<compile_context>
chip_gen: v5e
topology: v5e:2x2
jax: 0.10.0
libtpu: 0.0.40
codegen_flags: <defaults>
</compile_context>

<pallas_src>
import functools

import jax
import jax.numpy as jnp
from jax.experimental import pallas as pl
from jax.experimental.pallas import tpu as pltpu

_BN_EVAL_SCALE = float(1.0 / (1.0 + 1e-5) ** 0.5)   # BatchNorm eval, init stats
_LN_EPS = 1e-5


# ----------------------------------------------------------------------------
# In-kernel helpers (all operate on VMEM-resident values)
# ----------------------------------------------------------------------------

def _leaky(x):
    return jnp.where(x >= 0, x, 0.01 * x)


def _sigmoid(x):
    # 1 / (1 + exp(-x)) with the divide on the EUP (approx reciprocal).
    return pl.reciprocal(1.0 + jnp.exp(-x), approx=True)


def _mm(a, b):
    return jax.lax.dot_general(a, b, (((1,), (0,)), ((), ())),
                               preferred_element_type=jnp.float32)


def _mm_tn(a, b):  # a^T @ b   (contract dim 0 of both; pl.dot trans_a form)
    return jax.lax.dot_general(a, b, (((0,), (0,)), ((), ())),
                               preferred_element_type=jnp.float32)


def _mm_nt(a, b):  # a @ b^T   (contract dim 1 of both; pl.dot trans_b form)
    return jax.lax.dot_general(a, b, (((1,), (1,)), ((), ())),
                               preferred_element_type=jnp.float32)


def _shift_back(x, mfirst):
    """Value at time l-1 (0 at l == 0).  Lanes are (batch, time) flattened;
    mfirst also kills the cross-batch leak lanes."""
    xs = jnp.concatenate([x[:, :1], x[:, :-1]], axis=1)
    return xs * mfirst


def _shift_fwd(x, mlast):
    """Value at time l+1 (0 at l == L-1)."""
    xs = jnp.concatenate([x[:, 1:], x[:, -1:]], axis=1)
    return xs * mlast


def _st_block(x, mf, ml, W1L, b1L, WtL, btL, BigW, bgL, F1L, F2L, wT, bpT, vT,
              *, B, N, Co, L):
    """One ST_BLOCK_1 (eval mode) in the (node*channel, batch*time) layout."""
    NC = N * Co

    # ---- 1x1 conv (residual branch): node-block-diagonal lifted weight ------
    x_in = _mm(W1L, x) + b1L                                   # (N*Co, B*L)

    # ---- (1,Kt) temporal conv, padding (0,1): im2col over the 3 taps --------
    ts = jnp.concatenate([_shift_back(x, mf), x, _shift_fwd(x, ml)], axis=0)
    t = _leaky(_mm(WtL, ts) + btL)                             # (N*Co, B*L)

    # ---- K-order Chebyshev graph conv + (1,Kt) conv (Chebyshev folded) ------
    gs = jnp.concatenate([_shift_back(t, mf), t, _shift_fwd(t, ml)], axis=0)
    gc = _mm(BigW, gs) + bgL                                   # (2*N*Co, B*L)

    # ---- GLU gate ------------------------------------------------------------
    x1 = _sigmoid(gc[NC:, :]) * _leaky(gc[:NC, :])             # (N*Co, B*L)

    # ---- temporal attention (TATT_1) ------------------------------------------
    f1 = _mm(F1L, x1)                                          # (N,  B*L)
    f2 = _mm(F2L, x1)                                          # (Co, B*L)
    U = _mm(wT, f1)                                            # (Co, B*L)

    cnt = float(NC * L)
    outs = []
    for b in range(B):
        sl = slice(b * L, (b + 1) * L)
        # lgT[a, m] = sum_c f2[c, a] * U[c, m]   ( == logits[m, a] )
        lgT = _mm_tn(f2[:, sl], U[:, sl])                      # (L, L)
        Mt = _sigmoid(lgT + bpT)
        Y = _mm(Mt, vT) * _BN_EVAL_SCALE                       # (L, L)
        # softmax over the *first* time index of the reference logits
        Y = Y - jnp.max(Y, axis=-1, keepdims=True)
        e = jnp.exp(Y)
        coef = e * pl.reciprocal(jnp.sum(e, axis=-1, keepdims=True), approx=True)
        # out[.., a] = sum_e x1[.., e] * coef[a, e]
        xatt = _mm_nt(x1[:, sl], coef)                         # (N*Co, L)

        # ---- residual + LayerNorm([Co, N, L]) per batch (single pass) -------
        y = _leaky(xatt) + x_in[:, sl]
        s1 = jnp.sum(jnp.sum(y, axis=1, keepdims=True), axis=0, keepdims=True)
        s2 = jnp.sum(jnp.sum(y * y, axis=1, keepdims=True), axis=0, keepdims=True)
        mean = s1 / cnt
        var = s2 / cnt - mean * mean
        outs.append((y - mean) * jax.lax.rsqrt(var + _LN_EPS))
    return jnp.concatenate(outs, axis=-1)                      # (N*Co, B*L)


def _make_kernel(B, N, L, Co):
    def kernel(x_ref, mf_ref, ml_ref,
               w1l1, b1l1, wtl1, btl1, bw1, bgl1, f1l1, f2l1, wt1, bpt1, vt1,
               w1l2, b1l2, wtl2, btl2, bw2, bgl2, f1l2, f2l2, wt2, bpt2, vt2,
               w5_ref, g_ref, btot_ref, out_ref):
        mf = mf_ref[...]
        ml = ml_ref[...]
        x = _st_block(x_ref[...], mf, ml, w1l1[...], b1l1[...], wtl1[...],
                      btl1[...], bw1[...], bgl1[...], f1l1[...], f2l1[...],
                      wt1[...], bpt1[...], vt1[...], B=B, N=N, Co=Co, L=L)
        x = _st_block(x, mf, ml, w1l2[...], b1l2[...], wtl2[...], btl2[...],
                      bw2[...], bgl2[...], f1l2[...], f2l2[...], wt2[...],
                      bpt2[...], vt2[...], B=B, N=N, Co=Co, L=L)

        # ---- output head: conv1/2/3 (12-step slices) + conv4 (1,2) stride 2 --
        h5 = _mm(w5_ref[...], x)                               # (5*N, B*L)
        g = g_ref[...]                                         # (5, L, 12)
        btot = btot_ref[...]                                   # (1, 1)
        for b in range(B):
            hb = h5[:, b * L:(b + 1) * L]
            acc = None
            for i in range(5):
                term = _mm(hb[i * N:(i + 1) * N, :], g[i])     # (N, 12)
                acc = term if acc is None else acc + term
            out_ref[b] = acc + btot
    return kernel


# ----------------------------------------------------------------------------
# Wrapper: weight lifting / adjacency work in plain XLA + one pallas_call
# ----------------------------------------------------------------------------

def _prep_block(p, T, *, N, L, K, Kt):
    f32 = jnp.float32
    Co, Ci = p['conv1_w'].shape
    eyeN = jnp.eye(N, dtype=f32)
    eyeC = jnp.eye(Co, dtype=f32)

    # 1x1 conv: rows (n, o), cols (n', c)
    W1 = p['conv1_w'].astype(f32)
    W1L = jnp.einsum('nm,oc->nomc', eyeN, W1).reshape(N * Co, N * Ci)
    b1L = jnp.tile(p['conv1_b'].astype(f32), N).reshape(N * Co, 1)

    # (1,Kt) temporal conv: rows (n, o), cols (dt, n', c)
    Wt = p['time_w'].astype(f32)                                       # (Co,Ci,Kt)
    WtL = jnp.einsum('nm,ocd->nodmc', eyeN, Wt).reshape(N * Co, Kt * N * Ci)
    btL = jnp.tile(p['time_b'].astype(f32), N).reshape(N * Co, 1)

    # Chebyshev graph conv folded with the (1,Kt) conv:
    # BigW[(h,q,o),(d,n,c)] = sum_k gcn_w[h*Co+o, c*K+k, d] * T_k[q, n]
    Wg = p['gcn_w'].astype(f32).reshape(2 * Co, Co, K, Kt)             # (o,c,k,d)
    BW = jnp.einsum('ockd,kqn->qodnc', Wg, T)                          # (q,2Co,d,n,c)
    BW = BW.reshape(N, 2, Co, Kt, N, Co).transpose(1, 0, 2, 3, 4, 5)
    BigW = BW.reshape(2 * N * Co, Kt * N * Co)
    bg = p['gcn_b'].astype(f32).reshape(2, 1, Co)
    bgL = jnp.tile(bg, (1, N, 1)).reshape(2 * N * Co, 1)

    # temporal attention lifts
    ta = p['tatt']
    F1L = jnp.einsum('nm,c->nmc', eyeN, ta['w1'].astype(f32)).reshape(N, N * Co)
    F2L = jnp.einsum('n,cd->cnd', ta['w2'].astype(f32), eyeC).reshape(Co, N * Co)
    wT = ta['w'].astype(f32).T                                         # (Co, N)
    bpT = ta['b'].astype(f32).T                                        # (L, L)
    vT = ta['v'].astype(f32).T                                         # (L, L)
    return (W1L, b1L, WtL, btL, BigW, bgL, F1L, F2L, wT, bpT, vT)


def dgcn_mask_forward(params, x_w, x_d, x_r, supports, *, K, Kt):
    f32 = jnp.float32
    # BatchNorm2d(c_in, affine=False) eval with init running stats + concat.
    x = jnp.concatenate([x_w, x_d, x_r], axis=-1).astype(f32) * _BN_EVAL_SCALE
    B, Cin, N, L = x.shape
    assert L == 60, "forward's output-head slicing requires tem_size == 60"
    # kernel layout: rows = (node, channel), lanes = (batch, time)
    x2d = jnp.transpose(x, (2, 1, 0, 3)).reshape(N * Cin, B * L)

    # ---- (8,8) adjacency + Chebyshev polynomials in plain XLA ----
    A = params['h'].astype(f32) * supports.astype(f32)
    d = 1.0 / (jnp.sum(A, axis=-1) + 1e-4)
    A1 = d[:, None] * A
    polys = [jnp.eye(N, dtype=f32), A1]
    for _ in range(2, K):
        polys.append(2.0 * (A1 @ polys[-1]) - polys[-2])
    T = jnp.stack(polys, axis=0)                                       # (K, N, N)

    d_model = params['conv1_w'].shape[1]
    blk1 = _prep_block(params['block1'], T, N=N, L=L, K=K, Kt=Kt)
    blk2 = _prep_block(params['block2'], T, N=N, L=L, K=K, Kt=Kt)

    # edge masks for the (1,Kt) convs (zero the padded taps / batch boundaries)
    lane = jnp.arange(B * L) % L
    mf = (lane != 0).astype(f32).reshape(1, B * L)
    ml = (lane != L - 1).astype(f32).reshape(1, B * L)

    # ---- output head: stacked channel weights + time-selection matrices ----
    eyeN = jnp.eye(N, dtype=f32)
    tw = jnp.stack([params['conv1_w'][0], params['conv2_w'][0],
                    params['conv3_w'][0], params['conv4_w'][0, :, 0],
                    params['conv4_w'][0, :, 1]], axis=0).astype(f32)   # (5, C)
    W5 = jnp.einsum('nm,ic->inmc', eyeN, tw).reshape(5 * N, N * d_model)
    l_idx = jnp.arange(L)[:, None]
    t_idx = jnp.arange(12)[None, :]
    G = jnp.stack([(l_idx == t_idx), (l_idx == 12 + t_idx),
                   (l_idx == 24 + t_idx), (l_idx == 36 + 2 * t_idx),
                   (l_idx == 37 + 2 * t_idx)], axis=0).astype(f32)     # (5, L, 12)
    btot = (params['conv1_b'] + params['conv2_b'] + params['conv3_b']
            + params['conv4_b']).reshape(1, 1).astype(f32)

    kernel = _make_kernel(B, N, L, d_model)
    out = pl.pallas_call(
        kernel,
        out_shape=jax.ShapeDtypeStruct((B, N, 12), f32),
        compiler_params=pltpu.CompilerParams(
            vmem_limit_bytes=32 * 1024 * 1024),
    )(x2d, mf, ml, *blk1, *blk2, W5, G, btot)

    return out, A1, A1          # block2 returns its `supports` (= A1) as d_adj


# ----------------------------------------------------------------------------
# Deterministic synthetic parameters
# ----------------------------------------------------------------------------

def init_params(key, c_in, d_model, num_nodes, tem_size, K, Kt):
    keys = iter(jax.random.split(key, 40))

    def nrm(shape, scale=0.1):
        return (scale * jax.random.normal(next(keys), shape)).astype(jnp.float32)

    def block_params(ci, co):
        return dict(
            conv1_w=nrm((co, ci)), conv1_b=nrm((co,)),
            time_w=nrm((co, ci, Kt)), time_b=nrm((co,)),
            gcn_w=nrm((2 * co, K * co, Kt)), gcn_b=nrm((2 * co,)),
            tatt=dict(
                w1=nrm((co,)),
                w2=nrm((num_nodes,)),
                w=nrm((num_nodes, co)),
                b=jnp.zeros((tem_size, tem_size), jnp.float32),
                v=nrm((tem_size, tem_size)),
            ),
        )

    return dict(
        block1=block_params(c_in, d_model),
        block2=block_params(d_model, d_model),
        conv1_w=nrm((1, d_model)), conv1_b=nrm((1,)),
        conv2_w=nrm((1, d_model)), conv2_b=nrm((1,)),
        conv3_w=nrm((1, d_model)), conv3_b=nrm((1,)),
        conv4_w=nrm((1, d_model, 2)), conv4_b=nrm((1,)),
        h=jax.random.uniform(next(keys), (num_nodes, num_nodes),
                             minval=0.0, maxval=1e-4).astype(jnp.float32),
    )


# ----------------------------------------------------------------------------
# Main
# ----------------------------------------------------------------------------

if __name__ == "__main__":
    B, c_in, d_model = 2, 2, 16
    num_nodes = 8
    week, day, recent = 12, 12, 36          # forward's slices require tem_size=60
    K, Kt = 3, 3
    tem_size = week + day + recent

    params = init_params(jax.random.PRNGKey(42),
                         c_in, d_model, num_nodes, tem_size, K, Kt)

    k1, k2, k3, k4 = jax.random.split(jax.random.PRNGKey(0), 4)
    x_w = jax.random.normal(k1, (B, c_in, num_nodes, week), jnp.float32)
    x_d = jax.random.normal(k2, (B, c_in, num_nodes, day), jnp.float32)
    x_r = jax.random.normal(k3, (B, c_in, num_nodes, recent), jnp.float32)
    supports = jax.random.uniform(k4, (num_nodes, num_nodes), jnp.float32)

    fwd = jax.jit(functools.partial(dgcn_mask_forward, K=K, Kt=Kt))
    out, d_adj, A1 = fwd(params, x_w, x_d, x_r, supports)
    jax.block_until_ready((out, d_adj, A1))

    assert out.shape == (B, num_nodes, 12)
    assert d_adj.shape == (num_nodes, num_nodes)
    assert A1.shape == (num_nodes, num_nodes)
    assert bool(jnp.all(jnp.isfinite(out)))
    print("KERNEL_OK")
</pallas_src>

<mosaic_0001>
module attributes {stable_mosaic.version = 11 : i64} {
  func.func @kernel(%arg0: memref<16x120xf32, #tpu.memory_space<vmem>>, %arg1: memref<1x120xf32, #tpu.memory_space<vmem>>, %arg2: memref<1x120xf32, #tpu.memory_space<vmem>>, %arg3: memref<128x16xf32, #tpu.memory_space<vmem>>, %arg4: memref<128x1xf32, #tpu.memory_space<vmem>>, %arg5: memref<128x48xf32, #tpu.memory_space<vmem>>, %arg6: memref<128x1xf32, #tpu.memory_space<vmem>>, %arg7: memref<256x384xf32, #tpu.memory_space<vmem>>, %arg8: memref<256x1xf32, #tpu.memory_space<vmem>>, %arg9: memref<8x128xf32, #tpu.memory_space<vmem>>, %arg10: memref<16x128xf32, #tpu.memory_space<vmem>>, %arg11: memref<16x8xf32, #tpu.memory_space<vmem>>, %arg12: memref<60x60xf32, #tpu.memory_space<vmem>>, %arg13: memref<60x60xf32, #tpu.memory_space<vmem>>, %arg14: memref<128x128xf32, #tpu.memory_space<vmem>>, %arg15: memref<128x1xf32, #tpu.memory_space<vmem>>, %arg16: memref<128x384xf32, #tpu.memory_space<vmem>>, %arg17: memref<128x1xf32, #tpu.memory_space<vmem>>, %arg18: memref<256x384xf32, #tpu.memory_space<vmem>>, %arg19: memref<256x1xf32, #tpu.memory_space<vmem>>, %arg20: memref<8x128xf32, #tpu.memory_space<vmem>>, %arg21: memref<16x128xf32, #tpu.memory_space<vmem>>, %arg22: memref<16x8xf32, #tpu.memory_space<vmem>>, %arg23: memref<60x60xf32, #tpu.memory_space<vmem>>, %arg24: memref<60x60xf32, #tpu.memory_space<vmem>>, %arg25: memref<40x128xf32, #tpu.memory_space<vmem>>, %arg26: memref<5x60x12xf32, #tpu.memory_space<vmem>>, %arg27: memref<1x1xf32, #tpu.memory_space<vmem>>, %arg28: memref<2x8x12xf32, #tpu.memory_space<vmem>>) attributes {dimension_semantics = [], scalar_prefetch = 0 : i64, scratch_operands = 0 : i64, tpu.core_type = #tpu.core_type<tc>} {
    %c0 = arith.constant 0 : index
    %c0_0 = arith.constant 0 : index
    %0 = vector.load %arg1[%c0, %c0_0] : memref<1x120xf32, #tpu.memory_space<vmem>>, vector<1x120xf32>
    %c0_1 = arith.constant 0 : index
    %c0_2 = arith.constant 0 : index
    %1 = vector.load %arg2[%c0_1, %c0_2] : memref<1x120xf32, #tpu.memory_space<vmem>>, vector<1x120xf32>
    %c0_3 = arith.constant 0 : index
    %c0_4 = arith.constant 0 : index
    %2 = vector.load %arg0[%c0_3, %c0_4] : memref<16x120xf32, #tpu.memory_space<vmem>>, vector<16x120xf32>
    %c0_5 = arith.constant 0 : index
    %c0_6 = arith.constant 0 : index
    %3 = vector.load %arg3[%c0_5, %c0_6] : memref<128x16xf32, #tpu.memory_space<vmem>>, vector<128x16xf32>
    %c0_7 = arith.constant 0 : index
    %c0_8 = arith.constant 0 : index
    %4 = vector.load %arg4[%c0_7, %c0_8] : memref<128x1xf32, #tpu.memory_space<vmem>>, vector<128x1xf32>
    %c0_9 = arith.constant 0 : index
    %c0_10 = arith.constant 0 : index
    %5 = vector.load %arg5[%c0_9, %c0_10] : memref<128x48xf32, #tpu.memory_space<vmem>>, vector<128x48xf32>
    %c0_11 = arith.constant 0 : index
    %c0_12 = arith.constant 0 : index
    %6 = vector.load %arg6[%c0_11, %c0_12] : memref<128x1xf32, #tpu.memory_space<vmem>>, vector<128x1xf32>
    %c0_13 = arith.constant 0 : index
    %c0_14 = arith.constant 0 : index
    %7 = vector.load %arg7[%c0_13, %c0_14] : memref<256x384xf32, #tpu.memory_space<vmem>>, vector<256x384xf32>
    %c0_15 = arith.constant 0 : index
    %c0_16 = arith.constant 0 : index
    %8 = vector.load %arg8[%c0_15, %c0_16] : memref<256x1xf32, #tpu.memory_space<vmem>>, vector<256x1xf32>
    %c0_17 = arith.constant 0 : index
    %c0_18 = arith.constant 0 : index
    %9 = vector.load %arg9[%c0_17, %c0_18] : memref<8x128xf32, #tpu.memory_space<vmem>>, vector<8x128xf32>
    %c0_19 = arith.constant 0 : index
    %c0_20 = arith.constant 0 : index
    %10 = vector.load %arg10[%c0_19, %c0_20] : memref<16x128xf32, #tpu.memory_space<vmem>>, vector<16x128xf32>
    %c0_21 = arith.constant 0 : index
    %c0_22 = arith.constant 0 : index
    %11 = vector.load %arg11[%c0_21, %c0_22] : memref<16x8xf32, #tpu.memory_space<vmem>>, vector<16x8xf32>
    %c0_23 = arith.constant 0 : index
    %c0_24 = arith.constant 0 : index
    %12 = vector.load %arg12[%c0_23, %c0_24] : memref<60x60xf32, #tpu.memory_space<vmem>>, vector<60x60xf32>
    %c0_25 = arith.constant 0 : index
    %c0_26 = arith.constant 0 : index
    %13 = vector.load %arg13[%c0_25, %c0_26] : memref<60x60xf32, #tpu.memory_space<vmem>>, vector<60x60xf32>
    %cst = arith.constant dense<0.000000e+00> : vector<128x120xf32>
    %14 = tpu.matmul %3, %2, %cst {dimension_numbers = #tpu.dot_dimension_numbers<[1], [0], [0], [1], [0, 0, 1, 1], [], []>} : vector<128x16xf32>, vector<16x120xf32>, vector<128x120xf32> -> vector<128x120xf32>
    %15 = vector.broadcast %4 : vector<128x1xf32> to vector<128x120xf32>
    %16 = arith.addf %14, %15 : vector<128x120xf32>
    %17 = vector.extract_strided_slice %2 {offsets = [0, 0], sizes = [16, 1], strides = [1, 1]} : vector<16x120xf32> to vector<16x1xf32>
    %18 = vector.extract_strided_slice %2 {offsets = [0, 0], sizes = [16, 119], strides = [1, 1]} : vector<16x120xf32> to vector<16x119xf32>
    %19 = tpu.concatenate %17, %18 in 1 : vector<16x1xf32>, vector<16x119xf32> -> vector<16x120xf32>
    %20 = vector.broadcast %0 : vector<1x120xf32> to vector<16x120xf32>
    %21 = arith.mulf %19, %20 : vector<16x120xf32>
    %22 = vector.extract_strided_slice %2 {offsets = [0, 1], sizes = [16, 119], strides = [1, 1]} : vector<16x120xf32> to vector<16x119xf32>
    %23 = vector.extract_strided_slice %2 {offsets = [0, 119], sizes = [16, 1], strides = [1, 1]} : vector<16x120xf32> to vector<16x1xf32>
    %24 = tpu.concatenate %22, %23 in 1 : vector<16x119xf32>, vector<16x1xf32> -> vector<16x120xf32>
    %25 = vector.broadcast %1 : vector<1x120xf32> to vector<16x120xf32>
    %26 = arith.mulf %24, %25 : vector<16x120xf32>
    %27 = tpu.concatenate %21, %2, %26 in 0 : vector<16x120xf32>, vector<16x120xf32>, vector<16x120xf32> -> vector<48x120xf32>
    %cst_27 = arith.constant dense<0.000000e+00> : vector<128x120xf32>
    %28 = tpu.matmul %5, %27, %cst_27 {dimension_numbers = #tpu.dot_dimension_numbers<[1], [0], [0], [1], [0, 0, 1, 1], [], []>} : vector<128x48xf32>, vector<48x120xf32>, vector<128x120xf32> -> vector<128x120xf32>
    %29 = vector.broadcast %6 : vector<128x1xf32> to vector<128x120xf32>
    %30 = arith.addf %28, %29 : vector<128x120xf32>
    %cst_28 = arith.constant 0.000000e+00 : f32
    %31 = vector.broadcast %cst_28 : f32 to vector<128x120xf32>
    %32 = arith.cmpf oge, %30, %31 : vector<128x120xf32>
    %cst_29 = arith.constant 0.00999999977 : f32
    %33 = vector.broadcast %cst_29 : f32 to vector<128x120xf32>
    %34 = arith.mulf %33, %30 : vector<128x120xf32>
    %35 = arith.select %32, %30, %34 : vector<128x120xi1>, vector<128x120xf32>
    %36 = vector.extract_strided_slice %35 {offsets = [0, 0], sizes = [128, 1], strides = [1, 1]} : vector<128x120xf32> to vector<128x1xf32>
    %37 = vector.extract_strided_slice %35 {offsets = [0, 0], sizes = [128, 119], strides = [1, 1]} : vector<128x120xf32> to vector<128x119xf32>
    %38 = tpu.concatenate %36, %37 in 1 : vector<128x1xf32>, vector<128x119xf32> -> vector<128x120xf32>
    %39 = vector.broadcast %0 : vector<1x120xf32> to vector<128x120xf32>
    %40 = arith.mulf %38, %39 : vector<128x120xf32>
    %41 = vector.extract_strided_slice %35 {offsets = [0, 1], sizes = [128, 119], strides = [1, 1]} : vector<128x120xf32> to vector<128x119xf32>
    %42 = vector.extract_strided_slice %35 {offsets = [0, 119], sizes = [128, 1], strides = [1, 1]} : vector<128x120xf32> to vector<128x1xf32>
    %43 = tpu.concatenate %41, %42 in 1 : vector<128x119xf32>, vector<128x1xf32> -> vector<128x120xf32>
    %44 = vector.broadcast %1 : vector<1x120xf32> to vector<128x120xf32>
    %45 = arith.mulf %43, %44 : vector<128x120xf32>
    %46 = tpu.concatenate %40, %35, %45 in 0 : vector<128x120xf32>, vector<128x120xf32>, vector<128x120xf32> -> vector<384x120xf32>
    %cst_30 = arith.constant dense<0.000000e+00> : vector<256x120xf32>
    %47 = tpu.matmul %7, %46, %cst_30 {dimension_numbers = #tpu.dot_dimension_numbers<[1], [0], [0], [1], [0, 0, 1, 1], [], []>} : vector<256x384xf32>, vector<384x120xf32>, vector<256x120xf32> -> vector<256x120xf32>
    %48 = vector.broadcast %8 : vector<256x1xf32> to vector<256x120xf32>
    %49 = arith.addf %47, %48 : vector<256x120xf32>
    %50 = vector.extract_strided_slice %49 {offsets = [128, 0], sizes = [128, 120], strides = [1, 1]} : vector<256x120xf32> to vector<128x120xf32>
    %cst_31 = arith.constant 0.000000e+00 : f32
    %51 = vector.broadcast %cst_31 : f32 to vector<128x120xf32>
    %52 = arith.subf %51, %50 : vector<128x120xf32>
    %53 = math.exp %52 : vector<128x120xf32>
    %cst_32 = arith.constant 1.000000e+00 : f32
    %54 = vector.broadcast %cst_32 : f32 to vector<128x120xf32>
    %55 = arith.addf %54, %53 : vector<128x120xf32>
    %56 = tpu.reciprocal %55 {approx = true} : vector<128x120xf32> -> vector<128x120xf32>
    %57 = vector.extract_strided_slice %49 {offsets = [0, 0], sizes = [128, 120], strides = [1, 1]} : vector<256x120xf32> to vector<128x120xf32>
    %cst_33 = arith.constant 0.000000e+00 : f32
    %58 = vector.broadcast %cst_33 : f32 to vector<128x120xf32>
    %59 = arith.cmpf oge, %57, %58 : vector<128x120xf32>
    %cst_34 = arith.constant 0.00999999977 : f32
    %60 = vector.broadcast %cst_34 : f32 to vector<128x120xf32>
    %61 = arith.mulf %60, %57 : vector<128x120xf32>
    %62 = arith.select %59, %57, %61 : vector<128x120xi1>, vector<128x120xf32>
    %63 = arith.mulf %56, %62 : vector<128x120xf32>
    %cst_35 = arith.constant dense<0.000000e+00> : vector<8x120xf32>
    %64 = tpu.matmul %9, %63, %cst_35 {dimension_numbers = #tpu.dot_dimension_numbers<[1], [0], [0], [1], [0, 0, 1, 1], [], []>} : vector<8x128xf32>, vector<128x120xf32>, vector<8x120xf32> -> vector<8x120xf32>
    %cst_36 = arith.constant dense<0.000000e+00> : vector<16x120xf32>
    %65 = tpu.matmul %10, %63, %cst_36 {dimension_numbers = #tpu.dot_dimension_numbers<[1], [0], [0], [1], [0, 0, 1, 1], [], []>} : vector<16x128xf32>, vector<128x120xf32>, vector<16x120xf32> -> vector<16x120xf32>
    %cst_37 = arith.constant dense<0.000000e+00> : vector<16x120xf32>
    %66 = tpu.matmul %11, %64, %cst_37 {dimension_numbers = #tpu.dot_dimension_numbers<[1], [0], [0], [1], [0, 0, 1, 1], [], []>} : vector<16x8xf32>, vector<8x120xf32>, vector<16x120xf32> -> vector<16x120xf32>
    %67 = vector.extract_strided_slice %65 {offsets = [0, 0], sizes = [16, 60], strides = [1, 1]} : vector<16x120xf32> to vector<16x60xf32>
    %68 = vector.extract_strided_slice %66 {offsets = [0, 0], sizes = [16, 60], strides = [1, 1]} : vector<16x120xf32> to vector<16x60xf32>
    %cst_38 = arith.constant dense<0.000000e+00> : vector<60x60xf32>
    %69 = tpu.matmul %67, %68, %cst_38 {dimension_numbers = #tpu.dot_dimension_numbers<[0], [0], [1], [1], [0, 1, 1, 1], [], []>} : vector<16x60xf32>, vector<16x60xf32>, vector<60x60xf32> -> vector<60x60xf32>
    %70 = arith.addf %69, %12 : vector<60x60xf32>
    %cst_39 = arith.constant 0.000000e+00 : f32
    %71 = vector.broadcast %cst_39 : f32 to vector<60x60xf32>
    %72 = arith.subf %71, %70 : vector<60x60xf32>
    %73 = math.exp %72 : vector<60x60xf32>
    %cst_40 = arith.constant 1.000000e+00 : f32
    %74 = vector.broadcast %cst_40 : f32 to vector<60x60xf32>
    %75 = arith.addf %74, %73 : vector<60x60xf32>
    %76 = tpu.reciprocal %75 {approx = true} : vector<60x60xf32> -> vector<60x60xf32>
    %cst_41 = arith.constant dense<0.000000e+00> : vector<60x60xf32>
    %77 = tpu.matmul %76, %13, %cst_41 {dimension_numbers = #tpu.dot_dimension_numbers<[1], [0], [0], [1], [0, 0, 1, 1], [], []>} : vector<60x60xf32>, vector<60x60xf32>, vector<60x60xf32> -> vector<60x60xf32>
    %cst_42 = arith.constant 0.999994993 : f32
    %78 = vector.broadcast %cst_42 : f32 to vector<60x60xf32>
    %79 = arith.mulf %77, %78 : vector<60x60xf32>
    %cst_43 = arith.constant dense<0xFF800000> : vector<60xf32>
    %80 = vector.multi_reduction <maximumf>, %79, %cst_43 [1] : vector<60x60xf32> to vector<60xf32>
    %81 = vector.shape_cast %80 : vector<60xf32> to vector<60x1xf32>
    %82 = vector.broadcast %81 : vector<60x1xf32> to vector<60x60xf32>
    %83 = arith.subf %79, %82 : vector<60x60xf32>
    %84 = math.exp %83 : vector<60x60xf32>
    %cst_44 = arith.constant dense<0.000000e+00> : vector<60xf32>
    %85 = vector.multi_reduction <add>, %84, %cst_44 [1] : vector<60x60xf32> to vector<60xf32>
    %86 = vector.shape_cast %85 : vector<60xf32> to vector<60x1xf32>
    %87 = tpu.reciprocal %86 {approx = true} : vector<60x1xf32> -> vector<60x1xf32>
    %88 = vector.broadcast %87 : vector<60x1xf32> to vector<60x60xf32>
    %89 = arith.mulf %84, %88 : vector<60x60xf32>
    %90 = vector.extract_strided_slice %63 {offsets = [0, 0], sizes = [128, 60], strides = [1, 1]} : vector<128x120xf32> to vector<128x60xf32>
    %cst_45 = arith.constant dense<0.000000e+00> : vector<128x60xf32>
    %91 = tpu.matmul %90, %89, %cst_45 {dimension_numbers = #tpu.dot_dimension_numbers<[1], [1], [0], [0], [0, 0, 1, 0], [], []>} : vector<128x60xf32>, vector<60x60xf32>, vector<128x60xf32> -> vector<128x60xf32>
    %cst_46 = arith.constant 0.000000e+00 : f32
    %92 = vector.broadcast %cst_46 : f32 to vector<128x60xf32>
    %93 = arith.cmpf oge, %91, %92 : vector<128x60xf32>
    %cst_47 = arith.constant 0.00999999977 : f32
    %94 = vector.broadcast %cst_47 : f32 to vector<128x60xf32>
    %95 = arith.mulf %94, %91 : vector<128x60xf32>
    %96 = arith.select %93, %91, %95 : vector<128x60xi1>, vector<128x60xf32>
    %97 = vector.extract_strided_slice %16 {offsets = [0, 0], sizes = [128, 60], strides = [1, 1]} : vector<128x120xf32> to vector<128x60xf32>
    %98 = arith.addf %96, %97 : vector<128x60xf32>
    %cst_48 = arith.constant dense<0.000000e+00> : vector<128xf32>
    %99 = vector.multi_reduction <add>, %98, %cst_48 [1] : vector<128x60xf32> to vector<128xf32>
    %100 = vector.shape_cast %99 : vector<128xf32> to vector<128x1xf32>
    %cst_49 = arith.constant dense<0.000000e+00> : vector<1xf32>
    %101 = vector.multi_reduction <add>, %100, %cst_49 [0] : vector<128x1xf32> to vector<1xf32>
    %102 = vector.shape_cast %101 : vector<1xf32> to vector<1x1xf32>
    %103 = arith.mulf %98, %98 : vector<128x60xf32>
    %cst_50 = arith.constant dense<0.000000e+00> : vector<128xf32>
    %104 = vector.multi_reduction <add>, %103, %cst_50 [1] : vector<128x60xf32> to vector<128xf32>
    %105 = vector.shape_cast %104 : vector<128xf32> to vector<128x1xf32>
    %cst_51 = arith.constant dense<0.000000e+00> : vector<1xf32>
    %106 = vector.multi_reduction <add>, %105, %cst_51 [0] : vector<128x1xf32> to vector<1xf32>
    %107 = vector.shape_cast %106 : vector<1xf32> to vector<1x1xf32>
    %cst_52 = arith.constant 7.680000e+03 : f32
    %108 = vector.broadcast %cst_52 : f32 to vector<1x1xf32>
    %109 = arith.divf %102, %108 : vector<1x1xf32>
    %cst_53 = arith.constant 7.680000e+03 : f32
    %110 = vector.broadcast %cst_53 : f32 to vector<1x1xf32>
    %111 = arith.divf %107, %110 : vector<1x1xf32>
    %112 = arith.mulf %109, %109 : vector<1x1xf32>
    %113 = arith.subf %111, %112 : vector<1x1xf32>
    %114 = vector.broadcast %109 : vector<1x1xf32> to vector<128x60xf32>
    %115 = arith.subf %98, %114 : vector<128x60xf32>
    %cst_54 = arith.constant 9.99999974E-6 : f32
    %116 = vector.broadcast %cst_54 : f32 to vector<1x1xf32>
    %117 = arith.addf %113, %116 : vector<1x1xf32>
    %118 = math.rsqrt %117 : vector<1x1xf32>
    %119 = vector.broadcast %118 : vector<1x1xf32> to vector<128x60xf32>
    %120 = arith.mulf %115, %119 : vector<128x60xf32>
    %121 = vector.extract_strided_slice %65 {offsets = [0, 60], sizes = [16, 60], strides = [1, 1]} : vector<16x120xf32> to vector<16x60xf32>
    %122 = vector.extract_strided_slice %66 {offsets = [0, 60], sizes = [16, 60], strides = [1, 1]} : vector<16x120xf32> to vector<16x60xf32>
    %cst_55 = arith.constant dense<0.000000e+00> : vector<60x60xf32>
    %123 = tpu.matmul %121, %122, %cst_55 {dimension_numbers = #tpu.dot_dimension_numbers<[0], [0], [1], [1], [0, 1, 1, 1], [], []>} : vector<16x60xf32>, vector<16x60xf32>, vector<60x60xf32> -> vector<60x60xf32>
    %124 = arith.addf %123, %12 : vector<60x60xf32>
    %cst_56 = arith.constant 0.000000e+00 : f32
    %125 = vector.broadcast %cst_56 : f32 to vector<60x60xf32>
    %126 = arith.subf %125, %124 : vector<60x60xf32>
    %127 = math.exp %126 : vector<60x60xf32>
    %cst_57 = arith.constant 1.000000e+00 : f32
    %128 = vector.broadcast %cst_57 : f32 to vector<60x60xf32>
    %129 = arith.addf %128, %127 : vector<60x60xf32>
    %130 = tpu.reciprocal %129 {approx = true} : vector<60x60xf32> -> vector<60x60xf32>
    %cst_58 = arith.constant dense<0.000000e+00> : vector<60x60xf32>
    %131 = tpu.matmul %130, %13, %cst_58 {dimension_numbers = #tpu.dot_dimension_numbers<[1], [0], [0], [1], [0, 0, 1, 1], [], []>} : vector<60x60xf32>, vector<60x60xf32>, vector<60x60xf32> -> vector<60x60xf32>
    %cst_59 = arith.constant 0.999994993 : f32
    %132 = vector.broadcast %cst_59 : f32 to vector<60x60xf32>
    %133 = arith.mulf %131, %132 : vector<60x60xf32>
    %cst_60 = arith.constant dense<0xFF800000> : vector<60xf32>
    %134 = vector.multi_reduction <maximumf>, %133, %cst_60 [1] : vector<60x60xf32> to vector<60xf32>
    %135 = vector.shape_cast %134 : vector<60xf32> to vector<60x1xf32>
    %136 = vector.broadcast %135 : vector<60x1xf32> to vector<60x60xf32>
    %137 = arith.subf %133, %136 : vector<60x60xf32>
    %138 = math.exp %137 : vector<60x60xf32>
    %cst_61 = arith.constant dense<0.000000e+00> : vector<60xf32>
    %139 = vector.multi_reduction <add>, %138, %cst_61 [1] : vector<60x60xf32> to vector<60xf32>
    %140 = vector.shape_cast %139 : vector<60xf32> to vector<60x1xf32>
    %141 = tpu.reciprocal %140 {approx = true} : vector<60x1xf32> -> vector<60x1xf32>
    %142 = vector.broadcast %141 : vector<60x1xf32> to vector<60x60xf32>
    %143 = arith.mulf %138, %142 : vector<60x60xf32>
    %144 = vector.extract_strided_slice %63 {offsets = [0, 60], sizes = [128, 60], strides = [1, 1]} : vector<128x120xf32> to vector<128x60xf32>
    %cst_62 = arith.constant dense<0.000000e+00> : vector<128x60xf32>
    %145 = tpu.matmul %144, %143, %cst_62 {dimension_numbers = #tpu.dot_dimension_numbers<[1], [1], [0], [0], [0, 0, 1, 0], [], []>} : vector<128x60xf32>, vector<60x60xf32>, vector<128x60xf32> -> vector<128x60xf32>
    %cst_63 = arith.constant 0.000000e+00 : f32
    %146 = vector.broadcast %cst_63 : f32 to vector<128x60xf32>
    %147 = arith.cmpf oge, %145, %146 : vector<128x60xf32>
    %cst_64 = arith.constant 0.00999999977 : f32
    %148 = vector.broadcast %cst_64 : f32 to vector<128x60xf32>
    %149 = arith.mulf %148, %145 : vector<128x60xf32>
    %150 = arith.select %147, %145, %149 : vector<128x60xi1>, vector<128x60xf32>
    %151 = vector.extract_strided_slice %16 {offsets = [0, 60], sizes = [128, 60], strides = [1, 1]} : vector<128x120xf32> to vector<128x60xf32>
    %152 = arith.addf %150, %151 : vector<128x60xf32>
    %cst_65 = arith.constant dense<0.000000e+00> : vector<128xf32>
    %153 = vector.multi_reduction <add>, %152, %cst_65 [1] : vector<128x60xf32> to vector<128xf32>
    %154 = vector.shape_cast %153 : vector<128xf32> to vector<128x1xf32>
    %cst_66 = arith.constant dense<0.000000e+00> : vector<1xf32>
    %155 = vector.multi_reduction <add>, %154, %cst_66 [0] : vector<128x1xf32> to vector<1xf32>
    %156 = vector.shape_cast %155 : vector<1xf32> to vector<1x1xf32>
    %157 = arith.mulf %152, %152 : vector<128x60xf32>
    %cst_67 = arith.constant dense<0.000000e+00> : vector<128xf32>
    %158 = vector.multi_reduction <add>, %157, %cst_67 [1] : vector<128x60xf32> to vector<128xf32>
    %159 = vector.shape_cast %158 : vector<128xf32> to vector<128x1xf32>
    %cst_68 = arith.constant dense<0.000000e+00> : vector<1xf32>
    %160 = vector.multi_reduction <add>, %159, %cst_68 [0] : vector<128x1xf32> to vector<1xf32>
    %161 = vector.shape_cast %160 : vector<1xf32> to vector<1x1xf32>
    %cst_69 = arith.constant 7.680000e+03 : f32
    %162 = vector.broadcast %cst_69 : f32 to vector<1x1xf32>
    %163 = arith.divf %156, %162 : vector<1x1xf32>
    %cst_70 = arith.constant 7.680000e+03 : f32
    %164 = vector.broadcast %cst_70 : f32 to vector<1x1xf32>
    %165 = arith.divf %161, %164 : vector<1x1xf32>
    %166 = arith.mulf %163, %163 : vector<1x1xf32>
    %167 = arith.subf %165, %166 : vector<1x1xf32>
    %168 = vector.broadcast %163 : vector<1x1xf32> to vector<128x60xf32>
    %169 = arith.subf %152, %168 : vector<128x60xf32>
    %cst_71 = arith.constant 9.99999974E-6 : f32
    %170 = vector.broadcast %cst_71 : f32 to vector<1x1xf32>
    %171 = arith.addf %167, %170 : vector<1x1xf32>
    %172 = math.rsqrt %171 : vector<1x1xf32>
    %173 = vector.broadcast %172 : vector<1x1xf32> to vector<128x60xf32>
    %174 = arith.mulf %169, %173 : vector<128x60xf32>
    %175 = tpu.concatenate %120, %174 in 1 : vector<128x60xf32>, vector<128x60xf32> -> vector<128x120xf32>
    %c0_72 = arith.constant 0 : index
    %c0_73 = arith.constant 0 : index
    %176 = vector.load %arg14[%c0_72, %c0_73] : memref<128x128xf32, #tpu.memory_space<vmem>>, vector<128x128xf32>
    %c0_74 = arith.constant 0 : index
    %c0_75 = arith.constant 0 : index
    %177 = vector.load %arg15[%c0_74, %c0_75] : memref<128x1xf32, #tpu.memory_space<vmem>>, vector<128x1xf32>
    %c0_76 = arith.constant 0 : index
    %c0_77 = arith.constant 0 : index
    %178 = vector.load %arg16[%c0_76, %c0_77] : memref<128x384xf32, #tpu.memory_space<vmem>>, vector<128x384xf32>
    %c0_78 = arith.constant 0 : index
    %c0_79 = arith.constant 0 : index
    %179 = vector.load %arg17[%c0_78, %c0_79] : memref<128x1xf32, #tpu.memory_space<vmem>>, vector<128x1xf32>
    %c0_80 = arith.constant 0 : index
    %c0_81 = arith.constant 0 : index
    %180 = vector.load %arg18[%c0_80, %c0_81] : memref<256x384xf32, #tpu.memory_space<vmem>>, vector<256x384xf32>
    %c0_82 = arith.constant 0 : index
    %c0_83 = arith.constant 0 : index
    %181 = vector.load %arg19[%c0_82, %c0_83] : memref<256x1xf32, #tpu.memory_space<vmem>>, vector<256x1xf32>
    %c0_84 = arith.constant 0 : index
    %c0_85 = arith.constant 0 : index
    %182 = vector.load %arg20[%c0_84, %c0_85] : memref<8x128xf32, #tpu.memory_space<vmem>>, vector<8x128xf32>
    %c0_86 = arith.constant 0 : index
    %c0_87 = arith.constant 0 : index
    %183 = vector.load %arg21[%c0_86, %c0_87] : memref<16x128xf32, #tpu.memory_space<vmem>>, vector<16x128xf32>
    %c0_88 = arith.constant 0 : index
    %c0_89 = arith.constant 0 : index
    %184 = vector.load %arg22[%c0_88, %c0_89] : memref<16x8xf32, #tpu.memory_space<vmem>>, vector<16x8xf32>
    %c0_90 = arith.constant 0 : index
    %c0_91 = arith.constant 0 : index
    %185 = vector.load %arg23[%c0_90, %c0_91] : memref<60x60xf32, #tpu.memory_space<vmem>>, vector<60x60xf32>
    %c0_92 = arith.constant 0 : index
    %c0_93 = arith.constant 0 : index
    %186 = vector.load %arg24[%c0_92, %c0_93] : memref<60x60xf32, #tpu.memory_space<vmem>>, vector<60x60xf32>
    %cst_94 = arith.constant dense<0.000000e+00> : vector<128x120xf32>
    %187 = tpu.matmul %176, %175, %cst_94 {dimension_numbers = #tpu.dot_dimension_numbers<[1], [0], [0], [1], [0, 0, 1, 1], [], []>} : vector<128x128xf32>, vector<128x120xf32>, vector<128x120xf32> -> vector<128x120xf32>
    %188 = vector.broadcast %177 : vector<128x1xf32> to vector<128x120xf32>
    %189 = arith.addf %187, %188 : vector<128x120xf32>
    %190 = vector.extract_strided_slice %175 {offsets = [0, 0], sizes = [128, 1], strides = [1, 1]} : vector<128x120xf32> to vector<128x1xf32>
    %191 = vector.extract_strided_slice %175 {offsets = [0, 0], sizes = [128, 119], strides = [1, 1]} : vector<128x120xf32> to vector<128x119xf32>
    %192 = tpu.concatenate %190, %191 in 1 : vector<128x1xf32>, vector<128x119xf32> -> vector<128x120xf32>
    %193 = vector.broadcast %0 : vector<1x120xf32> to vector<128x120xf32>
    %194 = arith.mulf %192, %193 : vector<128x120xf32>
    %195 = vector.extract_strided_slice %175 {offsets = [0, 1], sizes = [128, 119], strides = [1, 1]} : vector<128x120xf32> to vector<128x119xf32>
    %196 = vector.extract_strided_slice %175 {offsets = [0, 119], sizes = [128, 1], strides = [1, 1]} : vector<128x120xf32> to vector<128x1xf32>
    %197 = tpu.concatenate %195, %196 in 1 : vector<128x119xf32>, vector<128x1xf32> -> vector<128x120xf32>
    %198 = vector.broadcast %1 : vector<1x120xf32> to vector<128x120xf32>
    %199 = arith.mulf %197, %198 : vector<128x120xf32>
    %200 = tpu.concatenate %194, %175, %199 in 0 : vector<128x120xf32>, vector<128x120xf32>, vector<128x120xf32> -> vector<384x120xf32>
    %cst_95 = arith.constant dense<0.000000e+00> : vector<128x120xf32>
    %201 = tpu.matmul %178, %200, %cst_95 {dimension_numbers = #tpu.dot_dimension_numbers<[1], [0], [0], [1], [0, 0, 1, 1], [], []>} : vector<128x384xf32>, vector<384x120xf32>, vector<128x120xf32> -> vector<128x120xf32>
    %202 = vector.broadcast %179 : vector<128x1xf32> to vector<128x120xf32>
    %203 = arith.addf %201, %202 : vector<128x120xf32>
    %cst_96 = arith.constant 0.000000e+00 : f32
    %204 = vector.broadcast %cst_96 : f32 to vector<128x120xf32>
    %205 = arith.cmpf oge, %203, %204 : vector<128x120xf32>
    %cst_97 = arith.constant 0.00999999977 : f32
    %206 = vector.broadcast %cst_97 : f32 to vector<128x120xf32>
    %207 = arith.mulf %206, %203 : vector<128x120xf32>
    %208 = arith.select %205, %203, %207 : vector<128x120xi1>, vector<128x120xf32>
    %209 = vector.extract_strided_slice %208 {offsets = [0, 0], sizes = [128, 1], strides = [1, 1]} : vector<128x120xf32> to vector<128x1xf32>
    %210 = vector.extract_strided_slice %208 {offsets = [0, 0], sizes = [128, 119], strides = [1, 1]} : vector<128x120xf32> to vector<128x119xf32>
    %211 = tpu.concatenate %209, %210 in 1 : vector<128x1xf32>, vector<128x119xf32> -> vector<128x120xf32>
    %212 = vector.broadcast %0 : vector<1x120xf32> to vector<128x120xf32>
    %213 = arith.mulf %211, %212 : vector<128x120xf32>
    %214 = vector.extract_strided_slice %208 {offsets = [0, 1], sizes = [128, 119], strides = [1, 1]} : vector<128x120xf32> to vector<128x119xf32>
    %215 = vector.extract_strided_slice %208 {offsets = [0, 119], sizes = [128, 1], strides = [1, 1]} : vector<128x120xf32> to vector<128x1xf32>
    %216 = tpu.concatenate %214, %215 in 1 : vector<128x119xf32>, vector<128x1xf32> -> vector<128x120xf32>
    %217 = vector.broadcast %1 : vector<1x120xf32> to vector<128x120xf32>
    %218 = arith.mulf %216, %217 : vector<128x120xf32>
    %219 = tpu.concatenate %213, %208, %218 in 0 : vector<128x120xf32>, vector<128x120xf32>, vector<128x120xf32> -> vector<384x120xf32>
    %cst_98 = arith.constant dense<0.000000e+00> : vector<256x120xf32>
    %220 = tpu.matmul %180, %219, %cst_98 {dimension_numbers = #tpu.dot_dimension_numbers<[1], [0], [0], [1], [0, 0, 1, 1], [], []>} : vector<256x384xf32>, vector<384x120xf32>, vector<256x120xf32> -> vector<256x120xf32>
    %221 = vector.broadcast %181 : vector<256x1xf32> to vector<256x120xf32>
    %222 = arith.addf %220, %221 : vector<256x120xf32>
    %223 = vector.extract_strided_slice %222 {offsets = [128, 0], sizes = [128, 120], strides = [1, 1]} : vector<256x120xf32> to vector<128x120xf32>
    %cst_99 = arith.constant 0.000000e+00 : f32
    %224 = vector.broadcast %cst_99 : f32 to vector<128x120xf32>
    %225 = arith.subf %224, %223 : vector<128x120xf32>
    %226 = math.exp %225 : vector<128x120xf32>
    %cst_100 = arith.constant 1.000000e+00 : f32
    %227 = vector.broadcast %cst_100 : f32 to vector<128x120xf32>
    %228 = arith.addf %227, %226 : vector<128x120xf32>
    %229 = tpu.reciprocal %228 {approx = true} : vector<128x120xf32> -> vector<128x120xf32>
    %230 = vector.extract_strided_slice %222 {offsets = [0, 0], sizes = [128, 120], strides = [1, 1]} : vector<256x120xf32> to vector<128x120xf32>
    %cst_101 = arith.constant 0.000000e+00 : f32
    %231 = vector.broadcast %cst_101 : f32 to vector<128x120xf32>
    %232 = arith.cmpf oge, %230, %231 : vector<128x120xf32>
    %cst_102 = arith.constant 0.00999999977 : f32
    %233 = vector.broadcast %cst_102 : f32 to vector<128x120xf32>
    %234 = arith.mulf %233, %230 : vector<128x120xf32>
    %235 = arith.select %232, %230, %234 : vector<128x120xi1>, vector<128x120xf32>
    %236 = arith.mulf %229, %235 : vector<128x120xf32>
    %cst_103 = arith.constant dense<0.000000e+00> : vector<8x120xf32>
    %237 = tpu.matmul %182, %236, %cst_103 {dimension_numbers = #tpu.dot_dimension_numbers<[1], [0], [0], [1], [0, 0, 1, 1], [], []>} : vector<8x128xf32>, vector<128x120xf32>, vector<8x120xf32> -> vector<8x120xf32>
    %cst_104 = arith.constant dense<0.000000e+00> : vector<16x120xf32>
    %238 = tpu.matmul %183, %236, %cst_104 {dimension_numbers = #tpu.dot_dimension_numbers<[1], [0], [0], [1], [0, 0, 1, 1], [], []>} : vector<16x128xf32>, vector<128x120xf32>, vector<16x120xf32> -> vector<16x120xf32>
    %cst_105 = arith.constant dense<0.000000e+00> : vector<16x120xf32>
    %239 = tpu.matmul %184, %237, %cst_105 {dimension_numbers = #tpu.dot_dimension_numbers<[1], [0], [0], [1], [0, 0, 1, 1], [], []>} : vector<16x8xf32>, vector<8x120xf32>, vector<16x120xf32> -> vector<16x120xf32>
    %240 = vector.extract_strided_slice %238 {offsets = [0, 0], sizes = [16, 60], strides = [1, 1]} : vector<16x120xf32> to vector<16x60xf32>
    %241 = vector.extract_strided_slice %239 {offsets = [0, 0], sizes = [16, 60], strides = [1, 1]} : vector<16x120xf32> to vector<16x60xf32>
    %cst_106 = arith.constant dense<0.000000e+00> : vector<60x60xf32>
    %242 = tpu.matmul %240, %241, %cst_106 {dimension_numbers = #tpu.dot_dimension_numbers<[0], [0], [1], [1], [0, 1, 1, 1], [], []>} : vector<16x60xf32>, vector<16x60xf32>, vector<60x60xf32> -> vector<60x60xf32>
    %243 = arith.addf %242, %185 : vector<60x60xf32>
    %cst_107 = arith.constant 0.000000e+00 : f32
    %244 = vector.broadcast %cst_107 : f32 to vector<60x60xf32>
    %245 = arith.subf %244, %243 : vector<60x60xf32>
    %246 = math.exp %245 : vector<60x60xf32>
    %cst_108 = arith.constant 1.000000e+00 : f32
    %247 = vector.broadcast %cst_108 : f32 to vector<60x60xf32>
    %248 = arith.addf %247, %246 : vector<60x60xf32>
    %249 = tpu.reciprocal %248 {approx = true} : vector<60x60xf32> -> vector<60x60xf32>
    %cst_109 = arith.constant dense<0.000000e+00> : vector<60x60xf32>
    %250 = tpu.matmul %249, %186, %cst_109 {dimension_numbers = #tpu.dot_dimension_numbers<[1], [0], [0], [1], [0, 0, 1, 1], [], []>} : vector<60x60xf32>, vector<60x60xf32>, vector<60x60xf32> -> vector<60x60xf32>
    %cst_110 = arith.constant 0.999994993 : f32
    %251 = vector.broadcast %cst_110 : f32 to vector<60x60xf32>
    %252 = arith.mulf %250, %251 : vector<60x60xf32>
    %cst_111 = arith.constant dense<0xFF800000> : vector<60xf32>
    %253 = vector.multi_reduction <maximumf>, %252, %cst_111 [1] : vector<60x60xf32> to vector<60xf32>
    %254 = vector.shape_cast %253 : vector<60xf32> to vector<60x1xf32>
    %255 = vector.broadcast %254 : vector<60x1xf32> to vector<60x60xf32>
    %256 = arith.subf %252, %255 : vector<60x60xf32>
    %257 = math.exp %256 : vector<60x60xf32>
    %cst_112 = arith.constant dense<0.000000e+00> : vector<60xf32>
    %258 = vector.multi_reduction <add>, %257, %cst_112 [1] : vector<60x60xf32> to vector<60xf32>
    %259 = vector.shape_cast %258 : vector<60xf32> to vector<60x1xf32>
    %260 = tpu.reciprocal %259 {approx = true} : vector<60x1xf32> -> vector<60x1xf32>
    %261 = vector.broadcast %260 : vector<60x1xf32> to vector<60x60xf32>
    %262 = arith.mulf %257, %261 : vector<60x60xf32>
    %263 = vector.extract_strided_slice %236 {offsets = [0, 0], sizes = [128, 60], strides = [1, 1]} : vector<128x120xf32> to vector<128x60xf32>
    %cst_113 = arith.constant dense<0.000000e+00> : vector<128x60xf32>
    %264 = tpu.matmul %263, %262, %cst_113 {dimension_numbers = #tpu.dot_dimension_numbers<[1], [1], [0], [0], [0, 0, 1, 0], [], []>} : vector<128x60xf32>, vector<60x60xf32>, vector<128x60xf32> -> vector<128x60xf32>
    %cst_114 = arith.constant 0.000000e+00 : f32
    %265 = vector.broadcast %cst_114 : f32 to vector<128x60xf32>
    %266 = arith.cmpf oge, %264, %265 : vector<128x60xf32>
    %cst_115 = arith.constant 0.00999999977 : f32
    %267 = vector.broadcast %cst_115 : f32 to vector<128x60xf32>
    %268 = arith.mulf %267, %264 : vector<128x60xf32>
    %269 = arith.select %266, %264, %268 : vector<128x60xi1>, vector<128x60xf32>
    %270 = vector.extract_strided_slice %189 {offsets = [0, 0], sizes = [128, 60], strides = [1, 1]} : vector<128x120xf32> to vector<128x60xf32>
    %271 = arith.addf %269, %270 : vector<128x60xf32>
    %cst_116 = arith.constant dense<0.000000e+00> : vector<128xf32>
    %272 = vector.multi_reduction <add>, %271, %cst_116 [1] : vector<128x60xf32> to vector<128xf32>
    %273 = vector.shape_cast %272 : vector<128xf32> to vector<128x1xf32>
    %cst_117 = arith.constant dense<0.000000e+00> : vector<1xf32>
    %274 = vector.multi_reduction <add>, %273, %cst_117 [0] : vector<128x1xf32> to vector<1xf32>
    %275 = vector.shape_cast %274 : vector<1xf32> to vector<1x1xf32>
    %276 = arith.mulf %271, %271 : vector<128x60xf32>
    %cst_118 = arith.constant dense<0.000000e+00> : vector<128xf32>
    %277 = vector.multi_reduction <add>, %276, %cst_118 [1] : vector<128x60xf32> to vector<128xf32>
    %278 = vector.shape_cast %277 : vector<128xf32> to vector<128x1xf32>
    %cst_119 = arith.constant dense<0.000000e+00> : vector<1xf32>
    %279 = vector.multi_reduction <add>, %278, %cst_119 [0] : vector<128x1xf32> to vector<1xf32>
    %280 = vector.shape_cast %279 : vector<1xf32> to vector<1x1xf32>
    %cst_120 = arith.constant 7.680000e+03 : f32
    %281 = vector.broadcast %cst_120 : f32 to vector<1x1xf32>
    %282 = arith.divf %275, %281 : vector<1x1xf32>
    %cst_121 = arith.constant 7.680000e+03 : f32
    %283 = vector.broadcast %cst_121 : f32 to vector<1x1xf32>
    %284 = arith.divf %280, %283 : vector<1x1xf32>
    %285 = arith.mulf %282, %282 : vector<1x1xf32>
    %286 = arith.subf %284, %285 : vector<1x1xf32>
    %287 = vector.broadcast %282 : vector<1x1xf32> to vector<128x60xf32>
    %288 = arith.subf %271, %287 : vector<128x60xf32>
    %cst_122 = arith.constant 9.99999974E-6 : f32
    %289 = vector.broadcast %cst_122 : f32 to vector<1x1xf32>
    %290 = arith.addf %286, %289 : vector<1x1xf32>
    %291 = math.rsqrt %290 : vector<1x1xf32>
    %292 = vector.broadcast %291 : vector<1x1xf32> to vector<128x60xf32>
    %293 = arith.mulf %288, %292 : vector<128x60xf32>
    %294 = vector.extract_strided_slice %238 {offsets = [0, 60], sizes = [16, 60], strides = [1, 1]} : vector<16x120xf32> to vector<16x60xf32>
    %295 = vector.extract_strided_slice %239 {offsets = [0, 60], sizes = [16, 60], strides = [1, 1]} : vector<16x120xf32> to vector<16x60xf32>
    %cst_123 = arith.constant dense<0.000000e+00> : vector<60x60xf32>
    %296 = tpu.matmul %294, %295, %cst_123 {dimension_numbers = #tpu.dot_dimension_numbers<[0], [0], [1], [1], [0, 1, 1, 1], [], []>} : vector<16x60xf32>, vector<16x60xf32>, vector<60x60xf32> -> vector<60x60xf32>
    %297 = arith.addf %296, %185 : vector<60x60xf32>
    %cst_124 = arith.constant 0.000000e+00 : f32
    %298 = vector.broadcast %cst_124 : f32 to vector<60x60xf32>
    %299 = arith.subf %298, %297 : vector<60x60xf32>
    %300 = math.exp %299 : vector<60x60xf32>
    %cst_125 = arith.constant 1.000000e+00 : f32
    %301 = vector.broadcast %cst_125 : f32 to vector<60x60xf32>
    %302 = arith.addf %301, %300 : vector<60x60xf32>
    %303 = tpu.reciprocal %302 {approx = true} : vector<60x60xf32> -> vector<60x60xf32>
    %cst_126 = arith.constant dense<0.000000e+00> : vector<60x60xf32>
    %304 = tpu.matmul %303, %186, %cst_126 {dimension_numbers = #tpu.dot_dimension_numbers<[1], [0], [0], [1], [0, 0, 1, 1], [], []>} : vector<60x60xf32>, vector<60x60xf32>, vector<60x60xf32> -> vector<60x60xf32>
    %cst_127 = arith.constant 0.999994993 : f32
    %305 = vector.broadcast %cst_127 : f32 to vector<60x60xf32>
    %306 = arith.mulf %304, %305 : vector<60x60xf32>
    %cst_128 = arith.constant dense<0xFF800000> : vector<60xf32>
    %307 = vector.multi_reduction <maximumf>, %306, %cst_128 [1] : vector<60x60xf32> to vector<60xf32>
    %308 = vector.shape_cast %307 : vector<60xf32> to vector<60x1xf32>
    %309 = vector.broadcast %308 : vector<60x1xf32> to vector<60x60xf32>
    %310 = arith.subf %306, %309 : vector<60x60xf32>
    %311 = math.exp %310 : vector<60x60xf32>
    %cst_129 = arith.constant dense<0.000000e+00> : vector<60xf32>
    %312 = vector.multi_reduction <add>, %311, %cst_129 [1] : vector<60x60xf32> to vector<60xf32>
    %313 = vector.shape_cast %312 : vector<60xf32> to vector<60x1xf32>
    %314 = tpu.reciprocal %313 {approx = true} : vector<60x1xf32> -> vector<60x1xf32>
    %315 = vector.broadcast %314 : vector<60x1xf32> to vector<60x60xf32>
    %316 = arith.mulf %311, %315 : vector<60x60xf32>
    %317 = vector.extract_strided_slice %236 {offsets = [0, 60], sizes = [128, 60], strides = [1, 1]} : vector<128x120xf32> to vector<128x60xf32>
    %cst_130 = arith.constant dense<0.000000e+00> : vector<128x60xf32>
    %318 = tpu.matmul %317, %316, %cst_130 {dimension_numbers = #tpu.dot_dimension_numbers<[1], [1], [0], [0], [0, 0, 1, 0], [], []>} : vector<128x60xf32>, vector<60x60xf32>, vector<128x60xf32> -> vector<128x60xf32>
    %cst_131 = arith.constant 0.000000e+00 : f32
    %319 = vector.broadcast %cst_131 : f32 to vector<128x60xf32>
    %320 = arith.cmpf oge, %318, %319 : vector<128x60xf32>
    %cst_132 = arith.constant 0.00999999977 : f32
    %321 = vector.broadcast %cst_132 : f32 to vector<128x60xf32>
    %322 = arith.mulf %321, %318 : vector<128x60xf32>
    %323 = arith.select %320, %318, %322 : vector<128x60xi1>, vector<128x60xf32>
    %324 = vector.extract_strided_slice %189 {offsets = [0, 60], sizes = [128, 60], strides = [1, 1]} : vector<128x120xf32> to vector<128x60xf32>
    %325 = arith.addf %323, %324 : vector<128x60xf32>
    %cst_133 = arith.constant dense<0.000000e+00> : vector<128xf32>
    %326 = vector.multi_reduction <add>, %325, %cst_133 [1] : vector<128x60xf32> to vector<128xf32>
    %327 = vector.shape_cast %326 : vector<128xf32> to vector<128x1xf32>
    %cst_134 = arith.constant dense<0.000000e+00> : vector<1xf32>
    %328 = vector.multi_reduction <add>, %327, %cst_134 [0] : vector<128x1xf32> to vector<1xf32>
    %329 = vector.shape_cast %328 : vector<1xf32> to vector<1x1xf32>
    %330 = arith.mulf %325, %325 : vector<128x60xf32>
    %cst_135 = arith.constant dense<0.000000e+00> : vector<128xf32>
    %331 = vector.multi_reduction <add>, %330, %cst_135 [1] : vector<128x60xf32> to vector<128xf32>
    %332 = vector.shape_cast %331 : vector<128xf32> to vector<128x1xf32>
    %cst_136 = arith.constant dense<0.000000e+00> : vector<1xf32>
    %333 = vector.multi_reduction <add>, %332, %cst_136 [0] : vector<128x1xf32> to vector<1xf32>
    %334 = vector.shape_cast %333 : vector<1xf32> to vector<1x1xf32>
    %cst_137 = arith.constant 7.680000e+03 : f32
    %335 = vector.broadcast %cst_137 : f32 to vector<1x1xf32>
    %336 = arith.divf %329, %335 : vector<1x1xf32>
    %cst_138 = arith.constant 7.680000e+03 : f32
    %337 = vector.broadcast %cst_138 : f32 to vector<1x1xf32>
    %338 = arith.divf %334, %337 : vector<1x1xf32>
    %339 = arith.mulf %336, %336 : vector<1x1xf32>
    %340 = arith.subf %338, %339 : vector<1x1xf32>
    %341 = vector.broadcast %336 : vector<1x1xf32> to vector<128x60xf32>
    %342 = arith.subf %325, %341 : vector<128x60xf32>
    %cst_139 = arith.constant 9.99999974E-6 : f32
    %343 = vector.broadcast %cst_139 : f32 to vector<1x1xf32>
    %344 = arith.addf %340, %343 : vector<1x1xf32>
    %345 = math.rsqrt %344 : vector<1x1xf32>
    %346 = vector.broadcast %345 : vector<1x1xf32> to vector<128x60xf32>
    %347 = arith.mulf %342, %346 : vector<128x60xf32>
    %348 = tpu.concatenate %293, %347 in 1 : vector<128x60xf32>, vector<128x60xf32> -> vector<128x120xf32>
    %c0_140 = arith.constant 0 : index
    %c0_141 = arith.constant 0 : index
    %349 = vector.load %arg25[%c0_140, %c0_141] : memref<40x128xf32, #tpu.memory_space<vmem>>, vector<40x128xf32>
    %cst_142 = arith.constant dense<0.000000e+00> : vector<40x120xf32>
    %350 = tpu.matmul %349, %348, %cst_142 {dimension_numbers = #tpu.dot_dimension_numbers<[1], [0], [0], [1], [0, 0, 1, 1], [], []>} : vector<40x128xf32>, vector<128x120xf32>, vector<40x120xf32> -> vector<40x120xf32>
    %c0_143 = arith.constant 0 : index
    %c0_144 = arith.constant 0 : index
    %c0_145 = arith.constant 0 : index
    %351 = vector.load %arg26[%c0_143, %c0_144, %c0_145] : memref<5x60x12xf32, #tpu.memory_space<vmem>>, vector<5x60x12xf32>
    %c0_146 = arith.constant 0 : index
    %c0_147 = arith.constant 0 : index
    %352 = vector.load %arg27[%c0_146, %c0_147] : memref<1x1xf32, #tpu.memory_space<vmem>>, vector<1x1xf32>
    %353 = vector.extract_strided_slice %350 {offsets = [0, 0], sizes = [40, 60], strides = [1, 1]} : vector<40x120xf32> to vector<40x60xf32>
    %354 = vector.extract_strided_slice %353 {offsets = [0, 0], sizes = [8, 60], strides = [1, 1]} : vector<40x60xf32> to vector<8x60xf32>
    %355 = vector.extract_strided_slice %351 {offsets = [0, 0, 0], sizes = [1, 60, 12], strides = [1, 1, 1]} : vector<5x60x12xf32> to vector<1x60x12xf32>
    %356 = vector.shape_cast %355 : vector<1x60x12xf32> to vector<60x12xf32>
    %cst_148 = arith.constant dense<0.000000e+00> : vector<8x12xf32>
    %357 = tpu.matmul %354, %356, %cst_148 {dimension_numbers = #tpu.dot_dimension_numbers<[1], [0], [0], [1], [0, 0, 1, 1], [], []>} : vector<8x60xf32>, vector<60x12xf32>, vector<8x12xf32> -> vector<8x12xf32>
    %358 = vector.extract_strided_slice %353 {offsets = [8, 0], sizes = [8, 60], strides = [1, 1]} : vector<40x60xf32> to vector<8x60xf32>
    %359 = vector.extract_strided_slice %351 {offsets = [1, 0, 0], sizes = [1, 60, 12], strides = [1, 1, 1]} : vector<5x60x12xf32> to vector<1x60x12xf32>
    %360 = vector.shape_cast %359 : vector<1x60x12xf32> to vector<60x12xf32>
    %cst_149 = arith.constant dense<0.000000e+00> : vector<8x12xf32>
    %361 = tpu.matmul %358, %360, %cst_149 {dimension_numbers = #tpu.dot_dimension_numbers<[1], [0], [0], [1], [0, 0, 1, 1], [], []>} : vector<8x60xf32>, vector<60x12xf32>, vector<8x12xf32> -> vector<8x12xf32>
    %362 = arith.addf %357, %361 : vector<8x12xf32>
    %363 = vector.extract_strided_slice %353 {offsets = [16, 0], sizes = [8, 60], strides = [1, 1]} : vector<40x60xf32> to vector<8x60xf32>
    %364 = vector.extract_strided_slice %351 {offsets = [2, 0, 0], sizes = [1, 60, 12], strides = [1, 1, 1]} : vector<5x60x12xf32> to vector<1x60x12xf32>
    %365 = vector.shape_cast %364 : vector<1x60x12xf32> to vector<60x12xf32>
    %cst_150 = arith.constant dense<0.000000e+00> : vector<8x12xf32>
    %366 = tpu.matmul %363, %365, %cst_150 {dimension_numbers = #tpu.dot_dimension_numbers<[1], [0], [0], [1], [0, 0, 1, 1], [], []>} : vector<8x60xf32>, vector<60x12xf32>, vector<8x12xf32> -> vector<8x12xf32>
    %367 = arith.addf %362, %366 : vector<8x12xf32>
    %368 = vector.extract_strided_slice %353 {offsets = [24, 0], sizes = [8, 60], strides = [1, 1]} : vector<40x60xf32> to vector<8x60xf32>
    %369 = vector.extract_strided_slice %351 {offsets = [3, 0, 0], sizes = [1, 60, 12], strides = [1, 1, 1]} : vector<5x60x12xf32> to vector<1x60x12xf32>
    %370 = vector.shape_cast %369 : vector<1x60x12xf32> to vector<60x12xf32>
    %cst_151 = arith.constant dense<0.000000e+00> : vector<8x12xf32>
    %371 = tpu.matmul %368, %370, %cst_151 {dimension_numbers = #tpu.dot_dimension_numbers<[1], [0], [0], [1], [0, 0, 1, 1], [], []>} : vector<8x60xf32>, vector<60x12xf32>, vector<8x12xf32> -> vector<8x12xf32>
    %372 = arith.addf %367, %371 : vector<8x12xf32>
    %373 = vector.extract_strided_slice %353 {offsets = [32, 0], sizes = [8, 60], strides = [1, 1]} : vector<40x60xf32> to vector<8x60xf32>
    %374 = vector.extract_strided_slice %351 {offsets = [4, 0, 0], sizes = [1, 60, 12], strides = [1, 1, 1]} : vector<5x60x12xf32> to vector<1x60x12xf32>
    %375 = vector.shape_cast %374 : vector<1x60x12xf32> to vector<60x12xf32>
    %cst_152 = arith.constant dense<0.000000e+00> : vector<8x12xf32>
    %376 = tpu.matmul %373, %375, %cst_152 {dimension_numbers = #tpu.dot_dimension_numbers<[1], [0], [0], [1], [0, 0, 1, 1], [], []>} : vector<8x60xf32>, vector<60x12xf32>, vector<8x12xf32> -> vector<8x12xf32>
    %377 = arith.addf %372, %376 : vector<8x12xf32>
    %378 = vector.broadcast %352 : vector<1x1xf32> to vector<8x12xf32>
    %379 = arith.addf %377, %378 : vector<8x12xf32>
    %c0_153 = arith.constant 0 : index
    %c0_154 = arith.constant 0 : index
    %c0_155 = arith.constant 0 : index
    %380 = vector.load %arg28[%c0_153, %c0_154, %c0_155] : memref<2x8x12xf32, #tpu.memory_space<vmem>>, vector<1x8x12xf32>
    %381 = vector.shape_cast %380 : vector<1x8x12xf32> to vector<8x12xf32>
    %382 = vector.shape_cast %379 : vector<8x12xf32> to vector<1x8x12xf32>
    tpu.vector_store %arg28[%c0_153, %c0_154, %c0_155], %382 {strides = array<i32>} : memref<2x8x12xf32, #tpu.memory_space<vmem>>, vector<1x8x12xf32>,
    %383 = vector.extract_strided_slice %350 {offsets = [0, 60], sizes = [40, 60], strides = [1, 1]} : vector<40x120xf32> to vector<40x60xf32>
    %384 = vector.extract_strided_slice %383 {offsets = [0, 0], sizes = [8, 60], strides = [1, 1]} : vector<40x60xf32> to vector<8x60xf32>
    %385 = vector.extract_strided_slice %351 {offsets = [0, 0, 0], sizes = [1, 60, 12], strides = [1, 1, 1]} : vector<5x60x12xf32> to vector<1x60x12xf32>
    %386 = vector.shape_cast %385 : vector<1x60x12xf32> to vector<60x12xf32>
    %cst_156 = arith.constant dense<0.000000e+00> : vector<8x12xf32>
    %387 = tpu.matmul %384, %386, %cst_156 {dimension_numbers = #tpu.dot_dimension_numbers<[1], [0], [0], [1], [0, 0, 1, 1], [], []>} : vector<8x60xf32>, vector<60x12xf32>, vector<8x12xf32> -> vector<8x12xf32>
    %388 = vector.extract_strided_slice %383 {offsets = [8, 0], sizes = [8, 60], strides = [1, 1]} : vector<40x60xf32> to vector<8x60xf32>
    %389 = vector.extract_strided_slice %351 {offsets = [1, 0, 0], sizes = [1, 60, 12], strides = [1, 1, 1]} : vector<5x60x12xf32> to vector<1x60x12xf32>
    %390 = vector.shape_cast %389 : vector<1x60x12xf32> to vector<60x12xf32>
    %cst_157 = arith.constant dense<0.000000e+00> : vector<8x12xf32>
    %391 = tpu.matmul %388, %390, %cst_157 {dimension_numbers = #tpu.dot_dimension_numbers<[1], [0], [0], [1], [0, 0, 1, 1], [], []>} : vector<8x60xf32>, vector<60x12xf32>, vector<8x12xf32> -> vector<8x12xf32>
    %392 = arith.addf %387, %391 : vector<8x12xf32>
    %393 = vector.extract_strided_slice %383 {offsets = [16, 0], sizes = [8, 60], strides = [1, 1]} : vector<40x60xf32> to vector<8x60xf32>
    %394 = vector.extract_strided_slice %351 {offsets = [2, 0, 0], sizes = [1, 60, 12], strides = [1, 1, 1]} : vector<5x60x12xf32> to vector<1x60x12xf32>
    %395 = vector.shape_cast %394 : vector<1x60x12xf32> to vector<60x12xf32>
    %cst_158 = arith.constant dense<0.000000e+00> : vector<8x12xf32>
    %396 = tpu.matmul %393, %395, %cst_158 {dimension_numbers = #tpu.dot_dimension_numbers<[1], [0], [0], [1], [0, 0, 1, 1], [], []>} : vector<8x60xf32>, vector<60x12xf32>, vector<8x12xf32> -> vector<8x12xf32>
    %397 = arith.addf %392, %396 : vector<8x12xf32>
    %398 = vector.extract_strided_slice %383 {offsets = [24, 0], sizes = [8, 60], strides = [1, 1]} : vector<40x60xf32> to vector<8x60xf32>
    %399 = vector.extract_strided_slice %351 {offsets = [3, 0, 0], sizes = [1, 60, 12], strides = [1, 1, 1]} : vector<5x60x12xf32> to vector<1x60x12xf32>
    %400 = vector.shape_cast %399 : vector<1x60x12xf32> to vector<60x12xf32>
    %cst_159 = arith.constant dense<0.000000e+00> : vector<8x12xf32>
    %401 = tpu.matmul %398, %400, %cst_159 {dimension_numbers = #tpu.dot_dimension_numbers<[1], [0], [0], [1], [0, 0, 1, 1], [], []>} : vector<8x60xf32>, vector<60x12xf32>, vector<8x12xf32> -> vector<8x12xf32>
    %402 = arith.addf %397, %401 : vector<8x12xf32>
    %403 = vector.extract_strided_slice %383 {offsets = [32, 0], sizes = [8, 60], strides = [1, 1]} : vector<40x60xf32> to vector<8x60xf32>
    %404 = vector.extract_strided_slice %351 {offsets = [4, 0, 0], sizes = [1, 60, 12], strides = [1, 1, 1]} : vector<5x60x12xf32> to vector<1x60x12xf32>
    %405 = vector.shape_cast %404 : vector<1x60x12xf32> to vector<60x12xf32>
    %cst_160 = arith.constant dense<0.000000e+00> : vector<8x12xf32>
    %406 = tpu.matmul %403, %405, %cst_160 {dimension_numbers = #tpu.dot_dimension_numbers<[1], [0], [0], [1], [0, 0, 1, 1], [], []>} : vector<8x60xf32>, vector<60x12xf32>, vector<8x12xf32> -> vector<8x12xf32>
    %407 = arith.addf %402, %406 : vector<8x12xf32>
    %408 = vector.broadcast %352 : vector<1x1xf32> to vector<8x12xf32>
    %409 = arith.addf %407, %408 : vector<8x12xf32>
    %c1 = arith.constant 1 : index
    %c0_161 = arith.constant 0 : index
    %c0_162 = arith.constant 0 : index
    %410 = vector.load %arg28[%c1, %c0_161, %c0_162] : memref<2x8x12xf32, #tpu.memory_space<vmem>>, vector<1x8x12xf32>
    %411 = vector.shape_cast %410 : vector<1x8x12xf32> to vector<8x12xf32>
    %412 = vector.shape_cast %409 : vector<8x12xf32> to vector<1x8x12xf32>
    tpu.vector_store %arg28[%c1, %c0_161, %c0_162], %412 {strides = array<i32>} : memref<2x8x12xf32, #tpu.memory_space<vmem>>, vector<1x8x12xf32>,
    return
  }
}

</mosaic_0001>

<llo_original>
// kernel: tile.31
$region0: #{tile.31}
  #allocation0 [shape = 's32[1]{0}', space=sflag, size = 0x4, scoped, tag = 'scoped memory for tile.31']
  %s0 = inlined_call_operand.vmem [shape: f32[16], index: 0, kind: input, shape index: {}]
  %s1 = inlined_call_operand.vmem [shape: f32[8,16], index: 1, kind: output, shape index: {}]
  // Predicated region
  $region2: #{tile.31} parent=0 // pred_check
    _
  $region3: #{tile.31} parent=0 // pred_check_branch
    %3 = sbr.rel (0) target = $region5
  $region4: #{tile.31} parent=0 // pred_region
    _
  $region5: #{tile.31} parent=0 // pred_fallthru
    _
  %v4 = vld [vmem:[%s0] ss:$0 sm:$0xff]
  %5 = vst [vmem:[%s1] sm:$0xff] %v4

// kernel: tile.0
$region0: #{tile.0}
  %s0 = inlined_call_operand.vmem [shape: f32[8,16], index: 0, kind: input, shape index: {}]
  %s1 = inlined_call_operand.vmem [shape: f32[128,1], index: 1, kind: output, shape index: {}]
  %v2 = vld [vmem:[%s0] sm:$0xff]
  %vm3 = vcmask 7168
  %4 = vst.msk [vmem:[%s1] ss:$16 sm:$0x3] %vm3, %v2
  %5 = vst.msk [vmem:[%s1] ss:$16 sm:$0xc] %vm3, %v2
  %6 = vst.msk [vmem:[%s1] ss:$16 sm:$0x30] %vm3, %v2
  %7 = vst.msk [vmem:[%s1] ss:$16 sm:$0xc0] %vm3, %v2
  %v8 = vld [vmem:[%s0] sm:$0xff]
  %9 = vrot.lane.b32.xlu0 %v8, 127
  %v10 = vpop.permute.xlu0 %9
  %vm11 = vcmask 7168
  %s12 = scalar_lea.vmem %s1, 1
  %13 = vst.msk [vmem:[%s12] ss:$16 sm:$0x3] %vm11, %v10
  %s14 = scalar_lea.vmem %s1, 1
  %15 = vst.msk [vmem:[%s14] ss:$16 sm:$0xc] %vm11, %v10
  %s16 = scalar_lea.vmem %s1, 1
  %17 = vst.msk [vmem:[%s16] ss:$16 sm:$0x30] %vm11, %v10
  %s18 = scalar_lea.vmem %s1, 1
  %19 = vst.msk [vmem:[%s18] ss:$16 sm:$0xc0] %vm11, %v10
  %v20 = vld [vmem:[%s0] sm:$0xff]
  %21 = vrot.lane.b32.xlu0 %v20, 126
  %v22 = vpop.permute.xlu0 %21
  %vm23 = vcmask 7168
  %s24 = scalar_lea.vmem %s1, 2
  %25 = vst.msk [vmem:[%s24] ss:$16 sm:$0x3] %vm23, %v22
  %s26 = scalar_lea.vmem %s1, 2
  %27 = vst.msk [vmem:[%s26] ss:$16 sm:$0xc] %vm23, %v22
  %s28 = scalar_lea.vmem %s1, 2
  %29 = vst.msk [vmem:[%s28] ss:$16 sm:$0x30] %vm23, %v22
  %s30 = scalar_lea.vmem %s1, 2
  %31 = vst.msk [vmem:[%s30] ss:$16 sm:$0xc0] %vm23, %v22
  %v32 = vld [vmem:[%s0] sm:$0xff]
  %33 = vrot.lane.b32.xlu0 %v32, 125
  %v34 = vpop.permute.xlu0 %33
  %vm35 = vcmask 7168
  %s36 = scalar_lea.vmem %s1, 3
  %37 = vst.msk [vmem:[%s36] ss:$16 sm:$0x3] %vm35, %v34
  %s38 = scalar_lea.vmem %s1, 3
  %39 = vst.msk [vmem:[%s38] ss:$16 sm:$0xc] %vm35, %v34
  %s40 = scalar_lea.vmem %s1, 3
  %41 = vst.msk [vmem:[%s40] ss:$16 sm:$0x30] %vm35, %v34
  %s42 = scalar_lea.vmem %s1, 3
  %43 = vst.msk [vmem:[%s42] ss:$16 sm:$0xc0] %vm35, %v34
  %v44 = vld [vmem:[%s0] sm:$0xff]
  %45 = vrot.lane.b32.xlu0 %v44, 124
  %v46 = vpop.permute.xlu0 %45
  %vm47 = vcmask 7168
  %s48 = scalar_lea.vmem %s1, 4
  %49 = vst.msk [vmem:[%s48] ss:$16 sm:$0x3] %vm47, %v46
  %s50 = scalar_lea.vmem %s1, 4
  %51 = vst.msk [vmem:[%s50] ss:$16 sm:$0xc] %vm47, %v46
  %s52 = scalar_lea.vmem %s1, 4
  %53 = vst.msk [vmem:[%s52] ss:$16 sm:$0x30] %vm47, %v46
  %s54 = scalar_lea.vmem %s1, 4
  %55 = vst.msk [vmem:[%s54] ss:$16 sm:$0xc0] %vm47, %v46
  %v56 = vld [vmem:[%s0] sm:$0xff]
  %57 = vrot.lane.b32.xlu0 %v56, 123
  %v58 = vpop.permute.xlu0 %57
  %vm59 = vcmask 7168
  %s60 = scalar_lea.vmem %s1, 5
  %61 = vst.msk [vmem:[%s60] ss:$16 sm:$0x3] %vm59, %v58
  %s62 = scalar_lea.vmem %s1, 5
  %63 = vst.msk [vmem:[%s62] ss:$16 sm:$0xc] %vm59, %v58
  %s64 = scalar_lea.vmem %s1, 5
  %65 = vst.msk [vmem:[%s64] ss:$16 sm:$0x30] %vm59, %v58
  %s66 = scalar_lea.vmem %s1, 5
  %67 = vst.msk [vmem:[%s66] ss:$16 sm:$0xc0] %vm59, %v58
  %v68 = vld [vmem:[%s0] sm:$0xff]
  %69 = vrot.lane.b32.xlu0 %v68, 122
  %v70 = vpop.permute.xlu0 %69
  %vm71 = vcmask 7168
  %s72 = scalar_lea.vmem %s1, 6
  %73 = vst.msk [vmem:[%s72] ss:$16 sm:$0x3] %vm71, %v70
  %s74 = scalar_lea.vmem %s1, 6
  %75 = vst.msk [vmem:[%s74] ss:$16 sm:$0xc] %vm71, %v70
  %s76 = scalar_lea.vmem %s1, 6
  %77 = vst.msk [vmem:[%s76] ss:$16 sm:$0x30] %vm71, %v70
  %s78 = scalar_lea.vmem %s1, 6
  %79 = vst.msk [vmem:[%s78] ss:$16 sm:$0xc0] %vm71, %v70
  %v80 = vld [vmem:[%s0] sm:$0xff]
  %81 = vrot.lane.b32.xlu0 %v80, 121
  %v82 = vpop.permute.xlu0 %81
  %vm83 = vcmask 7168
  %s84 = scalar_lea.vmem %s1, 7
  %85 = vst.msk [vmem:[%s84] ss:$16 sm:$0x3] %vm83, %v82
  %s86 = scalar_lea.vmem %s1, 7
  %87 = vst.msk [vmem:[%s86] ss:$16 sm:$0xc] %vm83, %v82
  %s88 = scalar_lea.vmem %s1, 7
  %89 = vst.msk [vmem:[%s88] ss:$16 sm:$0x30] %vm83, %v82
  %s90 = scalar_lea.vmem %s1, 7
  %91 = vst.msk [vmem:[%s90] ss:$16 sm:$0xc0] %vm83, %v82
  %v92 = vld [vmem:[%s0] sm:$0xff]
  %93 = vrot.lane.b32.xlu0 %v92, 120
  %v94 = vpop.permute.xlu0 %93
  %vm95 = vcmask 7168
  %s96 = scalar_lea.vmem %s1, 8
  %97 = vst.msk [vmem:[%s96] ss:$16 sm:$0x3] %vm95, %v94
  %s98 = scalar_lea.vmem %s1, 8
  %99 = vst.msk [vmem:[%s98] ss:$16 sm:$0xc] %vm95, %v94
  %s100 = scalar_lea.vmem %s1, 8
  %101 = vst.msk [vmem:[%s100] ss:$16 sm:$0x30] %vm95, %v94
  %s102 = scalar_lea.vmem %s1, 8
  %103 = vst.msk [vmem:[%s102] ss:$16 sm:$0xc0] %vm95, %v94
  %v104 = vld [vmem:[%s0] sm:$0xff]
  %105 = vrot.lane.b32.xlu0 %v104, 119
  %v106 = vpop.permute.xlu0 %105
  %vm107 = vcmask 7168
  %s108 = scalar_lea.vmem %s1, 9
  %109 = vst.msk [vmem:[%s108] ss:$16 sm:$0x3] %vm107, %v106
  %s110 = scalar_lea.vmem %s1, 9
  %111 = vst.msk [vmem:[%s110] ss:$16 sm:$0xc] %vm107, %v106
  %s112 = scalar_lea.vmem %s1, 9
  %113 = vst.msk [vmem:[%s112] ss:$16 sm:$0x30] %vm107, %v106
  %s114 = scalar_lea.vmem %s1, 9
  %115 = vst.msk [vmem:[%s114] ss:$16 sm:$0xc0] %vm107, %v106
  %v116 = vld [vmem:[%s0] sm:$0xff]
  %117 = vrot.lane.b32.xlu0 %v116, 118
  %v118 = vpop.permute.xlu0 %117
  %vm119 = vcmask 7168
  %s120 = scalar_lea.vmem %s1, 10
  %121 = vst.msk [vmem:[%s120] ss:$16 sm:$0x3] %vm119, %v118
  %s122 = scalar_lea.vmem %s1, 10
  %123 = vst.msk [vmem:[%s122] ss:$16 sm:$0xc] %vm119, %v118
  %s124 = scalar_lea.vmem %s1, 10
  %125 = vst.msk [vmem:[%s124] ss:$16 sm:$0x30] %vm119, %v118
  %s126 = scalar_lea.vmem %s1, 10
  %127 = vst.msk [vmem:[%s126] ss:$16 sm:$0xc0] %vm119, %v118
  %v128 = vld [vmem:[%s0] sm:$0xff]
  %129 = vrot.lane.b32.xlu0 %v128, 117
  %v130 = vpop.permute.xlu0 %129
  %vm131 = vcmask 7168
  %s132 = scalar_lea.vmem %s1, 11
  %133 = vst.msk [vmem:[%s132] ss:$16 sm:$0x3] %vm131, %v130
  %s134 = scalar_lea.vmem %s1, 11
  %135 = vst.msk [vmem:[%s134] ss:$16 sm:$0xc] %vm131, %v130
  %s136 = scalar_lea.vmem %s1, 11
  %137 = vst.msk [vmem:[%s136] ss:$16 sm:$0x30] %vm131, %v130
  %s138 = scalar_lea.vmem %s1, 11
  %139 = vst.msk [vmem:[%s138] ss:$16 sm:$0xc0] %vm131, %v130
  %v140 = vld [vmem:[%s0] sm:$0xff]
  %141 = vrot.lane.b32.xlu0 %v140, 116
  %v142 = vpop.permute.xlu0 %141
  %vm143 = vcmask 7168
  %s144 = scalar_lea.vmem %s1, 12
  %145 = vst.msk [vmem:[%s144] ss:$16 sm:$0x3] %vm143, %v142
  %s146 = scalar_lea.vmem %s1, 12
  %147 = vst.msk [vmem:[%s146] ss:$16 sm:$0xc] %vm143, %v142
  %s148 = scalar_lea.vmem %s1, 12
  %149 = vst.msk [vmem:[%s148] ss:$16 sm:$0x30] %vm143, %v142
  %s150 = scalar_lea.vmem %s1, 12
  %151 = vst.msk [vmem:[%s150] ss:$16 sm:$0xc0] %vm143, %v142
  %v152 = vld [vmem:[%s0] sm:$0xff]
  %153 = vrot.lane.b32.xlu0 %v152, 115
  %v154 = vpop.permute.xlu0 %153
  %vm155 = vcmask 7168
  %s156 = scalar_lea.vmem %s1, 13
  %157 = vst.msk [vmem:[%s156] ss:$16 sm:$0x3] %vm155, %v154
  %s158 = scalar_lea.vmem %s1, 13
  %159 = vst.msk [vmem:[%s158] ss:$16 sm:$0xc] %vm155, %v154
  %s160 = scalar_lea.vmem %s1, 13
  %161 = vst.msk [vmem:[%s160] ss:$16 sm:$0x30] %vm155, %v154
  %s162 = scalar_lea.vmem %s1, 13
  %163 = vst.msk [vmem:[%s162] ss:$16 sm:$0xc0] %vm155, %v154
  %v164 = vld [vmem:[%s0] sm:$0xff]
  %165 = vrot.lane.b32.xlu0 %v164, 114
  %v166 = vpop.permute.xlu0 %165
  %vm167 = vcmask 7168
  %s168 = scalar_lea.vmem %s1, 14
  %169 = vst.msk [vmem:[%s168] ss:$16 sm:$0x3] %vm167, %v166
  %s170 = scalar_lea.vmem %s1, 14
  %171 = vst.msk [vmem:[%s170] ss:$16 sm:$0xc] %vm167, %v166
  %s172 = scalar_lea.vmem %s1, 14
  %173 = vst.msk [vmem:[%s172] ss:$16 sm:$0x30] %vm167, %v166
  %s174 = scalar_lea.vmem %s1, 14
  %175 = vst.msk [vmem:[%s174] ss:$16 sm:$0xc0] %vm167, %v166
  %v176 = vld [vmem:[%s0] sm:$0xff]
  %177 = vrot.lane.b32.xlu0 %v176, 113
  %v178 = vpop.permute.xlu0 %177
  %vm179 = vcmask 7168
  %s180 = scalar_lea.vmem %s1, 15
  %181 = vst.msk [vmem:[%s180] ss:$16 sm:$0x3] %vm179, %v178
  %s182 = scalar_lea.vmem %s1, 15
  %183 = vst.msk [vmem:[%s182] ss:$16 sm:$0xc] %vm179, %v178
  %s184 = scalar_lea.vmem %s1, 15
  %185 = vst.msk [vmem:[%s184] ss:$16 sm:$0x30] %vm179, %v178
  %s186 = scalar_lea.vmem %s1, 15
  %187 = vst.msk [vmem:[%s186] ss:$16 sm:$0xc0] %vm179, %v178

// kernel: dgcn_mask_forward.1
$region0: #{dgcn_mask_forward.1}
  #allocation0 [shape = 'u32[]', space=smem, size = 0x4, offset = 0x4, fixed_abs, tag = 'smem constant byte address 0x4 - core index']
  #allocation1 [shape = 'u32[72,128]{1,0:T(1,128)}', space=vmem, size = 0x9000, scoped, tag = 'internal scratch']
  #allocation2 [shape = 'f32[1,1]{1,0:T(1,128)S(1)}', space=vmem, size = 0x200, scoped, tag = 'scoped memory for dgcn_mask_forward.1']
  %s0 = inlined_call_operand.vmem [shape: f32[16,120], index: 0, kind: input, shape index: {}]
  %s1 = inlined_call_operand.vmem [shape: f32[1,120], index: 1, kind: input, shape index: {}]
  %s2 = inlined_call_operand.vmem [shape: f32[1,120], index: 2, kind: input, shape index: {}]
  %s3 = inlined_call_operand.vmem [shape: f32[128,16], index: 3, kind: input, shape index: {}]
  %s4 = inlined_call_operand.vmem [shape: f32[128,1], index: 4, kind: input, shape index: {}]
  %s5 = inlined_call_operand.vmem [shape: f32[128,48], index: 5, kind: input, shape index: {}]
  %s6 = inlined_call_operand.vmem [shape: f32[128,1], index: 6, kind: input, shape index: {}]
  %s7 = inlined_call_operand.vmem [shape: f32[256,384], index: 7, kind: input, shape index: {}]
  %s8 = inlined_call_operand.vmem [shape: f32[256,1], index: 8, kind: input, shape index: {}]
  %s9 = inlined_call_operand.vmem [shape: f32[8,128], index: 9, kind: input, shape index: {}]
  %s10 = inlined_call_operand.vmem [shape: f32[16,128], index: 10, kind: input, shape index: {}]
  %s11 = inlined_call_operand.vmem [shape: f32[16,8], index: 11, kind: input, shape index: {}]
  %s12 = inlined_call_operand.vmem [shape: f32[60,60], index: 12, kind: input, shape index: {}]
  %s13 = inlined_call_operand.vmem [shape: f32[60,60], index: 13, kind: input, shape index: {}]
  %s14 = inlined_call_operand.vmem [shape: f32[128,128], index: 14, kind: input, shape index: {}]
  %s15 = inlined_call_operand.vmem [shape: f32[128,1], index: 15, kind: input, shape index: {}]
  %s16 = inlined_call_operand.vmem [shape: f32[128,384], index: 16, kind: input, shape index: {}]
  %s17 = inlined_call_operand.vmem [shape: f32[128,1], index: 17, kind: input, shape index: {}]
  %s18 = inlined_call_operand.vmem [shape: f32[256,384], index: 18, kind: input, shape index: {}]
  %s19 = inlined_call_operand.vmem [shape: f32[256,1], index: 19, kind: input, shape index: {}]
  %s20 = inlined_call_operand.vmem [shape: f32[8,128], index: 20, kind: input, shape index: {}]
  %s21 = inlined_call_operand.vmem [shape: f32[16,128], index: 21, kind: input, shape index: {}]
  %s22 = inlined_call_operand.vmem [shape: f32[16,8], index: 22, kind: input, shape index: {}]
  %s23 = inlined_call_operand.vmem [shape: f32[60,60], index: 23, kind: input, shape index: {}]
  %s24 = inlined_call_operand.vmem [shape: f32[60,60], index: 24, kind: input, shape index: {}]
  %s25 = inlined_call_operand.vmem [shape: f32[40,128], index: 25, kind: input, shape index: {}]
  %s26 = inlined_call_operand.vmem [shape: f32[5,60,12], index: 26, kind: input, shape index: {}]
  %s27 = inlined_call_operand.<no memory space> [shape: f32[1,1], index: 27, kind: input, shape index: {}]
  %s28 = inlined_call_operand.hbm [shape: f32[2,8,12], index: 28, kind: output, shape index: {}]
  %s29 = sld [smem:[#allocation0]]
  $region122: #{dgcn_mask_forward.1} parent=0
    _
  %s31 = ssub.s32 1, %s29
  %s32 = scalar_select 0, %s31, %s29
  %v33 = vstv %s27
  %34 = vst [vmem:[#allocation2] sm:$0x1] %v33
  $region1: #{dgcn_mask_forward.1} parent=0
    #allocation3 [shape = 'u8[8192]{0}', space=vmem, size = 0x2000, scoped, tag = 'output window, operand 0, single buffered']
    #allocation4 [shape = 's32[1]{0}', space=sflag, size = 0x4, scoped, tag = 'scoped memory for dgcn_mask_forward.1']
    %35 = vsyncpa [#allocation4], 0
    // Predicated region
    $region2: #{dgcn_mask_forward.1} parent=1 // pred_check
      _
    $region3: #{dgcn_mask_forward.1} parent=1 // pred_check_branch
      %37 = sbr.rel (0) target = $region5
    $region4: #{dgcn_mask_forward.1} parent=1 // pred_region
      _
    $region5: #{dgcn_mask_forward.1} parent=1 // pred_fallthru
      _
    // Predicated region
    $region6: #{dgcn_mask_forward.1} parent=1 // pred_check
      _
    $region7: #{dgcn_mask_forward.1} parent=1 // pred_check_branch
      %39 = sbr.rel (0) target = $region9
    $region8: #{dgcn_mask_forward.1} parent=1 // pred_region
      _
    $region9: #{dgcn_mask_forward.1} parent=1 // pred_fallthru
      _
    // Predicated region
    $region10: #{dgcn_mask_forward.1} parent=1 // pred_check
      _
    $region11: #{dgcn_mask_forward.1} parent=1 // pred_check_branch
      %41 = sbr.rel (0) target = $region13
    $region12: #{dgcn_mask_forward.1} parent=1 // pred_region
      _
    $region13: #{dgcn_mask_forward.1} parent=1 // pred_fallthru
      _
    // Predicated region
    $region14: #{dgcn_mask_forward.1} parent=1 // pred_check
      _
    $region15: #{dgcn_mask_forward.1} parent=1 // pred_check_branch
      %43 = sbr.rel (0) target = $region17
    $region16: #{dgcn_mask_forward.1} parent=1 // pred_region
      _
    $region17: #{dgcn_mask_forward.1} parent=1 // pred_fallthru
      _
    // Predicated region
    $region18: #{dgcn_mask_forward.1} parent=1 // pred_check
      _
    $region19: #{dgcn_mask_forward.1} parent=1 // pred_check_branch
      %45 = sbr.rel (0) target = $region21
    $region20: #{dgcn_mask_forward.1} parent=1 // pred_region
      _
    $region21: #{dgcn_mask_forward.1} parent=1 // pred_fallthru
      _
    // Predicated region
    $region22: #{dgcn_mask_forward.1} parent=1 // pred_check
      _
    $region23: #{dgcn_mask_forward.1} parent=1 // pred_check_branch
      %47 = sbr.rel (0) target = $region25
    $region24: #{dgcn_mask_forward.1} parent=1 // pred_region
      _
    $region25: #{dgcn_mask_forward.1} parent=1 // pred_fallthru
      _
    // Predicated region
    $region26: #{dgcn_mask_forward.1} parent=1 // pred_check
      _
    $region27: #{dgcn_mask_forward.1} parent=1 // pred_check_branch
      %49 = sbr.rel (0) target = $region29
    $region28: #{dgcn_mask_forward.1} parent=1 // pred_region
      _
    $region29: #{dgcn_mask_forward.1} parent=1 // pred_fallthru
      _
    // Predicated region
    $region30: #{dgcn_mask_forward.1} parent=1 // pred_check
      _
    $region31: #{dgcn_mask_forward.1} parent=1 // pred_check_branch
      %51 = sbr.rel (0) target = $region33
    $region32: #{dgcn_mask_forward.1} parent=1 // pred_region
      _
    $region33: #{dgcn_mask_forward.1} parent=1 // pred_fallthru
      _
    // Predicated region
    $region34: #{dgcn_mask_forward.1} parent=1 // pred_check
      _
    $region35: #{dgcn_mask_forward.1} parent=1 // pred_check_branch
      %53 = sbr.rel (0) target = $region37
    $region36: #{dgcn_mask_forward.1} parent=1 // pred_region
      _
    $region37: #{dgcn_mask_forward.1} parent=1 // pred_fallthru
      _
    // Predicated region
    $region38: #{dgcn_mask_forward.1} parent=1 // pred_check
      _
    $region39: #{dgcn_mask_forward.1} parent=1 // pred_check_branch
      %55 = sbr.rel (0) target = $region41
    $region40: #{dgcn_mask_forward.1} parent=1 // pred_region
      _
    $region41: #{dgcn_mask_forward.1} parent=1 // pred_fallthru
      _
    // Predicated region
    $region42: #{dgcn_mask_forward.1} parent=1 // pred_check
      _
    $region43: #{dgcn_mask_forward.1} parent=1 // pred_check_branch
      %57 = sbr.rel (0) target = $region45
    $region44: #{dgcn_mask_forward.1} parent=1 // pred_region
      _
    $region45: #{dgcn_mask_forward.1} parent=1 // pred_fallthru
      _
    // Predicated region
    $region46: #{dgcn_mask_forward.1} parent=1 // pred_check
      _
    $region47: #{dgcn_mask_forward.1} parent=1 // pred_check_branch
      %59 = sbr.rel (0) target = $region49
    $region48: #{dgcn_mask_forward.1} parent=1 // pred_region
      _
    $region49: #{dgcn_mask_forward.1} parent=1 // pred_fallthru
      _
    // Predicated region
    $region50: #{dgcn_mask_forward.1} parent=1 // pred_check
      _
    $region51: #{dgcn_mask_forward.1} parent=1 // pred_check_branch
      %61 = sbr.rel (0) target = $region53
    $region52: #{dgcn_mask_forward.1} parent=1 // pred_region
      _
    $region53: #{dgcn_mask_forward.1} parent=1 // pred_fallthru
      _
    // Predicated region
    $region54: #{dgcn_mask_forward.1} parent=1 // pred_check
      _
    $region55: #{dgcn_mask_forward.1} parent=1 // pred_check_branch
      %63 = sbr.rel (0) target = $region57
    $region56: #{dgcn_mask_forward.1} parent=1 // pred_region
      _
    $region57: #{dgcn_mask_forward.1} parent=1 // pred_fallthru
      _
    // Predicated region
    $region58: #{dgcn_mask_forward.1} parent=1 // pred_check
      _
    $region59: #{dgcn_mask_forward.1} parent=1 // pred_check_branch
      %65 = sbr.rel (0) target = $region61
    $region60: #{dgcn_mask_forward.1} parent=1 // pred_region
      _
    $region61: #{dgcn_mask_forward.1} parent=1 // pred_fallthru
      _
    // Predicated region
    $region62: #{dgcn_mask_forward.1} parent=1 // pred_check
      _
    $region63: #{dgcn_mask_forward.1} parent=1 // pred_check_branch
      %67 = sbr.rel (0) target = $region65
    $region64: #{dgcn_mask_forward.1} parent=1 // pred_region
      _
    $region65: #{dgcn_mask_forward.1} parent=1 // pred_fallthru
      _
    // Predicated region
    $region66: #{dgcn_mask_forward.1} parent=1 // pred_check
      _
    $region67: #{dgcn_mask_forward.1} parent=1 // pred_check_branch
      %69 = sbr.rel (0) target = $region69
    $region68: #{dgcn_mask_forward.1} parent=1 // pred_region
      _
    $region69: #{dgcn_mask_forward.1} parent=1 // pred_fallthru
      _
    // Predicated region
    $region70: #{dgcn_mask_forward.1} parent=1 // pred_check
      _
    $region71: #{dgcn_mask_forward.1} parent=1 // pred_check_branch
      %71 = sbr.rel (0) target = $region73
    $region72: #{dgcn_mask_forward.1} parent=1 // pred_region
      _
    $region73: #{dgcn_mask_forward.1} parent=1 // pred_fallthru
      _
    // Predicated region
    $region74: #{dgcn_mask_forward.1} parent=1 // pred_check
      _
    $region75: #{dgcn_mask_forward.1} parent=1 // pred_check_branch
      %73 = sbr.rel (0) target = $region77
    $region76: #{dgcn_mask_forward.1} parent=1 // pred_region
      _
    $region77: #{dgcn_mask_forward.1} parent=1 // pred_fallthru
      _
    // Predicated region
    $region78: #{dgcn_mask_forward.1} parent=1 // pred_check
      _
    $region79: #{dgcn_mask_forward.1} parent=1 // pred_check_branch
      %75 = sbr.rel (0) target = $region81
    $region80: #{dgcn_mask_forward.1} parent=1 // pred_region
      _
    $region81: #{dgcn_mask_forward.1} parent=1 // pred_fallthru
      _
    // Predicated region
    $region82: #{dgcn_mask_forward.1} parent=1 // pred_check
      _
    $region83: #{dgcn_mask_forward.1} parent=1 // pred_check_branch
      %77 = sbr.rel (0) target = $region85
    $region84: #{dgcn_mask_forward.1} parent=1 // pred_region
      _
    $region85: #{dgcn_mask_forward.1} parent=1 // pred_fallthru
      _
    // Predicated region
    $region86: #{dgcn_mask_forward.1} parent=1 // pred_check
      _
    $region87: #{dgcn_mask_forward.1} parent=1 // pred_check_branch
      %79 = sbr.rel (0) target = $region89
    $region88: #{dgcn_mask_forward.1} parent=1 // pred_region
      _
    $region89: #{dgcn_mask_forward.1} parent=1 // pred_fallthru
      _
    // Predicated region
    $region90: #{dgcn_mask_forward.1} parent=1 // pred_check
      _
    $region91: #{dgcn_mask_forward.1} parent=1 // pred_check_branch
      %81 = sbr.rel (0) target = $region93
    $region92: #{dgcn_mask_forward.1} parent=1 // pred_region
      _
    $region93: #{dgcn_mask_forward.1} parent=1 // pred_fallthru
      _
    // Predicated region
    $region94: #{dgcn_mask_forward.1} parent=1 // pred_check
      _
    $region95: #{dgcn_mask_forward.1} parent=1 // pred_check_branch
      %83 = sbr.rel (0) target = $region97
    $region96: #{dgcn_mask_forward.1} parent=1 // pred_region
      _
    $region97: #{dgcn_mask_forward.1} parent=1 // pred_fallthru
      _
    // Predicated region
    $region98: #{dgcn_mask_forward.1} parent=1 // pred_check
      _
    $region99: #{dgcn_mask_forward.1} parent=1 // pred_check_branch
      %85 = sbr.rel (0) target = $region101
    $region100: #{dgcn_mask_forward.1} parent=1 // pred_region
      _
    $region101: #{dgcn_mask_forward.1} parent=1 // pred_fallthru
      _
    // Predicated region
    $region102: #{dgcn_mask_forward.1} parent=1 // pred_check
      _
    $region103: #{dgcn_mask_forward.1} parent=1 // pred_check_branch
      %87 = sbr.rel (0) target = $region105
    $region104: #{dgcn_mask_forward.1} parent=1 // pred_region
      _
    $region105: #{dgcn_mask_forward.1} parent=1 // pred_fallthru
      _
    // Predicated region
    $region106: #{dgcn_mask_forward.1} parent=1 // pred_check
      _
    $region107: #{dgcn_mask_forward.1} parent=1 // pred_check_branch
      %89 = sbr.rel (0) target = $region109
    $region108: #{dgcn_mask_forward.1} parent=1 // pred_region
      _
    $region109: #{dgcn_mask_forward.1} parent=1 // pred_fallthru
      _
    // Predicated region
    $region110: #{dgcn_mask_forward.1} parent=1 // pred_check
      _
    $region111: #{dgcn_mask_forward.1} parent=1 // pred_check_branch
      %91 = sbr.rel (0) target = $region113
    $region112: #{dgcn_mask_forward.1} parent=1 // pred_region
      _
    $region113: #{dgcn_mask_forward.1} parent=1 // pred_fallthru
      _
    %v92 = vld [vmem:[%s1] sm:$0x1]
    %v93 = vld [vmem:[%s2] sm:$0x1]
    %v94 = vld [vmem:[%s0] sm:$0xff]
    %v95 = vld [vmem:[%s0 + $0x8] sm:$0xff]
    %v96 = vld [vmem:[%s3] sm:$0xff]
    %v97 = vld [vmem:[%s3 + $0x8] sm:$0xff]
    %v98 = vld [vmem:[%s3 + $0x10] sm:$0xff]
    %v99 = vld [vmem:[%s3 + $0x18] sm:$0xff]
    %v100 = vld [vmem:[%s3 + $0x20] sm:$0xff]
    %v101 = vld [vmem:[%s3 + $0x28] sm:$0xff]
    %v102 = vld [vmem:[%s3 + $0x30] sm:$0xff]
    %v103 = vld [vmem:[%s3 + $0x38] sm:$0xff]
    %v104 = vld [vmem:[%s3 + $0x40] sm:$0xff]
    %v105 = vld [vmem:[%s3 + $0x48] sm:$0xff]
    %v106 = vld [vmem:[%s3 + $0x50] sm:$0xff]
    %v107 = vld [vmem:[%s3 + $0x58] sm:$0xff]
    %v108 = vld [vmem:[%s3 + $0x60] sm:$0xff]
    %v109 = vld [vmem:[%s3 + $0x68] sm:$0xff]
    %v110 = vld [vmem:[%s3 + $0x70] sm:$0xff]
    %v111 = vld [vmem:[%s3 + $0x78] sm:$0xff]
    %v112 = vld [vmem:[%s4] sm:$0xff]
    %v113 = vld [vmem:[%s4 + $0x8] sm:$0xff]
    %v114 = vld [vmem:[%s4 + $0x10] sm:$0xff]
    %v115 = vld [vmem:[%s4 + $0x18] sm:$0xff]
    %v116 = vld [vmem:[%s4 + $0x20] sm:$0xff]
    %v117 = vld [vmem:[%s4 + $0x28] sm:$0xff]
    %v118 = vld [vmem:[%s4 + $0x30] sm:$0xff]
    %v119 = vld [vmem:[%s4 + $0x38] sm:$0xff]
    %v120 = vld [vmem:[%s4 + $0x40] sm:$0xff]
    %v121 = vld [vmem:[%s4 + $0x48] sm:$0xff]
    %v122 = vld [vmem:[%s4 + $0x50] sm:$0xff]
    %v123 = vld [vmem:[%s4 + $0x58] sm:$0xff]
    %v124 = vld [vmem:[%s4 + $0x60] sm:$0xff]
    %v125 = vld [vmem:[%s4 + $0x68] sm:$0xff]
    %v126 = vld [vmem:[%s4 + $0x70] sm:$0xff]
    %v127 = vld [vmem:[%s4 + $0x78] sm:$0xff]
    %v128 = vld [vmem:[%s5] sm:$0xff]
    %v129 = vld [vmem:[%s5 + $0x8] sm:$0xff]
    %v130 = vld [vmem:[%s5 + $0x10] sm:$0xff]
    %v131 = vld [vmem:[%s5 + $0x18] sm:$0xff]
    %v132 = vld [vmem:[%s5 + $0x20] sm:$0xff]
    %v133 = vld [vmem:[%s5 + $0x28] sm:$0xff]
    %v134 = vld [vmem:[%s5 + $0x30] sm:$0xff]
    %v135 = vld [vmem:[%s5 + $0x38] sm:$0xff]
    %v136 = vld [vmem:[%s5 + $0x40] sm:$0xff]
    %v137 = vld [vmem:[%s5 + $0x48] sm:$0xff]
    %v138 = vld [vmem:[%s5 + $0x50] sm:$0xff]
    %v139 = vld [vmem:[%s5 + $0x58] sm:$0xff]
    %v140 = vld [vmem:[%s5 + $0x60] sm:$0xff]
    %v141 = vld [vmem:[%s5 + $0x68] sm:$0xff]
    %v142 = vld [vmem:[%s5 + $0x70] sm:$0xff]
    %v143 = vld [vmem:[%s5 + $0x78] sm:$0xff]
    %v144 = vld [vmem:[%s6] sm:$0xff]
    %v145 = vld [vmem:[%s6 + $0x8] sm:$0xff]
    %v146 = vld [vmem:[%s6 + $0x10] sm:$0xff]
    %v147 = vld [vmem:[%s6 + $0x18] sm:$0xff]
    %v148 = vld [vmem:[%s6 + $0x20] sm:$0xff]
    %v149 = vld [vmem:[%s6 + $0x28] sm:$0xff]
    %v150 = vld [vmem:[%s6 + $0x30] sm:$0xff]
    %v151 = vld [vmem:[%s6 + $0x38] sm:$0xff]
    %v152 = vld [vmem:[%s6 + $0x40] sm:$0xff]
    %v153 = vld [vmem:[%s6 + $0x48] sm:$0xff]
    %v154 = vld [vmem:[%s6 + $0x50] sm:$0xff]
    %v155 = vld [vmem:[%s6 + $0x58] sm:$0xff]
    %v156 = vld [vmem:[%s6 + $0x60] sm:$0xff]
    %v157 = vld [vmem:[%s6 + $0x68] sm:$0xff]
    %v158 = vld [vmem:[%s6 + $0x70] sm:$0xff]
    %v159 = vld [vmem:[%s6 + $0x78] sm:$0xff]
    %v160 = vld [vmem:[%s7] sm:$0xff]
    %v161 = vld [vmem:[%s7 + $0x8] sm:$0xff]
    %v162 = vld [vmem:[%s7 + $0x10] sm:$0xff]
    %v163 = vld [vmem:[%s7 + $0x18] sm:$0xff]
    %v164 = vld [vmem:[%s7 + $0x20] sm:$0xff]
    %v165 = vld [vmem:[%s7 + $0x28] sm:$0xff]
    %v166 = vld [vmem:[%s7 + $0x30] sm:$0xff]
    %v167 = vld [vmem:[%s7 + $0x38] sm:$0xff]
    %v168 = vld [vmem:[%s7 + $0x40] sm:$0xff]
    %v169 = vld [vmem:[%s7 + $0x48] sm:$0xff]
    %v170 = vld [vmem:[%s7 + $0x50] sm:$0xff]
    %v171 = vld [vmem:[%s7 + $0x58] sm:$0xff]
    %v172 = vld [vmem:[%s7 + $0x60] sm:$0xff]
    %v173 = vld [vmem:[%s7 + $0x68] sm:$0xff]
    %v174 = vld [vmem:[%s7 + $0x70] sm:$0xff]
    %v175 = vld [vmem:[%s7 + $0x78] sm:$0xff]
    %v176 = vld [vmem:[%s7 + $0x80] sm:$0xff]
    %v177 = vld [vmem:[%s7 + $0x88] sm:$0xff]
    %v178 = vld [vmem:[%s7 + $0x90] sm:$0xff]
    %v179 = vld [vmem:[%s7 + $0x98] sm:$0xff]
    %v180 = vld [vmem:[%s7 + $0xa0] sm:$0xff]
    %v181 = vld [vmem:[%s7 + $0xa8] sm:$0xff]
    %v182 = vld [vmem:[%s7 + $0xb0] sm:$0xff]
    %v183 = vld [vmem:[%s7 + $0xb8] sm:$0xff]
    %v184 = vld [vmem:[%s7 + $0xc0] sm:$0xff]
    %v185 = vld [vmem:[%s7 + $0xc8] sm:$0xff]
    %v186 = vld [vmem:[%s7 + $0xd0] sm:$0xff]
    %v187 = vld [vmem:[%s7 + $0xd8] sm:$0xff]
    %v188 = vld [vmem:[%s7 + $0xe0] sm:$0xff]
    %v189 = vld [vmem:[%s7 + $0xe8] sm:$0xff]
    %v190 = vld [vmem:[%s7 + $0xf0] sm:$0xff]
    %v191 = vld [vmem:[%s7 + $0xf8] sm:$0xff]
    %v192 = vld [vmem:[%s7 + $0x100] sm:$0xff]
    %v193 = vld [vmem:[%s7 + $0x108] sm:$0xff]
    %v194 = vld [vmem:[%s7 + $0x110] sm:$0xff]
    %v195 = vld [vmem:[%s7 + $0x118] sm:$0xff]
    %v196 = vld [vmem:[%s7 + $0x120] sm:$0xff]
    %v197 = vld [vmem:[%s7 + $0x128] sm:$0xff]
    %v198 = vld [vmem:[%s7 + $0x130] sm:$0xff]
    %v199 = vld [vmem:[%s7 + $0x138] sm:$0xff]
    %v200 = vld [vmem:[%s7 + $0x140] sm:$0xff]
    %v201 = vld [vmem:[%s7 + $0x148] sm:$0xff]
    %v202 = vld [vmem:[%s7 + $0x150] sm:$0xff]
    %v203 = vld [vmem:[%s7 + $0x158] sm:$0xff]
    %v204 = vld [vmem:[%s7 + $0x160] sm:$0xff]
    %v205 = vld [vmem:[%s7 + $0x168] sm:$0xff]
    %v206 = vld [vmem:[%s7 + $0x170] sm:$0xff]
    %v207 = vld [vmem:[%s7 + $0x178] sm:$0xff]
    %v208 = vld [vmem:[%s7 + $0x180] sm:$0xff]
    %v209 = vld [vmem:[%s7 + $0x188] sm:$0xff]
    %v210 = vld [vmem:[%s7 + $0x190] sm:$0xff]
    %v211 = vld [vmem:[%s7 + $0x198] sm:$0xff]
    %v212 = vld [vmem:[%s7 + $0x1a0] sm:$0xff]
    %v213 = vld [vmem:[%s7 + $0x1a8] sm:$0xff]
    %v214 = vld [vmem:[%s7 + $0x1b0] sm:$0xff]
    %v215 = vld [vmem:[%s7 + $0x1b8] sm:$0xff]
    %v216 = vld [vmem:[%s7 + $0x1c0] sm:$0xff]
    %v217 = vld [vmem:[%s7 + $0x1c8] sm:$0xff]
    %v218 = vld [vmem:[%s7 + $0x1d0] sm:$0xff]
    %v219 = vld [vmem:[%s7 + $0x1d8] sm:$0xff]
    %v220 = vld [vmem:[%s7 + $0x1e0] sm:$0xff]
    %v221 = vld [vmem:[%s7 + $0x1e8] sm:$0xff]
    %v222 = vld [vmem:[%s7 + $0x1f0] sm:$0xff]
    %v223 = vld [vmem:[%s7 + $0x1f8] sm:$0xff]
    %v224 = vld [vmem:[%s7 + $0x200] sm:$0xff]
    %v225 = vld [vmem:[%s7 + $0x208] sm:$0xff]
    %v226 = vld [vmem:[%s7 + $0x210] sm:$0xff]
    %v227 = vld [vmem:[%s7 + $0x218] sm:$0xff]
    %v228 = vld [vmem:[%s7 + $0x220] sm:$0xff]
    %v229 = vld [vmem:[%s7 + $0x228] sm:$0xff]
    %v230 = vld [vmem:[%s7 + $0x230] sm:$0xff]
    %v231 = vld [vmem:[%s7 + $0x238] sm:$0xff]
    %v232 = vld [vmem:[%s7 + $0x240] sm:$0xff]
    %v233 = vld [vmem:[%s7 + $0x248] sm:$0xff]
    %v234 = vld [vmem:[%s7 + $0x250] sm:$0xff]
    %v235 = vld [vmem:[%s7 + $0x258] sm:$0xff]
    %v236 = vld [vmem:[%s7 + $0x260] sm:$0xff]
    %v237 = vld [vmem:[%s7 + $0x268] sm:$0xff]
    %v238 = vld [vmem:[%s7 + $0x270] sm:$0xff]
    %v239 = vld [vmem:[%s7 + $0x278] sm:$0xff]
    %v240 = vld [vmem:[%s7 + $0x280] sm:$0xff]
    %v241 = vld [vmem:[%s7 + $0x288] sm:$0xff]
    %v242 = vld [vmem:[%s7 + $0x290] sm:$0xff]
    %v243 = vld [vmem:[%s7 + $0x298] sm:$0xff]
    %v244 = vld [vmem:[%s7 + $0x2a0] sm:$0xff]
    %v245 = vld [vmem:[%s7 + $0x2a8] sm:$0xff]
    %v246 = vld [vmem:[%s7 + $0x2b0] sm:$0xff]
    %v247 = vld [vmem:[%s7 + $0x2b8] sm:$0xff]
    %v248 = vld [vmem:[%s7 + $0x2c0] sm:$0xff]
    %v249 = vld [vmem:[%s7 + $0x2c8] sm:$0xff]
    %v250 = vld [vmem:[%s7 + $0x2d0] sm:$0xff]
    %v251 = vld [vmem:[%s7 + $0x2d8] sm:$0xff]
    %v252 = vld [vmem:[%s7 + $0x2e0] sm:$0xff]
    %v253 = vld [vmem:[%s7 + $0x2e8] sm:$0xff]
    %v254 = vld [vmem:[%s7 + $0x2f0] sm:$0xff]
    %v255 = vld [vmem:[%s7 + $0x2f8] sm:$0xff]
    %v256 = vld [vmem:[%s8] sm:$0xff]
    %v257 = vld [vmem:[%s8 + $0x8] sm:$0xff]
    %v258 = vld [vmem:[%s8 + $0x10] sm:$0xff]
    %v259 = vld [vmem:[%s8 + $0x18] sm:$0xff]
    %v260 = vld [vmem:[%s8 + $0x20] sm:$0xff]
    %v261 = vld [vmem:[%s8 + $0x28] sm:$0xff]
    %v262 = vld [vmem:[%s8 + $0x30] sm:$0xff]
    %v263 = vld [vmem:[%s8 + $0x38] sm:$0xff]
    %v264 = vld [vmem:[%s8 + $0x40] sm:$0xff]
    %v265 = vld [vmem:[%s8 + $0x48] sm:$0xff]
    %v266 = vld [vmem:[%s8 + $0x50] sm:$0xff]
    %v267 = vld [vmem:[%s8 + $0x58] sm:$0xff]
    %v268 = vld [vmem:[%s8 + $0x60] sm:$0xff]
    %v269 = vld [vmem:[%s8 + $0x68] sm:$0xff]
    %v270 = vld [vmem:[%s8 + $0x70] sm:$0xff]
    %v271 = vld [vmem:[%s8 + $0x78] sm:$0xff]
    %v272 = vld [vmem:[%s8 + $0x80] sm:$0xff]
    %v273 = vld [vmem:[%s8 + $0x88] sm:$0xff]
    %v274 = vld [vmem:[%s8 + $0x90] sm:$0xff]
    %v275 = vld [vmem:[%s8 + $0x98] sm:$0xff]
    %v276 = vld [vmem:[%s8 + $0xa0] sm:$0xff]
    %v277 = vld [vmem:[%s8 + $0xa8] sm:$0xff]
    %v278 = vld [vmem:[%s8 + $0xb0] sm:$0xff]
    %v279 = vld [vmem:[%s8 + $0xb8] sm:$0xff]
    %v280 = vld [vmem:[%s8 + $0xc0] sm:$0xff]
    %v281 = vld [vmem:[%s8 + $0xc8] sm:$0xff]
    %v282 = vld [vmem:[%s8 + $0xd0] sm:$0xff]
    %v283 = vld [vmem:[%s8 + $0xd8] sm:$0xff]
    %v284 = vld [vmem:[%s8 + $0xe0] sm:$0xff]
    %v285 = vld [vmem:[%s8 + $0xe8] sm:$0xff]
    %v286 = vld [vmem:[%s8 + $0xf0] sm:$0xff]
    %v287 = vld [vmem:[%s8 + $0xf8] sm:$0xff]
    %v288 = vld [vmem:[%s9] sm:$0xff]
    %v289 = vld [vmem:[%s10] sm:$0xff]
    %v290 = vld [vmem:[%s10 + $0x8] sm:$0xff]
    %v291 = vld [vmem:[%s11] sm:$0xff]
    %v292 = vld [vmem:[%s11 + $0x8] sm:$0xff]
    %v293 = vld [vmem:[%s12] sm:$0xff]
    %v294 = vld [vmem:[%s12 + $0x8] sm:$0xff]
    %v295 = vld [vmem:[%s12 + $0x10] sm:$0xff]
    %v296 = vld [vmem:[%s12 + $0x18] sm:$0xff]
    %v297 = vld [vmem:[%s12 + $0x20] sm:$0xff]
    %v298 = vld [vmem:[%s12 + $0x28] sm:$0xff]
    %v299 = vld [vmem:[%s12 + $0x30] sm:$0xff]
    %v300 = vld [vmem:[%s12 + $0x38] sm:$0xf]
    %v301 = vld [vmem:[%s13] sm:$0xff]
    %v302 = vld [vmem:[%s13 + $0x8] sm:$0xff]
    %v303 = vld [vmem:[%s13 + $0x10] sm:$0xff]
    %v304 = vld [vmem:[%s13 + $0x18] sm:$0xff]
    %v305 = vld [vmem:[%s13 + $0x20] sm:$0xff]
    %v306 = vld [vmem:[%s13 + $0x28] sm:$0xff]
    %v307 = vld [vmem:[%s13 + $0x30] sm:$0xff]
    %v308 = vld [vmem:[%s13 + $0x38] sm:$0xf]
    %310 = vset.pattern.permute.xlu0 0
    %311 = vperm.xlu0 %310, %v112
    %v312 = vpop.permute.xlu0 %311
    %315 = vset.pattern.permute.xlu0 0
    %316 = vperm.xlu0 %315, %v113
    %v317 = vpop.permute.xlu0 %316
    %320 = vset.pattern.permute.xlu0 0
    %321 = vperm.xlu0 %320, %v114
    %v322 = vpop.permute.xlu0 %321
    %325 = vset.pattern.permute.xlu0 0
    %326 = vperm.xlu0 %325, %v115
    %v327 = vpop.permute.xlu0 %326
    %330 = vset.pattern.permute.xlu0 0
    %331 = vperm.xlu0 %330, %v116
    %v332 = vpop.permute.xlu0 %331
    %335 = vset.pattern.permute.xlu0 0
    %336 = vperm.xlu0 %335, %v117
    %v337 = vpop.permute.xlu0 %336
    %340 = vset.pattern.permute.xlu0 0
    %341 = vperm.xlu0 %340, %v118
    %v342 = vpop.permute.xlu0 %341
    %345 = vset.pattern.permute.xlu0 0
    %346 = vperm.xlu0 %345, %v119
    %v347 = vpop.permute.xlu0 %346
    %350 = vset.pattern.permute.xlu0 0
    %351 = vperm.xlu0 %350, %v120
    %v352 = vpop.permute.xlu0 %351
    %355 = vset.pattern.permute.xlu0 0
    %356 = vperm.xlu0 %355, %v121
    %v357 = vpop.permute.xlu0 %356
    %360 = vset.pattern.permute.xlu0 0
    %361 = vperm.xlu0 %360, %v122
    %v362 = vpop.permute.xlu0 %361
    %365 = vset.pattern.permute.xlu0 0
    %366 = vperm.xlu0 %365, %v123
    %v367 = vpop.permute.xlu0 %366
    %370 = vset.pattern.permute.xlu0 0
    %371 = vperm.xlu0 %370, %v124
    %v372 = vpop.permute.xlu0 %371
    %375 = vset.pattern.permute.xlu0 0
    %376 = vperm.xlu0 %375, %v125
    %v377 = vpop.permute.xlu0 %376
    %380 = vset.pattern.permute.xlu0 0
    %381 = vperm.xlu0 %380, %v126
    %v382 = vpop.permute.xlu0 %381
    %385 = vset.pattern.permute.xlu0 0
    %386 = vperm.xlu0 %385, %v127
    %v387 = vpop.permute.xlu0 %386
    %vm389 = vcmask 130048
    %v391 = vsel %vm389, %v96, 0
    %v394 = vsel %vm389, %v97, 0
    %v397 = vsel %vm389, %v98, 0
    %v400 = vsel %vm389, %v99, 0
    %v403 = vsel %vm389, %v100, 0
    %v406 = vsel %vm389, %v101, 0
    %v409 = vsel %vm389, %v102, 0
    %v412 = vsel %vm389, %v103, 0
    %v415 = vsel %vm389, %v104, 0
    %v418 = vsel %vm389, %v105, 0
    %v421 = vsel %vm389, %v106, 0
    %v424 = vsel %vm389, %v107, 0
    %v427 = vsel %vm389, %v108, 0
    %v430 = vsel %vm389, %v109, 0
    %v433 = vsel %vm389, %v110, 0
    %v436 = vsel %vm389, %v111, 0
    %438 = vmatpush.msra.mxu0 0.0
    %439 = vmatpush.msra.mxu0 0.0
    %440 = vmatpush.msra.mxu0 0.0
    %441 = vmatpush.msra.mxu0 0.0
    %442 = vmatpush.msra.mxu0 0.0
    %443 = vmatpush.msra.mxu0 0.0
    %444 = vmatpush.msra.mxu0 0.0
    %445 = vmatpush.msra.mxu0 0.0
    %446 = vmatpush.msra.mxu0 0.0
    %447 = vmatpush.msra.mxu0 0.0
    %448 = vmatpush.msra.mxu0 0.0
    %449 = vmatpush.msra.mxu0 0.0
    %450 = vmatpush.msra.mxu0 0.0
    %451 = vmatpush.msra.mxu0 0.0
    %452 = vmatpush.msra.mxu0 %v95
    %453 = vmatpush.msra.mxu0 %v94
    %454 = vmatmul.f32.gmra.mxu0 %v391
    %v455 = vpop.f32.mrf.mxu0
    %v456 = vadd.f32 %v312, %v455
    %457 = vmatmul.f32.gmra.mxu0 %v394
    %v458 = vpop.f32.mrf.mxu0
    %v459 = vadd.f32 %v317, %v458
    %460 = vmatmul.f32.gmra.mxu0 %v397
    %v461 = vpop.f32.mrf.mxu0
    %v462 = vadd.f32 %v322, %v461
    %463 = vmatmul.f32.gmra.mxu0 %v400
    %v464 = vpop.f32.mrf.mxu0
    %v465 = vadd.f32 %v327, %v464
    %466 = vmatmul.f32.gmra.mxu0 %v403
    %v467 = vpop.f32.mrf.mxu0
    %v468 = vadd.f32 %v332, %v467
    %469 = vmatmul.f32.gmra.mxu0 %v406
    %v470 = vpop.f32.mrf.mxu0
    %v471 = vadd.f32 %v337, %v470
    %472 = vmatmul.f32.gmra.mxu0 %v409
    %v473 = vpop.f32.mrf.mxu0
    %v474 = vadd.f32 %v342, %v473
    %475 = vmatmul.f32.gmra.mxu0 %v412
    %v476 = vpop.f32.mrf.mxu0
    %v477 = vadd.f32 %v347, %v476
    %478 = vmatmul.f32.gmra.mxu0 %v415
    %v479 = vpop.f32.mrf.mxu0
    %v480 = vadd.f32 %v352, %v479
    %481 = vmatmul.f32.gmra.mxu0 %v418
    %v482 = vpop.f32.mrf.mxu0
    %v483 = vadd.f32 %v357, %v482
    %484 = vmatmul.f32.gmra.mxu0 %v421
    %v485 = vpop.f32.mrf.mxu0
    %v486 = vadd.f32 %v362, %v485
    %487 = vmatmul.f32.gmra.mxu0 %v424
    %v488 = vpop.f32.mrf.mxu0
    %v489 = vadd.f32 %v367, %v488
    %490 = vmatmul.f32.gmra.mxu0 %v427
    %v491 = vpop.f32.mrf.mxu0
    %v492 = vadd.f32 %v372, %v491
    %493 = vmatmul.f32.gmra.mxu0 %v430
    %v494 = vpop.f32.mrf.mxu0
    %v495 = vadd.f32 %v377, %v494
    %496 = vmatmul.f32.gmra.mxu0 %v433
    %v497 = vpop.f32.mrf.mxu0
    %v498 = vadd.f32 %v382, %v497
    %499 = vmatmul.f32.gmra.mxu0 %v436
    %v500 = vpop.f32.mrf.mxu0
    %v501 = vadd.f32 %v387, %v500
    %502 = vdwg.mxu0
    %505 = vrot.lane.b32.xlu0 %v94, 1
    %v506 = vpop.permute.xlu0 %505
    %507 = vrot.lane.b32.xlu0 %v95, 1
    %v508 = vpop.permute.xlu0 %507
    %vm511 = vcmask 7168
    %v512 = vsel %vm511, %v94, %v506
    %v513 = vsel %vm511, %v95, %v508
    %v515 = vperm.slane %v92, 0
    %v517 = vmul.f32 %v512, %v515
    %v518 = vmul.f32 %v513, %v515
    %519 = vrot.lane.b32.xlu0 %v94, 127
    %v520 = vpop.permute.xlu0 %519
    %521 = vrot.lane.b32.xlu0 %v95, 127
    %v522 = vpop.permute.xlu0 %521
    %vm525 = vcmask 973824
    %v526 = vsel %vm525, %v520, %v94
    %v527 = vsel %vm525, %v522, %v95
    %v529 = vperm.slane %v93, 0
    %v531 = vmul.f32 %v526, %v529
    %v532 = vmul.f32 %v527, %v529
    %534 = vset.pattern.permute.xlu0 0
    %535 = vperm.xlu0 %534, %v144
    %v536 = vpop.permute.xlu0 %535
    %539 = vset.pattern.permute.xlu0 0
    %540 = vperm.xlu0 %539, %v145
    %v541 = vpop.permute.xlu0 %540
    %544 = vset.pattern.permute.xlu0 0
    %545 = vperm.xlu0 %544, %v146
    %v546 = vpop.permute.xlu0 %545
    %549 = vset.pattern.permute.xlu0 0
    %550 = vperm.xlu0 %549, %v147
    %v551 = vpop.permute.xlu0 %550
    %554 = vset.pattern.permute.xlu0 0
    %555 = vperm.xlu0 %554, %v148
    %v556 = vpop.permute.xlu0 %555
    %559 = vset.pattern.permute.xlu0 0
    %560 = vperm.xlu0 %559, %v149
    %v561 = vpop.permute.xlu0 %560
    %564 = vset.pattern.permute.xlu0 0
    %565 = vperm.xlu0 %564, %v150
    %v566 = vpop.permute.xlu0 %565
    %569 = vset.pattern.permute.xlu0 0
    %570 = vperm.xlu0 %569, %v151
    %v571 = vpop.permute.xlu0 %570
    %574 = vset.pattern.permute.xlu0 0
    %575 = vperm.xlu0 %574, %v152
    %v576 = vpop.permute.xlu0 %575
    %579 = vset.pattern.permute.xlu0 0
    %580 = vperm.xlu0 %579, %v153
    %v581 = vpop.permute.xlu0 %580
    %584 = vset.pattern.permute.xlu0 0
    %585 = vperm.xlu0 %584, %v154
    %v586 = vpop.permute.xlu0 %585
    %589 = vset.pattern.permute.xlu0 0
    %590 = vperm.xlu0 %589, %v155
    %v591 = vpop.permute.xlu0 %590
    %594 = vset.pattern.permute.xlu0 0
    %595 = vperm.xlu0 %594, %v156
    %v596 = vpop.permute.xlu0 %595
    %599 = vset.pattern.permute.xlu0 0
    %600 = vperm.xlu0 %599, %v157
    %v601 = vpop.permute.xlu0 %600
    %604 = vset.pattern.permute.xlu0 0
    %605 = vperm.xlu0 %604, %v158
    %v606 = vpop.permute.xlu0 %605
    %609 = vset.pattern.permute.xlu0 0
    %610 = vperm.xlu0 %609, %v159
    %v611 = vpop.permute.xlu0 %610
    %vm613 = vcmask 392192
    %v615 = vsel %vm613, %v128, 0
    %v618 = vsel %vm613, %v129, 0
    %v621 = vsel %vm613, %v130, 0
    %v624 = vsel %vm613, %v131, 0
    %v627 = vsel %vm613, %v132, 0
    %v630 = vsel %vm613, %v133, 0
    %v633 = vsel %vm613, %v134, 0
    %v636 = vsel %vm613, %v135, 0
    %v639 = vsel %vm613, %v136, 0
    %v642 = vsel %vm613, %v137, 0
    %v645 = vsel %vm613, %v138, 0
    %v648 = vsel %vm613, %v139, 0
    %v651 = vsel %vm613, %v140, 0
    %v654 = vsel %vm613, %v141, 0
    %v657 = vsel %vm613, %v142, 0
    %v660 = vsel %vm613, %v143, 0
    %662 = vmatpush.msra.mxu0 0.0
    %663 = vmatpush.msra.mxu0 0.0
    %664 = vmatpush.msra.mxu0 0.0
    %665 = vmatpush.msra.mxu0 0.0
    %666 = vmatpush.msra.mxu0 0.0
    %667 = vmatpush.msra.mxu0 0.0
    %668 = vmatpush.msra.mxu0 0.0
    %669 = vmatpush.msra.mxu0 0.0
    %670 = vmatpush.msra.mxu0 0.0
    %671 = vmatpush.msra.mxu0 0.0
    %672 = vmatpush.msra.mxu0 %v532
    %673 = vmatpush.msra.mxu0 %v531
    %674 = vmatpush.msra.mxu0 %v95
    %675 = vmatpush.msra.mxu0 %v94
    %676 = vmatpush.msra.mxu0 %v518
    %677 = vmatpush.msra.mxu0 %v517
    %678 = vmatmul.f32.gmra.mxu0 %v615
    %v679 = vpop.f32.mrf.mxu0
    %v680 = vadd.f32 %v536, %v679
    %681 = vmatmul.f32.gmra.mxu0 %v618
    %v682 = vpop.f32.mrf.mxu0
    %v683 = vadd.f32 %v541, %v682
    %684 = vmatmul.f32.gmra.mxu0 %v621
    %v685 = vpop.f32.mrf.mxu0
    %v686 = vadd.f32 %v546, %v685
    %687 = vmatmul.f32.gmra.mxu0 %v624
    %v688 = vpop.f32.mrf.mxu0
    %v689 = vadd.f32 %v551, %v688
    %690 = vmatmul.f32.gmra.mxu0 %v627
    %v691 = vpop.f32.mrf.mxu0
    %v692 = vadd.f32 %v556, %v691
    %693 = vmatmul.f32.gmra.mxu0 %v630
    %v694 = vpop.f32.mrf.mxu0
    %v695 = vadd.f32 %v561, %v694
    %696 = vmatmul.f32.gmra.mxu0 %v633
    %v697 = vpop.f32.mrf.mxu0
    %v698 = vadd.f32 %v566, %v697
    %699 = vmatmul.f32.gmra.mxu0 %v636
    %v700 = vpop.f32.mrf.mxu0
    %v701 = vadd.f32 %v571, %v700
    %702 = vmatmul.f32.gmra.mxu0 %v639
    %v703 = vpop.f32.mrf.mxu0
    %v704 = vadd.f32 %v576, %v703
    %705 = vmatmul.f32.gmra.mxu0 %v642
    %v706 = vpop.f32.mrf.mxu0
    %v707 = vadd.f32 %v581, %v706
    %708 = vmatmul.f32.gmra.mxu0 %v645
    %v709 = vpop.f32.mrf.mxu0
    %v710 = vadd.f32 %v586, %v709
    %711 = vmatmul.f32.gmra.mxu0 %v648
    %v712 = vpop.f32.mrf.mxu0
    %v713 = vadd.f32 %v591, %v712
    %714 = vmatmul.f32.gmra.mxu0 %v651
    %v715 = vpop.f32.mrf.mxu0
    %v716 = vadd.f32 %v596, %v715
    %717 = vmatmul.f32.gmra.mxu0 %v654
    %v718 = vpop.f32.mrf.mxu0
    %v719 = vadd.f32 %v601, %v718
    %720 = vmatmul.f32.gmra.mxu0 %v657
    %v721 = vpop.f32.mrf.mxu0
    %v722 = vadd.f32 %v606, %v721
    %723 = vmatmul.f32.gmra.mxu0 %v660
    %v724 = vpop.f32.mrf.mxu0
    %v725 = vadd.f32 %v611, %v724
    %726 = vdwg.mxu0
    %vm727 = vcmp.ge.f32.partialorder %v680, 0.0
    %vm728 = vcmp.ge.f32.partialorder %v683, 0.0
    %vm729 = vcmp.ge.f32.partialorder %v686, 0.0
    %vm730 = vcmp.ge.f32.partialorder %v689, 0.0
    %vm731 = vcmp.ge.f32.partialorder %v692, 0.0
    %vm732 = vcmp.ge.f32.partialorder %v695, 0.0
    %vm733 = vcmp.ge.f32.partialorder %v698, 0.0
    %vm734 = vcmp.ge.f32.partialorder %v701, 0.0
    %vm735 = vcmp.ge.f32.partialorder %v704, 0.0
    %vm736 = vcmp.ge.f32.partialorder %v707, 0.0
    %vm737 = vcmp.ge.f32.partialorder %v710, 0.0
    %vm738 = vcmp.ge.f32.partialorder %v713, 0.0
    %vm739 = vcmp.ge.f32.partialorder %v716, 0.0
    %vm740 = vcmp.ge.f32.partialorder %v719, 0.0
    %vm741 = vcmp.ge.f32.partialorder %v722, 0.0
    %vm742 = vcmp.ge.f32.partialorder %v725, 0.0
    %v743 = vmul.f32 %v680, 0.01
    %v744 = vmul.f32 %v683, 0.01
    %v745 = vmul.f32 %v686, 0.01
    %v746 = vmul.f32 %v689, 0.01
    %v747 = vmul.f32 %v692, 0.01
    %v748 = vmul.f32 %v695, 0.01
    %v749 = vmul.f32 %v698, 0.01
    %v750 = vmul.f32 %v701, 0.01
    %v751 = vmul.f32 %v704, 0.01
    %v752 = vmul.f32 %v707, 0.01
    %v753 = vmul.f32 %v710, 0.01
    %v754 = vmul.f32 %v713, 0.01
    %v755 = vmul.f32 %v716, 0.01
    %v756 = vmul.f32 %v719, 0.01
    %v757 = vmul.f32 %v722, 0.01
    %v758 = vmul.f32 %v725, 0.01
    %v759 = vsel %vm727, %v680, %v743
    %v760 = vsel %vm728, %v683, %v744
    %v761 = vsel %vm729, %v686, %v745
    %v762 = vsel %vm730, %v689, %v746
    %v763 = vsel %vm731, %v692, %v747
    %v764 = vsel %vm732, %v695, %v748
    %v765 = vsel %vm733, %v698, %v749
    %v766 = vsel %vm734, %v701, %v750
    %v767 = vsel %vm735, %v704, %v751
    %v768 = vsel %vm736, %v707, %v752
    %v769 = vsel %vm737, %v710, %v753
    %v770 = vsel %vm738, %v713, %v754
    %v771 = vsel %vm739, %v716, %v755
    %v772 = vsel %vm740, %v719, %v756
    %v773 = vsel %vm741, %v722, %v757
    %v774 = vsel %vm742, %v725, %v758
    %791 = vrot.lane.b32.xlu0 %v759, 1
    %v792 = vpop.permute.xlu0 %791
    %793 = vrot.lane.b32.xlu0 %v760, 1
    %v794 = vpop.permute.xlu0 %793
    %795 = vrot.lane.b32.xlu0 %v761, 1
    %v796 = vpop.permute.xlu0 %795
    %797 = vrot.lane.b32.xlu0 %v762, 1
    %v798 = vpop.permute.xlu0 %797
    %799 = vrot.lane.b32.xlu0 %v763, 1
    %v800 = vpop.permute.xlu0 %799
    %801 = vrot.lane.b32.xlu0 %v764, 1
    %v802 = vpop.permute.xlu0 %801
    %803 = vrot.lane.b32.xlu0 %v765, 1
    %v804 = vpop.permute.xlu0 %803
    %805 = vrot.lane.b32.xlu0 %v766, 1
    %v806 = vpop.permute.xlu0 %805
    %807 = vrot.lane.b32.xlu0 %v767, 1
    %v808 = vpop.permute.xlu0 %807
    %809 = vrot.lane.b32.xlu0 %v768, 1
    %v810 = vpop.permute.xlu0 %809
    %811 = vrot.lane.b32.xlu0 %v769, 1
    %v812 = vpop.permute.xlu0 %811
    %813 = vrot.lane.b32.xlu0 %v770, 1
    %v814 = vpop.permute.xlu0 %813
    %815 = vrot.lane.b32.xlu0 %v771, 1
    %v816 = vpop.permute.xlu0 %815
    %817 = vrot.lane.b32.xlu0 %v772, 1
    %v818 = vpop.permute.xlu0 %817
    %819 = vrot.lane.b32.xlu0 %v773, 1
    %v820 = vpop.permute.xlu0 %819
    %821 = vrot.lane.b32.xlu0 %v774, 1
    %v822 = vpop.permute.xlu0 %821
    %v839 = vsel %vm511, %v759, %v792
    %v840 = vsel %vm511, %v760, %v794
    %v841 = vsel %vm511, %v761, %v796
    %v842 = vsel %vm511, %v762, %v798
    %v843 = vsel %vm511, %v763, %v800
    %v844 = vsel %vm511, %v764, %v802
    %v845 = vsel %vm511, %v765, %v804
    %v846 = vsel %vm511, %v766, %v806
    %v847 = vsel %vm511, %v767, %v808
    %v848 = vsel %vm511, %v768, %v810
    %v849 = vsel %vm511, %v769, %v812
    %v850 = vsel %vm511, %v770, %v814
    %v851 = vsel %vm511, %v771, %v816
    %v852 = vsel %vm511, %v772, %v818
    %v853 = vsel %vm511, %v773, %v820
    %v854 = vsel %vm511, %v774, %v822
    %v855 = vmul.f32 %v839, %v515
    %v856 = vmul.f32 %v840, %v515
    %v857 = vmul.f32 %v841, %v515
    %v858 = vmul.f32 %v842, %v515
    %v859 = vmul.f32 %v843, %v515
    %v860 = vmul.f32 %v844, %v515
    %v861 = vmul.f32 %v845, %v515
    %v862 = vmul.f32 %v846, %v515
    %v863 = vmul.f32 %v847, %v515
    %v864 = vmul.f32 %v848, %v515
    %v865 = vmul.f32 %v849, %v515
    %v866 = vmul.f32 %v850, %v515
    %v867 = vmul.f32 %v851, %v515
    %v868 = vmul.f32 %v852, %v515
    %v869 = vmul.f32 %v853, %v515
    %v870 = vmul.f32 %v854, %v515
    %871 = vrot.lane.b32.xlu0 %v759, 127
    %v872 = vpop.permute.xlu0 %871
    %873 = vrot.lane.b32.xlu0 %v760, 127
    %v874 = vpop.permute.xlu0 %873
    %875 = vrot.lane.b32.xlu0 %v761, 127
    %v876 = vpop.permute.xlu0 %875
    %877 = vrot.lane.b32.xlu0 %v762, 127
    %v878 = vpop.permute.xlu0 %877
    %879 = vrot.lane.b32.xlu0 %v763, 127
    %v880 = vpop.permute.xlu0 %879
    %881 = vrot.lane.b32.xlu0 %v764, 127
    %v882 = vpop.permute.xlu0 %881
    %883 = vrot.lane.b32.xlu0 %v765, 127
    %v884 = vpop.permute.xlu0 %883
    %885 = vrot.lane.b32.xlu0 %v766, 127
    %v886 = vpop.permute.xlu0 %885
    %887 = vrot.lane.b32.xlu0 %v767, 127
    %v888 = vpop.permute.xlu0 %887
    %889 = vrot.lane.b32.xlu0 %v768, 127
    %v890 = vpop.permute.xlu0 %889
    %891 = vrot.lane.b32.xlu0 %v769, 127
    %v892 = vpop.permute.xlu0 %891
    %893 = vrot.lane.b32.xlu0 %v770, 127
    %v894 = vpop.permute.xlu0 %893
    %895 = vrot.lane.b32.xlu0 %v771, 127
    %v896 = vpop.permute.xlu0 %895
    %897 = vrot.lane.b32.xlu0 %v772, 127
    %v898 = vpop.permute.xlu0 %897
    %899 = vrot.lane.b32.xlu0 %v773, 127
    %v900 = vpop.permute.xlu0 %899
    %901 = vrot.lane.b32.xlu0 %v774, 127
    %v902 = vpop.permute.xlu0 %901
    %v919 = vsel %vm525, %v872, %v759
    %v920 = vsel %vm525, %v874, %v760
    %v921 = vsel %vm525, %v876, %v761
    %v922 = vsel %vm525, %v878, %v762
    %v923 = vsel %vm525, %v880, %v763
    %v924 = vsel %vm525, %v882, %v764
    %v925 = vsel %vm525, %v884, %v765
    %v926 = vsel %vm525, %v886, %v766
    %v927 = vsel %vm525, %v888, %v767
    %v928 = vsel %vm525, %v890, %v768
    %v929 = vsel %vm525, %v892, %v769
    %v930 = vsel %vm525, %v894, %v770
    %v931 = vsel %vm525, %v896, %v771
    %v932 = vsel %vm525, %v898, %v772
    %v933 = vsel %vm525, %v900, %v773
    %v934 = vsel %vm525, %v902, %v774
    %v935 = vmul.f32 %v919, %v529
    %v936 = vmul.f32 %v920, %v529
    %v937 = vmul.f32 %v921, %v529
    %v938 = vmul.f32 %v922, %v529
    %v939 = vmul.f32 %v923, %v529
    %v940 = vmul.f32 %v924, %v529
    %v941 = vmul.f32 %v925, %v529
    %v942 = vmul.f32 %v926, %v529
    %v943 = vmul.f32 %v927, %v529
    %v944 = vmul.f32 %v928, %v529
    %v945 = vmul.f32 %v929, %v529
    %v946 = vmul.f32 %v930, %v529
    %v947 = vmul.f32 %v931, %v529
    %v948 = vmul.f32 %v932, %v529
    %v949 = vmul.f32 %v933, %v529
    %v950 = vmul.f32 %v934, %v529
    %952 = vset.pattern.permute.xlu0 0
    %953 = vperm.xlu0 %952, %v256
    %v954 = vpop.permute.xlu0 %953
    %957 = vset.pattern.permute.xlu0 0
    %958 = vperm.xlu0 %957, %v257
    %v959 = vpop.permute.xlu0 %958
    %962 = vset.pattern.permute.xlu0 0
    %963 = vperm.xlu0 %962, %v258
    %v964 = vpop.permute.xlu0 %963
    %967 = vset.pattern.permute.xlu0 0
    %968 = vperm.xlu0 %967, %v259
    %v969 = vpop.permute.xlu0 %968
    %972 = vset.pattern.permute.xlu0 0
    %973 = vperm.xlu0 %972, %v260
    %v974 = vpop.permute.xlu0 %973
    %977 = vset.pattern.permute.xlu0 0
    %978 = vperm.xlu0 %977, %v261
    %v979 = vpop.permute.xlu0 %978
    %982 = vset.pattern.permute.xlu0 0
    %983 = vperm.xlu0 %982, %v262
    %v984 = vpop.permute.xlu0 %983
    %987 = vset.pattern.permute.xlu0 0
    %988 = vperm.xlu0 %987, %v263
    %v989 = vpop.permute.xlu0 %988
    %992 = vset.pattern.permute.xlu0 0
    %993 = vperm.xlu0 %992, %v264
    %v994 = vpop.permute.xlu0 %993
    %997 = vset.pattern.permute.xlu0 0
    %998 = vperm.xlu0 %997, %v265
    %v999 = vpop.permute.xlu0 %998
    %1002 = vset.pattern.permute.xlu0 0
    %1003 = vperm.xlu0 %1002, %v266
    %v1004 = vpop.permute.xlu0 %1003
    %1007 = vset.pattern.permute.xlu0 0
    %1008 = vperm.xlu0 %1007, %v267
    %v1009 = vpop.permute.xlu0 %1008
    %1012 = vset.pattern.permute.xlu0 0
    %1013 = vperm.xlu0 %1012, %v268
    %v1014 = vpop.permute.xlu0 %1013
    %1017 = vset.pattern.permute.xlu0 0
    %1018 = vperm.xlu0 %1017, %v269
    %v1019 = vpop.permute.xlu0 %1018
    %1022 = vset.pattern.permute.xlu0 0
    %1023 = vperm.xlu0 %1022, %v270
    %v1024 = vpop.permute.xlu0 %1023
    %1027 = vset.pattern.permute.xlu0 0
    %1028 = vperm.xlu0 %1027, %v271
    %v1029 = vpop.permute.xlu0 %1028
    %1032 = vset.pattern.permute.xlu0 0
    %1033 = vperm.xlu0 %1032, %v272
    %v1034 = vpop.permute.xlu0 %1033
    %1037 = vset.pattern.permute.xlu0 0
    %1038 = vperm.xlu0 %1037, %v273
    %v1039 = vpop.permute.xlu0 %1038
    %1042 = vset.pattern.permute.xlu0 0
    %1043 = vperm.xlu0 %1042, %v274
    %v1044 = vpop.permute.xlu0 %1043
    %1047 = vset.pattern.permute.xlu0 0
    %1048 = vperm.xlu0 %1047, %v275
    %v1049 = vpop.permute.xlu0 %1048
    %1052 = vset.pattern.permute.xlu0 0
    %1053 = vperm.xlu0 %1052, %v276
    %v1054 = vpop.permute.xlu0 %1053
    %1057 = vset.pattern.permute.xlu0 0
    %1058 = vperm.xlu0 %1057, %v277
    %v1059 = vpop.permute.xlu0 %1058
    %1062 = vset.pattern.permute.xlu0 0
    %1063 = vperm.xlu0 %1062, %v278
    %v1064 = vpop.permute.xlu0 %1063
    %1067 = vset.pattern.permute.xlu0 0
    %1068 = vperm.xlu0 %1067, %v279
    %v1069 = vpop.permute.xlu0 %1068
    %1072 = vset.pattern.permute.xlu0 0
    %1073 = vperm.xlu0 %1072, %v280
    %v1074 = vpop.permute.xlu0 %1073
    %1077 = vset.pattern.permute.xlu0 0
    %1078 = vperm.xlu0 %1077, %v281
    %v1079 = vpop.permute.xlu0 %1078
    %1082 = vset.pattern.permute.xlu0 0
    %1083 = vperm.xlu0 %1082, %v282
    %v1084 = vpop.permute.xlu0 %1083
    %1087 = vset.pattern.permute.xlu0 0
    %1088 = vperm.xlu0 %1087, %v283
    %v1089 = vpop.permute.xlu0 %1088
    %1092 = vset.pattern.permute.xlu0 0
    %1093 = vperm.xlu0 %1092, %v284
    %v1094 = vpop.permute.xlu0 %1093
    %1097 = vset.pattern.permute.xlu0 0
    %1098 = vperm.xlu0 %1097, %v285
    %v1099 = vpop.permute.xlu0 %1098
    %1102 = vset.pattern.permute.xlu0 0
    %1103 = vperm.xlu0 %1102, %v286
    %v1104 = vpop.permute.xlu0 %1103
    %1107 = vset.pattern.permute.xlu0 0
    %1108 = vperm.xlu0 %1107, %v287
    %v1109 = vpop.permute.xlu0 %1108
    %1111 = vmatpush.msra.mxu0 %v870
    %1112 = vmatpush.msra.mxu0 %v869
    %1113 = vmatpush.msra.mxu0 %v868
    %1114 = vmatpush.msra.mxu0 %v867
    %1115 = vmatpush.msra.mxu0 %v866
    %1116 = vmatpush.msra.mxu0 %v865
    %1117 = vmatpush.msra.mxu0 %v864
    %1118 = vmatpush.msra.mxu0 %v863
    %1119 = vmatpush.msra.mxu0 %v862
    %1120 = vmatpush.msra.mxu0 %v861
    %1121 = vmatpush.msra.mxu0 %v860
    %1122 = vmatpush.msra.mxu0 %v859
    %1123 = vmatpush.msra.mxu0 %v858
    %1124 = vmatpush.msra.mxu0 %v857
    %1125 = vmatpush.msra.mxu0 %v856
    %1126 = vmatpush.msra.mxu0 %v855
    %1127 = vmatmul.f32.gmra.mxu0 %v160
    %v1128 = vpop.f32.mrf.mxu0
    %v1129 = vadd.f32 %v954, %v1128
    %1130 = vmatmul.f32.gmra.mxu0 %v163
    %v1131 = vpop.f32.mrf.mxu0
    %v1132 = vadd.f32 %v959, %v1131
    %1133 = vmatmul.f32.gmra.mxu0 %v166
    %v1134 = vpop.f32.mrf.mxu0
    %v1135 = vadd.f32 %v964, %v1134
    %1136 = vmatmul.f32.gmra.mxu0 %v169
    %v1137 = vpop.f32.mrf.mxu0
    %v1138 = vadd.f32 %v969, %v1137
    %1139 = vmatmul.f32.gmra.mxu0 %v172
    %v1140 = vpop.f32.mrf.mxu0
    %v1141 = vadd.f32 %v974, %v1140
    %1142 = vmatmul.f32.gmra.mxu0 %v175
    %v1143 = vpop.f32.mrf.mxu0
    %v1144 = vadd.f32 %v979, %v1143
    %1145 = vmatmul.f32.gmra.mxu0 %v178
    %v1146 = vpop.f32.mrf.mxu0
    %v1147 = vadd.f32 %v984, %v1146
    %1148 = vmatmul.f32.gmra.mxu0 %v181
    %v1149 = vpop.f32.mrf.mxu0
    %v1150 = vadd.f32 %v989, %v1149
    %1151 = vmatmul.f32.gmra.mxu0 %v184
    %v1152 = vpop.f32.mrf.mxu0
    %v1153 = vadd.f32 %v994, %v1152
    %1154 = vmatmul.f32.gmra.mxu0 %v187
    %v1155 = vpop.f32.mrf.mxu0
    %v1156 = vadd.f32 %v999, %v1155
    %1157 = vmatmul.f32.gmra.mxu0 %v190
    %v1158 = vpop.f32.mrf.mxu0
    %v1159 = vadd.f32 %v1004, %v1158
    %1160 = vmatmul.f32.gmra.mxu0 %v193
    %v1161 = vpop.f32.mrf.mxu0
    %v1162 = vadd.f32 %v1009, %v1161
    %1163 = vmatmul.f32.gmra.mxu0 %v196
    %v1164 = vpop.f32.mrf.mxu0
    %v1165 = vadd.f32 %v1014, %v1164
    %1166 = vmatmul.f32.gmra.mxu0 %v199
    %v1167 = vpop.f32.mrf.mxu0
    %v1168 = vadd.f32 %v1019, %v1167
    %1169 = vmatmul.f32.gmra.mxu0 %v202
    %v1170 = vpop.f32.mrf.mxu0
    %v1171 = vadd.f32 %v1024, %v1170
    %1172 = vmatmul.f32.gmra.mxu0 %v205
    %v1173 = vpop.f32.mrf.mxu0
    %v1174 = vadd.f32 %v1029, %v1173
    %1175 = vmatmul.f32.gmra.mxu0 %v208
    %v1176 = vpop.f32.mrf.mxu0
    %v1177 = vadd.f32 %v1034, %v1176
    %1178 = vmatmul.f32.gmra.mxu0 %v211
    %v1179 = vpop.f32.mrf.mxu0
    %v1180 = vadd.f32 %v1039, %v1179
    %1181 = vmatmul.f32.gmra.mxu0 %v214
    %v1182 = vpop.f32.mrf.mxu0
    %v1183 = vadd.f32 %v1044, %v1182
    %1184 = vmatmul.f32.gmra.mxu0 %v217
    %v1185 = vpop.f32.mrf.mxu0
    %v1186 = vadd.f32 %v1049, %v1185
    %1187 = vmatmul.f32.gmra.mxu0 %v220
    %v1188 = vpop.f32.mrf.mxu0
    %v1189 = vadd.f32 %v1054, %v1188
    %1190 = vmatmul.f32.gmra.mxu0 %v223
    %v1191 = vpop.f32.mrf.mxu0
    %v1192 = vadd.f32 %v1059, %v1191
    %1193 = vmatmul.f32.gmra.mxu0 %v226
    %v1194 = vpop.f32.mrf.mxu0
    %v1195 = vadd.f32 %v1064, %v1194
    %1196 = vmatmul.f32.gmra.mxu0 %v229
    %v1197 = vpop.f32.mrf.mxu0
    %v1198 = vadd.f32 %v1069, %v1197
    %1199 = vmatmul.f32.gmra.mxu0 %v232
    %v1200 = vpop.f32.mrf.mxu0
    %v1201 = vadd.f32 %v1074, %v1200
    %1202 = vmatmul.f32.gmra.mxu0 %v235
    %v1203 = vpop.f32.mrf.mxu0
    %v1204 = vadd.f32 %v1079, %v1203
    %1205 = vmatmul.f32.gmra.mxu0 %v238
    %v1206 = vpop.f32.mrf.mxu0
    %v1207 = vadd.f32 %v1084, %v1206
    %1208 = vmatmul.f32.gmra.mxu0 %v241
    %v1209 = vpop.f32.mrf.mxu0
    %v1210 = vadd.f32 %v1089, %v1209
    %1211 = vmatmul.f32.gmra.mxu0 %v244
    %v1212 = vpop.f32.mrf.mxu0
    %v1213 = vadd.f32 %v1094, %v1212
    %1214 = vmatmul.f32.gmra.mxu0 %v247
    %v1215 = vpop.f32.mrf.mxu0
    %v1216 = vadd.f32 %v1099, %v1215
    %1217 = vmatmul.f32.gmra.mxu0 %v250
    %v1218 = vpop.f32.mrf.mxu0
    %v1219 = vadd.f32 %v1104, %v1218
    %1220 = vmatmul.f32.gmra.mxu0 %v253
    %v1221 = vpop.f32.mrf.mxu0
    %v1222 = vadd.f32 %v1109, %v1221
    %1223 = vdwg.mxu0
    %1224 = vmatpush.msra.mxu0 %v774
    %1225 = vmatpush.msra.mxu0 %v773
    %1226 = vmatpush.msra.mxu0 %v772
    %1227 = vmatpush.msra.mxu0 %v771
    %1228 = vmatpush.msra.mxu0 %v770
    %1229 = vmatpush.msra.mxu0 %v769
    %1230 = vmatpush.msra.mxu0 %v768
    %1231 = vmatpush.msra.mxu0 %v767
    %1232 = vmatpush.msra.mxu0 %v766
    %1233 = vmatpush.msra.mxu0 %v765
    %1234 = vmatpush.msra.mxu0 %v764
    %1235 = vmatpush.msra.mxu0 %v763
    %1236 = vmatpush.msra.mxu0 %v762
    %1237 = vmatpush.msra.mxu0 %v761
    %1238 = vmatpush.msra.mxu0 %v760
    %1239 = vmatpush.msra.mxu0 %v759
    %1240 = vmatmul.f32.gmra.mxu0 %v161
    %v1241 = vpop.f32.mrf.mxu0
    %v1242 = vadd.f32 %v1129, %v1241
    %1243 = vmatmul.f32.gmra.mxu0 %v164
    %v1244 = vpop.f32.mrf.mxu0
    %v1245 = vadd.f32 %v1132, %v1244
    %1246 = vmatmul.f32.gmra.mxu0 %v167
    %v1247 = vpop.f32.mrf.mxu0
    %v1248 = vadd.f32 %v1135, %v1247
    %1249 = vmatmul.f32.gmra.mxu0 %v170
    %v1250 = vpop.f32.mrf.mxu0
    %v1251 = vadd.f32 %v1138, %v1250
    %1252 = vmatmul.f32.gmra.mxu0 %v173
    %v1253 = vpop.f32.mrf.mxu0
    %v1254 = vadd.f32 %v1141, %v1253
    %1255 = vmatmul.f32.gmra.mxu0 %v176
    %v1256 = vpop.f32.mrf.mxu0
    %v1257 = vadd.f32 %v1144, %v1256
    %1258 = vmatmul.f32.gmra.mxu0 %v179
    %v1259 = vpop.f32.mrf.mxu0
    %v1260 = vadd.f32 %v1147, %v1259
    %1261 = vmatmul.f32.gmra.mxu0 %v182
    %v1262 = vpop.f32.mrf.mxu0
    %v1263 = vadd.f32 %v1150, %v1262
    %1264 = vmatmul.f32.gmra.mxu0 %v185
    %v1265 = vpop.f32.mrf.mxu0
    %v1266 = vadd.f32 %v1153, %v1265
    %1267 = vmatmul.f32.gmra.mxu0 %v188
    %v1268 = vpop.f32.mrf.mxu0
    %v1269 = vadd.f32 %v1156, %v1268
    %1270 = vmatmul.f32.gmra.mxu0 %v191
    %v1271 = vpop.f32.mrf.mxu0
    %v1272 = vadd.f32 %v1159, %v1271
    %1273 = vmatmul.f32.gmra.mxu0 %v194
    %v1274 = vpop.f32.mrf.mxu0
    %v1275 = vadd.f32 %v1162, %v1274
    %1276 = vmatmul.f32.gmra.mxu0 %v197
    %v1277 = vpop.f32.mrf.mxu0
    %v1278 = vadd.f32 %v1165, %v1277
    %1279 = vmatmul.f32.gmra.mxu0 %v200
    %v1280 = vpop.f32.mrf.mxu0
    %v1281 = vadd.f32 %v1168, %v1280
    %1282 = vmatmul.f32.gmra.mxu0 %v203
    %v1283 = vpop.f32.mrf.mxu0
    %v1284 = vadd.f32 %v1171, %v1283
    %1285 = vmatmul.f32.gmra.mxu0 %v206
    %v1286 = vpop.f32.mrf.mxu0
    %v1287 = vadd.f32 %v1174, %v1286
    %1288 = vmatmul.f32.gmra.mxu0 %v209
    %v1289 = vpop.f32.mrf.mxu0
    %v1290 = vadd.f32 %v1177, %v1289
    %1291 = vmatmul.f32.gmra.mxu0 %v212
    %v1292 = vpop.f32.mrf.mxu0
    %v1293 = vadd.f32 %v1180, %v1292
    %1294 = vmatmul.f32.gmra.mxu0 %v215
    %v1295 = vpop.f32.mrf.mxu0
    %v1296 = vadd.f32 %v1183, %v1295
    %1297 = vmatmul.f32.gmra.mxu0 %v218
    %v1298 = vpop.f32.mrf.mxu0
    %v1299 = vadd.f32 %v1186, %v1298
    %1300 = vmatmul.f32.gmra.mxu0 %v221
    %v1301 = vpop.f32.mrf.mxu0
    %v1302 = vadd.f32 %v1189, %v1301
    %1303 = vmatmul.f32.gmra.mxu0 %v224
    %v1304 = vpop.f32.mrf.mxu0
    %v1305 = vadd.f32 %v1192, %v1304
    %1306 = vmatmul.f32.gmra.mxu0 %v227
    %v1307 = vpop.f32.mrf.mxu0
    %v1308 = vadd.f32 %v1195, %v1307
    %1309 = vmatmul.f32.gmra.mxu0 %v230
    %v1310 = vpop.f32.mrf.mxu0
    %v1311 = vadd.f32 %v1198, %v1310
    %1312 = vmatmul.f32.gmra.mxu0 %v233
    %v1313 = vpop.f32.mrf.mxu0
    %v1314 = vadd.f32 %v1201, %v1313
    %1315 = vmatmul.f32.gmra.mxu0 %v236
    %v1316 = vpop.f32.mrf.mxu0
    %v1317 = vadd.f32 %v1204, %v1316
    %1318 = vmatmul.f32.gmra.mxu0 %v239
    %v1319 = vpop.f32.mrf.mxu0
    %v1320 = vadd.f32 %v1207, %v1319
    %1321 = vmatmul.f32.gmra.mxu0 %v242
    %v1322 = vpop.f32.mrf.mxu0
    %v1323 = vadd.f32 %v1210, %v1322
    %1324 = vmatmul.f32.gmra.mxu0 %v245
    %v1325 = vpop.f32.mrf.mxu0
    %v1326 = vadd.f32 %v1213, %v1325
    %1327 = vmatmul.f32.gmra.mxu0 %v248
    %v1328 = vpop.f32.mrf.mxu0
    %v1329 = vadd.f32 %v1216, %v1328
    %1330 = vmatmul.f32.gmra.mxu0 %v251
    %v1331 = vpop.f32.mrf.mxu0
    %v1332 = vadd.f32 %v1219, %v1331
    %1333 = vmatmul.f32.gmra.mxu0 %v254
    %v1334 = vpop.f32.mrf.mxu0
    %v1335 = vadd.f32 %v1222, %v1334
    %1336 = vdwg.mxu0
    %1337 = vmatpush.msra.mxu0 %v950
    %1338 = vmatpush.msra.mxu0 %v949
    %1339 = vmatpush.msra.mxu0 %v948
    %1340 = vmatpush.msra.mxu0 %v947
    %1341 = vmatpush.msra.mxu0 %v946
    %1342 = vmatpush.msra.mxu0 %v945
    %1343 = vmatpush.msra.mxu0 %v944
    %1344 = vmatpush.msra.mxu0 %v943
    %1345 = vmatpush.msra.mxu0 %v942
    %1346 = vmatpush.msra.mxu0 %v941
    %1347 = vmatpush.msra.mxu0 %v940
    %1348 = vmatpush.msra.mxu0 %v939
    %1349 = vmatpush.msra.mxu0 %v938
    %1350 = vmatpush.msra.mxu0 %v937
    %1351 = vmatpush.msra.mxu0 %v936
    %1352 = vmatpush.msra.mxu0 %v935
    %1353 = vmatmul.f32.gmra.mxu0 %v162
    %v1354 = vpop.f32.mrf.mxu0
    %v1355 = vadd.f32 %v1242, %v1354
    %1356 = vmatmul.f32.gmra.mxu0 %v165
    %v1357 = vpop.f32.mrf.mxu0
    %v1358 = vadd.f32 %v1245, %v1357
    %1359 = vmatmul.f32.gmra.mxu0 %v168
    %v1360 = vpop.f32.mrf.mxu0
    %v1361 = vadd.f32 %v1248, %v1360
    %1362 = vmatmul.f32.gmra.mxu0 %v171
    %v1363 = vpop.f32.mrf.mxu0
    %v1364 = vadd.f32 %v1251, %v1363
    %1365 = vmatmul.f32.gmra.mxu0 %v174
    %v1366 = vpop.f32.mrf.mxu0
    %v1367 = vadd.f32 %v1254, %v1366
    %1368 = vmatmul.f32.gmra.mxu0 %v177
    %v1369 = vpop.f32.mrf.mxu0
    %v1370 = vadd.f32 %v1257, %v1369
    %1371 = vmatmul.f32.gmra.mxu0 %v180
    %v1372 = vpop.f32.mrf.mxu0
    %v1373 = vadd.f32 %v1260, %v1372
    %1374 = vmatmul.f32.gmra.mxu0 %v183
    %v1375 = vpop.f32.mrf.mxu0
    %v1376 = vadd.f32 %v1263, %v1375
    %1377 = vmatmul.f32.gmra.mxu0 %v186
    %v1378 = vpop.f32.mrf.mxu0
    %v1379 = vadd.f32 %v1266, %v1378
    %1380 = vmatmul.f32.gmra.mxu0 %v189
    %v1381 = vpop.f32.mrf.mxu0
    %v1382 = vadd.f32 %v1269, %v1381
    %1383 = vmatmul.f32.gmra.mxu0 %v192
    %v1384 = vpop.f32.mrf.mxu0
    %v1385 = vadd.f32 %v1272, %v1384
    %1386 = vmatmul.f32.gmra.mxu0 %v195
    %v1387 = vpop.f32.mrf.mxu0
    %v1388 = vadd.f32 %v1275, %v1387
    %1389 = vmatmul.f32.gmra.mxu0 %v198
    %v1390 = vpop.f32.mrf.mxu0
    %v1391 = vadd.f32 %v1278, %v1390
    %1392 = vmatmul.f32.gmra.mxu0 %v201
    %v1393 = vpop.f32.mrf.mxu0
    %v1394 = vadd.f32 %v1281, %v1393
    %1395 = vmatmul.f32.gmra.mxu0 %v204
    %v1396 = vpop.f32.mrf.mxu0
    %v1397 = vadd.f32 %v1284, %v1396
    %1398 = vmatmul.f32.gmra.mxu0 %v207
    %v1399 = vpop.f32.mrf.mxu0
    %v1400 = vadd.f32 %v1287, %v1399
    %1401 = vmatmul.f32.gmra.mxu0 %v210
    %v1402 = vpop.f32.mrf.mxu0
    %v1403 = vadd.f32 %v1290, %v1402
    %1404 = vmatmul.f32.gmra.mxu0 %v213
    %v1405 = vpop.f32.mrf.mxu0
    %v1406 = vadd.f32 %v1293, %v1405
    %1407 = vmatmul.f32.gmra.mxu0 %v216
    %v1408 = vpop.f32.mrf.mxu0
    %v1409 = vadd.f32 %v1296, %v1408
    %1410 = vmatmul.f32.gmra.mxu0 %v219
    %v1411 = vpop.f32.mrf.mxu0
    %v1412 = vadd.f32 %v1299, %v1411
    %1413 = vmatmul.f32.gmra.mxu0 %v222
    %v1414 = vpop.f32.mrf.mxu0
    %v1415 = vadd.f32 %v1302, %v1414
    %1416 = vmatmul.f32.gmra.mxu0 %v225
    %v1417 = vpop.f32.mrf.mxu0
    %v1418 = vadd.f32 %v1305, %v1417
    %1419 = vmatmul.f32.gmra.mxu0 %v228
    %v1420 = vpop.f32.mrf.mxu0
    %v1421 = vadd.f32 %v1308, %v1420
    %1422 = vmatmul.f32.gmra.mxu0 %v231
    %v1423 = vpop.f32.mrf.mxu0
    %v1424 = vadd.f32 %v1311, %v1423
    %1425 = vmatmul.f32.gmra.mxu0 %v234
    %v1426 = vpop.f32.mrf.mxu0
    %v1427 = vadd.f32 %v1314, %v1426
    %1428 = vmatmul.f32.gmra.mxu0 %v237
    %v1429 = vpop.f32.mrf.mxu0
    %v1430 = vadd.f32 %v1317, %v1429
    %1431 = vmatmul.f32.gmra.mxu0 %v240
    %v1432 = vpop.f32.mrf.mxu0
    %v1433 = vadd.f32 %v1320, %v1432
    %1434 = vmatmul.f32.gmra.mxu0 %v243
    %v1435 = vpop.f32.mrf.mxu0
    %v1436 = vadd.f32 %v1323, %v1435
    %1437 = vmatmul.f32.gmra.mxu0 %v246
    %v1438 = vpop.f32.mrf.mxu0
    %v1439 = vadd.f32 %v1326, %v1438
    %1440 = vmatmul.f32.gmra.mxu0 %v249
    %v1441 = vpop.f32.mrf.mxu0
    %v1442 = vadd.f32 %v1329, %v1441
    %1443 = vmatmul.f32.gmra.mxu0 %v252
    %v1444 = vpop.f32.mrf.mxu0
    %v1445 = vadd.f32 %v1332, %v1444
    %1446 = vmatmul.f32.gmra.mxu0 %v255
    %v1447 = vpop.f32.mrf.mxu0
    %v1448 = vadd.f32 %v1335, %v1447
    %1449 = vdwg.mxu0
    %v1450 = vsub.f32 0.0, %v1403
    %v1451 = vsub.f32 0.0, %v1406
    %v1452 = vsub.f32 0.0, %v1409
    %v1453 = vsub.f32 0.0, %v1412
    %v1454 = vsub.f32 0.0, %v1415
    %v1455 = vsub.f32 0.0, %v1418
    %v1456 = vsub.f32 0.0, %v1421
    %v1457 = vsub.f32 0.0, %v1424
    %v1458 = vsub.f32 0.0, %v1427
    %v1459 = vsub.f32 0.0, %v1430
    %v1460 = vsub.f32 0.0, %v1433
    %v1461 = vsub.f32 0.0, %v1436
    %v1462 = vsub.f32 0.0, %v1439
    %v1463 = vsub.f32 0.0, %v1442
    %v1464 = vsub.f32 0.0, %v1445
    %v1465 = vsub.f32 0.0, %v1448
    %v1466 = vmul.f32 %v1450, 1.442695
    %v1467 = vpow.pop %v1466
    %v1468 = vmul.f32 %v1451, 1.442695
    %v1469 = vpow.pop %v1468
    %v1470 = vmul.f32 %v1452, 1.442695
    %v1471 = vpow.pop %v1470
    %v1472 = vmul.f32 %v1453, 1.442695
    %v1473 = vpow.pop %v1472
    %v1474 = vmul.f32 %v1454, 1.442695
    %v1475 = vpow.pop %v1474
    %v1476 = vmul.f32 %v1455, 1.442695
    %v1477 = vpow.pop %v1476
    %v1478 = vmul.f32 %v1456, 1.442695
    %v1479 = vpow.pop %v1478
    %v1480 = vmul.f32 %v1457, 1.442695
    %v1481 = vpow.pop %v1480
    %v1482 = vmul.f32 %v1458, 1.442695
    %v1483 = vpow.pop %v1482
    %v1484 = vmul.f32 %v1459, 1.442695
    %v1485 = vpow.pop %v1484
    %v1486 = vmul.f32 %v1460, 1.442695
    %v1487 = vpow.pop %v1486
    %v1488 = vmul.f32 %v1461, 1.442695
    %v1489 = vpow.pop %v1488
    %v1490 = vmul.f32 %v1462, 1.442695
    %v1491 = vpow.pop %v1490
    %v1492 = vmul.f32 %v1463, 1.442695
    %v1493 = vpow.pop %v1492
    %v1494 = vmul.f32 %v1464, 1.442695
    %v1495 = vpow.pop %v1494
    %v1496 = vmul.f32 %v1465, 1.442695
    %v1497 = vpow.pop %v1496
    %v1498 = vadd.f32 %v1467, 1.0
    %v1499 = vadd.f32 %v1469, 1.0
    %v1500 = vadd.f32 %v1471, 1.0
    %v1501 = vadd.f32 %v1473, 1.0
    %v1502 = vadd.f32 %v1475, 1.0
    %v1503 = vadd.f32 %v1477, 1.0
    %v1504 = vadd.f32 %v1479, 1.0
    %v1505 = vadd.f32 %v1481, 1.0
    %v1506 = vadd.f32 %v1483, 1.0
    %v1507 = vadd.f32 %v1485, 1.0
    %v1508 = vadd.f32 %v1487, 1.0
    %v1509 = vadd.f32 %v1489, 1.0
    %v1510 = vadd.f32 %v1491, 1.0
    %v1511 = vadd.f32 %v1493, 1.0
    %v1512 = vadd.f32 %v1495, 1.0
    %v1513 = vadd.f32 %v1497, 1.0
    %v1514 = vrcp.pop %v1498
    %v1515 = vrcp.pop %v1499
    %v1516 = vrcp.pop %v1500
    %v1517 = vrcp.pop %v1501
    %v1518 = vrcp.pop %v1502
    %v1519 = vrcp.pop %v1503
    %v1520 = vrcp.pop %v1504
    %v1521 = vrcp.pop %v1505
    %v1522 = vrcp.pop %v1506
    %v1523 = vrcp.pop %v1507
    %v1524 = vrcp.pop %v1508
    %v1525 = vrcp.pop %v1509
    %v1526 = vrcp.pop %v1510
    %v1527 = vrcp.pop %v1511
    %v1528 = vrcp.pop %v1512
    %v1529 = vrcp.pop %v1513
    %vm1530 = vcmp.ge.f32.partialorder %v1355, 0.0
    %vm1531 = vcmp.ge.f32.partialorder %v1358, 0.0
    %vm1532 = vcmp.ge.f32.partialorder %v1361, 0.0
    %vm1533 = vcmp.ge.f32.partialorder %v1364, 0.0
    %vm1534 = vcmp.ge.f32.partialorder %v1367, 0.0
    %vm1535 = vcmp.ge.f32.partialorder %v1370, 0.0
    %vm1536 = vcmp.ge.f32.partialorder %v1373, 0.0
    %vm1537 = vcmp.ge.f32.partialorder %v1376, 0.0
    %vm1538 = vcmp.ge.f32.partialorder %v1379, 0.0
    %vm1539 = vcmp.ge.f32.partialorder %v1382, 0.0
    %vm1540 = vcmp.ge.f32.partialorder %v1385, 0.0
    %vm1541 = vcmp.ge.f32.partialorder %v1388, 0.0
    %vm1542 = vcmp.ge.f32.partialorder %v1391, 0.0
    %vm1543 = vcmp.ge.f32.partialorder %v1394, 0.0
    %vm1544 = vcmp.ge.f32.partialorder %v1397, 0.0
    %vm1545 = vcmp.ge.f32.partialorder %v1400, 0.0
    %v1546 = vmul.f32 %v1355, 0.01
    %v1547 = vmul.f32 %v1358, 0.01
    %v1548 = vmul.f32 %v1361, 0.01
    %v1549 = vmul.f32 %v1364, 0.01
    %v1550 = vmul.f32 %v1367, 0.01
    %v1551 = vmul.f32 %v1370, 0.01
    %v1552 = vmul.f32 %v1373, 0.01
    %v1553 = vmul.f32 %v1376, 0.01
    %v1554 = vmul.f32 %v1379, 0.01
    %v1555 = vmul.f32 %v1382, 0.01
    %v1556 = vmul.f32 %v1385, 0.01
    %v1557 = vmul.f32 %v1388, 0.01
    %v1558 = vmul.f32 %v1391, 0.01
    %v1559 = vmul.f32 %v1394, 0.01
    %v1560 = vmul.f32 %v1397, 0.01
    %v1561 = vmul.f32 %v1400, 0.01
    %v1562 = vsel %vm1530, %v1355, %v1546
    %v1563 = vsel %vm1531, %v1358, %v1547
    %v1564 = vsel %vm1532, %v1361, %v1548
    %v1565 = vsel %vm1533, %v1364, %v1549
    %v1566 = vsel %vm1534, %v1367, %v1550
    %v1567 = vsel %vm1535, %v1370, %v1551
    %v1568 = vsel %vm1536, %v1373, %v1552
    %v1569 = vsel %vm1537, %v1376, %v1553
    %v1570 = vsel %vm1538, %v1379, %v1554
    %v1571 = vsel %vm1539, %v1382, %v1555
    %v1572 = vsel %vm1540, %v1385, %v1556
    %v1573 = vsel %vm1541, %v1388, %v1557
    %v1574 = vsel %vm1542, %v1391, %v1558
    %v1575 = vsel %vm1543, %v1394, %v1559
    %v1576 = vsel %vm1544, %v1397, %v1560
    %v1577 = vsel %vm1545, %v1400, %v1561
    %v1578 = vmul.f32 %v1514, %v1562
    %v1579 = vmul.f32 %v1515, %v1563
    %v1580 = vmul.f32 %v1516, %v1564
    %v1581 = vmul.f32 %v1517, %v1565
    %v1582 = vmul.f32 %v1518, %v1566
    %v1583 = vmul.f32 %v1519, %v1567
    %v1584 = vmul.f32 %v1520, %v1568
    %v1585 = vmul.f32 %v1521, %v1569
    %v1586 = vmul.f32 %v1522, %v1570
    %v1587 = vmul.f32 %v1523, %v1571
    %v1588 = vmul.f32 %v1524, %v1572
    %v1589 = vmul.f32 %v1525, %v1573
    %v1590 = vmul.f32 %v1526, %v1574
    %v1591 = vmul.f32 %v1527, %v1575
    %v1592 = vmul.f32 %v1528, %v1576
    %v1593 = vmul.f32 %v1529, %v1577
    %1594 = vmatpush.msra.mxu0 %v1593
    %1595 = vmatpush.msra.mxu0 %v1592
    %1596 = vmatpush.msra.mxu0 %v1591
    %1597 = vmatpush.msra.mxu0 %v1590
    %1598 = vmatpush.msra.mxu0 %v1589
    %1599 = vmatpush.msra.mxu0 %v1588
    %1600 = vmatpush.msra.mxu0 %v1587
    %1601 = vmatpush.msra.mxu0 %v1586
    %1602 = vmatpush.msra.mxu0 %v1585
    %1603 = vmatpush.msra.mxu0 %v1584
    %1604 = vmatpush.msra.mxu0 %v1583
    %1605 = vmatpush.msra.mxu0 %v1582
    %1606 = vmatpush.msra.mxu0 %v1581
    %1607 = vmatpush.msra.mxu0 %v1580
    %1608 = vmatpush.msra.mxu0 %v1579
    %1609 = vmatpush.msra.mxu0 %v1578
    %1610 = vmatmul.f32.gmra.mxu0 %v288
    %v1611 = vpop.f32.mrf.mxu0
    %v1612 = vadd.f32 0.0, %v1611
    %1613 = vdwg.mxu0
    %1614 = vmatpush.msra.mxu0 %v1593
    %1615 = vmatpush.msra.mxu0 %v1592
    %1616 = vmatpush.msra.mxu0 %v1591
    %1617 = vmatpush.msra.mxu0 %v1590
    %1618 = vmatpush.msra.mxu0 %v1589
    %1619 = vmatpush.msra.mxu0 %v1588
    %1620 = vmatpush.msra.mxu0 %v1587
    %1621 = vmatpush.msra.mxu0 %v1586
    %1622 = vmatpush.msra.mxu0 %v1585
    %1623 = vmatpush.msra.mxu0 %v1584
    %1624 = vmatpush.msra.mxu0 %v1583
    %1625 = vmatpush.msra.mxu0 %v1582
    %1626 = vmatpush.msra.mxu0 %v1581
    %1627 = vmatpush.msra.mxu0 %v1580
    %1628 = vmatpush.msra.mxu0 %v1579
    %1629 = vmatpush.msra.mxu0 %v1578
    %1630 = vmatmul.f32.gmra.mxu0 %v289
    %v1631 = vpop.f32.mrf.mxu0
    %v1632 = vadd.f32 0.0, %v1631
    %1633 = vmatmul.f32.gmra.mxu0 %v290
    %v1634 = vpop.f32.mrf.mxu0
    %v1635 = vadd.f32 0.0, %v1634
    %1636 = vdwg.mxu0
    %vm1637 = vcmask 64512
    %v1639 = vsel %vm1637, %v291, 0
    %v1642 = vsel %vm1637, %v292, 0
    %1644 = vmatpush.msra.mxu0 0.0
    %1645 = vmatpush.msra.mxu0 0.0
    %1646 = vmatpush.msra.mxu0 0.0
    %1647 = vmatpush.msra.mxu0 0.0
    %1648 = vmatpush.msra.mxu0 0.0
    %1649 = vmatpush.msra.mxu0 0.0
    %1650 = vmatpush.msra.mxu0 0.0
    %1651 = vmatpush.msra.mxu0 0.0
    %1652 = vmatpush.msra.mxu0 0.0
    %1653 = vmatpush.msra.mxu0 0.0
    %1654 = vmatpush.msra.mxu0 0.0
    %1655 = vmatpush.msra.mxu0 0.0
    %1656 = vmatpush.msra.mxu0 0.0
    %1657 = vmatpush.msra.mxu0 0.0
    %1658 = vmatpush.msra.mxu0 0.0
    %1659 = vmatpush.msra.mxu0 %v1612
    %1660 = vmatmul.f32.gmra.mxu0 %v1639
    %v1661 = vpop.f32.mrf.mxu0
    %v1662 = vadd.f32 0.0, %v1661
    %1663 = vmatmul.f32.gmra.mxu0 %v1642
    %v1664 = vpop.f32.mrf.mxu0
    %v1665 = vadd.f32 0.0, %v1664
    %1666 = vdwg.mxu0
    %1667 = vxpose.xlu0.b32.start [1/16] %v1632, 128
    %1668 = vxpose.xlu0.b32.cont [2/16] %v1635, 128
    %1669 = vxpose.xlu0.b32.cont [3/16] 0.0, 128
    %1670 = vxpose.xlu0.b32.cont [4/16] 0.0, 128
    %1671 = vxpose.xlu0.b32.cont [5/16] 0.0, 128
    %1672 = vxpose.xlu0.b32.cont [6/16] 0.0, 128
    %1673 = vxpose.xlu0.b32.cont [7/16] 0.0, 128
    %1674 = vxpose.xlu0.b32.cont [8/16] 0.0, 128
    %1675 = vxpose.xlu0.b32.cont [9/16] 0.0, 128
    %1676 = vxpose.xlu0.b32.cont [10/16] 0.0, 128
    %1677 = vxpose.xlu0.b32.cont [11/16] 0.0, 128
    %1678 = vxpose.xlu0.b32.cont [12/16] 0.0, 128
    %1679 = vxpose.xlu0.b32.cont [13/16] 0.0, 128
    %1680 = vxpose.xlu0.b32.cont [14/16] 0.0, 128
    %1681 = vxpose.xlu0.b32.cont [15/16] 0.0, 128
    %1682 = vxpose.xlu0.b32.end [16/16] 0.0, 128
    %v1683 = vpop.trf.xlu0
    %v1684 = vpop.trf.xlu0
    %v1685 = vpop.trf.xlu0
    %v1686 = vpop.trf.xlu0
    %v1687 = vpop.trf.xlu0
    %v1688 = vpop.trf.xlu0
    %v1689 = vpop.trf.xlu0
    %v1690 = vpop.trf.xlu0
    %v1691 = vpop.trf.xlu0
    %v1692 = vpop.trf.xlu0
    %v1693 = vpop.trf.xlu0
    %v1694 = vpop.trf.xlu0
    %v1695 = vpop.trf.xlu0
    %v1696 = vpop.trf.xlu0
    %v1697 = vpop.trf.xlu0
    %v1698 = vpop.trf.xlu0
    %v1700 = vsel %vm389, %v1683, 0
    %v1703 = vsel %vm389, %v1684, 0
    %v1706 = vsel %vm389, %v1685, 0
    %v1709 = vsel %vm389, %v1686, 0
    %v1712 = vsel %vm389, %v1687, 0
    %v1715 = vsel %vm389, %v1688, 0
    %v1718 = vsel %vm389, %v1689, 0
    %v1721 = vsel %vm389, %v1690, 0
    %1723 = vmatpush.msra.mxu0 0.0
    %1724 = vmatpush.msra.mxu0 0.0
    %1725 = vmatpush.msra.mxu0 0.0
    %1726 = vmatpush.msra.mxu0 0.0
    %1727 = vmatpush.msra.mxu0 0.0
    %1728 = vmatpush.msra.mxu0 0.0
    %1729 = vmatpush.msra.mxu0 0.0
    %1730 = vmatpush.msra.mxu0 0.0
    %1731 = vmatpush.msra.mxu0 0.0
    %1732 = vmatpush.msra.mxu0 0.0
    %1733 = vmatpush.msra.mxu0 0.0
    %1734 = vmatpush.msra.mxu0 0.0
    %1735 = vmatpush.msra.mxu0 0.0
    %1736 = vmatpush.msra.mxu0 0.0
    %1737 = vmatpush.msra.mxu0 %v1665
    %1738 = vmatpush.msra.mxu0 %v1662
    %1739 = vmatmul.f32.gmra.mxu0 %v1700
    %v1740 = vpop.f32.mrf.mxu0
    %v1741 = vadd.f32 %v293, %v1740
    %1742 = vmatmul.f32.gmra.mxu0 %v1703
    %v1743 = vpop.f32.mrf.mxu0
    %v1744 = vadd.f32 %v294, %v1743
    %1745 = vmatmul.f32.gmra.mxu0 %v1706
    %v1746 = vpop.f32.mrf.mxu0
    %v1747 = vadd.f32 %v295, %v1746
    %1748 = vmatmul.f32.gmra.mxu0 %v1709
    %v1749 = vpop.f32.mrf.mxu0
    %v1750 = vadd.f32 %v296, %v1749
    %1751 = vmatmul.f32.gmra.mxu0 %v1712
    %v1752 = vpop.f32.mrf.mxu0
    %v1753 = vadd.f32 %v297, %v1752
    %1754 = vmatmul.f32.gmra.mxu0 %v1715
    %v1755 = vpop.f32.mrf.mxu0
    %v1756 = vadd.f32 %v298, %v1755
    %1757 = vmatmul.f32.gmra.mxu0 %v1718
    %v1758 = vpop.f32.mrf.mxu0
    %v1759 = vadd.f32 %v299, %v1758
    %1760 = vmatmul.f32.gmra.mxu0 %v1721
    %v1761 = vpop.f32.mrf.mxu0
    %v1762 = vadd.f32 %v300, %v1761
    %1763 = vdwg.mxu0
    %v1764 = vsub.f32 0.0, %v1741
    %v1765 = vsub.f32 0.0, %v1744
    %v1766 = vsub.f32 0.0, %v1747
    %v1767 = vsub.f32 0.0, %v1750
    %v1768 = vsub.f32 0.0, %v1753
    %v1769 = vsub.f32 0.0, %v1756
    %v1770 = vsub.f32 0.0, %v1759
    %v1771 = vsub.f32 0.0, %v1762
    %v1772 = vmul.f32 %v1764, 1.442695
    %v1773 = vpow.pop %v1772
    %v1774 = vmul.f32 %v1765, 1.442695
    %v1775 = vpow.pop %v1774
    %v1776 = vmul.f32 %v1766, 1.442695
    %v1777 = vpow.pop %v1776
    %v1778 = vmul.f32 %v1767, 1.442695
    %v1779 = vpow.pop %v1778
    %v1780 = vmul.f32 %v1768, 1.442695
    %v1781 = vpow.pop %v1780
    %v1782 = vmul.f32 %v1769, 1.442695
    %v1783 = vpow.pop %v1782
    %v1784 = vmul.f32 %v1770, 1.442695
    %v1785 = vpow.pop %v1784
    %v1786 = vmul.f32 %v1771, 1.442695
    %v1787 = vpow.pop %v1786
    %v1788 = vadd.f32 %v1773, 1.0
    %v1789 = vadd.f32 %v1775, 1.0
    %v1790 = vadd.f32 %v1777, 1.0
    %v1791 = vadd.f32 %v1779, 1.0
    %v1792 = vadd.f32 %v1781, 1.0
    %v1793 = vadd.f32 %v1783, 1.0
    %v1794 = vadd.f32 %v1785, 1.0
    %v1795 = vadd.f32 %v1787, 1.0
    %v1796 = vrcp.pop %v1788
    %v1797 = vrcp.pop %v1789
    %v1798 = vrcp.pop %v1790
    %v1799 = vrcp.pop %v1791
    %v1800 = vrcp.pop %v1792
    %v1801 = vrcp.pop %v1793
    %v1802 = vrcp.pop %v1794
    %v1803 = vrcp.pop %v1795
    %vm1804 = vcmask 490496
    %v1806 = vsel %vm1804, %v1796, 0
    %v1809 = vsel %vm1804, %v1797, 0
    %v1812 = vsel %vm1804, %v1798, 0
    %v1815 = vsel %vm1804, %v1799, 0
    %v1818 = vsel %vm1804, %v1800, 0
    %v1821 = vsel %vm1804, %v1801, 0
    %v1824 = vsel %vm1804, %v1802, 0
    %v1827 = vsel %vm1804, %v1803, 0
    %vm1829 = vcmask 1043456
    %v1831 = vsel %vm1829, %v308, 0
    %1833 = vmatpush.msra.mxu0 0.0
    %1834 = vmatpush.msra.mxu0 0.0
    %1835 = vmatpush.msra.mxu0 0.0
    %1836 = vmatpush.msra.mxu0 0.0
    %1837 = vmatpush.msra.mxu0 0.0
    %1838 = vmatpush.msra.mxu0 0.0
    %1839 = vmatpush.msra.mxu0 0.0
    %1840 = vmatpush.msra.mxu0 0.0
    %1841 = vmatpush.msra.mxu0 %v1831
    %1842 = vmatpush.msra.mxu0 %v307
    %1843 = vmatpush.msra.mxu0 %v306
    %1844 = vmatpush.msra.mxu0 %v305
    %1845 = vmatpush.msra.mxu0 %v304
    %1846 = vmatpush.msra.mxu0 %v303
    %1847 = vmatpush.msra.mxu0 %v302
    %1848 = vmatpush.msra.mxu0 %v301
    %1849 = vmatmul.f32.gmra.mxu0 %v1806
    %v1850 = vpop.f32.mrf.mxu0
    %v1851 = vadd.f32 0.0, %v1850
    %1852 = vmatmul.f32.gmra.mxu0 %v1809
    %v1853 = vpop.f32.mrf.mxu0
    %v1854 = vadd.f32 0.0, %v1853
    %1855 = vmatmul.f32.gmra.mxu0 %v1812
    %v1856 = vpop.f32.mrf.mxu0
    %v1857 = vadd.f32 0.0, %v1856
    %1858 = vmatmul.f32.gmra.mxu0 %v1815
    %v1859 = vpop.f32.mrf.mxu0
    %v1860 = vadd.f32 0.0, %v1859
    %1861 = vmatmul.f32.gmra.mxu0 %v1818
    %v1862 = vpop.f32.mrf.mxu0
    %v1863 = vadd.f32 0.0, %v1862
    %1864 = vmatmul.f32.gmra.mxu0 %v1821
    %v1865 = vpop.f32.mrf.mxu0
    %v1866 = vadd.f32 0.0, %v1865
    %1867 = vmatmul.f32.gmra.mxu0 %v1824
    %v1868 = vpop.f32.mrf.mxu0
    %v1869 = vadd.f32 0.0, %v1868
    %1870 = vmatmul.f32.gmra.mxu0 %v1827
    %v1871 = vpop.f32.mrf.mxu0
    %v1872 = vadd.f32 0.0, %v1871
    %1873 = vdwg.mxu0
    %v1874 = vmul.f32 %v1851, 0.999995
    %v1875 = vmul.f32 %v1854, 0.999995
    %v1876 = vmul.f32 %v1857, 0.999995
    %v1877 = vmul.f32 %v1860, 0.999995
    %v1878 = vmul.f32 %v1863, 0.999995
    %v1879 = vmul.f32 %v1866, 0.999995
    %v1880 = vmul.f32 %v1869, 0.999995
    %v1881 = vmul.f32 %v1872, 0.999995
    %v1882 = vsel %vm1804, %v1874, -inf
    %1883 = vmax.xlane.f32.xlu0 %v1882
    %v1884 = vpop.xlane.xlu0 %1883
    %v1885 = vsel %vm1804, %v1875, -inf
    %1886 = vmax.xlane.f32.xlu0 %v1885
    %v1887 = vpop.xlane.xlu0 %1886
    %v1888 = vsel %vm1804, %v1876, -inf
    %1889 = vmax.xlane.f32.xlu0 %v1888
    %v1890 = vpop.xlane.xlu0 %1889
    %v1891 = vsel %vm1804, %v1877, -inf
    %1892 = vmax.xlane.f32.xlu0 %v1891
    %v1893 = vpop.xlane.xlu0 %1892
    %v1894 = vsel %vm1804, %v1878, -inf
    %1895 = vmax.xlane.f32.xlu0 %v1894
    %v1896 = vpop.xlane.xlu0 %1895
    %v1897 = vsel %vm1804, %v1879, -inf
    %1898 = vmax.xlane.f32.xlu0 %v1897
    %v1899 = vpop.xlane.xlu0 %1898
    %v1900 = vsel %vm1804, %v1880, -inf
    %1901 = vmax.xlane.f32.xlu0 %v1900
    %v1902 = vpop.xlane.xlu0 %1901
    %vm1903 = vcmask 486400
    %v1904 = vsel %vm1903, %v1881, -inf
    %1905 = vmax.xlane.f32.xlu0 %v1904
    %v1906 = vpop.xlane.xlu0 %1905
    %v1907 = vsub.f32 %v1874, %v1884
    %v1908 = vsub.f32 %v1875, %v1887
    %v1909 = vsub.f32 %v1876, %v1890
    %v1910 = vsub.f32 %v1877, %v1893
    %v1911 = vsub.f32 %v1878, %v1896
    %v1912 = vsub.f32 %v1879, %v1899
    %v1913 = vsub.f32 %v1880, %v1902
    %v1914 = vsub.f32 %v1881, %v1906
    %v1915 = vmul.f32 %v1907, 1.442695
    %v1916 = vpow.pop %v1915
    %v1917 = vmul.f32 %v1908, 1.442695
    %v1918 = vpow.pop %v1917
    %v1919 = vmul.f32 %v1909, 1.442695
    %v1920 = vpow.pop %v1919
    %v1921 = vmul.f32 %v1910, 1.442695
    %v1922 = vpow.pop %v1921
    %v1923 = vmul.f32 %v1911, 1.442695
    %v1924 = vpow.pop %v1923
    %v1925 = vmul.f32 %v1912, 1.442695
    %v1926 = vpow.pop %v1925
    %v1927 = vmul.f32 %v1913, 1.442695
    %v1928 = vpow.pop %v1927
    %v1929 = vmul.f32 %v1914, 1.442695
    %v1930 = vpow.pop %v1929
    %v1931 = vsel %vm1804, %v1916, 0.0
    %1932 = vadd.xlane.f32.xlu0 %v1931
    %v1933 = vpop.xlane.xlu0 %1932
    %v1934 = vsel %vm1804, %v1918, 0.0
    %1935 = vadd.xlane.f32.xlu0 %v1934
    %v1936 = vpop.xlane.xlu0 %1935
    %v1937 = vsel %vm1804, %v1920, 0.0
    %1938 = vadd.xlane.f32.xlu0 %v1937
    %v1939 = vpop.xlane.xlu0 %1938
    %v1940 = vsel %vm1804, %v1922, 0.0
    %1941 = vadd.xlane.f32.xlu0 %v1940
    %v1942 = vpop.xlane.xlu0 %1941
    %v1943 = vsel %vm1804, %v1924, 0.0
    %1944 = vadd.xlane.f32.xlu0 %v1943
    %v1945 = vpop.xlane.xlu0 %1944
    %v1946 = vsel %vm1804, %v1926, 0.0
    %1947 = vadd.xlane.f32.xlu0 %v1946
    %v1948 = vpop.xlane.xlu0 %1947
    %v1949 = vsel %vm1804, %v1928, 0.0
    %1950 = vadd.xlane.f32.xlu0 %v1949
    %v1951 = vpop.xlane.xlu0 %1950
    %v1952 = vsel %vm1903, %v1930, 0.0
    %1953 = vadd.xlane.f32.xlu0 %v1952
    %v1954 = vpop.xlane.xlu0 %1953
    %v1955 = vrcp.pop %v1933
    %v1956 = vrcp.pop %v1936
    %v1957 = vrcp.pop %v1939
    %v1958 = vrcp.pop %v1942
    %v1959 = vrcp.pop %v1945
    %v1960 = vrcp.pop %v1948
    %v1961 = vrcp.pop %v1951
    %v1962 = vrcp.pop %v1954
    %v1963 = vmul.f32 %v1916, %v1955
    %v1964 = vmul.f32 %v1918, %v1956
    %v1965 = vmul.f32 %v1920, %v1957
    %v1966 = vmul.f32 %v1922, %v1958
    %v1967 = vmul.f32 %v1924, %v1959
    %v1968 = vmul.f32 %v1926, %v1960
    %v1969 = vmul.f32 %v1928, %v1961
    %v1970 = vmul.f32 %v1930, %v1962
    %v1972 = vsel %vm1804, %v1578, 0
    %v1975 = vsel %vm1804, %v1579, 0
    %v1978 = vsel %vm1804, %v1580, 0
    %v1981 = vsel %vm1804, %v1581, 0
    %v1984 = vsel %vm1804, %v1582, 0
    %v1987 = vsel %vm1804, %v1583, 0
    %v1990 = vsel %vm1804, %v1584, 0
    %v1993 = vsel %vm1804, %v1585, 0
    %v1996 = vsel %vm1804, %v1586, 0
    %v1999 = vsel %vm1804, %v1587, 0
    %v2002 = vsel %vm1804, %v1588, 0
    %v2005 = vsel %vm1804, %v1589, 0
    %v2008 = vsel %vm1804, %v1590, 0
    %v2011 = vsel %vm1804, %v1591, 0
    %v2014 = vsel %vm1804, %v1592, 0
    %v2017 = vsel %vm1804, %v1593, 0
    %v2020 = vsel %vm1804, %v1963, 0
    %v2023 = vsel %vm1804, %v1964, 0
    %v2026 = vsel %vm1804, %v1965, 0
    %v2029 = vsel %vm1804, %v1966, 0
    %v2032 = vsel %vm1804, %v1967, 0
    %v2035 = vsel %vm1804, %v1968, 0
    %v2038 = vsel %vm1804, %v1969, 0
    %v2041 = vsel %vm1804, %v1970, 0
    %2043 = vmatpush.xpose.msra.mxu0 0.0
    %2044 = vmatpush.xpose.msra.mxu0 0.0
    %2045 = vmatpush.xpose.msra.mxu0 0.0
    %2046 = vmatpush.xpose.msra.mxu0 0.0
    %2047 = vmatpush.xpose.msra.mxu0 0.0
    %2048 = vmatpush.xpose.msra.mxu0 0.0
    %2049 = vmatpush.xpose.msra.mxu0 0.0
    %2050 = vmatpush.xpose.msra.mxu0 0.0
    %2051 = vmatpush.xpose.msra.mxu0 %v2041
    %2052 = vmatpush.xpose.msra.mxu0 %v2038
    %2053 = vmatpush.xpose.msra.mxu0 %v2035
    %2054 = vmatpush.xpose.msra.mxu0 %v2032
    %2055 = vmatpush.xpose.msra.mxu0 %v2029
    %2056 = vmatpush.xpose.msra.mxu0 %v2026
    %2057 = vmatpush.xpose.msra.mxu0 %v2023
    %2058 = vmatpush.xpose.msra.mxu0 %v2020
    %2059 = vmatmul.f32.gmra.mxu0 %v1972
    %v2060 = vpop.f32.mrf.mxu0
    %v2061 = vadd.f32 0.0, %v2060
    %2062 = vmatmul.f32.gmra.mxu0 %v1975
    %v2063 = vpop.f32.mrf.mxu0
    %v2064 = vadd.f32 0.0, %v2063
    %2065 = vmatmul.f32.gmra.mxu0 %v1978
    %v2066 = vpop.f32.mrf.mxu0
    %v2067 = vadd.f32 0.0, %v2066
    %2068 = vmatmul.f32.gmra.mxu0 %v1981
    %v2069 = vpop.f32.mrf.mxu0
    %v2070 = vadd.f32 0.0, %v2069
    %2071 = vmatmul.f32.gmra.mxu0 %v1984
    %v2072 = vpop.f32.mrf.mxu0
    %v2073 = vadd.f32 0.0, %v2072
    %2074 = vmatmul.f32.gmra.mxu0 %v1987
    %v2075 = vpop.f32.mrf.mxu0
    %v2076 = vadd.f32 0.0, %v2075
    %2077 = vmatmul.f32.gmra.mxu0 %v1990
    %v2078 = vpop.f32.mrf.mxu0
    %v2079 = vadd.f32 0.0, %v2078
    %2080 = vmatmul.f32.gmra.mxu0 %v1993
    %v2081 = vpop.f32.mrf.mxu0
    %v2082 = vadd.f32 0.0, %v2081
    %2083 = vmatmul.f32.gmra.mxu0 %v1996
    %v2084 = vpop.f32.mrf.mxu0
    %v2085 = vadd.f32 0.0, %v2084
    %2086 = vmatmul.f32.gmra.mxu0 %v1999
    %v2087 = vpop.f32.mrf.mxu0
    %v2088 = vadd.f32 0.0, %v2087
    %2089 = vmatmul.f32.gmra.mxu0 %v2002
    %v2090 = vpop.f32.mrf.mxu0
    %v2091 = vadd.f32 0.0, %v2090
    %2092 = vmatmul.f32.gmra.mxu0 %v2005
    %v2093 = vpop.f32.mrf.mxu0
    %v2094 = vadd.f32 0.0, %v2093
    %2095 = vmatmul.f32.gmra.mxu0 %v2008
    %v2096 = vpop.f32.mrf.mxu0
    %v2097 = vadd.f32 0.0, %v2096
    %2098 = vmatmul.f32.gmra.mxu0 %v2011
    %v2099 = vpop.f32.mrf.mxu0
    %v2100 = vadd.f32 0.0, %v2099
    %2101 = vmatmul.f32.gmra.mxu0 %v2014
    %v2102 = vpop.f32.mrf.mxu0
    %v2103 = vadd.f32 0.0, %v2102
    %2104 = vmatmul.f32.gmra.mxu0 %v2017
    %v2105 = vpop.f32.mrf.mxu0
    %v2106 = vadd.f32 0.0, %v2105
    %2107 = vdwg.mxu0
    %vm2108 = vcmp.ge.f32.partialorder %v2061, 0.0
    %vm2109 = vcmp.ge.f32.partialorder %v2064, 0.0
    %vm2110 = vcmp.ge.f32.partialorder %v2067, 0.0
    %vm2111 = vcmp.ge.f32.partialorder %v2070, 0.0
    %vm2112 = vcmp.ge.f32.partialorder %v2073, 0.0
    %vm2113 = vcmp.ge.f32.partialorder %v2076, 0.0
    %vm2114 = vcmp.ge.f32.partialorder %v2079, 0.0
    %vm2115 = vcmp.ge.f32.partialorder %v2082, 0.0
    %vm2116 = vcmp.ge.f32.partialorder %v2085, 0.0
    %vm2117 = vcmp.ge.f32.partialorder %v2088, 0.0
    %vm2118 = vcmp.ge.f32.partialorder %v2091, 0.0
    %vm2119 = vcmp.ge.f32.partialorder %v2094, 0.0
    %vm2120 = vcmp.ge.f32.partialorder %v2097, 0.0
    %vm2121 = vcmp.ge.f32.partialorder %v2100, 0.0
    %vm2122 = vcmp.ge.f32.partialorder %v2103, 0.0
    %vm2123 = vcmp.ge.f32.partialorder %v2106, 0.0
    %v2124 = vmul.f32 %v2061, 0.01
    %v2125 = vmul.f32 %v2064, 0.01
    %v2126 = vmul.f32 %v2067, 0.01
    %v2127 = vmul.f32 %v2070, 0.01
    %v2128 = vmul.f32 %v2073, 0.01
    %v2129 = vmul.f32 %v2076, 0.01
    %v2130 = vmul.f32 %v2079, 0.01
    %v2131 = vmul.f32 %v2082, 0.01
    %v2132 = vmul.f32 %v2085, 0.01
    %v2133 = vmul.f32 %v2088, 0.01
    %v2134 = vmul.f32 %v2091, 0.01
    %v2135 = vmul.f32 %v2094, 0.01
    %v2136 = vmul.f32 %v2097, 0.01
    %v2137 = vmul.f32 %v2100, 0.01
    %v2138 = vmul.f32 %v2103, 0.01
    %v2139 = vmul.f32 %v2106, 0.01
    %v2140 = vsel %vm2108, %v2061, %v2124
    %v2141 = vsel %vm2109, %v2064, %v2125
    %v2142 = vsel %vm2110, %v2067, %v2126
    %v2143 = vsel %vm2111, %v2070, %v2127
    %v2144 = vsel %vm2112, %v2073, %v2128
    %v2145 = vsel %vm2113, %v2076, %v2129
    %v2146 = vsel %vm2114, %v2079, %v2130
    %v2147 = vsel %vm2115, %v2082, %v2131
    %v2148 = vsel %vm2116, %v2085, %v2132
    %v2149 = vsel %vm2117, %v2088, %v2133
    %v2150 = vsel %vm2118, %v2091, %v2134
    %v2151 = vsel %vm2119, %v2094, %v2135
    %v2152 = vsel %vm2120, %v2097, %v2136
    %v2153 = vsel %vm2121, %v2100, %v2137
    %v2154 = vsel %vm2122, %v2103, %v2138
    %v2155 = vsel %vm2123, %v2106, %v2139
    %v2156 = vadd.f32 %v2140, %v456
    %v2157 = vadd.f32 %v2141, %v459
    %v2158 = vadd.f32 %v2142, %v462
    %v2159 = vadd.f32 %v2143, %v465
    %v2160 = vadd.f32 %v2144, %v468
    %v2161 = vadd.f32 %v2145, %v471
    %v2162 = vadd.f32 %v2146, %v474
    %v2163 = vadd.f32 %v2147, %v477
    %v2164 = vadd.f32 %v2148, %v480
    %v2165 = vadd.f32 %v2149, %v483
    %v2166 = vadd.f32 %v2150, %v486
    %v2167 = vadd.f32 %v2151, %v489
    %v2168 = vadd.f32 %v2152, %v492
    %v2169 = vadd.f32 %v2153, %v495
    %v2170 = vadd.f32 %v2154, %v498
    %v2171 = vadd.f32 %v2155, %v501
    %v2172 = vsel %vm1804, %v2156, 0.0
    %2173 = vadd.xlane.f32.xlu0 %v2172
    %v2174 = vpop.xlane.xlu0 %2173
    %v2175 = vsel %vm1804, %v2157, 0.0
    %2176 = vadd.xlane.f32.xlu0 %v2175
    %v2177 = vpop.xlane.xlu0 %2176
    %v2178 = vsel %vm1804, %v2158, 0.0
    %2179 = vadd.xlane.f32.xlu0 %v2178
    %v2180 = vpop.xlane.xlu0 %2179
    %v2181 = vsel %vm1804, %v2159, 0.0
    %2182 = vadd.xlane.f32.xlu0 %v2181
    %v2183 = vpop.xlane.xlu0 %2182
    %v2184 = vsel %vm1804, %v2160, 0.0
    %2185 = vadd.xlane.f32.xlu0 %v2184
    %v2186 = vpop.xlane.xlu0 %2185
    %v2187 = vsel %vm1804, %v2161, 0.0
    %2188 = vadd.xlane.f32.xlu0 %v2187
    %v2189 = vpop.xlane.xlu0 %2188
    %v2190 = vsel %vm1804, %v2162, 0.0
    %2191 = vadd.xlane.f32.xlu0 %v2190
    %v2192 = vpop.xlane.xlu0 %2191
    %v2193 = vsel %vm1804, %v2163, 0.0
    %2194 = vadd.xlane.f32.xlu0 %v2193
    %v2195 = vpop.xlane.xlu0 %2194
    %v2196 = vsel %vm1804, %v2164, 0.0
    %2197 = vadd.xlane.f32.xlu0 %v2196
    %v2198 = vpop.xlane.xlu0 %2197
    %v2199 = vsel %vm1804, %v2165, 0.0
    %2200 = vadd.xlane.f32.xlu0 %v2199
    %v2201 = vpop.xlane.xlu0 %2200
    %v2202 = vsel %vm1804, %v2166, 0.0
    %2203 = vadd.xlane.f32.xlu0 %v2202
    %v2204 = vpop.xlane.xlu0 %2203
    %v2205 = vsel %vm1804, %v2167, 0.0
    %2206 = vadd.xlane.f32.xlu0 %v2205
    %v2207 = vpop.xlane.xlu0 %2206
    %v2208 = vsel %vm1804, %v2168, 0.0
    %2209 = vadd.xlane.f32.xlu0 %v2208
    %v2210 = vpop.xlane.xlu0 %2209
    %v2211 = vsel %vm1804, %v2169, 0.0
    %2212 = vadd.xlane.f32.xlu0 %v2211
    %v2213 = vpop.xlane.xlu0 %2212
    %v2214 = vsel %vm1804, %v2170, 0.0
    %2215 = vadd.xlane.f32.xlu0 %v2214
    %v2216 = vpop.xlane.xlu0 %2215
    %v2217 = vsel %vm1804, %v2171, 0.0
    %2218 = vadd.xlane.f32.xlu0 %v2217
    %v2219 = vpop.xlane.xlu0 %2218
    %v2220 = vadd.f32 %v2174, %v2177
    %v2221 = vadd.f32 %v2220, %v2180
    %v2222 = vadd.f32 %v2221, %v2183
    %v2223 = vadd.f32 %v2222, %v2186
    %v2224 = vadd.f32 %v2223, %v2189
    %v2225 = vadd.f32 %v2224, %v2192
    %v2226 = vadd.f32 %v2225, %v2195
    %v2227 = vadd.f32 %v2226, %v2198
    %v2228 = vadd.f32 %v2227, %v2201
    %v2229 = vadd.f32 %v2228, %v2204
    %v2230 = vadd.f32 %v2229, %v2207
    %v2231 = vadd.f32 %v2230, %v2210
    %v2232 = vadd.f32 %v2231, %v2213
    %v2233 = vadd.f32 %v2232, %v2216
    %v2234 = vadd.f32 %v2233, %v2219
    %v2235 = vrot.slane %v2234, 4
    %v2236 = vadd.f32 %v2234, %v2235
    %v2237 = vrot.slane %v2236, 2
    %v2238 = vadd.f32 %v2236, %v2237
    %v2239 = vrot.slane %v2238, 1
    %v2240 = vadd.f32 %v2238, %v2239
    %v2241 = vmul.f32 %v2156, %v2156
    %v2242 = vmul.f32 %v2157, %v2157
    %v2243 = vmul.f32 %v2158, %v2158
    %v2244 = vmul.f32 %v2159, %v2159
    %v2245 = vmul.f32 %v2160, %v2160
    %v2246 = vmul.f32 %v2161, %v2161
    %v2247 = vmul.f32 %v2162, %v2162
    %v2248 = vmul.f32 %v2163, %v2163
    %v2249 = vmul.f32 %v2164, %v2164
    %v2250 = vmul.f32 %v2165, %v2165
    %v2251 = vmul.f32 %v2166, %v2166
    %v2252 = vmul.f32 %v2167, %v2167
    %v2253 = vmul.f32 %v2168, %v2168
    %v2254 = vmul.f32 %v2169, %v2169
    %v2255 = vmul.f32 %v2170, %v2170
    %v2256 = vmul.f32 %v2171, %v2171
    %v2257 = vsel %vm1804, %v2241, 0.0
    %2258 = vadd.xlane.f32.xlu0 %v2257
    %v2259 = vpop.xlane.xlu0 %2258
    %v2260 = vsel %vm1804, %v2242, 0.0
    %2261 = vadd.xlane.f32.xlu0 %v2260
    %v2262 = vpop.xlane.xlu0 %2261
    %v2263 = vsel %vm1804, %v2243, 0.0
    %2264 = vadd.xlane.f32.xlu0 %v2263
    %v2265 = vpop.xlane.xlu0 %2264
    %v2266 = vsel %vm1804, %v2244, 0.0
    %2267 = vadd.xlane.f32.xlu0 %v2266
    %v2268 = vpop.xlane.xlu0 %2267
    %v2269 = vsel %vm1804, %v2245, 0.0
    %2270 = vadd.xlane.f32.xlu0 %v2269
    %v2271 = vpop.xlane.xlu0 %2270
    %v2272 = vsel %vm1804, %v2246, 0.0
    %2273 = vadd.xlane.f32.xlu0 %v2272
    %v2274 = vpop.xlane.xlu0 %2273
    %v2275 = vsel %vm1804, %v2247, 0.0
    %2276 = vadd.xlane.f32.xlu0 %v2275
    %v2277 = vpop.xlane.xlu0 %2276
    %v2278 = vsel %vm1804, %v2248, 0.0
    %2279 = vadd.xlane.f32.xlu0 %v2278
    %v2280 = vpop.xlane.xlu0 %2279
    %v2281 = vsel %vm1804, %v2249, 0.0
    %2282 = vadd.xlane.f32.xlu0 %v2281
    %v2283 = vpop.xlane.xlu0 %2282
    %v2284 = vsel %vm1804, %v2250, 0.0
    %2285 = vadd.xlane.f32.xlu0 %v2284
    %v2286 = vpop.xlane.xlu0 %2285
    %v2287 = vsel %vm1804, %v2251, 0.0
    %2288 = vadd.xlane.f32.xlu0 %v2287
    %v2289 = vpop.xlane.xlu0 %2288
    %v2290 = vsel %vm1804, %v2252, 0.0
    %2291 = vadd.xlane.f32.xlu0 %v2290
    %v2292 = vpop.xlane.xlu0 %2291
    %v2293 = vsel %vm1804, %v2253, 0.0
    %2294 = vadd.xlane.f32.xlu0 %v2293
    %v2295 = vpop.xlane.xlu0 %2294
    %v2296 = vsel %vm1804, %v2254, 0.0
    %2297 = vadd.xlane.f32.xlu0 %v2296
    %v2298 = vpop.xlane.xlu0 %2297
    %v2299 = vsel %vm1804, %v2255, 0.0
    %2300 = vadd.xlane.f32.xlu0 %v2299
    %v2301 = vpop.xlane.xlu0 %2300
    %v2302 = vsel %vm1804, %v2256, 0.0
    %2303 = vadd.xlane.f32.xlu0 %v2302
    %v2304 = vpop.xlane.xlu0 %2303
    %v2305 = vadd.f32 %v2259, %v2262
    %v2306 = vadd.f32 %v2305, %v2265
    %v2307 = vadd.f32 %v2306, %v2268
    %v2308 = vadd.f32 %v2307, %v2271
    %v2309 = vadd.f32 %v2308, %v2274
    %v2310 = vadd.f32 %v2309, %v2277
    %v2311 = vadd.f32 %v2310, %v2280
    %v2312 = vadd.f32 %v2311, %v2283
    %v2313 = vadd.f32 %v2312, %v2286
    %v2314 = vadd.f32 %v2313, %v2289
    %v2315 = vadd.f32 %v2314, %v2292
    %v2316 = vadd.f32 %v2315, %v2295
    %v2317 = vadd.f32 %v2316, %v2298
    %v2318 = vadd.f32 %v2317, %v2301
    %v2319 = vadd.f32 %v2318, %v2304
    %v2320 = vrot.slane %v2319, 4
    %v2321 = vadd.f32 %v2319, %v2320
    %v2322 = vrot.slane %v2321, 2
    %v2323 = vadd.f32 %v2321, %v2322
    %v2324 = vrot.slane %v2323, 1
    %v2325 = vadd.f32 %v2323, %v2324
    %v2326 = vrcp.pop 7680.0
    %v2327 = vmul.f32 7680.0, %v2326
    %v2328 = vsub.f32 1.0, %v2327
    %v2329 = vmul.f32 %v2326, %v2328
    %v2330 = vadd.f32 %v2326, %v2329
    %vm2331 = vweird.f32 %v2326
    %v2332 = vsel %vm2331, %v2326, %v2330
    %v2333 = vmul.f32 %v2240, %v2332
    %v2334 = vmul.f32 %v2325, %v2332
    %v2335 = vmul.f32 %v2333, %v2333
    %v2336 = vsub.f32 %v2334, %v2335
    %v2337 = vsub.f32 %v2156, %v2333
    %v2338 = vsub.f32 %v2157, %v2333
    %v2339 = vsub.f32 %v2158, %v2333
    %v2340 = vsub.f32 %v2159, %v2333
    %v2341 = vsub.f32 %v2160, %v2333
    %v2342 = vsub.f32 %v2161, %v2333
    %v2343 = vsub.f32 %v2162, %v2333
    %v2344 = vsub.f32 %v2163, %v2333
    %v2345 = vsub.f32 %v2164, %v2333
    %v2346 = vsub.f32 %v2165, %v2333
    %v2347 = vsub.f32 %v2166, %v2333
    %v2348 = vsub.f32 %v2167, %v2333
    %v2349 = vsub.f32 %v2168, %v2333
    %v2350 = vsub.f32 %v2169, %v2333
    %v2351 = vsub.f32 %v2170, %v2333
    %v2352 = vsub.f32 %v2171, %v2333
    %v2353 = vadd.f32 %v2336, 1e-05
    %v2354 = vrsqrt.pop %v2353
    %v2355 = vmul.f32 %v2354, %v2353
    %v2356 = vmul.f32 %v2355, %v2354
    %v2357 = vmul.f32 0.5, %v2356
    %v2358 = vsub.f32 1.5, %v2357
    %v2359 = vmul.f32 %v2354, %v2358
    %vm2360 = vweird.f32 %v2353
    %vm2361 = vweird.f32 %v2354
    %vm2362 = vmor %vm2360, %vm2361
    %v2363 = vsel %vm2362, %v2354, %v2359
    %v2364 = vmul.f32 %v2337, %v2363
    %v2365 = vmul.f32 %v2338, %v2363
    %v2366 = vmul.f32 %v2339, %v2363
    %v2367 = vmul.f32 %v2340, %v2363
    %v2368 = vmul.f32 %v2341, %v2363
    %v2369 = vmul.f32 %v2342, %v2363
    %v2370 = vmul.f32 %v2343, %v2363
    %v2371 = vmul.f32 %v2344, %v2363
    %v2372 = vmul.f32 %v2345, %v2363
    %v2373 = vmul.f32 %v2346, %v2363
    %v2374 = vmul.f32 %v2347, %v2363
    %v2375 = vmul.f32 %v2348, %v2363
    %v2376 = vmul.f32 %v2349, %v2363
    %v2377 = vmul.f32 %v2350, %v2363
    %v2378 = vmul.f32 %v2351, %v2363
    %v2379 = vmul.f32 %v2352, %v2363
    %2382 = vrot.lane.b32.xlu0 %v1632, 68
    %v2383 = vpop.permute.xlu0 %2382
    %2384 = vrot.lane.b32.xlu0 %v1635, 68
    %v2385 = vpop.permute.xlu0 %2384
    %2388 = vxpose.xlu0.b32.start [1/16] %v2383, 128
    %2389 = vxpose.xlu0.b32.cont [2/16] %v2385, 128
    %2390 = vxpose.xlu0.b32.cont [3/16] 0.0, 128
    %2391 = vxpose.xlu0.b32.cont [4/16] 0.0, 128
    %2392 = vxpose.xlu0.b32.cont [5/16] 0.0, 128
    %2393 = vxpose.xlu0.b32.cont [6/16] 0.0, 128
    %2394 = vxpose.xlu0.b32.cont [7/16] 0.0, 128
    %2395 = vxpose.xlu0.b32.cont [8/16] 0.0, 128
    %2396 = vxpose.xlu0.b32.cont [9/16] 0.0, 128
    %2397 = vxpose.xlu0.b32.cont [10/16] 0.0, 128
    %2398 = vxpose.xlu0.b32.cont [11/16] 0.0, 128
    %2399 = vxpose.xlu0.b32.cont [12/16] 0.0, 128
    %2400 = vxpose.xlu0.b32.cont [13/16] 0.0, 128
    %2401 = vxpose.xlu0.b32.cont [14/16] 0.0, 128
    %2402 = vxpose.xlu0.b32.cont [15/16] 0.0, 128
    %2403 = vxpose.xlu0.b32.end [16/16] 0.0, 128
    %v2404 = vpop.trf.xlu0
    %v2405 = vpop.trf.xlu0
    %v2406 = vpop.trf.xlu0
    %v2407 = vpop.trf.xlu0
    %v2408 = vpop.trf.xlu0
    %v2409 = vpop.trf.xlu0
    %v2410 = vpop.trf.xlu0
    %v2411 = vpop.trf.xlu0
    %v2412 = vpop.trf.xlu0
    %v2413 = vpop.trf.xlu0
    %v2414 = vpop.trf.xlu0
    %v2415 = vpop.trf.xlu0
    %v2416 = vpop.trf.xlu0
    %v2417 = vpop.trf.xlu0
    %v2418 = vpop.trf.xlu0
    %v2419 = vpop.trf.xlu0
    %2422 = vrot.lane.b32.xlu0 %v1662, 68
    %v2423 = vpop.permute.xlu0 %2422
    %2424 = vrot.lane.b32.xlu0 %v1665, 68
    %v2425 = vpop.permute.xlu0 %2424
    %v2429 = vsel %vm389, %v2404, 0
    %v2432 = vsel %vm389, %v2405, 0
    %v2435 = vsel %vm389, %v2406, 0
    %v2438 = vsel %vm389, %v2407, 0
    %v2441 = vsel %vm389, %v2408, 0
    %v2444 = vsel %vm389, %v2409, 0
    %v2447 = vsel %vm389, %v2410, 0
    %v2450 = vsel %vm389, %v2411, 0
    %2452 = vmatpush.msra.mxu0 0.0
    %2453 = vmatpush.msra.mxu0 0.0
    %2454 = vmatpush.msra.mxu0 0.0
    %2455 = vmatpush.msra.mxu0 0.0
    %2456 = vmatpush.msra.mxu0 0.0
    %2457 = vmatpush.msra.mxu0 0.0
    %2458 = vmatpush.msra.mxu0 0.0
    %2459 = vmatpush.msra.mxu0 0.0
    %2460 = vmatpush.msra.mxu0 0.0
    %2461 = vmatpush.msra.mxu0 0.0
    %2462 = vmatpush.msra.mxu0 0.0
    %2463 = vmatpush.msra.mxu0 0.0
    %2464 = vmatpush.msra.mxu0 0.0
    %2465 = vmatpush.msra.mxu0 0.0
    %2466 = vmatpush.msra.mxu0 %v2425
    %2467 = vmatpush.msra.mxu0 %v2423
    %2468 = vmatmul.f32.gmra.mxu0 %v2429
    %v2469 = vpop.f32.mrf.mxu0
    %v2470 = vadd.f32 %v293, %v2469
    %2471 = vmatmul.f32.gmra.mxu0 %v2432
    %v2472 = vpop.f32.mrf.mxu0
    %v2473 = vadd.f32 %v294, %v2472
    %2474 = vmatmul.f32.gmra.mxu0 %v2435
    %v2475 = vpop.f32.mrf.mxu0
    %v2476 = vadd.f32 %v295, %v2475
    %2477 = vmatmul.f32.gmra.mxu0 %v2438
    %v2478 = vpop.f32.mrf.mxu0
    %v2479 = vadd.f32 %v296, %v2478
    %2480 = vmatmul.f32.gmra.mxu0 %v2441
    %v2481 = vpop.f32.mrf.mxu0
    %v2482 = vadd.f32 %v297, %v2481
    %2483 = vmatmul.f32.gmra.mxu0 %v2444
    %v2484 = vpop.f32.mrf.mxu0
    %v2485 = vadd.f32 %v298, %v2484
    %2486 = vmatmul.f32.gmra.mxu0 %v2447
    %v2487 = vpop.f32.mrf.mxu0
    %v2488 = vadd.f32 %v299, %v2487
    %2489 = vmatmul.f32.gmra.mxu0 %v2450
    %v2490 = vpop.f32.mrf.mxu0
    %v2491 = vadd.f32 %v300, %v2490
    %2492 = vdwg.mxu0
    %v2493 = vsub.f32 0.0, %v2470
    %v2494 = vsub.f32 0.0, %v2473
    %v2495 = vsub.f32 0.0, %v2476
    %v2496 = vsub.f32 0.0, %v2479
    %v2497 = vsub.f32 0.0, %v2482
    %v2498 = vsub.f32 0.0, %v2485
    %v2499 = vsub.f32 0.0, %v2488
    %v2500 = vsub.f32 0.0, %v2491
    %v2501 = vmul.f32 %v2493, 1.442695
    %v2502 = vpow.pop %v2501
    %v2503 = vmul.f32 %v2494, 1.442695
    %v2504 = vpow.pop %v2503
    %v2505 = vmul.f32 %v2495, 1.442695
    %v2506 = vpow.pop %v2505
    %v2507 = vmul.f32 %v2496, 1.442695
    %v2508 = vpow.pop %v2507
    %v2509 = vmul.f32 %v2497, 1.442695
    %v2510 = vpow.pop %v2509
    %v2511 = vmul.f32 %v2498, 1.442695
    %v2512 = vpow.pop %v2511
    %v2513 = vmul.f32 %v2499, 1.442695
    %v2514 = vpow.pop %v2513
    %v2515 = vmul.f32 %v2500, 1.442695
    %v2516 = vpow.pop %v2515
    %v2517 = vadd.f32 %v2502, 1.0
    %v2518 = vadd.f32 %v2504, 1.0
    %v2519 = vadd.f32 %v2506, 1.0
    %v2520 = vadd.f32 %v2508, 1.0
    %v2521 = vadd.f32 %v2510, 1.0
    %v2522 = vadd.f32 %v2512, 1.0
    %v2523 = vadd.f32 %v2514, 1.0
    %v2524 = vadd.f32 %v2516, 1.0
    %v2525 = vrcp.pop %v2517
    %v2526 = vrcp.pop %v2518
    %v2527 = vrcp.pop %v2519
    %v2528 = vrcp.pop %v2520
    %v2529 = vrcp.pop %v2521
    %v2530 = vrcp.pop %v2522
    %v2531 = vrcp.pop %v2523
    %v2532 = vrcp.pop %v2524
    %v2534 = vsel %vm1804, %v2525, 0
    %v2537 = vsel %vm1804, %v2526, 0
    %v2540 = vsel %vm1804, %v2527, 0
    %v2543 = vsel %vm1804, %v2528, 0
    %v2546 = vsel %vm1804, %v2529, 0
    %v2549 = vsel %vm1804, %v2530, 0
    %v2552 = vsel %vm1804, %v2531, 0
    %v2555 = vsel %vm1804, %v2532, 0
    %2557 = vmatpush.msra.mxu0 0.0
    %2558 = vmatpush.msra.mxu0 0.0
    %2559 = vmatpush.msra.mxu0 0.0
    %2560 = vmatpush.msra.mxu0 0.0
    %2561 = vmatpush.msra.mxu0 0.0
    %2562 = vmatpush.msra.mxu0 0.0
    %2563 = vmatpush.msra.mxu0 0.0
    %2564 = vmatpush.msra.mxu0 0.0
    %2565 = vmatpush.msra.mxu0 %v1831
    %2566 = vmatpush.msra.mxu0 %v307
    %2567 = vmatpush.msra.mxu0 %v306
    %2568 = vmatpush.msra.mxu0 %v305
    %2569 = vmatpush.msra.mxu0 %v304
    %2570 = vmatpush.msra.mxu0 %v303
    %2571 = vmatpush.msra.mxu0 %v302
    %2572 = vmatpush.msra.mxu0 %v301
    %2573 = vmatmul.f32.gmra.mxu0 %v2534
    %v2574 = vpop.f32.mrf.mxu0
    %v2575 = vadd.f32 0.0, %v2574
    %2576 = vmatmul.f32.gmra.mxu0 %v2537
    %v2577 = vpop.f32.mrf.mxu0
    %v2578 = vadd.f32 0.0, %v2577
    %2579 = vmatmul.f32.gmra.mxu0 %v2540
    %v2580 = vpop.f32.mrf.mxu0
    %v2581 = vadd.f32 0.0, %v2580
    %2582 = vmatmul.f32.gmra.mxu0 %v2543
    %v2583 = vpop.f32.mrf.mxu0
    %v2584 = vadd.f32 0.0, %v2583
    %2585 = vmatmul.f32.gmra.mxu0 %v2546
    %v2586 = vpop.f32.mrf.mxu0
    %v2587 = vadd.f32 0.0, %v2586
    %2588 = vmatmul.f32.gmra.mxu0 %v2549
    %v2589 = vpop.f32.mrf.mxu0
    %v2590 = vadd.f32 0.0, %v2589
    %2591 = vmatmul.f32.gmra.mxu0 %v2552
    %v2592 = vpop.f32.mrf.mxu0
    %v2593 = vadd.f32 0.0, %v2592
    %2594 = vmatmul.f32.gmra.mxu0 %v2555
    %v2595 = vpop.f32.mrf.mxu0
    %v2596 = vadd.f32 0.0, %v2595
    %2597 = vdwg.mxu0
    %v2598 = vmul.f32 %v2575, 0.999995
    %v2599 = vmul.f32 %v2578, 0.999995
    %v2600 = vmul.f32 %v2581, 0.999995
    %v2601 = vmul.f32 %v2584, 0.999995
    %v2602 = vmul.f32 %v2587, 0.999995
    %v2603 = vmul.f32 %v2590, 0.999995
    %v2604 = vmul.f32 %v2593, 0.999995
    %v2605 = vmul.f32 %v2596, 0.999995
    %v2606 = vsel %vm1804, %v2598, -inf
    %2607 = vmax.xlane.f32.xlu0 %v2606
    %v2608 = vpop.xlane.xlu0 %2607
    %v2609 = vsel %vm1804, %v2599, -inf
    %2610 = vmax.xlane.f32.xlu0 %v2609
    %v2611 = vpop.xlane.xlu0 %2610
    %v2612 = vsel %vm1804, %v2600, -inf
    %2613 = vmax.xlane.f32.xlu0 %v2612
    %v2614 = vpop.xlane.xlu0 %2613
    %v2615 = vsel %vm1804, %v2601, -inf
    %2616 = vmax.xlane.f32.xlu0 %v2615
    %v2617 = vpop.xlane.xlu0 %2616
    %v2618 = vsel %vm1804, %v2602, -inf
    %2619 = vmax.xlane.f32.xlu0 %v2618
    %v2620 = vpop.xlane.xlu0 %2619
    %v2621 = vsel %vm1804, %v2603, -inf
    %2622 = vmax.xlane.f32.xlu0 %v2621
    %v2623 = vpop.xlane.xlu0 %2622
    %v2624 = vsel %vm1804, %v2604, -inf
    %2625 = vmax.xlane.f32.xlu0 %v2624
    %v2626 = vpop.xlane.xlu0 %2625
    %v2627 = vsel %vm1903, %v2605, -inf
    %2628 = vmax.xlane.f32.xlu0 %v2627
    %v2629 = vpop.xlane.xlu0 %2628
    %v2630 = vsub.f32 %v2598, %v2608
    %v2631 = vsub.f32 %v2599, %v2611
    %v2632 = vsub.f32 %v2600, %v2614
    %v2633 = vsub.f32 %v2601, %v2617
    %v2634 = vsub.f32 %v2602, %v2620
    %v2635 = vsub.f32 %v2603, %v2623
    %v2636 = vsub.f32 %v2604, %v2626
    %v2637 = vsub.f32 %v2605, %v2629
    %v2638 = vmul.f32 %v2630, 1.442695
    %v2639 = vpow.pop %v2638
    %v2640 = vmul.f32 %v2631, 1.442695
    %v2641 = vpow.pop %v2640
    %v2642 = vmul.f32 %v2632, 1.442695
    %v2643 = vpow.pop %v2642
    %v2644 = vmul.f32 %v2633, 1.442695
    %v2645 = vpow.pop %v2644
    %v2646 = vmul.f32 %v2634, 1.442695
    %v2647 = vpow.pop %v2646
    %v2648 = vmul.f32 %v2635, 1.442695
    %v2649 = vpow.pop %v2648
    %v2650 = vmul.f32 %v2636, 1.442695
    %v2651 = vpow.pop %v2650
    %v2652 = vmul.f32 %v2637, 1.442695
    %v2653 = vpow.pop %v2652
    %v2654 = vsel %vm1804, %v2639, 0.0
    %2655 = vadd.xlane.f32.xlu0 %v2654
    %v2656 = vpop.xlane.xlu0 %2655
    %v2657 = vsel %vm1804, %v2641, 0.0
    %2658 = vadd.xlane.f32.xlu0 %v2657
    %v2659 = vpop.xlane.xlu0 %2658
    %v2660 = vsel %vm1804, %v2643, 0.0
    %2661 = vadd.xlane.f32.xlu0 %v2660
    %v2662 = vpop.xlane.xlu0 %2661
    %v2663 = vsel %vm1804, %v2645, 0.0
    %2664 = vadd.xlane.f32.xlu0 %v2663
    %v2665 = vpop.xlane.xlu0 %2664
    %v2666 = vsel %vm1804, %v2647, 0.0
    %2667 = vadd.xlane.f32.xlu0 %v2666
    %v2668 = vpop.xlane.xlu0 %2667
    %v2669 = vsel %vm1804, %v2649, 0.0
    %2670 = vadd.xlane.f32.xlu0 %v2669
    %v2671 = vpop.xlane.xlu0 %2670
    %v2672 = vsel %vm1804, %v2651, 0.0
    %2673 = vadd.xlane.f32.xlu0 %v2672
    %v2674 = vpop.xlane.xlu0 %2673
    %v2675 = vsel %vm1903, %v2653, 0.0
    %2676 = vadd.xlane.f32.xlu0 %v2675
    %v2677 = vpop.xlane.xlu0 %2676
    %v2678 = vrcp.pop %v2656
    %v2679 = vrcp.pop %v2659
    %v2680 = vrcp.pop %v2662
    %v2681 = vrcp.pop %v2665
    %v2682 = vrcp.pop %v2668
    %v2683 = vrcp.pop %v2671
    %v2684 = vrcp.pop %v2674
    %v2685 = vrcp.pop %v2677
    %v2686 = vmul.f32 %v2639, %v2678
    %v2687 = vmul.f32 %v2641, %v2679
    %v2688 = vmul.f32 %v2643, %v2680
    %v2689 = vmul.f32 %v2645, %v2681
    %v2690 = vmul.f32 %v2647, %v2682
    %v2691 = vmul.f32 %v2649, %v2683
    %v2692 = vmul.f32 %v2651, %v2684
    %v2693 = vmul.f32 %v2653, %v2685
    %2694 = vrot.lane.b32.xlu0 %v1578, 68
    %v2695 = vpop.permute.xlu0 %2694
    %2696 = vrot.lane.b32.xlu0 %v1579, 68
    %v2697 = vpop.permute.xlu0 %2696
    %2698 = vrot.lane.b32.xlu0 %v1580, 68
    %v2699 = vpop.permute.xlu0 %2698
    %2700 = vrot.lane.b32.xlu0 %v1581, 68
    %v2701 = vpop.permute.xlu0 %2700
    %2702 = vrot.lane.b32.xlu0 %v1582, 68
    %v2703 = vpop.permute.xlu0 %2702
    %2704 = vrot.lane.b32.xlu0 %v1583, 68
    %v2705 = vpop.permute.xlu0 %2704
    %2706 = vrot.lane.b32.xlu0 %v1584, 68
    %v2707 = vpop.permute.xlu0 %2706
    %2708 = vrot.lane.b32.xlu0 %v1585, 68
    %v2709 = vpop.permute.xlu0 %2708
    %2710 = vrot.lane.b32.xlu0 %v1586, 68
    %v2711 = vpop.permute.xlu0 %2710
    %2712 = vrot.lane.b32.xlu0 %v1587, 68
    %v2713 = vpop.permute.xlu0 %2712
    %2714 = vrot.lane.b32.xlu0 %v1588, 68
    %v2715 = vpop.permute.xlu0 %2714
    %2716 = vrot.lane.b32.xlu0 %v1589, 68
    %v2717 = vpop.permute.xlu0 %2716
    %2718 = vrot.lane.b32.xlu0 %v1590, 68
    %v2719 = vpop.permute.xlu0 %2718
    %2720 = vrot.lane.b32.xlu0 %v1591, 68
    %v2721 = vpop.permute.xlu0 %2720
    %2722 = vrot.lane.b32.xlu0 %v1592, 68
    %v2723 = vpop.permute.xlu0 %2722
    %2724 = vrot.lane.b32.xlu0 %v1593, 68
    %v2725 = vpop.permute.xlu0 %2724
    %v2726 = vsel %vm1804, %v2695, 0
    %v2728 = vsel %vm1804, %v2697, 0
    %v2730 = vsel %vm1804, %v2699, 0
    %v2732 = vsel %vm1804, %v2701, 0
    %v2734 = vsel %vm1804, %v2703, 0
    %v2736 = vsel %vm1804, %v2705, 0
    %v2738 = vsel %vm1804, %v2707, 0
    %v2740 = vsel %vm1804, %v2709, 0
    %v2742 = vsel %vm1804, %v2711, 0
    %v2744 = vsel %vm1804, %v2713, 0
    %v2746 = vsel %vm1804, %v2715, 0
    %v2748 = vsel %vm1804, %v2717, 0
    %v2750 = vsel %vm1804, %v2719, 0
    %v2752 = vsel %vm1804, %v2721, 0
    %v2754 = vsel %vm1804, %v2723, 0
    %v2756 = vsel %vm1804, %v2725, 0
    %v2759 = vsel %vm1804, %v2686, 0
    %v2762 = vsel %vm1804, %v2687, 0
    %v2765 = vsel %vm1804, %v2688, 0
    %v2768 = vsel %vm1804, %v2689, 0
    %v2771 = vsel %vm1804, %v2690, 0
    %v2774 = vsel %vm1804, %v2691, 0
    %v2777 = vsel %vm1804, %v2692, 0
    %v2780 = vsel %vm1804, %v2693, 0
    %2782 = vmatpush.xpose.msra.mxu0 0.0
    %2783 = vmatpush.xpose.msra.mxu0 0.0
    %2784 = vmatpush.xpose.msra.mxu0 0.0
    %2785 = vmatpush.xpose.msra.mxu0 0.0
    %2786 = vmatpush.xpose.msra.mxu0 0.0
    %2787 = vmatpush.xpose.msra.mxu0 0.0
    %2788 = vmatpush.xpose.msra.mxu0 0.0
    %2789 = vmatpush.xpose.msra.mxu0 0.0
    %2790 = vmatpush.xpose.msra.mxu0 %v2780
    %2791 = vmatpush.xpose.msra.mxu0 %v2777
    %2792 = vmatpush.xpose.msra.mxu0 %v2774
    %2793 = vmatpush.xpose.msra.mxu0 %v2771
    %2794 = vmatpush.xpose.msra.mxu0 %v2768
    %2795 = vmatpush.xpose.msra.mxu0 %v2765
    %2796 = vmatpush.xpose.msra.mxu0 %v2762
    %2797 = vmatpush.xpose.msra.mxu0 %v2759
    %2798 = vmatmul.f32.gmra.mxu0 %v2726
    %v2799 = vpop.f32.mrf.mxu0
    %v2800 = vadd.f32 0.0, %v2799
    %2801 = vmatmul.f32.gmra.mxu0 %v2728
    %v2802 = vpop.f32.mrf.mxu0
    %v2803 = vadd.f32 0.0, %v2802
    %2804 = vmatmul.f32.gmra.mxu0 %v2730
    %v2805 = vpop.f32.mrf.mxu0
    %v2806 = vadd.f32 0.0, %v2805
    %2807 = vmatmul.f32.gmra.mxu0 %v2732
    %v2808 = vpop.f32.mrf.mxu0
    %v2809 = vadd.f32 0.0, %v2808
    %2810 = vmatmul.f32.gmra.mxu0 %v2734
    %v2811 = vpop.f32.mrf.mxu0
    %v2812 = vadd.f32 0.0, %v2811
    %2813 = vmatmul.f32.gmra.mxu0 %v2736
    %v2814 = vpop.f32.mrf.mxu0
    %v2815 = vadd.f32 0.0, %v2814
    %2816 = vmatmul.f32.gmra.mxu0 %v2738
    %v2817 = vpop.f32.mrf.mxu0
    %v2818 = vadd.f32 0.0, %v2817
    %2819 = vmatmul.f32.gmra.mxu0 %v2740
    %v2820 = vpop.f32.mrf.mxu0
    %v2821 = vadd.f32 0.0, %v2820
    %2822 = vmatmul.f32.gmra.mxu0 %v2742
    %v2823 = vpop.f32.mrf.mxu0
    %v2824 = vadd.f32 0.0, %v2823
    %2825 = vmatmul.f32.gmra.mxu0 %v2744
    %v2826 = vpop.f32.mrf.mxu0
    %v2827 = vadd.f32 0.0, %v2826
    %2828 = vmatmul.f32.gmra.mxu0 %v2746
    %v2829 = vpop.f32.mrf.mxu0
    %v2830 = vadd.f32 0.0, %v2829
    %2831 = vmatmul.f32.gmra.mxu0 %v2748
    %v2832 = vpop.f32.mrf.mxu0
    %v2833 = vadd.f32 0.0, %v2832
    %2834 = vmatmul.f32.gmra.mxu0 %v2750
    %v2835 = vpop.f32.mrf.mxu0
    %v2836 = vadd.f32 0.0, %v2835
    %2837 = vmatmul.f32.gmra.mxu0 %v2752
    %v2838 = vpop.f32.mrf.mxu0
    %v2839 = vadd.f32 0.0, %v2838
    %2840 = vmatmul.f32.gmra.mxu0 %v2754
    %v2841 = vpop.f32.mrf.mxu0
    %v2842 = vadd.f32 0.0, %v2841
    %2843 = vmatmul.f32.gmra.mxu0 %v2756
    %v2844 = vpop.f32.mrf.mxu0
    %v2845 = vadd.f32 0.0, %v2844
    %2846 = vdwg.mxu0
    %vm2847 = vcmp.ge.f32.partialorder %v2800, 0.0
    %vm2848 = vcmp.ge.f32.partialorder %v2803, 0.0
    %vm2849 = vcmp.ge.f32.partialorder %v2806, 0.0
    %vm2850 = vcmp.ge.f32.partialorder %v2809, 0.0
    %vm2851 = vcmp.ge.f32.partialorder %v2812, 0.0
    %vm2852 = vcmp.ge.f32.partialorder %v2815, 0.0
    %vm2853 = vcmp.ge.f32.partialorder %v2818, 0.0
    %vm2854 = vcmp.ge.f32.partialorder %v2821, 0.0
    %vm2855 = vcmp.ge.f32.partialorder %v2824, 0.0
    %vm2856 = vcmp.ge.f32.partialorder %v2827, 0.0
    %vm2857 = vcmp.ge.f32.partialorder %v2830, 0.0
    %vm2858 = vcmp.ge.f32.partialorder %v2833, 0.0
    %vm2859 = vcmp.ge.f32.partialorder %v2836, 0.0
    %vm2860 = vcmp.ge.f32.partialorder %v2839, 0.0
    %vm2861 = vcmp.ge.f32.partialorder %v2842, 0.0
    %vm2862 = vcmp.ge.f32.partialorder %v2845, 0.0
    %v2863 = vmul.f32 %v2800, 0.01
    %v2864 = vmul.f32 %v2803, 0.01
    %v2865 = vmul.f32 %v2806, 0.01
    %v2866 = vmul.f32 %v2809, 0.01
    %v2867 = vmul.f32 %v2812, 0.01
    %v2868 = vmul.f32 %v2815, 0.01
    %v2869 = vmul.f32 %v2818, 0.01
    %v2870 = vmul.f32 %v2821, 0.01
    %v2871 = vmul.f32 %v2824, 0.01
    %v2872 = vmul.f32 %v2827, 0.01
    %v2873 = vmul.f32 %v2830, 0.01
    %v2874 = vmul.f32 %v2833, 0.01
    %v2875 = vmul.f32 %v2836, 0.01
    %v2876 = vmul.f32 %v2839, 0.01
    %v2877 = vmul.f32 %v2842, 0.01
    %v2878 = vmul.f32 %v2845, 0.01
    %v2879 = vsel %vm2847, %v2800, %v2863
    %v2880 = vsel %vm2848, %v2803, %v2864
    %v2881 = vsel %vm2849, %v2806, %v2865
    %v2882 = vsel %vm2850, %v2809, %v2866
    %v2883 = vsel %vm2851, %v2812, %v2867
    %v2884 = vsel %vm2852, %v2815, %v2868
    %v2885 = vsel %vm2853, %v2818, %v2869
    %v2886 = vsel %vm2854, %v2821, %v2870
    %v2887 = vsel %vm2855, %v2824, %v2871
    %v2888 = vsel %vm2856, %v2827, %v2872
    %v2889 = vsel %vm2857, %v2830, %v2873
    %v2890 = vsel %vm2858, %v2833, %v2874
    %v2891 = vsel %vm2859, %v2836, %v2875
    %v2892 = vsel %vm2860, %v2839, %v2876
    %v2893 = vsel %vm2861, %v2842, %v2877
    %v2894 = vsel %vm2862, %v2845, %v2878
    %2911 = vrot.lane.b32.xlu0 %v456, 68
    %v2912 = vpop.permute.xlu0 %2911
    %2913 = vrot.lane.b32.xlu0 %v459, 68
    %v2914 = vpop.permute.xlu0 %2913
    %2915 = vrot.lane.b32.xlu0 %v462, 68
    %v2916 = vpop.permute.xlu0 %2915
    %2917 = vrot.lane.b32.xlu0 %v465, 68
    %v2918 = vpop.permute.xlu0 %2917
    %2919 = vrot.lane.b32.xlu0 %v468, 68
    %v2920 = vpop.permute.xlu0 %2919
    %2921 = vrot.lane.b32.xlu0 %v471, 68
    %v2922 = vpop.permute.xlu0 %2921
    %2923 = vrot.lane.b32.xlu0 %v474, 68
    %v2924 = vpop.permute.xlu0 %2923
    %2925 = vrot.lane.b32.xlu0 %v477, 68
    %v2926 = vpop.permute.xlu0 %2925
    %2927 = vrot.lane.b32.xlu0 %v480, 68
    %v2928 = vpop.permute.xlu0 %2927
    %2929 = vrot.lane.b32.xlu0 %v483, 68
    %v2930 = vpop.permute.xlu0 %2929
    %2931 = vrot.lane.b32.xlu0 %v486, 68
    %v2932 = vpop.permute.xlu0 %2931
    %2933 = vrot.lane.b32.xlu0 %v489, 68
    %v2934 = vpop.permute.xlu0 %2933
    %2935 = vrot.lane.b32.xlu0 %v492, 68
    %v2936 = vpop.permute.xlu0 %2935
    %2937 = vrot.lane.b32.xlu0 %v495, 68
    %v2938 = vpop.permute.xlu0 %2937
    %2939 = vrot.lane.b32.xlu0 %v498, 68
    %v2940 = vpop.permute.xlu0 %2939
    %2941 = vrot.lane.b32.xlu0 %v501, 68
    %v2942 = vpop.permute.xlu0 %2941
    %v2959 = vadd.f32 %v2879, %v2912
    %v2960 = vadd.f32 %v2880, %v2914
    %v2961 = vadd.f32 %v2881, %v2916
    %v2962 = vadd.f32 %v2882, %v2918
    %v2963 = vadd.f32 %v2883, %v2920
    %v2964 = vadd.f32 %v2884, %v2922
    %v2965 = vadd.f32 %v2885, %v2924
    %v2966 = vadd.f32 %v2886, %v2926
    %v2967 = vadd.f32 %v2887, %v2928
    %v2968 = vadd.f32 %v2888, %v2930
    %v2969 = vadd.f32 %v2889, %v2932
    %v2970 = vadd.f32 %v2890, %v2934
    %v2971 = vadd.f32 %v2891, %v2936
    %v2972 = vadd.f32 %v2892, %v2938
    %v2973 = vadd.f32 %v2893, %v2940
    %v2974 = vadd.f32 %v2894, %v2942
    %v2975 = vsel %vm1804, %v2959, 0.0
    %2976 = vadd.xlane.f32.xlu0 %v2975
    %v2977 = vpop.xlane.xlu0 %2976
    %v2978 = vsel %vm1804, %v2960, 0.0
    %2979 = vadd.xlane.f32.xlu0 %v2978
    %v2980 = vpop.xlane.xlu0 %2979
    %v2981 = vsel %vm1804, %v2961, 0.0
    %2982 = vadd.xlane.f32.xlu0 %v2981
    %v2983 = vpop.xlane.xlu0 %2982
    %v2984 = vsel %vm1804, %v2962, 0.0
    %2985 = vadd.xlane.f32.xlu0 %v2984
    %v2986 = vpop.xlane.xlu0 %2985
    %v2987 = vsel %vm1804, %v2963, 0.0
    %2988 = vadd.xlane.f32.xlu0 %v2987
    %v2989 = vpop.xlane.xlu0 %2988
    %v2990 = vsel %vm1804, %v2964, 0.0
    %2991 = vadd.xlane.f32.xlu0 %v2990
    %v2992 = vpop.xlane.xlu0 %2991
    %v2993 = vsel %vm1804, %v2965, 0.0
    %2994 = vadd.xlane.f32.xlu0 %v2993
    %v2995 = vpop.xlane.xlu0 %2994
    %v2996 = vsel %vm1804, %v2966, 0.0
    %2997 = vadd.xlane.f32.xlu0 %v2996
    %v2998 = vpop.xlane.xlu0 %2997
    %v2999 = vsel %vm1804, %v2967, 0.0
    %3000 = vadd.xlane.f32.xlu0 %v2999
    %v3001 = vpop.xlane.xlu0 %3000
    %v3002 = vsel %vm1804, %v2968, 0.0
    %3003 = vadd.xlane.f32.xlu0 %v3002
    %v3004 = vpop.xlane.xlu0 %3003
    %v3005 = vsel %vm1804, %v2969, 0.0
    %3006 = vadd.xlane.f32.xlu0 %v3005
    %v3007 = vpop.xlane.xlu0 %3006
    %v3008 = vsel %vm1804, %v2970, 0.0
    %3009 = vadd.xlane.f32.xlu0 %v3008
    %v3010 = vpop.xlane.xlu0 %3009
    %v3011 = vsel %vm1804, %v2971, 0.0
    %3012 = vadd.xlane.f32.xlu0 %v3011
    %v3013 = vpop.xlane.xlu0 %3012
    %v3014 = vsel %vm1804, %v2972, 0.0
    %3015 = vadd.xlane.f32.xlu0 %v3014
    %v3016 = vpop.xlane.xlu0 %3015
    %v3017 = vsel %vm1804, %v2973, 0.0
    %3018 = vadd.xlane.f32.xlu0 %v3017
    %v3019 = vpop.xlane.xlu0 %3018
    %v3020 = vsel %vm1804, %v2974, 0.0
    %3021 = vadd.xlane.f32.xlu0 %v3020
    %v3022 = vpop.xlane.xlu0 %3021
    %v3023 = vadd.f32 %v2977, %v2980
    %v3024 = vadd.f32 %v3023, %v2983
    %v3025 = vadd.f32 %v3024, %v2986
    %v3026 = vadd.f32 %v3025, %v2989
    %v3027 = vadd.f32 %v3026, %v2992
    %v3028 = vadd.f32 %v3027, %v2995
    %v3029 = vadd.f32 %v3028, %v2998
    %v3030 = vadd.f32 %v3029, %v3001
    %v3031 = vadd.f32 %v3030, %v3004
    %v3032 = vadd.f32 %v3031, %v3007
    %v3033 = vadd.f32 %v3032, %v3010
    %v3034 = vadd.f32 %v3033, %v3013
    %v3035 = vadd.f32 %v3034, %v3016
    %v3036 = vadd.f32 %v3035, %v3019
    %v3037 = vadd.f32 %v3036, %v3022
    %v3038 = vrot.slane %v3037, 4
    %v3039 = vadd.f32 %v3037, %v3038
    %v3040 = vrot.slane %v3039, 2
    %v3041 = vadd.f32 %v3039, %v3040
    %v3042 = vrot.slane %v3041, 1
    %v3043 = vadd.f32 %v3041, %v3042
    %v3044 = vmul.f32 %v2959, %v2959
    %v3045 = vmul.f32 %v2960, %v2960
    %v3046 = vmul.f32 %v2961, %v2961
    %v3047 = vmul.f32 %v2962, %v2962
    %v3048 = vmul.f32 %v2963, %v2963
    %v3049 = vmul.f32 %v2964, %v2964
    %v3050 = vmul.f32 %v2965, %v2965
    %v3051 = vmul.f32 %v2966, %v2966
    %v3052 = vmul.f32 %v2967, %v2967
    %v3053 = vmul.f32 %v2968, %v2968
    %v3054 = vmul.f32 %v2969, %v2969
    %v3055 = vmul.f32 %v2970, %v2970
    %v3056 = vmul.f32 %v2971, %v2971
    %v3057 = vmul.f32 %v2972, %v2972
    %v3058 = vmul.f32 %v2973, %v2973
    %v3059 = vmul.f32 %v2974, %v2974
    %v3060 = vsel %vm1804, %v3044, 0.0
    %3061 = vadd.xlane.f32.xlu0 %v3060
    %v3062 = vpop.xlane.xlu0 %3061
    %v3063 = vsel %vm1804, %v3045, 0.0
    %3064 = vadd.xlane.f32.xlu0 %v3063
    %v3065 = vpop.xlane.xlu0 %3064
    %v3066 = vsel %vm1804, %v3046, 0.0
    %3067 = vadd.xlane.f32.xlu0 %v3066
    %v3068 = vpop.xlane.xlu0 %3067
    %v3069 = vsel %vm1804, %v3047, 0.0
    %3070 = vadd.xlane.f32.xlu0 %v3069
    %v3071 = vpop.xlane.xlu0 %3070
    %v3072 = vsel %vm1804, %v3048, 0.0
    %3073 = vadd.xlane.f32.xlu0 %v3072
    %v3074 = vpop.xlane.xlu0 %3073
    %v3075 = vsel %vm1804, %v3049, 0.0
    %3076 = vadd.xlane.f32.xlu0 %v3075
    %v3077 = vpop.xlane.xlu0 %3076
    %v3078 = vsel %vm1804, %v3050, 0.0
    %3079 = vadd.xlane.f32.xlu0 %v3078
    %v3080 = vpop.xlane.xlu0 %3079
    %v3081 = vsel %vm1804, %v3051, 0.0
    %3082 = vadd.xlane.f32.xlu0 %v3081
    %v3083 = vpop.xlane.xlu0 %3082
    %v3084 = vsel %vm1804, %v3052, 0.0
    %3085 = vadd.xlane.f32.xlu0 %v3084
    %v3086 = vpop.xlane.xlu0 %3085
    %v3087 = vsel %vm1804, %v3053, 0.0
    %3088 = vadd.xlane.f32.xlu0 %v3087
    %v3089 = vpop.xlane.xlu0 %3088
    %v3090 = vsel %vm1804, %v3054, 0.0
    %3091 = vadd.xlane.f32.xlu0 %v3090
    %v3092 = vpop.xlane.xlu0 %3091
    %v3093 = vsel %vm1804, %v3055, 0.0
    %3094 = vadd.xlane.f32.xlu0 %v3093
    %v3095 = vpop.xlane.xlu0 %3094
    %v3096 = vsel %vm1804, %v3056, 0.0
    %3097 = vadd.xlane.f32.xlu0 %v3096
    %v3098 = vpop.xlane.xlu0 %3097
    %v3099 = vsel %vm1804, %v3057, 0.0
    %3100 = vadd.xlane.f32.xlu0 %v3099
    %v3101 = vpop.xlane.xlu0 %3100
    %v3102 = vsel %vm1804, %v3058, 0.0
    %3103 = vadd.xlane.f32.xlu0 %v3102
    %v3104 = vpop.xlane.xlu0 %3103
    %v3105 = vsel %vm1804, %v3059, 0.0
    %3106 = vadd.xlane.f32.xlu0 %v3105
    %v3107 = vpop.xlane.xlu0 %3106
    %v3108 = vadd.f32 %v3062, %v3065
    %v3109 = vadd.f32 %v3108, %v3068
    %v3110 = vadd.f32 %v3109, %v3071
    %v3111 = vadd.f32 %v3110, %v3074
    %v3112 = vadd.f32 %v3111, %v3077
    %v3113 = vadd.f32 %v3112, %v3080
    %v3114 = vadd.f32 %v3113, %v3083
    %v3115 = vadd.f32 %v3114, %v3086
    %v3116 = vadd.f32 %v3115, %v3089
    %v3117 = vadd.f32 %v3116, %v3092
    %v3118 = vadd.f32 %v3117, %v3095
    %v3119 = vadd.f32 %v3118, %v3098
    %v3120 = vadd.f32 %v3119, %v3101
    %v3121 = vadd.f32 %v3120, %v3104
    %v3122 = vadd.f32 %v3121, %v3107
    %v3123 = vrot.slane %v3122, 4
    %v3124 = vadd.f32 %v3122, %v3123
    %v3125 = vrot.slane %v3124, 2
    %v3126 = vadd.f32 %v3124, %v3125
    %v3127 = vrot.slane %v3126, 1
    %v3128 = vadd.f32 %v3126, %v3127
    %v3129 = vmul.f32 %v3043, %v2332
    %v3130 = vmul.f32 %v3128, %v2332
    %v3131 = vmul.f32 %v3129, %v3129
    %v3132 = vsub.f32 %v3130, %v3131
    %v3133 = vsub.f32 %v2959, %v3129
    %v3134 = vsub.f32 %v2960, %v3129
    %v3135 = vsub.f32 %v2961, %v3129
    %v3136 = vsub.f32 %v2962, %v3129
    %v3137 = vsub.f32 %v2963, %v3129
    %v3138 = vsub.f32 %v2964, %v3129
    %v3139 = vsub.f32 %v2965, %v3129
    %v3140 = vsub.f32 %v2966, %v3129
    %v3141 = vsub.f32 %v2967, %v3129
    %v3142 = vsub.f32 %v2968, %v3129
    %v3143 = vsub.f32 %v2969, %v3129
    %v3144 = vsub.f32 %v2970, %v3129
    %v3145 = vsub.f32 %v2971, %v3129
    %v3146 = vsub.f32 %v2972, %v3129
    %v3147 = vsub.f32 %v2973, %v3129
    %v3148 = vsub.f32 %v2974, %v3129
    %v3149 = vadd.f32 %v3132, 1e-05
    %v3150 = vrsqrt.pop %v3149
    %v3151 = vmul.f32 %v3150, %v3149
    %v3152 = vmul.f32 %v3151, %v3150
    %v3153 = vmul.f32 0.5, %v3152
    %v3154 = vsub.f32 1.5, %v3153
    %v3155 = vmul.f32 %v3150, %v3154
    %vm3156 = vweird.f32 %v3149
    %vm3157 = vweird.f32 %v3150
    %vm3158 = vmor %vm3156, %vm3157
    %v3159 = vsel %vm3158, %v3150, %v3155
    %v3160 = vmul.f32 %v3133, %v3159
    %v3161 = vmul.f32 %v3134, %v3159
    %v3162 = vmul.f32 %v3135, %v3159
    %v3163 = vmul.f32 %v3136, %v3159
    %v3164 = vmul.f32 %v3137, %v3159
    %v3165 = vmul.f32 %v3138, %v3159
    %v3166 = vmul.f32 %v3139, %v3159
    %v3167 = vmul.f32 %v3140, %v3159
    %v3168 = vmul.f32 %v3141, %v3159
    %v3169 = vmul.f32 %v3142, %v3159
    %v3170 = vmul.f32 %v3143, %v3159
    %v3171 = vmul.f32 %v3144, %v3159
    %v3172 = vmul.f32 %v3145, %v3159
    %v3173 = vmul.f32 %v3146, %v3159
    %v3174 = vmul.f32 %v3147, %v3159
    %v3175 = vmul.f32 %v3148, %v3159
    %3192 = vrot.lane.b32.xlu0 %v3160, 60
    %v3193 = vpop.permute.xlu0 %3192
    %3194 = vrot.lane.b32.xlu0 %v3161, 60
    %v3195 = vpop.permute.xlu0 %3194
    %3196 = vrot.lane.b32.xlu0 %v3162, 60
    %v3197 = vpop.permute.xlu0 %3196
    %3198 = vrot.lane.b32.xlu0 %v3163, 60
    %v3199 = vpop.permute.xlu0 %3198
    %3200 = vrot.lane.b32.xlu0 %v3164, 60
    %v3201 = vpop.permute.xlu0 %3200
    %3202 = vrot.lane.b32.xlu0 %v3165, 60
    %v3203 = vpop.permute.xlu0 %3202
    %3204 = vrot.lane.b32.xlu0 %v3166, 60
    %v3205 = vpop.permute.xlu0 %3204
    %3206 = vrot.lane.b32.xlu0 %v3167, 60
    %v3207 = vpop.permute.xlu0 %3206
    %3208 = vrot.lane.b32.xlu0 %v3168, 60
    %v3209 = vpop.permute.xlu0 %3208
    %3210 = vrot.lane.b32.xlu0 %v3169, 60
    %v3211 = vpop.permute.xlu0 %3210
    %3212 = vrot.lane.b32.xlu0 %v3170, 60
    %v3213 = vpop.permute.xlu0 %3212
    %3214 = vrot.lane.b32.xlu0 %v3171, 60
    %v3215 = vpop.permute.xlu0 %3214
    %3216 = vrot.lane.b32.xlu0 %v3172, 60
    %v3217 = vpop.permute.xlu0 %3216
    %3218 = vrot.lane.b32.xlu0 %v3173, 60
    %v3219 = vpop.permute.xlu0 %3218
    %3220 = vrot.lane.b32.xlu0 %v3174, 60
    %v3221 = vpop.permute.xlu0 %3220
    %3222 = vrot.lane.b32.xlu0 %v3175, 60
    %v3223 = vpop.permute.xlu0 %3222
    %v3240 = vsel %vm1804, %v2364, %v3193
    %v3241 = vsel %vm1804, %v2365, %v3195
    %v3242 = vsel %vm1804, %v2366, %v3197
    %v3243 = vsel %vm1804, %v2367, %v3199
    %v3244 = vsel %vm1804, %v2368, %v3201
    %v3245 = vsel %vm1804, %v2369, %v3203
    %v3246 = vsel %vm1804, %v2370, %v3205
    %v3247 = vsel %vm1804, %v2371, %v3207
    %v3248 = vsel %vm1804, %v2372, %v3209
    %v3249 = vsel %vm1804, %v2373, %v3211
    %v3250 = vsel %vm1804, %v2374, %v3213
    %v3251 = vsel %vm1804, %v2375, %v3215
    %v3252 = vsel %vm1804, %v2376, %v3217
    %v3253 = vsel %vm1804, %v2377, %v3219
    %v3254 = vsel %vm1804, %v2378, %v3221
    %v3255 = vsel %vm1804, %v2379, %v3223
    %v3256 = vld [vmem:[%s14] sm:$0xff]
    %v3257 = vld [vmem:[%s14 + $0x8] sm:$0xff]
    %v3258 = vld [vmem:[%s14 + $0x10] sm:$0xff]
    %v3259 = vld [vmem:[%s14 + $0x18] sm:$0xff]
    %v3260 = vld [vmem:[%s14 + $0x20] sm:$0xff]
    %v3261 = vld [vmem:[%s14 + $0x28] sm:$0xff]
    %v3262 = vld [vmem:[%s14 + $0x30] sm:$0xff]
    %v3263 = vld [vmem:[%s14 + $0x38] sm:$0xff]
    %v3264 = vld [vmem:[%s14 + $0x40] sm:$0xff]
    %v3265 = vld [vmem:[%s14 + $0x48] sm:$0xff]
    %v3266 = vld [vmem:[%s14 + $0x50] sm:$0xff]
    %v3267 = vld [vmem:[%s14 + $0x58] sm:$0xff]
    %v3268 = vld [vmem:[%s14 + $0x60] sm:$0xff]
    %v3269 = vld [vmem:[%s14 + $0x68] sm:$0xff]
    %v3270 = vld [vmem:[%s14 + $0x70] sm:$0xff]
    %v3271 = vld [vmem:[%s14 + $0x78] sm:$0xff]
    %v3272 = vld [vmem:[%s15] sm:$0xff]
    %v3273 = vld [vmem:[%s15 + $0x8] sm:$0xff]
    %v3274 = vld [vmem:[%s15 + $0x10] sm:$0xff]
    %v3275 = vld [vmem:[%s15 + $0x18] sm:$0xff]
    %v3276 = vld [vmem:[%s15 + $0x20] sm:$0xff]
    %v3277 = vld [vmem:[%s15 + $0x28] sm:$0xff]
    %v3278 = vld [vmem:[%s15 + $0x30] sm:$0xff]
    %v3279 = vld [vmem:[%s15 + $0x38] sm:$0xff]
    %v3280 = vld [vmem:[%s15 + $0x40] sm:$0xff]
    %v3281 = vld [vmem:[%s15 + $0x48] sm:$0xff]
    %v3282 = vld [vmem:[%s15 + $0x50] sm:$0xff]
    %v3283 = vld [vmem:[%s15 + $0x58] sm:$0xff]
    %v3284 = vld [vmem:[%s15 + $0x60] sm:$0xff]
    %v3285 = vld [vmem:[%s15 + $0x68] sm:$0xff]
    %v3286 = vld [vmem:[%s15 + $0x70] sm:$0xff]
    %v3287 = vld [vmem:[%s15 + $0x78] sm:$0xff]
    %v3288 = vld [vmem:[%s16] sm:$0xff]
    %v3289 = vld [vmem:[%s16 + $0x8] sm:$0xff]
    %v3290 = vld [vmem:[%s16 + $0x10] sm:$0xff]
    %v3291 = vld [vmem:[%s16 + $0x18] sm:$0xff]
    %v3292 = vld [vmem:[%s16 + $0x20] sm:$0xff]
    %v3293 = vld [vmem:[%s16 + $0x28] sm:$0xff]
    %v3294 = vld [vmem:[%s16 + $0x30] sm:$0xff]
    %v3295 = vld [vmem:[%s16 + $0x38] sm:$0xff]
    %v3296 = vld [vmem:[%s16 + $0x40] sm:$0xff]
    %v3297 = vld [vmem:[%s16 + $0x48] sm:$0xff]
    %v3298 = vld [vmem:[%s16 + $0x50] sm:$0xff]
    %v3299 = vld [vmem:[%s16 + $0x58] sm:$0xff]
    %v3300 = vld [vmem:[%s16 + $0x60] sm:$0xff]
    %v3301 = vld [vmem:[%s16 + $0x68] sm:$0xff]
    %v3302 = vld [vmem:[%s16 + $0x70] sm:$0xff]
    %v3303 = vld [vmem:[%s16 + $0x78] sm:$0xff]
    %v3304 = vld [vmem:[%s16 + $0x80] sm:$0xff]
    %v3305 = vld [vmem:[%s16 + $0x88] sm:$0xff]
    %v3306 = vld [vmem:[%s16 + $0x90] sm:$0xff]
    %v3307 = vld [vmem:[%s16 + $0x98] sm:$0xff]
    %v3308 = vld [vmem:[%s16 + $0xa0] sm:$0xff]
    %v3309 = vld [vmem:[%s16 + $0xa8] sm:$0xff]
    %v3310 = vld [vmem:[%s16 + $0xb0] sm:$0xff]
    %v3311 = vld [vmem:[%s16 + $0xb8] sm:$0xff]
    %v3312 = vld [vmem:[%s16 + $0xc0] sm:$0xff]
    %v3313 = vld [vmem:[%s16 + $0xc8] sm:$0xff]
    %v3314 = vld [vmem:[%s16 + $0xd0] sm:$0xff]
    %v3315 = vld [vmem:[%s16 + $0xd8] sm:$0xff]
    %v3316 = vld [vmem:[%s16 + $0xe0] sm:$0xff]
    %v3317 = vld [vmem:[%s16 + $0xe8] sm:$0xff]
    %v3318 = vld [vmem:[%s16 + $0xf0] sm:$0xff]
    %v3319 = vld [vmem:[%s16 + $0xf8] sm:$0xff]
    %v3320 = vld [vmem:[%s16 + $0x100] sm:$0xff]
    %v3321 = vld [vmem:[%s16 + $0x108] sm:$0xff]
    %v3322 = vld [vmem:[%s16 + $0x110] sm:$0xff]
    %v3323 = vld [vmem:[%s16 + $0x118] sm:$0xff]
    %v3324 = vld [vmem:[%s16 + $0x120] sm:$0xff]
    %v3325 = vld [vmem:[%s16 + $0x128] sm:$0xff]
    %v3326 = vld [vmem:[%s16 + $0x130] sm:$0xff]
    %v3327 = vld [vmem:[%s16 + $0x138] sm:$0xff]
    %v3328 = vld [vmem:[%s16 + $0x140] sm:$0xff]
    %v3329 = vld [vmem:[%s16 + $0x148] sm:$0xff]
    %v3330 = vld [vmem:[%s16 + $0x150] sm:$0xff]
    %v3331 = vld [vmem:[%s16 + $0x158] sm:$0xff]
    %v3332 = vld [vmem:[%s16 + $0x160] sm:$0xff]
    %v3333 = vld [vmem:[%s16 + $0x168] sm:$0xff]
    %v3334 = vld [vmem:[%s16 + $0x170] sm:$0xff]
    %v3335 = vld [vmem:[%s16 + $0x178] sm:$0xff]
    %v3336 = vld [vmem:[%s17] sm:$0xff]
    %v3337 = vld [vmem:[%s17 + $0x8] sm:$0xff]
    %v3338 = vld [vmem:[%s17 + $0x10] sm:$0xff]
    %v3339 = vld [vmem:[%s17 + $0x18] sm:$0xff]
    %v3340 = vld [vmem:[%s17 + $0x20] sm:$0xff]
    %v3341 = vld [vmem:[%s17 + $0x28] sm:$0xff]
    %v3342 = vld [vmem:[%s17 + $0x30] sm:$0xff]
    %v3343 = vld [vmem:[%s17 + $0x38] sm:$0xff]
    %v3344 = vld [vmem:[%s17 + $0x40] sm:$0xff]
    %v3345 = vld [vmem:[%s17 + $0x48] sm:$0xff]
    %v3346 = vld [vmem:[%s17 + $0x50] sm:$0xff]
    %v3347 = vld [vmem:[%s17 + $0x58] sm:$0xff]
    %v3348 = vld [vmem:[%s17 + $0x60] sm:$0xff]
    %v3349 = vld [vmem:[%s17 + $0x68] sm:$0xff]
    %v3350 = vld [vmem:[%s17 + $0x70] sm:$0xff]
    %v3351 = vld [vmem:[%s17 + $0x78] sm:$0xff]
    %v3352 = vld [vmem:[%s18] sm:$0xff]
    %v3353 = vld [vmem:[%s18 + $0x8] sm:$0xff]
    %v3354 = vld [vmem:[%s18 + $0x10] sm:$0xff]
    %v3355 = vld [vmem:[%s18 + $0x18] sm:$0xff]
    %v3356 = vld [vmem:[%s18 + $0x20] sm:$0xff]
    %v3357 = vld [vmem:[%s18 + $0x28] sm:$0xff]
    %v3358 = vld [vmem:[%s18 + $0x30] sm:$0xff]
    %v3359 = vld [vmem:[%s18 + $0x38] sm:$0xff]
    %v3360 = vld [vmem:[%s18 + $0x40] sm:$0xff]
    %v3361 = vld [vmem:[%s18 + $0x48] sm:$0xff]
    %v3362 = vld [vmem:[%s18 + $0x50] sm:$0xff]
    %v3363 = vld [vmem:[%s18 + $0x58] sm:$0xff]
    %v3364 = vld [vmem:[%s18 + $0x60] sm:$0xff]
    %v3365 = vld [vmem:[%s18 + $0x68] sm:$0xff]
    %v3366 = vld [vmem:[%s18 + $0x70] sm:$0xff]
    %v3367 = vld [vmem:[%s18 + $0x78] sm:$0xff]
    %v3368 = vld [vmem:[%s18 + $0x80] sm:$0xff]
    %v3369 = vld [vmem:[%s18 + $0x88] sm:$0xff]
    %v3370 = vld [vmem:[%s18 + $0x90] sm:$0xff]
    %v3371 = vld [vmem:[%s18 + $0x98] sm:$0xff]
    %v3372 = vld [vmem:[%s18 + $0xa0] sm:$0xff]
    %v3373 = vld [vmem:[%s18 + $0xa8] sm:$0xff]
    %v3374 = vld [vmem:[%s18 + $0xb0] sm:$0xff]
    %v3375 = vld [vmem:[%s18 + $0xb8] sm:$0xff]
    %v3376 = vld [vmem:[%s18 + $0xc0] sm:$0xff]
    %v3377 = vld [vmem:[%s18 + $0xc8] sm:$0xff]
    %v3378 = vld [vmem:[%s18 + $0xd0] sm:$0xff]
    %v3379 = vld [vmem:[%s18 + $0xd8] sm:$0xff]
    %v3380 = vld [vmem:[%s18 + $0xe0] sm:$0xff]
    %v3381 = vld [vmem:[%s18 + $0xe8] sm:$0xff]
    %v3382 = vld [vmem:[%s18 + $0xf0] sm:$0xff]
    %v3383 = vld [vmem:[%s18 + $0xf8] sm:$0xff]
    %v3384 = vld [vmem:[%s18 + $0x100] sm:$0xff]
    %v3385 = vld [vmem:[%s18 + $0x108] sm:$0xff]
    %v3386 = vld [vmem:[%s18 + $0x110] sm:$0xff]
    %v3387 = vld [vmem:[%s18 + $0x118] sm:$0xff]
    %v3388 = vld [vmem:[%s18 + $0x120] sm:$0xff]
    %v3389 = vld [vmem:[%s18 + $0x128] sm:$0xff]
    %v3390 = vld [vmem:[%s18 + $0x130] sm:$0xff]
    %v3391 = vld [vmem:[%s18 + $0x138] sm:$0xff]
    %v3392 = vld [vmem:[%s18 + $0x140] sm:$0xff]
    %v3393 = vld [vmem:[%s18 + $0x148] sm:$0xff]
    %v3394 = vld [vmem:[%s18 + $0x150] sm:$0xff]
    %v3395 = vld [vmem:[%s18 + $0x158] sm:$0xff]
    %v3396 = vld [vmem:[%s18 + $0x160] sm:$0xff]
    %v3397 = vld [vmem:[%s18 + $0x168] sm:$0xff]
    %v3398 = vld [vmem:[%s18 + $0x170] sm:$0xff]
    %v3399 = vld [vmem:[%s18 + $0x178] sm:$0xff]
    %v3400 = vld [vmem:[%s18 + $0x180] sm:$0xff]
    %v3401 = vld [vmem:[%s18 + $0x188] sm:$0xff]
    %v3402 = vld [vmem:[%s18 + $0x190] sm:$0xff]
    %v3403 = vld [vmem:[%s18 + $0x198] sm:$0xff]
    %v3404 = vld [vmem:[%s18 + $0x1a0] sm:$0xff]
    %v3405 = vld [vmem:[%s18 + $0x1a8] sm:$0xff]
    %v3406 = vld [vmem:[%s18 + $0x1b0] sm:$0xff]
    %v3407 = vld [vmem:[%s18 + $0x1b8] sm:$0xff]
    %v3408 = vld [vmem:[%s18 + $0x1c0] sm:$0xff]
    %v3409 = vld [vmem:[%s18 + $0x1c8] sm:$0xff]
    %v3410 = vld [vmem:[%s18 + $0x1d0] sm:$0xff]
    %v3411 = vld [vmem:[%s18 + $0x1d8] sm:$0xff]
    %v3412 = vld [vmem:[%s18 + $0x1e0] sm:$0xff]
    %v3413 = vld [vmem:[%s18 + $0x1e8] sm:$0xff]
    %v3414 = vld [vmem:[%s18 + $0x1f0] sm:$0xff]
    %v3415 = vld [vmem:[%s18 + $0x1f8] sm:$0xff]
    %v3416 = vld [vmem:[%s18 + $0x200] sm:$0xff]
    %v3417 = vld [vmem:[%s18 + $0x208] sm:$0xff]
    %v3418 = vld [vmem:[%s18 + $0x210] sm:$0xff]
    %v3419 = vld [vmem:[%s18 + $0x218] sm:$0xff]
    %v3420 = vld [vmem:[%s18 + $0x220] sm:$0xff]
    %v3421 = vld [vmem:[%s18 + $0x228] sm:$0xff]
    %v3422 = vld [vmem:[%s18 + $0x230] sm:$0xff]
    %v3423 = vld [vmem:[%s18 + $0x238] sm:$0xff]
    %v3424 = vld [vmem:[%s18 + $0x240] sm:$0xff]
    %v3425 = vld [vmem:[%s18 + $0x248] sm:$0xff]
    %v3426 = vld [vmem:[%s18 + $0x250] sm:$0xff]
    %v3427 = vld [vmem:[%s18 + $0x258] sm:$0xff]
    %v3428 = vld [vmem:[%s18 + $0x260] sm:$0xff]
    %v3429 = vld [vmem:[%s18 + $0x268] sm:$0xff]
    %v3430 = vld [vmem:[%s18 + $0x270] sm:$0xff]
    %v3431 = vld [vmem:[%s18 + $0x278] sm:$0xff]
    %v3432 = vld [vmem:[%s18 + $0x280] sm:$0xff]
    %v3433 = vld [vmem:[%s18 + $0x288] sm:$0xff]
    %v3434 = vld [vmem:[%s18 + $0x290] sm:$0xff]
    %v3435 = vld [vmem:[%s18 + $0x298] sm:$0xff]
    %v3436 = vld [vmem:[%s18 + $0x2a0] sm:$0xff]
    %v3437 = vld [vmem:[%s18 + $0x2a8] sm:$0xff]
    %v3438 = vld [vmem:[%s18 + $0x2b0] sm:$0xff]
    %v3439 = vld [vmem:[%s18 + $0x2b8] sm:$0xff]
    %v3440 = vld [vmem:[%s18 + $0x2c0] sm:$0xff]
    %v3441 = vld [vmem:[%s18 + $0x2c8] sm:$0xff]
    %v3442 = vld [vmem:[%s18 + $0x2d0] sm:$0xff]
    %v3443 = vld [vmem:[%s18 + $0x2d8] sm:$0xff]
    %v3444 = vld [vmem:[%s18 + $0x2e0] sm:$0xff]
    %v3445 = vld [vmem:[%s18 + $0x2e8] sm:$0xff]
    %v3446 = vld [vmem:[%s18 + $0x2f0] sm:$0xff]
    %v3447 = vld [vmem:[%s18 + $0x2f8] sm:$0xff]
    %v3448 = vld [vmem:[%s19] sm:$0xff]
    %v3449 = vld [vmem:[%s19 + $0x8] sm:$0xff]
    %v3450 = vld [vmem:[%s19 + $0x10] sm:$0xff]
    %v3451 = vld [vmem:[%s19 + $0x18] sm:$0xff]
    %v3452 = vld [vmem:[%s19 + $0x20] sm:$0xff]
    %v3453 = vld [vmem:[%s19 + $0x28] sm:$0xff]
    %v3454 = vld [vmem:[%s19 + $0x30] sm:$0xff]
    %v3455 = vld [vmem:[%s19 + $0x38] sm:$0xff]
    %v3456 = vld [vmem:[%s19 + $0x40] sm:$0xff]
    %v3457 = vld [vmem:[%s19 + $0x48] sm:$0xff]
    %v3458 = vld [vmem:[%s19 + $0x50] sm:$0xff]
    %v3459 = vld [vmem:[%s19 + $0x58] sm:$0xff]
    %v3460 = vld [vmem:[%s19 + $0x60] sm:$0xff]
    %v3461 = vld [vmem:[%s19 + $0x68] sm:$0xff]
    %v3462 = vld [vmem:[%s19 + $0x70] sm:$0xff]
    %v3463 = vld [vmem:[%s19 + $0x78] sm:$0xff]
    %v3464 = vld [vmem:[%s19 + $0x80] sm:$0xff]
    %v3465 = vld [vmem:[%s19 + $0x88] sm:$0xff]
    %v3466 = vld [vmem:[%s19 + $0x90] sm:$0xff]
    %v3467 = vld [vmem:[%s19 + $0x98] sm:$0xff]
    %v3468 = vld [vmem:[%s19 + $0xa0] sm:$0xff]
    %v3469 = vld [vmem:[%s19 + $0xa8] sm:$0xff]
    %v3470 = vld [vmem:[%s19 + $0xb0] sm:$0xff]
    %v3471 = vld [vmem:[%s19 + $0xb8] sm:$0xff]
    %v3472 = vld [vmem:[%s19 + $0xc0] sm:$0xff]
    %v3473 = vld [vmem:[%s19 + $0xc8] sm:$0xff]
    %v3474 = vld [vmem:[%s19 + $0xd0] sm:$0xff]
    %v3475 = vld [vmem:[%s19 + $0xd8] sm:$0xff]
    %v3476 = vld [vmem:[%s19 + $0xe0] sm:$0xff]
    %v3477 = vld [vmem:[%s19 + $0xe8] sm:$0xff]
    %v3478 = vld [vmem:[%s19 + $0xf0] sm:$0xff]
    %v3479 = vld [vmem:[%s19 + $0xf8] sm:$0xff]
    %v3480 = vld [vmem:[%s20] sm:$0xff]
    %v3481 = vld [vmem:[%s21] sm:$0xff]
    %v3482 = vld [vmem:[%s21 + $0x8] sm:$0xff]
    %v3483 = vld [vmem:[%s22] sm:$0xff]
    %v3484 = vld [vmem:[%s22 + $0x8] sm:$0xff]
    %v3485 = vld [vmem:[%s23] sm:$0xff]
    %v3486 = vld [vmem:[%s23 + $0x8] sm:$0xff]
    %v3487 = vld [vmem:[%s23 + $0x10] sm:$0xff]
    %v3488 = vld [vmem:[%s23 + $0x18] sm:$0xff]
    %v3489 = vld [vmem:[%s23 + $0x20] sm:$0xff]
    %v3490 = vld [vmem:[%s23 + $0x28] sm:$0xff]
    %v3491 = vld [vmem:[%s23 + $0x30] sm:$0xff]
    %v3492 = vld [vmem:[%s23 + $0x38] sm:$0xf]
    %v3493 = vld [vmem:[%s24] sm:$0xff]
    %v3494 = vld [vmem:[%s24 + $0x8] sm:$0xff]
    %v3495 = vld [vmem:[%s24 + $0x10] sm:$0xff]
    %v3496 = vld [vmem:[%s24 + $0x18] sm:$0xff]
    %v3497 = vld [vmem:[%s24 + $0x20] sm:$0xff]
    %v3498 = vld [vmem:[%s24 + $0x28] sm:$0xff]
    %v3499 = vld [vmem:[%s24 + $0x30] sm:$0xff]
    %v3500 = vld [vmem:[%s24 + $0x38] sm:$0xf]
    %3502 = vset.pattern.permute.xlu0 0
    %3503 = vperm.xlu0 %3502, %v3272
    %v3504 = vpop.permute.xlu0 %3503
    %3507 = vset.pattern.permute.xlu0 0
    %3508 = vperm.xlu0 %3507, %v3273
    %v3509 = vpop.permute.xlu0 %3508
    %3512 = vset.pattern.permute.xlu0 0
    %3513 = vperm.xlu0 %3512, %v3274
    %v3514 = vpop.permute.xlu0 %3513
    %3517 = vset.pattern.permute.xlu0 0
    %3518 = vperm.xlu0 %3517, %v3275
    %v3519 = vpop.permute.xlu0 %3518
    %3522 = vset.pattern.permute.xlu0 0
    %3523 = vperm.xlu0 %3522, %v3276
    %v3524 = vpop.permute.xlu0 %3523
    %3527 = vset.pattern.permute.xlu0 0
    %3528 = vperm.xlu0 %3527, %v3277
    %v3529 = vpop.permute.xlu0 %3528
    %3532 = vset.pattern.permute.xlu0 0
    %3533 = vperm.xlu0 %3532, %v3278
    %v3534 = vpop.permute.xlu0 %3533
    %3537 = vset.pattern.permute.xlu0 0
    %3538 = vperm.xlu0 %3537, %v3279
    %v3539 = vpop.permute.xlu0 %3538
    %3542 = vset.pattern.permute.xlu0 0
    %3543 = vperm.xlu0 %3542, %v3280
    %v3544 = vpop.permute.xlu0 %3543
    %3547 = vset.pattern.permute.xlu0 0
    %3548 = vperm.xlu0 %3547, %v3281
    %v3549 = vpop.permute.xlu0 %3548
    %3552 = vset.pattern.permute.xlu0 0
    %3553 = vperm.xlu0 %3552, %v3282
    %v3554 = vpop.permute.xlu0 %3553
    %3557 = vset.pattern.permute.xlu0 0
    %3558 = vperm.xlu0 %3557, %v3283
    %v3559 = vpop.permute.xlu0 %3558
    %3562 = vset.pattern.permute.xlu0 0
    %3563 = vperm.xlu0 %3562, %v3284
    %v3564 = vpop.permute.xlu0 %3563
    %3567 = vset.pattern.permute.xlu0 0
    %3568 = vperm.xlu0 %3567, %v3285
    %v3569 = vpop.permute.xlu0 %3568
    %3572 = vset.pattern.permute.xlu0 0
    %3573 = vperm.xlu0 %3572, %v3286
    %v3574 = vpop.permute.xlu0 %3573
    %3577 = vset.pattern.permute.xlu0 0
    %3578 = vperm.xlu0 %3577, %v3287
    %v3579 = vpop.permute.xlu0 %3578
    %3581 = vmatpush.msra.mxu0 %v3255
    %3582 = vmatpush.msra.mxu0 %v3254
    %3583 = vmatpush.msra.mxu0 %v3253
    %3584 = vmatpush.msra.mxu0 %v3252
    %3585 = vmatpush.msra.mxu0 %v3251
    %3586 = vmatpush.msra.mxu0 %v3250
    %3587 = vmatpush.msra.mxu0 %v3249
    %3588 = vmatpush.msra.mxu0 %v3248
    %3589 = vmatpush.msra.mxu0 %v3247
    %3590 = vmatpush.msra.mxu0 %v3246
    %3591 = vmatpush.msra.mxu0 %v3245
    %3592 = vmatpush.msra.mxu0 %v3244
    %3593 = vmatpush.msra.mxu0 %v3243
    %3594 = vmatpush.msra.mxu0 %v3242
    %3595 = vmatpush.msra.mxu0 %v3241
    %3596 = vmatpush.msra.mxu0 %v3240
    %3597 = vmatmul.f32.gmra.mxu0 %v3256
    %v3598 = vpop.f32.mrf.mxu0
    %v3599 = vadd.f32 %v3504, %v3598
    %3600 = vmatmul.f32.gmra.mxu0 %v3257
    %v3601 = vpop.f32.mrf.mxu0
    %v3602 = vadd.f32 %v3509, %v3601
    %3603 = vmatmul.f32.gmra.mxu0 %v3258
    %v3604 = vpop.f32.mrf.mxu0
    %v3605 = vadd.f32 %v3514, %v3604
    %3606 = vmatmul.f32.gmra.mxu0 %v3259
    %v3607 = vpop.f32.mrf.mxu0
    %v3608 = vadd.f32 %v3519, %v3607
    %3609 = vmatmul.f32.gmra.mxu0 %v3260
    %v3610 = vpop.f32.mrf.mxu0
    %v3611 = vadd.f32 %v3524, %v3610
    %3612 = vmatmul.f32.gmra.mxu0 %v3261
    %v3613 = vpop.f32.mrf.mxu0
    %v3614 = vadd.f32 %v3529, %v3613
    %3615 = vmatmul.f32.gmra.mxu0 %v3262
    %v3616 = vpop.f32.mrf.mxu0
    %v3617 = vadd.f32 %v3534, %v3616
    %3618 = vmatmul.f32.gmra.mxu0 %v3263
    %v3619 = vpop.f32.mrf.mxu0
    %v3620 = vadd.f32 %v3539, %v3619
    %3621 = vmatmul.f32.gmra.mxu0 %v3264
    %v3622 = vpop.f32.mrf.mxu0
    %v3623 = vadd.f32 %v3544, %v3622
    %3624 = vmatmul.f32.gmra.mxu0 %v3265
    %v3625 = vpop.f32.mrf.mxu0
    %v3626 = vadd.f32 %v3549, %v3625
    %3627 = vmatmul.f32.gmra.mxu0 %v3266
    %v3628 = vpop.f32.mrf.mxu0
    %v3629 = vadd.f32 %v3554, %v3628
    %3630 = vmatmul.f32.gmra.mxu0 %v3267
    %v3631 = vpop.f32.mrf.mxu0
    %v3632 = vadd.f32 %v3559, %v3631
    %3633 = vmatmul.f32.gmra.mxu0 %v3268
    %v3634 = vpop.f32.mrf.mxu0
    %v3635 = vadd.f32 %v3564, %v3634
    %3636 = vmatmul.f32.gmra.mxu0 %v3269
    %v3637 = vpop.f32.mrf.mxu0
    %v3638 = vadd.f32 %v3569, %v3637
    %3639 = vmatmul.f32.gmra.mxu0 %v3270
    %v3640 = vpop.f32.mrf.mxu0
    %v3641 = vadd.f32 %v3574, %v3640
    %3642 = vmatmul.f32.gmra.mxu0 %v3271
    %v3643 = vpop.f32.mrf.mxu0
    %v3644 = vadd.f32 %v3579, %v3643
    %3645 = vdwg.mxu0
    %3662 = vrot.lane.b32.xlu0 %v3240, 1
    %v3663 = vpop.permute.xlu0 %3662
    %3664 = vrot.lane.b32.xlu0 %v3241, 1
    %v3665 = vpop.permute.xlu0 %3664
    %3666 = vrot.lane.b32.xlu0 %v3242, 1
    %v3667 = vpop.permute.xlu0 %3666
    %3668 = vrot.lane.b32.xlu0 %v3243, 1
    %v3669 = vpop.permute.xlu0 %3668
    %3670 = vrot.lane.b32.xlu0 %v3244, 1
    %v3671 = vpop.permute.xlu0 %3670
    %3672 = vrot.lane.b32.xlu0 %v3245, 1
    %v3673 = vpop.permute.xlu0 %3672
    %3674 = vrot.lane.b32.xlu0 %v3246, 1
    %v3675 = vpop.permute.xlu0 %3674
    %3676 = vrot.lane.b32.xlu0 %v3247, 1
    %v3677 = vpop.permute.xlu0 %3676
    %3678 = vrot.lane.b32.xlu0 %v3248, 1
    %v3679 = vpop.permute.xlu0 %3678
    %3680 = vrot.lane.b32.xlu0 %v3249, 1
    %v3681 = vpop.permute.xlu0 %3680
    %3682 = vrot.lane.b32.xlu0 %v3250, 1
    %v3683 = vpop.permute.xlu0 %3682
    %3684 = vrot.lane.b32.xlu0 %v3251, 1
    %v3685 = vpop.permute.xlu0 %3684
    %3686 = vrot.lane.b32.xlu0 %v3252, 1
    %v3687 = vpop.permute.xlu0 %3686
    %3688 = vrot.lane.b32.xlu0 %v3253, 1
    %v3689 = vpop.permute.xlu0 %3688
    %3690 = vrot.lane.b32.xlu0 %v3254, 1
    %v3691 = vpop.permute.xlu0 %3690
    %3692 = vrot.lane.b32.xlu0 %v3255, 1
    %v3693 = vpop.permute.xlu0 %3692
    %v3710 = vsel %vm511, %v3240, %v3663
    %v3711 = vsel %vm511, %v3241, %v3665
    %v3712 = vsel %vm511, %v3242, %v3667
    %v3713 = vsel %vm511, %v3243, %v3669
    %v3714 = vsel %vm511, %v3244, %v3671
    %v3715 = vsel %vm511, %v3245, %v3673
    %v3716 = vsel %vm511, %v3246, %v3675
    %v3717 = vsel %vm511, %v3247, %v3677
    %v3718 = vsel %vm511, %v3248, %v3679
    %v3719 = vsel %vm511, %v3249, %v3681
    %v3720 = vsel %vm511, %v3250, %v3683
    %v3721 = vsel %vm511, %v3251, %v3685
    %v3722 = vsel %vm511, %v3252, %v3687
    %v3723 = vsel %vm511, %v3253, %v3689
    %v3724 = vsel %vm511, %v3254, %v3691
    %v3725 = vsel %vm511, %v3255, %v3693
    %v3726 = vmul.f32 %v3710, %v515
    %v3727 = vmul.f32 %v3711, %v515
    %v3728 = vmul.f32 %v3712, %v515
    %v3729 = vmul.f32 %v3713, %v515
    %v3730 = vmul.f32 %v3714, %v515
    %v3731 = vmul.f32 %v3715, %v515
    %v3732 = vmul.f32 %v3716, %v515
    %v3733 = vmul.f32 %v3717, %v515
    %v3734 = vmul.f32 %v3718, %v515
    %v3735 = vmul.f32 %v3719, %v515
    %v3736 = vmul.f32 %v3720, %v515
    %v3737 = vmul.f32 %v3721, %v515
    %v3738 = vmul.f32 %v3722, %v515
    %v3739 = vmul.f32 %v3723, %v515
    %v3740 = vmul.f32 %v3724, %v515
    %v3741 = vmul.f32 %v3725, %v515
    %3742 = vrot.lane.b32.xlu0 %v3240, 127
    %v3743 = vpop.permute.xlu0 %3742
    %3744 = vrot.lane.b32.xlu0 %v3241, 127
    %v3745 = vpop.permute.xlu0 %3744
    %3746 = vrot.lane.b32.xlu0 %v3242, 127
    %v3747 = vpop.permute.xlu0 %3746
    %3748 = vrot.lane.b32.xlu0 %v3243, 127
    %v3749 = vpop.permute.xlu0 %3748
    %3750 = vrot.lane.b32.xlu0 %v3244, 127
    %v3751 = vpop.permute.xlu0 %3750
    %3752 = vrot.lane.b32.xlu0 %v3245, 127
    %v3753 = vpop.permute.xlu0 %3752
    %3754 = vrot.lane.b32.xlu0 %v3246, 127
    %v3755 = vpop.permute.xlu0 %3754
    %3756 = vrot.lane.b32.xlu0 %v3247, 127
    %v3757 = vpop.permute.xlu0 %3756
    %3758 = vrot.lane.b32.xlu0 %v3248, 127
    %v3759 = vpop.permute.xlu0 %3758
    %3760 = vrot.lane.b32.xlu0 %v3249, 127
    %v3761 = vpop.permute.xlu0 %3760
    %3762 = vrot.lane.b32.xlu0 %v3250, 127
    %v3763 = vpop.permute.xlu0 %3762
    %3764 = vrot.lane.b32.xlu0 %v3251, 127
    %v3765 = vpop.permute.xlu0 %3764
    %3766 = vrot.lane.b32.xlu0 %v3252, 127
    %v3767 = vpop.permute.xlu0 %3766
    %3768 = vrot.lane.b32.xlu0 %v3253, 127
    %v3769 = vpop.permute.xlu0 %3768
    %3770 = vrot.lane.b32.xlu0 %v3254, 127
    %v3771 = vpop.permute.xlu0 %3770
    %3772 = vrot.lane.b32.xlu0 %v3255, 127
    %v3773 = vpop.permute.xlu0 %3772
    %v3790 = vsel %vm525, %v3743, %v3240
    %v3791 = vsel %vm525, %v3745, %v3241
    %v3792 = vsel %vm525, %v3747, %v3242
    %v3793 = vsel %vm525, %v3749, %v3243
    %v3794 = vsel %vm525, %v3751, %v3244
    %v3795 = vsel %vm525, %v3753, %v3245
    %v3796 = vsel %vm525, %v3755, %v3246
    %v3797 = vsel %vm525, %v3757, %v3247
    %v3798 = vsel %vm525, %v3759, %v3248
    %v3799 = vsel %vm525, %v3761, %v3249
    %v3800 = vsel %vm525, %v3763, %v3250
    %v3801 = vsel %vm525, %v3765, %v3251
    %v3802 = vsel %vm525, %v3767, %v3252
    %v3803 = vsel %vm525, %v3769, %v3253
    %v3804 = vsel %vm525, %v3771, %v3254
    %v3805 = vsel %vm525, %v3773, %v3255
    %v3806 = vmul.f32 %v3790, %v529
    %v3807 = vmul.f32 %v3791, %v529
    %v3808 = vmul.f32 %v3792, %v529
    %v3809 = vmul.f32 %v3793, %v529
    %v3810 = vmul.f32 %v3794, %v529
    %v3811 = vmul.f32 %v3795, %v529
    %v3812 = vmul.f32 %v3796, %v529
    %v3813 = vmul.f32 %v3797, %v529
    %v3814 = vmul.f32 %v3798, %v529
    %v3815 = vmul.f32 %v3799, %v529
    %v3816 = vmul.f32 %v3800, %v529
    %v3817 = vmul.f32 %v3801, %v529
    %v3818 = vmul.f32 %v3802, %v529
    %v3819 = vmul.f32 %v3803, %v529
    %v3820 = vmul.f32 %v3804, %v529
    %v3821 = vmul.f32 %v3805, %v529
    %3823 = vset.pattern.permute.xlu0 0
    %3824 = vperm.xlu0 %3823, %v3336
    %v3825 = vpop.permute.xlu0 %3824
    %3828 = vset.pattern.permute.xlu0 0
    %3829 = vperm.xlu0 %3828, %v3337
    %v3830 = vpop.permute.xlu0 %3829
    %3833 = vset.pattern.permute.xlu0 0
    %3834 = vperm.xlu0 %3833, %v3338
    %v3835 = vpop.permute.xlu0 %3834
    %3838 = vset.pattern.permute.xlu0 0
    %3839 = vperm.xlu0 %3838, %v3339
    %v3840 = vpop.permute.xlu0 %3839
    %3843 = vset.pattern.permute.xlu0 0
    %3844 = vperm.xlu0 %3843, %v3340
    %v3845 = vpop.permute.xlu0 %3844
    %3848 = vset.pattern.permute.xlu0 0
    %3849 = vperm.xlu0 %3848, %v3341
    %v3850 = vpop.permute.xlu0 %3849
    %3853 = vset.pattern.permute.xlu0 0
    %3854 = vperm.xlu0 %3853, %v3342
    %v3855 = vpop.permute.xlu0 %3854
    %3858 = vset.pattern.permute.xlu0 0
    %3859 = vperm.xlu0 %3858, %v3343
    %v3860 = vpop.permute.xlu0 %3859
    %3863 = vset.pattern.permute.xlu0 0
    %3864 = vperm.xlu0 %3863, %v3344
    %v3865 = vpop.permute.xlu0 %3864
    %3868 = vset.pattern.permute.xlu0 0
    %3869 = vperm.xlu0 %3868, %v3345
    %v3870 = vpop.permute.xlu0 %3869
    %3873 = vset.pattern.permute.xlu0 0
    %3874 = vperm.xlu0 %3873, %v3346
    %v3875 = vpop.permute.xlu0 %3874
    %3878 = vset.pattern.permute.xlu0 0
    %3879 = vperm.xlu0 %3878, %v3347
    %v3880 = vpop.permute.xlu0 %3879
    %3883 = vset.pattern.permute.xlu0 0
    %3884 = vperm.xlu0 %3883, %v3348
    %v3885 = vpop.permute.xlu0 %3884
    %3888 = vset.pattern.permute.xlu0 0
    %3889 = vperm.xlu0 %3888, %v3349
    %v3890 = vpop.permute.xlu0 %3889
    %3893 = vset.pattern.permute.xlu0 0
    %3894 = vperm.xlu0 %3893, %v3350
    %v3895 = vpop.permute.xlu0 %3894
    %3898 = vset.pattern.permute.xlu0 0
    %3899 = vperm.xlu0 %3898, %v3351
    %v3900 = vpop.permute.xlu0 %3899
    %3902 = vmatpush.msra.mxu0 %v3741
    %3903 = vmatpush.msra.mxu0 %v3740
    %3904 = vmatpush.msra.mxu0 %v3739
    %3905 = vmatpush.msra.mxu0 %v3738
    %3906 = vmatpush.msra.mxu0 %v3737
    %3907 = vmatpush.msra.mxu0 %v3736
    %3908 = vmatpush.msra.mxu0 %v3735
    %3909 = vmatpush.msra.mxu0 %v3734
    %3910 = vmatpush.msra.mxu0 %v3733
    %3911 = vmatpush.msra.mxu0 %v3732
    %3912 = vmatpush.msra.mxu0 %v3731
    %3913 = vmatpush.msra.mxu0 %v3730
    %3914 = vmatpush.msra.mxu0 %v3729
    %3915 = vmatpush.msra.mxu0 %v3728
    %3916 = vmatpush.msra.mxu0 %v3727
    %3917 = vmatpush.msra.mxu0 %v3726
    %3918 = vmatmul.f32.gmra.mxu0 %v3288
    %v3919 = vpop.f32.mrf.mxu0
    %v3920 = vadd.f32 %v3825, %v3919
    %3921 = vmatmul.f32.gmra.mxu0 %v3291
    %v3922 = vpop.f32.mrf.mxu0
    %v3923 = vadd.f32 %v3830, %v3922
    %3924 = vmatmul.f32.gmra.mxu0 %v3294
    %v3925 = vpop.f32.mrf.mxu0
    %v3926 = vadd.f32 %v3835, %v3925
    %3927 = vmatmul.f32.gmra.mxu0 %v3297
    %v3928 = vpop.f32.mrf.mxu0
    %v3929 = vadd.f32 %v3840, %v3928
    %3930 = vmatmul.f32.gmra.mxu0 %v3300
    %v3931 = vpop.f32.mrf.mxu0
    %v3932 = vadd.f32 %v3845, %v3931
    %3933 = vmatmul.f32.gmra.mxu0 %v3303
    %v3934 = vpop.f32.mrf.mxu0
    %v3935 = vadd.f32 %v3850, %v3934
    %3936 = vmatmul.f32.gmra.mxu0 %v3306
    %v3937 = vpop.f32.mrf.mxu0
    %v3938 = vadd.f32 %v3855, %v3937
    %3939 = vmatmul.f32.gmra.mxu0 %v3309
    %v3940 = vpop.f32.mrf.mxu0
    %v3941 = vadd.f32 %v3860, %v3940
    %3942 = vmatmul.f32.gmra.mxu0 %v3312
    %v3943 = vpop.f32.mrf.mxu0
    %v3944 = vadd.f32 %v3865, %v3943
    %3945 = vmatmul.f32.gmra.mxu0 %v3315
    %v3946 = vpop.f32.mrf.mxu0
    %v3947 = vadd.f32 %v3870, %v3946
    %3948 = vmatmul.f32.gmra.mxu0 %v3318
    %v3949 = vpop.f32.mrf.mxu0
    %v3950 = vadd.f32 %v3875, %v3949
    %3951 = vmatmul.f32.gmra.mxu0 %v3321
    %v3952 = vpop.f32.mrf.mxu0
    %v3953 = vadd.f32 %v3880, %v3952
    %3954 = vmatmul.f32.gmra.mxu0 %v3324
    %v3955 = vpop.f32.mrf.mxu0
    %v3956 = vadd.f32 %v3885, %v3955
    %3957 = vmatmul.f32.gmra.mxu0 %v3327
    %v3958 = vpop.f32.mrf.mxu0
    %v3959 = vadd.f32 %v3890, %v3958
    %3960 = vmatmul.f32.gmra.mxu0 %v3330
    %v3961 = vpop.f32.mrf.mxu0
    %v3962 = vadd.f32 %v3895, %v3961
    %3963 = vmatmul.f32.gmra.mxu0 %v3333
    %v3964 = vpop.f32.mrf.mxu0
    %v3965 = vadd.f32 %v3900, %v3964
    %3966 = vdwg.mxu0
    %3967 = vmatpush.msra.mxu0 %v3255
    %3968 = vmatpush.msra.mxu0 %v3254
    %3969 = vmatpush.msra.mxu0 %v3253
    %3970 = vmatpush.msra.mxu0 %v3252
    %3971 = vmatpush.msra.mxu0 %v3251
    %3972 = vmatpush.msra.mxu0 %v3250
    %3973 = vmatpush.msra.mxu0 %v3249
    %3974 = vmatpush.msra.mxu0 %v3248
    %3975 = vmatpush.msra.mxu0 %v3247
    %3976 = vmatpush.msra.mxu0 %v3246
    %3977 = vmatpush.msra.mxu0 %v3245
    %3978 = vmatpush.msra.mxu0 %v3244
    %3979 = vmatpush.msra.mxu0 %v3243
    %3980 = vmatpush.msra.mxu0 %v3242
    %3981 = vmatpush.msra.mxu0 %v3241
    %3982 = vmatpush.msra.mxu0 %v3240
    %3983 = vmatmul.f32.gmra.mxu0 %v3289
    %v3984 = vpop.f32.mrf.mxu0
    %v3985 = vadd.f32 %v3920, %v3984
    %3986 = vmatmul.f32.gmra.mxu0 %v3292
    %v3987 = vpop.f32.mrf.mxu0
    %v3988 = vadd.f32 %v3923, %v3987
    %3989 = vmatmul.f32.gmra.mxu0 %v3295
    %v3990 = vpop.f32.mrf.mxu0
    %v3991 = vadd.f32 %v3926, %v3990
    %3992 = vmatmul.f32.gmra.mxu0 %v3298
    %v3993 = vpop.f32.mrf.mxu0
    %v3994 = vadd.f32 %v3929, %v3993
    %3995 = vmatmul.f32.gmra.mxu0 %v3301
    %v3996 = vpop.f32.mrf.mxu0
    %v3997 = vadd.f32 %v3932, %v3996
    %3998 = vmatmul.f32.gmra.mxu0 %v3304
    %v3999 = vpop.f32.mrf.mxu0
    %v4000 = vadd.f32 %v3935, %v3999
    %4001 = vmatmul.f32.gmra.mxu0 %v3307
    %v4002 = vpop.f32.mrf.mxu0
    %v4003 = vadd.f32 %v3938, %v4002
    %4004 = vmatmul.f32.gmra.mxu0 %v3310
    %v4005 = vpop.f32.mrf.mxu0
    %v4006 = vadd.f32 %v3941, %v4005
    %4007 = vmatmul.f32.gmra.mxu0 %v3313
    %v4008 = vpop.f32.mrf.mxu0
    %v4009 = vadd.f32 %v3944, %v4008
    %4010 = vmatmul.f32.gmra.mxu0 %v3316
    %v4011 = vpop.f32.mrf.mxu0
    %v4012 = vadd.f32 %v3947, %v4011
    %4013 = vmatmul.f32.gmra.mxu0 %v3319
    %v4014 = vpop.f32.mrf.mxu0
    %v4015 = vadd.f32 %v3950, %v4014
    %4016 = vmatmul.f32.gmra.mxu0 %v3322
    %v4017 = vpop.f32.mrf.mxu0
    %v4018 = vadd.f32 %v3953, %v4017
    %4019 = vmatmul.f32.gmra.mxu0 %v3325
    %v4020 = vpop.f32.mrf.mxu0
    %v4021 = vadd.f32 %v3956, %v4020
    %4022 = vmatmul.f32.gmra.mxu0 %v3328
    %v4023 = vpop.f32.mrf.mxu0
    %v4024 = vadd.f32 %v3959, %v4023
    %4025 = vmatmul.f32.gmra.mxu0 %v3331
    %v4026 = vpop.f32.mrf.mxu0
    %v4027 = vadd.f32 %v3962, %v4026
    %4028 = vmatmul.f32.gmra.mxu0 %v3334
    %v4029 = vpop.f32.mrf.mxu0
    %v4030 = vadd.f32 %v3965, %v4029
    %4031 = vdwg.mxu0
    %4032 = vmatpush.msra.mxu0 %v3821
    %4033 = vmatpush.msra.mxu0 %v3820
    %4034 = vmatpush.msra.mxu0 %v3819
    %4035 = vmatpush.msra.mxu0 %v3818
    %4036 = vmatpush.msra.mxu0 %v3817
    %4037 = vmatpush.msra.mxu0 %v3816
    %4038 = vmatpush.msra.mxu0 %v3815
    %4039 = vmatpush.msra.mxu0 %v3814
    %4040 = vmatpush.msra.mxu0 %v3813
    %4041 = vmatpush.msra.mxu0 %v3812
    %4042 = vmatpush.msra.mxu0 %v3811
    %4043 = vmatpush.msra.mxu0 %v3810
    %4044 = vmatpush.msra.mxu0 %v3809
    %4045 = vmatpush.msra.mxu0 %v3808
    %4046 = vmatpush.msra.mxu0 %v3807
    %4047 = vmatpush.msra.mxu0 %v3806
    %4048 = vmatmul.f32.gmra.mxu0 %v3290
    %v4049 = vpop.f32.mrf.mxu0
    %v4050 = vadd.f32 %v3985, %v4049
    %4051 = vmatmul.f32.gmra.mxu0 %v3293
    %v4052 = vpop.f32.mrf.mxu0
    %v4053 = vadd.f32 %v3988, %v4052
    %4054 = vmatmul.f32.gmra.mxu0 %v3296
    %v4055 = vpop.f32.mrf.mxu0
    %v4056 = vadd.f32 %v3991, %v4055
    %4057 = vmatmul.f32.gmra.mxu0 %v3299
    %v4058 = vpop.f32.mrf.mxu0
    %v4059 = vadd.f32 %v3994, %v4058
    %4060 = vmatmul.f32.gmra.mxu0 %v3302
    %v4061 = vpop.f32.mrf.mxu0
    %v4062 = vadd.f32 %v3997, %v4061
    %4063 = vmatmul.f32.gmra.mxu0 %v3305
    %v4064 = vpop.f32.mrf.mxu0
    %v4065 = vadd.f32 %v4000, %v4064
    %4066 = vmatmul.f32.gmra.mxu0 %v3308
    %v4067 = vpop.f32.mrf.mxu0
    %v4068 = vadd.f32 %v4003, %v4067
    %4069 = vmatmul.f32.gmra.mxu0 %v3311
    %v4070 = vpop.f32.mrf.mxu0
    %v4071 = vadd.f32 %v4006, %v4070
    %4072 = vmatmul.f32.gmra.mxu0 %v3314
    %v4073 = vpop.f32.mrf.mxu0
    %v4074 = vadd.f32 %v4009, %v4073
    %4075 = vmatmul.f32.gmra.mxu0 %v3317
    %v4076 = vpop.f32.mrf.mxu0
    %v4077 = vadd.f32 %v4012, %v4076
    %4078 = vmatmul.f32.gmra.mxu0 %v3320
    %v4079 = vpop.f32.mrf.mxu0
    %v4080 = vadd.f32 %v4015, %v4079
    %4081 = vmatmul.f32.gmra.mxu0 %v3323
    %v4082 = vpop.f32.mrf.mxu0
    %v4083 = vadd.f32 %v4018, %v4082
    %4084 = vmatmul.f32.gmra.mxu0 %v3326
    %v4085 = vpop.f32.mrf.mxu0
    %v4086 = vadd.f32 %v4021, %v4085
    %4087 = vmatmul.f32.gmra.mxu0 %v3329
    %v4088 = vpop.f32.mrf.mxu0
    %v4089 = vadd.f32 %v4024, %v4088
    %4090 = vmatmul.f32.gmra.mxu0 %v3332
    %v4091 = vpop.f32.mrf.mxu0
    %v4092 = vadd.f32 %v4027, %v4091
    %4093 = vmatmul.f32.gmra.mxu0 %v3335
    %v4094 = vpop.f32.mrf.mxu0
    %v4095 = vadd.f32 %v4030, %v4094
    %4096 = vdwg.mxu0
    %vm4097 = vcmp.ge.f32.partialorder %v4050, 0.0
    %vm4098 = vcmp.ge.f32.partialorder %v4053, 0.0
    %vm4099 = vcmp.ge.f32.partialorder %v4056, 0.0
    %vm4100 = vcmp.ge.f32.partialorder %v4059, 0.0
    %vm4101 = vcmp.ge.f32.partialorder %v4062, 0.0
    %vm4102 = vcmp.ge.f32.partialorder %v4065, 0.0
    %vm4103 = vcmp.ge.f32.partialorder %v4068, 0.0
    %vm4104 = vcmp.ge.f32.partialorder %v4071, 0.0
    %vm4105 = vcmp.ge.f32.partialorder %v4074, 0.0
    %vm4106 = vcmp.ge.f32.partialorder %v4077, 0.0
    %vm4107 = vcmp.ge.f32.partialorder %v4080, 0.0
    %vm4108 = vcmp.ge.f32.partialorder %v4083, 0.0
    %vm4109 = vcmp.ge.f32.partialorder %v4086, 0.0
    %vm4110 = vcmp.ge.f32.partialorder %v4089, 0.0
    %vm4111 = vcmp.ge.f32.partialorder %v4092, 0.0
    %vm4112 = vcmp.ge.f32.partialorder %v4095, 0.0
    %v4113 = vmul.f32 %v4050, 0.01
    %v4114 = vmul.f32 %v4053, 0.01
    %v4115 = vmul.f32 %v4056, 0.01
    %v4116 = vmul.f32 %v4059, 0.01
    %v4117 = vmul.f32 %v4062, 0.01
    %v4118 = vmul.f32 %v4065, 0.01
    %v4119 = vmul.f32 %v4068, 0.01
    %v4120 = vmul.f32 %v4071, 0.01
    %v4121 = vmul.f32 %v4074, 0.01
    %v4122 = vmul.f32 %v4077, 0.01
    %v4123 = vmul.f32 %v4080, 0.01
    %v4124 = vmul.f32 %v4083, 0.01
    %v4125 = vmul.f32 %v4086, 0.01
    %v4126 = vmul.f32 %v4089, 0.01
    %v4127 = vmul.f32 %v4092, 0.01
    %v4128 = vmul.f32 %v4095, 0.01
    %v4129 = vsel %vm4097, %v4050, %v4113
    %v4130 = vsel %vm4098, %v4053, %v4114
    %v4131 = vsel %vm4099, %v4056, %v4115
    %v4132 = vsel %vm4100, %v4059, %v4116
    %v4133 = vsel %vm4101, %v4062, %v4117
    %v4134 = vsel %vm4102, %v4065, %v4118
    %v4135 = vsel %vm4103, %v4068, %v4119
    %v4136 = vsel %vm4104, %v4071, %v4120
    %v4137 = vsel %vm4105, %v4074, %v4121
    %v4138 = vsel %vm4106, %v4077, %v4122
    %v4139 = vsel %vm4107, %v4080, %v4123
    %v4140 = vsel %vm4108, %v4083, %v4124
    %v4141 = vsel %vm4109, %v4086, %v4125
    %v4142 = vsel %vm4110, %v4089, %v4126
    %v4143 = vsel %vm4111, %v4092, %v4127
    %v4144 = vsel %vm4112, %v4095, %v4128
    %4161 = vrot.lane.b32.xlu0 %v4129, 1
    %v4162 = vpop.permute.xlu0 %4161
    %4163 = vrot.lane.b32.xlu0 %v4130, 1
    %v4164 = vpop.permute.xlu0 %4163
    %4165 = vrot.lane.b32.xlu0 %v4131, 1
    %v4166 = vpop.permute.xlu0 %4165
    %4167 = vrot.lane.b32.xlu0 %v4132, 1
    %v4168 = vpop.permute.xlu0 %4167
    %4169 = vrot.lane.b32.xlu0 %v4133, 1
    %v4170 = vpop.permute.xlu0 %4169
    %4171 = vrot.lane.b32.xlu0 %v4134, 1
    %v4172 = vpop.permute.xlu0 %4171
    %4173 = vrot.lane.b32.xlu0 %v4135, 1
    %v4174 = vpop.permute.xlu0 %4173
    %4175 = vrot.lane.b32.xlu0 %v4136, 1
    %v4176 = vpop.permute.xlu0 %4175
    %4177 = vrot.lane.b32.xlu0 %v4137, 1
    %v4178 = vpop.permute.xlu0 %4177
    %4179 = vrot.lane.b32.xlu0 %v4138, 1
    %v4180 = vpop.permute.xlu0 %4179
    %4181 = vrot.lane.b32.xlu0 %v4139, 1
    %v4182 = vpop.permute.xlu0 %4181
    %4183 = vrot.lane.b32.xlu0 %v4140, 1
    %v4184 = vpop.permute.xlu0 %4183
    %4185 = vrot.lane.b32.xlu0 %v4141, 1
    %v4186 = vpop.permute.xlu0 %4185
    %4187 = vrot.lane.b32.xlu0 %v4142, 1
    %v4188 = vpop.permute.xlu0 %4187
    %4189 = vrot.lane.b32.xlu0 %v4143, 1
    %v4190 = vpop.permute.xlu0 %4189
    %4191 = vrot.lane.b32.xlu0 %v4144, 1
    %v4192 = vpop.permute.xlu0 %4191
    %v4209 = vsel %vm511, %v4129, %v4162
    %v4210 = vsel %vm511, %v4130, %v4164
    %v4211 = vsel %vm511, %v4131, %v4166
    %v4212 = vsel %vm511, %v4132, %v4168
    %v4213 = vsel %vm511, %v4133, %v4170
    %v4214 = vsel %vm511, %v4134, %v4172
    %v4215 = vsel %vm511, %v4135, %v4174
    %v4216 = vsel %vm511, %v4136, %v4176
    %v4217 = vsel %vm511, %v4137, %v4178
    %v4218 = vsel %vm511, %v4138, %v4180
    %v4219 = vsel %vm511, %v4139, %v4182
    %v4220 = vsel %vm511, %v4140, %v4184
    %v4221 = vsel %vm511, %v4141, %v4186
    %v4222 = vsel %vm511, %v4142, %v4188
    %v4223 = vsel %vm511, %v4143, %v4190
    %v4224 = vsel %vm511, %v4144, %v4192
    %v4225 = vmul.f32 %v4209, %v515
    %v4226 = vmul.f32 %v4210, %v515
    %v4227 = vmul.f32 %v4211, %v515
    %v4228 = vmul.f32 %v4212, %v515
    %v4229 = vmul.f32 %v4213, %v515
    %v4230 = vmul.f32 %v4214, %v515
    %v4231 = vmul.f32 %v4215, %v515
    %v4232 = vmul.f32 %v4216, %v515
    %v4233 = vmul.f32 %v4217, %v515
    %v4234 = vmul.f32 %v4218, %v515
    %v4235 = vmul.f32 %v4219, %v515
    %v4236 = vmul.f32 %v4220, %v515
    %v4237 = vmul.f32 %v4221, %v515
    %v4238 = vmul.f32 %v4222, %v515
    %v4239 = vmul.f32 %v4223, %v515
    %v4240 = vmul.f32 %v4224, %v515
    %4241 = vrot.lane.b32.xlu0 %v4129, 127
    %v4242 = vpop.permute.xlu0 %4241
    %4243 = vrot.lane.b32.xlu0 %v4130, 127
    %v4244 = vpop.permute.xlu0 %4243
    %4245 = vrot.lane.b32.xlu0 %v4131, 127
    %v4246 = vpop.permute.xlu0 %4245
    %4247 = vrot.lane.b32.xlu0 %v4132, 127
    %v4248 = vpop.permute.xlu0 %4247
    %4249 = vrot.lane.b32.xlu0 %v4133, 127
    %v4250 = vpop.permute.xlu0 %4249
    %4251 = vrot.lane.b32.xlu0 %v4134, 127
    %v4252 = vpop.permute.xlu0 %4251
    %4253 = vrot.lane.b32.xlu0 %v4135, 127
    %v4254 = vpop.permute.xlu0 %4253
    %4255 = vrot.lane.b32.xlu0 %v4136, 127
    %v4256 = vpop.permute.xlu0 %4255
    %4257 = vrot.lane.b32.xlu0 %v4137, 127
    %v4258 = vpop.permute.xlu0 %4257
    %4259 = vrot.lane.b32.xlu0 %v4138, 127
    %v4260 = vpop.permute.xlu0 %4259
    %4261 = vrot.lane.b32.xlu0 %v4139, 127
    %v4262 = vpop.permute.xlu0 %4261
    %4263 = vrot.lane.b32.xlu0 %v4140, 127
    %v4264 = vpop.permute.xlu0 %4263
    %4265 = vrot.lane.b32.xlu0 %v4141, 127
    %v4266 = vpop.permute.xlu0 %4265
    %4267 = vrot.lane.b32.xlu0 %v4142, 127
    %v4268 = vpop.permute.xlu0 %4267
    %4269 = vrot.lane.b32.xlu0 %v4143, 127
    %v4270 = vpop.permute.xlu0 %4269
    %4271 = vrot.lane.b32.xlu0 %v4144, 127
    %v4272 = vpop.permute.xlu0 %4271
    %v4289 = vsel %vm525, %v4242, %v4129
    %v4290 = vsel %vm525, %v4244, %v4130
    %v4291 = vsel %vm525, %v4246, %v4131
    %v4292 = vsel %vm525, %v4248, %v4132
    %v4293 = vsel %vm525, %v4250, %v4133
    %v4294 = vsel %vm525, %v4252, %v4134
    %v4295 = vsel %vm525, %v4254, %v4135
    %v4296 = vsel %vm525, %v4256, %v4136
    %v4297 = vsel %vm525, %v4258, %v4137
    %v4298 = vsel %vm525, %v4260, %v4138
    %v4299 = vsel %vm525, %v4262, %v4139
    %v4300 = vsel %vm525, %v4264, %v4140
    %v4301 = vsel %vm525, %v4266, %v4141
    %v4302 = vsel %vm525, %v4268, %v4142
    %v4303 = vsel %vm525, %v4270, %v4143
    %v4304 = vsel %vm525, %v4272, %v4144
    %v4305 = vmul.f32 %v4289, %v529
    %v4306 = vmul.f32 %v4290, %v529
    %v4307 = vmul.f32 %v4291, %v529
    %v4308 = vmul.f32 %v4292, %v529
    %v4309 = vmul.f32 %v4293, %v529
    %v4310 = vmul.f32 %v4294, %v529
    %v4311 = vmul.f32 %v4295, %v529
    %v4312 = vmul.f32 %v4296, %v529
    %v4313 = vmul.f32 %v4297, %v529
    %v4314 = vmul.f32 %v4298, %v529
    %v4315 = vmul.f32 %v4299, %v529
    %v4316 = vmul.f32 %v4300, %v529
    %v4317 = vmul.f32 %v4301, %v529
    %v4318 = vmul.f32 %v4302, %v529
    %v4319 = vmul.f32 %v4303, %v529
    %v4320 = vmul.f32 %v4304, %v529
    %4322 = vset.pattern.permute.xlu0 0
    %4323 = vperm.xlu0 %4322, %v3448
    %v4324 = vpop.permute.xlu0 %4323
    %4327 = vset.pattern.permute.xlu0 0
    %4328 = vperm.xlu0 %4327, %v3449
    %v4329 = vpop.permute.xlu0 %4328
    %4332 = vset.pattern.permute.xlu0 0
    %4333 = vperm.xlu0 %4332, %v3450
    %v4334 = vpop.permute.xlu0 %4333
    %4337 = vset.pattern.permute.xlu0 0
    %4338 = vperm.xlu0 %4337, %v3451
    %v4339 = vpop.permute.xlu0 %4338
    %4342 = vset.pattern.permute.xlu0 0
    %4343 = vperm.xlu0 %4342, %v3452
    %v4344 = vpop.permute.xlu0 %4343
    %4347 = vset.pattern.permute.xlu0 0
    %4348 = vperm.xlu0 %4347, %v3453
    %v4349 = vpop.permute.xlu0 %4348
    %4352 = vset.pattern.permute.xlu0 0
    %4353 = vperm.xlu0 %4352, %v3454
    %v4354 = vpop.permute.xlu0 %4353
    %4357 = vset.pattern.permute.xlu0 0
    %4358 = vperm.xlu0 %4357, %v3455
    %v4359 = vpop.permute.xlu0 %4358
    %4362 = vset.pattern.permute.xlu0 0
    %4363 = vperm.xlu0 %4362, %v3456
    %v4364 = vpop.permute.xlu0 %4363
    %4367 = vset.pattern.permute.xlu0 0
    %4368 = vperm.xlu0 %4367, %v3457
    %v4369 = vpop.permute.xlu0 %4368
    %4372 = vset.pattern.permute.xlu0 0
    %4373 = vperm.xlu0 %4372, %v3458
    %v4374 = vpop.permute.xlu0 %4373
    %4377 = vset.pattern.permute.xlu0 0
    %4378 = vperm.xlu0 %4377, %v3459
    %v4379 = vpop.permute.xlu0 %4378
    %4382 = vset.pattern.permute.xlu0 0
    %4383 = vperm.xlu0 %4382, %v3460
    %v4384 = vpop.permute.xlu0 %4383
    %4387 = vset.pattern.permute.xlu0 0
    %4388 = vperm.xlu0 %4387, %v3461
    %v4389 = vpop.permute.xlu0 %4388
    %4392 = vset.pattern.permute.xlu0 0
    %4393 = vperm.xlu0 %4392, %v3462
    %v4394 = vpop.permute.xlu0 %4393
    %4397 = vset.pattern.permute.xlu0 0
    %4398 = vperm.xlu0 %4397, %v3463
    %v4399 = vpop.permute.xlu0 %4398
    %4402 = vset.pattern.permute.xlu0 0
    %4403 = vperm.xlu0 %4402, %v3464
    %v4404 = vpop.permute.xlu0 %4403
    %4407 = vset.pattern.permute.xlu0 0
    %4408 = vperm.xlu0 %4407, %v3465
    %v4409 = vpop.permute.xlu0 %4408
    %4412 = vset.pattern.permute.xlu0 0
    %4413 = vperm.xlu0 %4412, %v3466
    %v4414 = vpop.permute.xlu0 %4413
    %4417 = vset.pattern.permute.xlu0 0
    %4418 = vperm.xlu0 %4417, %v3467
    %v4419 = vpop.permute.xlu0 %4418
    %4422 = vset.pattern.permute.xlu0 0
    %4423 = vperm.xlu0 %4422, %v3468
    %v4424 = vpop.permute.xlu0 %4423
    %4427 = vset.pattern.permute.xlu0 0
    %4428 = vperm.xlu0 %4427, %v3469
    %v4429 = vpop.permute.xlu0 %4428
    %4432 = vset.pattern.permute.xlu0 0
    %4433 = vperm.xlu0 %4432, %v3470
    %v4434 = vpop.permute.xlu0 %4433
    %4437 = vset.pattern.permute.xlu0 0
    %4438 = vperm.xlu0 %4437, %v3471
    %v4439 = vpop.permute.xlu0 %4438
    %4442 = vset.pattern.permute.xlu0 0
    %4443 = vperm.xlu0 %4442, %v3472
    %v4444 = vpop.permute.xlu0 %4443
    %4447 = vset.pattern.permute.xlu0 0
    %4448 = vperm.xlu0 %4447, %v3473
    %v4449 = vpop.permute.xlu0 %4448
    %4452 = vset.pattern.permute.xlu0 0
    %4453 = vperm.xlu0 %4452, %v3474
    %v4454 = vpop.permute.xlu0 %4453
    %4457 = vset.pattern.permute.xlu0 0
    %4458 = vperm.xlu0 %4457, %v3475
    %v4459 = vpop.permute.xlu0 %4458
    %4462 = vset.pattern.permute.xlu0 0
    %4463 = vperm.xlu0 %4462, %v3476
    %v4464 = vpop.permute.xlu0 %4463
    %4467 = vset.pattern.permute.xlu0 0
    %4468 = vperm.xlu0 %4467, %v3477
    %v4469 = vpop.permute.xlu0 %4468
    %4472 = vset.pattern.permute.xlu0 0
    %4473 = vperm.xlu0 %4472, %v3478
    %v4474 = vpop.permute.xlu0 %4473
    %4477 = vset.pattern.permute.xlu0 0
    %4478 = vperm.xlu0 %4477, %v3479
    %v4479 = vpop.permute.xlu0 %4478
    %4481 = vmatpush.msra.mxu0 %v4240
    %4482 = vmatpush.msra.mxu0 %v4239
    %4483 = vmatpush.msra.mxu0 %v4238
    %4484 = vmatpush.msra.mxu0 %v4237
    %4485 = vmatpush.msra.mxu0 %v4236
    %4486 = vmatpush.msra.mxu0 %v4235
    %4487 = vmatpush.msra.mxu0 %v4234
    %4488 = vmatpush.msra.mxu0 %v4233
    %4489 = vmatpush.msra.mxu0 %v4232
    %4490 = vmatpush.msra.mxu0 %v4231
    %4491 = vmatpush.msra.mxu0 %v4230
    %4492 = vmatpush.msra.mxu0 %v4229
    %4493 = vmatpush.msra.mxu0 %v4228
    %4494 = vmatpush.msra.mxu0 %v4227
    %4495 = vmatpush.msra.mxu0 %v4226
    %4496 = vmatpush.msra.mxu0 %v4225
    %4497 = vmatmul.f32.gmra.mxu0 %v3352
    %v4498 = vpop.f32.mrf.mxu0
    %v4499 = vadd.f32 %v4324, %v4498
    %4500 = vmatmul.f32.gmra.mxu0 %v3355
    %v4501 = vpop.f32.mrf.mxu0
    %v4502 = vadd.f32 %v4329, %v4501
    %4503 = vmatmul.f32.gmra.mxu0 %v3358
    %v4504 = vpop.f32.mrf.mxu0
    %v4505 = vadd.f32 %v4334, %v4504
    %4506 = vmatmul.f32.gmra.mxu0 %v3361
    %v4507 = vpop.f32.mrf.mxu0
    %v4508 = vadd.f32 %v4339, %v4507
    %4509 = vmatmul.f32.gmra.mxu0 %v3364
    %v4510 = vpop.f32.mrf.mxu0
    %v4511 = vadd.f32 %v4344, %v4510
    %4512 = vmatmul.f32.gmra.mxu0 %v3367
    %v4513 = vpop.f32.mrf.mxu0
    %v4514 = vadd.f32 %v4349, %v4513
    %4515 = vmatmul.f32.gmra.mxu0 %v3370
    %v4516 = vpop.f32.mrf.mxu0
    %v4517 = vadd.f32 %v4354, %v4516
    %4518 = vmatmul.f32.gmra.mxu0 %v3373
    %v4519 = vpop.f32.mrf.mxu0
    %v4520 = vadd.f32 %v4359, %v4519
    %4521 = vmatmul.f32.gmra.mxu0 %v3376
    %v4522 = vpop.f32.mrf.mxu0
    %v4523 = vadd.f32 %v4364, %v4522
    %4524 = vmatmul.f32.gmra.mxu0 %v3379
    %v4525 = vpop.f32.mrf.mxu0
    %v4526 = vadd.f32 %v4369, %v4525
    %4527 = vmatmul.f32.gmra.mxu0 %v3382
    %v4528 = vpop.f32.mrf.mxu0
    %v4529 = vadd.f32 %v4374, %v4528
    %4530 = vmatmul.f32.gmra.mxu0 %v3385
    %v4531 = vpop.f32.mrf.mxu0
    %v4532 = vadd.f32 %v4379, %v4531
    %4533 = vmatmul.f32.gmra.mxu0 %v3388
    %v4534 = vpop.f32.mrf.mxu0
    %v4535 = vadd.f32 %v4384, %v4534
    %4536 = vmatmul.f32.gmra.mxu0 %v3391
    %v4537 = vpop.f32.mrf.mxu0
    %v4538 = vadd.f32 %v4389, %v4537
    %4539 = vmatmul.f32.gmra.mxu0 %v3394
    %v4540 = vpop.f32.mrf.mxu0
    %v4541 = vadd.f32 %v4394, %v4540
    %4542 = vmatmul.f32.gmra.mxu0 %v3397
    %v4543 = vpop.f32.mrf.mxu0
    %v4544 = vadd.f32 %v4399, %v4543
    %4545 = vmatmul.f32.gmra.mxu0 %v3400
    %v4546 = vpop.f32.mrf.mxu0
    %v4547 = vadd.f32 %v4404, %v4546
    %4548 = vmatmul.f32.gmra.mxu0 %v3403
    %v4549 = vpop.f32.mrf.mxu0
    %v4550 = vadd.f32 %v4409, %v4549
    %4551 = vmatmul.f32.gmra.mxu0 %v3406
    %v4552 = vpop.f32.mrf.mxu0
    %v4553 = vadd.f32 %v4414, %v4552
    %4554 = vmatmul.f32.gmra.mxu0 %v3409
    %v4555 = vpop.f32.mrf.mxu0
    %v4556 = vadd.f32 %v4419, %v4555
    %4557 = vmatmul.f32.gmra.mxu0 %v3412
    %v4558 = vpop.f32.mrf.mxu0
    %v4559 = vadd.f32 %v4424, %v4558
    %4560 = vmatmul.f32.gmra.mxu0 %v3415
    %v4561 = vpop.f32.mrf.mxu0
    %v4562 = vadd.f32 %v4429, %v4561
    %4563 = vmatmul.f32.gmra.mxu0 %v3418
    %v4564 = vpop.f32.mrf.mxu0
    %v4565 = vadd.f32 %v4434, %v4564
    %4566 = vmatmul.f32.gmra.mxu0 %v3421
    %v4567 = vpop.f32.mrf.mxu0
    %v4568 = vadd.f32 %v4439, %v4567
    %4569 = vmatmul.f32.gmra.mxu0 %v3424
    %v4570 = vpop.f32.mrf.mxu0
    %v4571 = vadd.f32 %v4444, %v4570
    %4572 = vmatmul.f32.gmra.mxu0 %v3427
    %v4573 = vpop.f32.mrf.mxu0
    %v4574 = vadd.f32 %v4449, %v4573
    %4575 = vmatmul.f32.gmra.mxu0 %v3430
    %v4576 = vpop.f32.mrf.mxu0
    %v4577 = vadd.f32 %v4454, %v4576
    %4578 = vmatmul.f32.gmra.mxu0 %v3433
    %v4579 = vpop.f32.mrf.mxu0
    %v4580 = vadd.f32 %v4459, %v4579
    %4581 = vmatmul.f32.gmra.mxu0 %v3436
    %v4582 = vpop.f32.mrf.mxu0
    %v4583 = vadd.f32 %v4464, %v4582
    %4584 = vmatmul.f32.gmra.mxu0 %v3439
    %v4585 = vpop.f32.mrf.mxu0
    %v4586 = vadd.f32 %v4469, %v4585
    %4587 = vmatmul.f32.gmra.mxu0 %v3442
    %v4588 = vpop.f32.mrf.mxu0
    %v4589 = vadd.f32 %v4474, %v4588
    %4590 = vmatmul.f32.gmra.mxu0 %v3445
    %v4591 = vpop.f32.mrf.mxu0
    %v4592 = vadd.f32 %v4479, %v4591
    %4593 = vdwg.mxu0
    %4594 = vmatpush.msra.mxu0 %v4144
    %4595 = vmatpush.msra.mxu0 %v4143
    %4596 = vmatpush.msra.mxu0 %v4142
    %4597 = vmatpush.msra.mxu0 %v4141
    %4598 = vmatpush.msra.mxu0 %v4140
    %4599 = vmatpush.msra.mxu0 %v4139
    %4600 = vmatpush.msra.mxu0 %v4138
    %4601 = vmatpush.msra.mxu0 %v4137
    %4602 = vmatpush.msra.mxu0 %v4136
    %4603 = vmatpush.msra.mxu0 %v4135
    %4604 = vmatpush.msra.mxu0 %v4134
    %4605 = vmatpush.msra.mxu0 %v4133
    %4606 = vmatpush.msra.mxu0 %v4132
    %4607 = vmatpush.msra.mxu0 %v4131
    %4608 = vmatpush.msra.mxu0 %v4130
    %4609 = vmatpush.msra.mxu0 %v4129
    %4610 = vmatmul.f32.gmra.mxu0 %v3353
    %v4611 = vpop.f32.mrf.mxu0
    %v4612 = vadd.f32 %v4499, %v4611
    %4613 = vmatmul.f32.gmra.mxu0 %v3356
    %v4614 = vpop.f32.mrf.mxu0
    %v4615 = vadd.f32 %v4502, %v4614
    %4616 = vmatmul.f32.gmra.mxu0 %v3359
    %v4617 = vpop.f32.mrf.mxu0
    %v4618 = vadd.f32 %v4505, %v4617
    %4619 = vmatmul.f32.gmra.mxu0 %v3362
    %v4620 = vpop.f32.mrf.mxu0
    %v4621 = vadd.f32 %v4508, %v4620
    %4622 = vmatmul.f32.gmra.mxu0 %v3365
    %v4623 = vpop.f32.mrf.mxu0
    %v4624 = vadd.f32 %v4511, %v4623
    %4625 = vmatmul.f32.gmra.mxu0 %v3368
    %v4626 = vpop.f32.mrf.mxu0
    %v4627 = vadd.f32 %v4514, %v4626
    %4628 = vmatmul.f32.gmra.mxu0 %v3371
    %v4629 = vpop.f32.mrf.mxu0
    %v4630 = vadd.f32 %v4517, %v4629
    %4631 = vmatmul.f32.gmra.mxu0 %v3374
    %v4632 = vpop.f32.mrf.mxu0
    %v4633 = vadd.f32 %v4520, %v4632
    %4634 = vmatmul.f32.gmra.mxu0 %v3377
    %v4635 = vpop.f32.mrf.mxu0
    %v4636 = vadd.f32 %v4523, %v4635
    %4637 = vmatmul.f32.gmra.mxu0 %v3380
    %v4638 = vpop.f32.mrf.mxu0
    %v4639 = vadd.f32 %v4526, %v4638
    %4640 = vmatmul.f32.gmra.mxu0 %v3383
    %v4641 = vpop.f32.mrf.mxu0
    %v4642 = vadd.f32 %v4529, %v4641
    %4643 = vmatmul.f32.gmra.mxu0 %v3386
    %v4644 = vpop.f32.mrf.mxu0
    %v4645 = vadd.f32 %v4532, %v4644
    %4646 = vmatmul.f32.gmra.mxu0 %v3389
    %v4647 = vpop.f32.mrf.mxu0
    %v4648 = vadd.f32 %v4535, %v4647
    %4649 = vmatmul.f32.gmra.mxu0 %v3392
    %v4650 = vpop.f32.mrf.mxu0
    %v4651 = vadd.f32 %v4538, %v4650
    %4652 = vmatmul.f32.gmra.mxu0 %v3395
    %v4653 = vpop.f32.mrf.mxu0
    %v4654 = vadd.f32 %v4541, %v4653
    %4655 = vmatmul.f32.gmra.mxu0 %v3398
    %v4656 = vpop.f32.mrf.mxu0
    %v4657 = vadd.f32 %v4544, %v4656
    %4658 = vmatmul.f32.gmra.mxu0 %v3401
    %v4659 = vpop.f32.mrf.mxu0
    %v4660 = vadd.f32 %v4547, %v4659
    %4661 = vmatmul.f32.gmra.mxu0 %v3404
    %v4662 = vpop.f32.mrf.mxu0
    %v4663 = vadd.f32 %v4550, %v4662
    %4664 = vmatmul.f32.gmra.mxu0 %v3407
    %v4665 = vpop.f32.mrf.mxu0
    %v4666 = vadd.f32 %v4553, %v4665
    %4667 = vmatmul.f32.gmra.mxu0 %v3410
    %v4668 = vpop.f32.mrf.mxu0
    %v4669 = vadd.f32 %v4556, %v4668
    %4670 = vmatmul.f32.gmra.mxu0 %v3413
    %v4671 = vpop.f32.mrf.mxu0
    %v4672 = vadd.f32 %v4559, %v4671
    %4673 = vmatmul.f32.gmra.mxu0 %v3416
    %v4674 = vpop.f32.mrf.mxu0
    %v4675 = vadd.f32 %v4562, %v4674
    %4676 = vmatmul.f32.gmra.mxu0 %v3419
    %v4677 = vpop.f32.mrf.mxu0
    %v4678 = vadd.f32 %v4565, %v4677
    %4679 = vmatmul.f32.gmra.mxu0 %v3422
    %v4680 = vpop.f32.mrf.mxu0
    %v4681 = vadd.f32 %v4568, %v4680
    %4682 = vmatmul.f32.gmra.mxu0 %v3425
    %v4683 = vpop.f32.mrf.mxu0
    %v4684 = vadd.f32 %v4571, %v4683
    %4685 = vmatmul.f32.gmra.mxu0 %v3428
    %v4686 = vpop.f32.mrf.mxu0
    %v4687 = vadd.f32 %v4574, %v4686
    %4688 = vmatmul.f32.gmra.mxu0 %v3431
    %v4689 = vpop.f32.mrf.mxu0
    %v4690 = vadd.f32 %v4577, %v4689
    %4691 = vmatmul.f32.gmra.mxu0 %v3434
    %v4692 = vpop.f32.mrf.mxu0
    %v4693 = vadd.f32 %v4580, %v4692
    %4694 = vmatmul.f32.gmra.mxu0 %v3437
    %v4695 = vpop.f32.mrf.mxu0
    %v4696 = vadd.f32 %v4583, %v4695
    %4697 = vmatmul.f32.gmra.mxu0 %v3440
    %v4698 = vpop.f32.mrf.mxu0
    %v4699 = vadd.f32 %v4586, %v4698
    %4700 = vmatmul.f32.gmra.mxu0 %v3443
    %v4701 = vpop.f32.mrf.mxu0
    %v4702 = vadd.f32 %v4589, %v4701
    %4703 = vmatmul.f32.gmra.mxu0 %v3446
    %v4704 = vpop.f32.mrf.mxu0
    %v4705 = vadd.f32 %v4592, %v4704
    %4706 = vdwg.mxu0
    %4707 = vmatpush.msra.mxu0 %v4320
    %4708 = vmatpush.msra.mxu0 %v4319
    %4709 = vmatpush.msra.mxu0 %v4318
    %4710 = vmatpush.msra.mxu0 %v4317
    %4711 = vmatpush.msra.mxu0 %v4316
    %4712 = vmatpush.msra.mxu0 %v4315
    %4713 = vmatpush.msra.mxu0 %v4314
    %4714 = vmatpush.msra.mxu0 %v4313
    %4715 = vmatpush.msra.mxu0 %v4312
    %4716 = vmatpush.msra.mxu0 %v4311
    %4717 = vmatpush.msra.mxu0 %v4310
    %4718 = vmatpush.msra.mxu0 %v4309
    %4719 = vmatpush.msra.mxu0 %v4308
    %4720 = vmatpush.msra.mxu0 %v4307
    %4721 = vmatpush.msra.mxu0 %v4306
    %4722 = vmatpush.msra.mxu0 %v4305
    %4723 = vmatmul.f32.gmra.mxu0 %v3354
    %v4724 = vpop.f32.mrf.mxu0
    %v4725 = vadd.f32 %v4612, %v4724
    %4726 = vmatmul.f32.gmra.mxu0 %v3357
    %v4727 = vpop.f32.mrf.mxu0
    %v4728 = vadd.f32 %v4615, %v4727
    %4729 = vmatmul.f32.gmra.mxu0 %v3360
    %v4730 = vpop.f32.mrf.mxu0
    %v4731 = vadd.f32 %v4618, %v4730
    %4732 = vmatmul.f32.gmra.mxu0 %v3363
    %v4733 = vpop.f32.mrf.mxu0
    %v4734 = vadd.f32 %v4621, %v4733
    %4735 = vmatmul.f32.gmra.mxu0 %v3366
    %v4736 = vpop.f32.mrf.mxu0
    %v4737 = vadd.f32 %v4624, %v4736
    %4738 = vmatmul.f32.gmra.mxu0 %v3369
    %v4739 = vpop.f32.mrf.mxu0
    %v4740 = vadd.f32 %v4627, %v4739
    %4741 = vmatmul.f32.gmra.mxu0 %v3372
    %v4742 = vpop.f32.mrf.mxu0
    %v4743 = vadd.f32 %v4630, %v4742
    %4744 = vmatmul.f32.gmra.mxu0 %v3375
    %v4745 = vpop.f32.mrf.mxu0
    %v4746 = vadd.f32 %v4633, %v4745
    %4747 = vmatmul.f32.gmra.mxu0 %v3378
    %v4748 = vpop.f32.mrf.mxu0
    %v4749 = vadd.f32 %v4636, %v4748
    %4750 = vmatmul.f32.gmra.mxu0 %v3381
    %v4751 = vpop.f32.mrf.mxu0
    %v4752 = vadd.f32 %v4639, %v4751
    %4753 = vmatmul.f32.gmra.mxu0 %v3384
    %v4754 = vpop.f32.mrf.mxu0
    %v4755 = vadd.f32 %v4642, %v4754
    %4756 = vmatmul.f32.gmra.mxu0 %v3387
    %v4757 = vpop.f32.mrf.mxu0
    %v4758 = vadd.f32 %v4645, %v4757
    %4759 = vmatmul.f32.gmra.mxu0 %v3390
    %v4760 = vpop.f32.mrf.mxu0
    %v4761 = vadd.f32 %v4648, %v4760
    %4762 = vmatmul.f32.gmra.mxu0 %v3393
    %v4763 = vpop.f32.mrf.mxu0
    %v4764 = vadd.f32 %v4651, %v4763
    %4765 = vmatmul.f32.gmra.mxu0 %v3396
    %v4766 = vpop.f32.mrf.mxu0
    %v4767 = vadd.f32 %v4654, %v4766
    %4768 = vmatmul.f32.gmra.mxu0 %v3399
    %v4769 = vpop.f32.mrf.mxu0
    %v4770 = vadd.f32 %v4657, %v4769
    %4771 = vmatmul.f32.gmra.mxu0 %v3402
    %v4772 = vpop.f32.mrf.mxu0
    %v4773 = vadd.f32 %v4660, %v4772
    %4774 = vmatmul.f32.gmra.mxu0 %v3405
    %v4775 = vpop.f32.mrf.mxu0
    %v4776 = vadd.f32 %v4663, %v4775
    %4777 = vmatmul.f32.gmra.mxu0 %v3408
    %v4778 = vpop.f32.mrf.mxu0
    %v4779 = vadd.f32 %v4666, %v4778
    %4780 = vmatmul.f32.gmra.mxu0 %v3411
    %v4781 = vpop.f32.mrf.mxu0
    %v4782 = vadd.f32 %v4669, %v4781
    %4783 = vmatmul.f32.gmra.mxu0 %v3414
    %v4784 = vpop.f32.mrf.mxu0
    %v4785 = vadd.f32 %v4672, %v4784
    %4786 = vmatmul.f32.gmra.mxu0 %v3417
    %v4787 = vpop.f32.mrf.mxu0
    %v4788 = vadd.f32 %v4675, %v4787
    %4789 = vmatmul.f32.gmra.mxu0 %v3420
    %v4790 = vpop.f32.mrf.mxu0
    %v4791 = vadd.f32 %v4678, %v4790
    %4792 = vmatmul.f32.gmra.mxu0 %v3423
    %v4793 = vpop.f32.mrf.mxu0
    %v4794 = vadd.f32 %v4681, %v4793
    %4795 = vmatmul.f32.gmra.mxu0 %v3426
    %v4796 = vpop.f32.mrf.mxu0
    %v4797 = vadd.f32 %v4684, %v4796
    %4798 = vmatmul.f32.gmra.mxu0 %v3429
    %v4799 = vpop.f32.mrf.mxu0
    %v4800 = vadd.f32 %v4687, %v4799
    %4801 = vmatmul.f32.gmra.mxu0 %v3432
    %v4802 = vpop.f32.mrf.mxu0
    %v4803 = vadd.f32 %v4690, %v4802
    %4804 = vmatmul.f32.gmra.mxu0 %v3435
    %v4805 = vpop.f32.mrf.mxu0
    %v4806 = vadd.f32 %v4693, %v4805
    %4807 = vmatmul.f32.gmra.mxu0 %v3438
    %v4808 = vpop.f32.mrf.mxu0
    %v4809 = vadd.f32 %v4696, %v4808
    %4810 = vmatmul.f32.gmra.mxu0 %v3441
    %v4811 = vpop.f32.mrf.mxu0
    %v4812 = vadd.f32 %v4699, %v4811
    %4813 = vmatmul.f32.gmra.mxu0 %v3444
    %v4814 = vpop.f32.mrf.mxu0
    %v4815 = vadd.f32 %v4702, %v4814
    %4816 = vmatmul.f32.gmra.mxu0 %v3447
    %v4817 = vpop.f32.mrf.mxu0
    %v4818 = vadd.f32 %v4705, %v4817
    %4819 = vdwg.mxu0
    %v4820 = vsub.f32 0.0, %v4773
    %v4821 = vsub.f32 0.0, %v4776
    %v4822 = vsub.f32 0.0, %v4779
    %v4823 = vsub.f32 0.0, %v4782
    %v4824 = vsub.f32 0.0, %v4785
    %v4825 = vsub.f32 0.0, %v4788
    %v4826 = vsub.f32 0.0, %v4791
    %v4827 = vsub.f32 0.0, %v4794
    %v4828 = vsub.f32 0.0, %v4797
    %v4829 = vsub.f32 0.0, %v4800
    %v4830 = vsub.f32 0.0, %v4803
    %v4831 = vsub.f32 0.0, %v4806
    %v4832 = vsub.f32 0.0, %v4809
    %v4833 = vsub.f32 0.0, %v4812
    %v4834 = vsub.f32 0.0, %v4815
    %v4835 = vsub.f32 0.0, %v4818
    %v4836 = vmul.f32 %v4820, 1.442695
    %v4837 = vpow.pop %v4836
    %v4838 = vmul.f32 %v4821, 1.442695
    %v4839 = vpow.pop %v4838
    %v4840 = vmul.f32 %v4822, 1.442695
    %v4841 = vpow.pop %v4840
    %v4842 = vmul.f32 %v4823, 1.442695
    %v4843 = vpow.pop %v4842
    %v4844 = vmul.f32 %v4824, 1.442695
    %v4845 = vpow.pop %v4844
    %v4846 = vmul.f32 %v4825, 1.442695
    %v4847 = vpow.pop %v4846
    %v4848 = vmul.f32 %v4826, 1.442695
    %v4849 = vpow.pop %v4848
    %v4850 = vmul.f32 %v4827, 1.442695
    %v4851 = vpow.pop %v4850
    %v4852 = vmul.f32 %v4828, 1.442695
    %v4853 = vpow.pop %v4852
    %v4854 = vmul.f32 %v4829, 1.442695
    %v4855 = vpow.pop %v4854
    %v4856 = vmul.f32 %v4830, 1.442695
    %v4857 = vpow.pop %v4856
    %v4858 = vmul.f32 %v4831, 1.442695
    %v4859 = vpow.pop %v4858
    %v4860 = vmul.f32 %v4832, 1.442695
    %v4861 = vpow.pop %v4860
    %v4862 = vmul.f32 %v4833, 1.442695
    %v4863 = vpow.pop %v4862
    %v4864 = vmul.f32 %v4834, 1.442695
    %v4865 = vpow.pop %v4864
    %v4866 = vmul.f32 %v4835, 1.442695
    %v4867 = vpow.pop %v4866
    %v4868 = vadd.f32 %v4837, 1.0
    %v4869 = vadd.f32 %v4839, 1.0
    %v4870 = vadd.f32 %v4841, 1.0
    %v4871 = vadd.f32 %v4843, 1.0
    %v4872 = vadd.f32 %v4845, 1.0
    %v4873 = vadd.f32 %v4847, 1.0
    %v4874 = vadd.f32 %v4849, 1.0
    %v4875 = vadd.f32 %v4851, 1.0
    %v4876 = vadd.f32 %v4853, 1.0
    %v4877 = vadd.f32 %v4855, 1.0
    %v4878 = vadd.f32 %v4857, 1.0
    %v4879 = vadd.f32 %v4859, 1.0
    %v4880 = vadd.f32 %v4861, 1.0
    %v4881 = vadd.f32 %v4863, 1.0
    %v4882 = vadd.f32 %v4865, 1.0
    %v4883 = vadd.f32 %v4867, 1.0
    %v4884 = vrcp.pop %v4868
    %v4885 = vrcp.pop %v4869
    %v4886 = vrcp.pop %v4870
    %v4887 = vrcp.pop %v4871
    %v4888 = vrcp.pop %v4872
    %v4889 = vrcp.pop %v4873
    %v4890 = vrcp.pop %v4874
    %v4891 = vrcp.pop %v4875
    %v4892 = vrcp.pop %v4876
    %v4893 = vrcp.pop %v4877
    %v4894 = vrcp.pop %v4878
    %v4895 = vrcp.pop %v4879
    %v4896 = vrcp.pop %v4880
    %v4897 = vrcp.pop %v4881
    %v4898 = vrcp.pop %v4882
    %v4899 = vrcp.pop %v4883
    %vm4900 = vcmp.ge.f32.partialorder %v4725, 0.0
    %vm4901 = vcmp.ge.f32.partialorder %v4728, 0.0
    %vm4902 = vcmp.ge.f32.partialorder %v4731, 0.0
    %vm4903 = vcmp.ge.f32.partialorder %v4734, 0.0
    %vm4904 = vcmp.ge.f32.partialorder %v4737, 0.0
    %vm4905 = vcmp.ge.f32.partialorder %v4740, 0.0
    %vm4906 = vcmp.ge.f32.partialorder %v4743, 0.0
    %vm4907 = vcmp.ge.f32.partialorder %v4746, 0.0
    %vm4908 = vcmp.ge.f32.partialorder %v4749, 0.0
    %vm4909 = vcmp.ge.f32.partialorder %v4752, 0.0
    %vm4910 = vcmp.ge.f32.partialorder %v4755, 0.0
    %vm4911 = vcmp.ge.f32.partialorder %v4758, 0.0
    %vm4912 = vcmp.ge.f32.partialorder %v4761, 0.0
    %vm4913 = vcmp.ge.f32.partialorder %v4764, 0.0
    %vm4914 = vcmp.ge.f32.partialorder %v4767, 0.0
    %vm4915 = vcmp.ge.f32.partialorder %v4770, 0.0
    %v4916 = vmul.f32 %v4725, 0.01
    %v4917 = vmul.f32 %v4728, 0.01
    %v4918 = vmul.f32 %v4731, 0.01
    %v4919 = vmul.f32 %v4734, 0.01
    %v4920 = vmul.f32 %v4737, 0.01
    %v4921 = vmul.f32 %v4740, 0.01
    %v4922 = vmul.f32 %v4743, 0.01
    %v4923 = vmul.f32 %v4746, 0.01
    %v4924 = vmul.f32 %v4749, 0.01
    %v4925 = vmul.f32 %v4752, 0.01
    %v4926 = vmul.f32 %v4755, 0.01
    %v4927 = vmul.f32 %v4758, 0.01
    %v4928 = vmul.f32 %v4761, 0.01
    %v4929 = vmul.f32 %v4764, 0.01
    %v4930 = vmul.f32 %v4767, 0.01
    %v4931 = vmul.f32 %v4770, 0.01
    %v4932 = vsel %vm4900, %v4725, %v4916
    %v4933 = vsel %vm4901, %v4728, %v4917
    %v4934 = vsel %vm4902, %v4731, %v4918
    %v4935 = vsel %vm4903, %v4734, %v4919
    %v4936 = vsel %vm4904, %v4737, %v4920
    %v4937 = vsel %vm4905, %v4740, %v4921
    %v4938 = vsel %vm4906, %v4743, %v4922
    %v4939 = vsel %vm4907, %v4746, %v4923
    %v4940 = vsel %vm4908, %v4749, %v4924
    %v4941 = vsel %vm4909, %v4752, %v4925
    %v4942 = vsel %vm4910, %v4755, %v4926
    %v4943 = vsel %vm4911, %v4758, %v4927
    %v4944 = vsel %vm4912, %v4761, %v4928
    %v4945 = vsel %vm4913, %v4764, %v4929
    %v4946 = vsel %vm4914, %v4767, %v4930
    %v4947 = vsel %vm4915, %v4770, %v4931
    %v4948 = vmul.f32 %v4884, %v4932
    %v4949 = vmul.f32 %v4885, %v4933
    %v4950 = vmul.f32 %v4886, %v4934
    %v4951 = vmul.f32 %v4887, %v4935
    %v4952 = vmul.f32 %v4888, %v4936
    %v4953 = vmul.f32 %v4889, %v4937
    %v4954 = vmul.f32 %v4890, %v4938
    %v4955 = vmul.f32 %v4891, %v4939
    %v4956 = vmul.f32 %v4892, %v4940
    %v4957 = vmul.f32 %v4893, %v4941
    %v4958 = vmul.f32 %v4894, %v4942
    %v4959 = vmul.f32 %v4895, %v4943
    %v4960 = vmul.f32 %v4896, %v4944
    %v4961 = vmul.f32 %v4897, %v4945
    %v4962 = vmul.f32 %v4898, %v4946
    %v4963 = vmul.f32 %v4899, %v4947
    %4964 = vmatpush.msra.mxu0 %v4963
    %4965 = vmatpush.msra.mxu0 %v4962
    %4966 = vmatpush.msra.mxu0 %v4961
    %4967 = vmatpush.msra.mxu0 %v4960
    %4968 = vmatpush.msra.mxu0 %v4959
    %4969 = vmatpush.msra.mxu0 %v4958
    %4970 = vmatpush.msra.mxu0 %v4957
    %4971 = vmatpush.msra.mxu0 %v4956
    %4972 = vmatpush.msra.mxu0 %v4955
    %4973 = vmatpush.msra.mxu0 %v4954
    %4974 = vmatpush.msra.mxu0 %v4953
    %4975 = vmatpush.msra.mxu0 %v4952
    %4976 = vmatpush.msra.mxu0 %v4951
    %4977 = vmatpush.msra.mxu0 %v4950
    %4978 = vmatpush.msra.mxu0 %v4949
    %4979 = vmatpush.msra.mxu0 %v4948
    %4980 = vmatmul.f32.gmra.mxu0 %v3480
    %v4981 = vpop.f32.mrf.mxu0
    %v4982 = vadd.f32 0.0, %v4981
    %4983 = vdwg.mxu0
    %4984 = vmatpush.msra.mxu0 %v4963
    %4985 = vmatpush.msra.mxu0 %v4962
    %4986 = vmatpush.msra.mxu0 %v4961
    %4987 = vmatpush.msra.mxu0 %v4960
    %4988 = vmatpush.msra.mxu0 %v4959
    %4989 = vmatpush.msra.mxu0 %v4958
    %4990 = vmatpush.msra.mxu0 %v4957
    %4991 = vmatpush.msra.mxu0 %v4956
    %4992 = vmatpush.msra.mxu0 %v4955
    %4993 = vmatpush.msra.mxu0 %v4954
    %4994 = vmatpush.msra.mxu0 %v4953
    %4995 = vmatpush.msra.mxu0 %v4952
    %4996 = vmatpush.msra.mxu0 %v4951
    %4997 = vmatpush.msra.mxu0 %v4950
    %4998 = vmatpush.msra.mxu0 %v4949
    %4999 = vmatpush.msra.mxu0 %v4948
    %5000 = vmatmul.f32.gmra.mxu0 %v3481
    %v5001 = vpop.f32.mrf.mxu0
    %v5002 = vadd.f32 0.0, %v5001
    %5003 = vmatmul.f32.gmra.mxu0 %v3482
    %v5004 = vpop.f32.mrf.mxu0
    %v5005 = vadd.f32 0.0, %v5004
    %5006 = vdwg.mxu0
    %v5008 = vsel %vm1637, %v3483, 0
    %v5011 = vsel %vm1637, %v3484, 0
    %5013 = vmatpush.msra.mxu0 0.0
    %5014 = vmatpush.msra.mxu0 0.0
    %5015 = vmatpush.msra.mxu0 0.0
    %5016 = vmatpush.msra.mxu0 0.0
    %5017 = vmatpush.msra.mxu0 0.0
    %5018 = vmatpush.msra.mxu0 0.0
    %5019 = vmatpush.msra.mxu0 0.0
    %5020 = vmatpush.msra.mxu0 0.0
    %5021 = vmatpush.msra.mxu0 0.0
    %5022 = vmatpush.msra.mxu0 0.0
    %5023 = vmatpush.msra.mxu0 0.0
    %5024 = vmatpush.msra.mxu0 0.0
    %5025 = vmatpush.msra.mxu0 0.0
    %5026 = vmatpush.msra.mxu0 0.0
    %5027 = vmatpush.msra.mxu0 0.0
    %5028 = vmatpush.msra.mxu0 %v4982
    %5029 = vmatmul.f32.gmra.mxu0 %v5008
    %v5030 = vpop.f32.mrf.mxu0
    %v5031 = vadd.f32 0.0, %v5030
    %5032 = vmatmul.f32.gmra.mxu0 %v5011
    %v5033 = vpop.f32.mrf.mxu0
    %v5034 = vadd.f32 0.0, %v5033
    %5035 = vdwg.mxu0
    %5036 = vxpose.xlu0.b32.start [1/16] %v5002, 128
    %5037 = vxpose.xlu0.b32.cont [2/16] %v5005, 128
    %5038 = vxpose.xlu0.b32.cont [3/16] 0.0, 128
    %5039 = vxpose.xlu0.b32.cont [4/16] 0.0, 128
    %5040 = vxpose.xlu0.b32.cont [5/16] 0.0, 128
    %5041 = vxpose.xlu0.b32.cont [6/16] 0.0, 128
    %5042 = vxpose.xlu0.b32.cont [7/16] 0.0, 128
    %5043 = vxpose.xlu0.b32.cont [8/16] 0.0, 128
    %5044 = vxpose.xlu0.b32.cont [9/16] 0.0, 128
    %5045 = vxpose.xlu0.b32.cont [10/16] 0.0, 128
    %5046 = vxpose.xlu0.b32.cont [11/16] 0.0, 128
    %5047 = vxpose.xlu0.b32.cont [12/16] 0.0, 128
    %5048 = vxpose.xlu0.b32.cont [13/16] 0.0, 128
    %5049 = vxpose.xlu0.b32.cont [14/16] 0.0, 128
    %5050 = vxpose.xlu0.b32.cont [15/16] 0.0, 128
    %5051 = vxpose.xlu0.b32.end [16/16] 0.0, 128
    %v5052 = vpop.trf.xlu0
    %v5053 = vpop.trf.xlu0
    %v5054 = vpop.trf.xlu0
    %v5055 = vpop.trf.xlu0
    %v5056 = vpop.trf.xlu0
    %v5057 = vpop.trf.xlu0
    %v5058 = vpop.trf.xlu0
    %v5059 = vpop.trf.xlu0
    %v5060 = vpop.trf.xlu0
    %v5061 = vpop.trf.xlu0
    %v5062 = vpop.trf.xlu0
    %v5063 = vpop.trf.xlu0
    %v5064 = vpop.trf.xlu0
    %v5065 = vpop.trf.xlu0
    %v5066 = vpop.trf.xlu0
    %v5067 = vpop.trf.xlu0
    %v5069 = vsel %vm389, %v5052, 0
    %v5072 = vsel %vm389, %v5053, 0
    %v5075 = vsel %vm389, %v5054, 0
    %v5078 = vsel %vm389, %v5055, 0
    %v5081 = vsel %vm389, %v5056, 0
    %v5084 = vsel %vm389, %v5057, 0
    %v5087 = vsel %vm389, %v5058, 0
    %v5090 = vsel %vm389, %v5059, 0
    %5092 = vmatpush.msra.mxu0 0.0
    %5093 = vmatpush.msra.mxu0 0.0
    %5094 = vmatpush.msra.mxu0 0.0
    %5095 = vmatpush.msra.mxu0 0.0
    %5096 = vmatpush.msra.mxu0 0.0
    %5097 = vmatpush.msra.mxu0 0.0
    %5098 = vmatpush.msra.mxu0 0.0
    %5099 = vmatpush.msra.mxu0 0.0
    %5100 = vmatpush.msra.mxu0 0.0
    %5101 = vmatpush.msra.mxu0 0.0
    %5102 = vmatpush.msra.mxu0 0.0
    %5103 = vmatpush.msra.mxu0 0.0
    %5104 = vmatpush.msra.mxu0 0.0
    %5105 = vmatpush.msra.mxu0 0.0
    %5106 = vmatpush.msra.mxu0 %v5034
    %5107 = vmatpush.msra.mxu0 %v5031
    %5108 = vmatmul.f32.gmra.mxu0 %v5069
    %v5109 = vpop.f32.mrf.mxu0
    %v5110 = vadd.f32 %v3485, %v5109
    %5111 = vmatmul.f32.gmra.mxu0 %v5072
    %v5112 = vpop.f32.mrf.mxu0
    %v5113 = vadd.f32 %v3486, %v5112
    %5114 = vmatmul.f32.gmra.mxu0 %v5075
    %v5115 = vpop.f32.mrf.mxu0
    %v5116 = vadd.f32 %v3487, %v5115
    %5117 = vmatmul.f32.gmra.mxu0 %v5078
    %v5118 = vpop.f32.mrf.mxu0
    %v5119 = vadd.f32 %v3488, %v5118
    %5120 = vmatmul.f32.gmra.mxu0 %v5081
    %v5121 = vpop.f32.mrf.mxu0
    %v5122 = vadd.f32 %v3489, %v5121
    %5123 = vmatmul.f32.gmra.mxu0 %v5084
    %v5124 = vpop.f32.mrf.mxu0
    %v5125 = vadd.f32 %v3490, %v5124
    %5126 = vmatmul.f32.gmra.mxu0 %v5087
    %v5127 = vpop.f32.mrf.mxu0
    %v5128 = vadd.f32 %v3491, %v5127
    %5129 = vmatmul.f32.gmra.mxu0 %v5090
    %v5130 = vpop.f32.mrf.mxu0
    %v5131 = vadd.f32 %v3492, %v5130
    %5132 = vdwg.mxu0
    %v5133 = vsub.f32 0.0, %v5110
    %v5134 = vsub.f32 0.0, %v5113
    %v5135 = vsub.f32 0.0, %v5116
    %v5136 = vsub.f32 0.0, %v5119
    %v5137 = vsub.f32 0.0, %v5122
    %v5138 = vsub.f32 0.0, %v5125
    %v5139 = vsub.f32 0.0, %v5128
    %v5140 = vsub.f32 0.0, %v5131
    %v5141 = vmul.f32 %v5133, 1.442695
    %v5142 = vpow.pop %v5141
    %v5143 = vmul.f32 %v5134, 1.442695
    %v5144 = vpow.pop %v5143
    %v5145 = vmul.f32 %v5135, 1.442695
    %v5146 = vpow.pop %v5145
    %v5147 = vmul.f32 %v5136, 1.442695
    %v5148 = vpow.pop %v5147
    %v5149 = vmul.f32 %v5137, 1.442695
    %v5150 = vpow.pop %v5149
    %v5151 = vmul.f32 %v5138, 1.442695
    %v5152 = vpow.pop %v5151
    %v5153 = vmul.f32 %v5139, 1.442695
    %v5154 = vpow.pop %v5153
    %v5155 = vmul.f32 %v5140, 1.442695
    %v5156 = vpow.pop %v5155
    %v5157 = vadd.f32 %v5142, 1.0
    %v5158 = vadd.f32 %v5144, 1.0
    %v5159 = vadd.f32 %v5146, 1.0
    %v5160 = vadd.f32 %v5148, 1.0
    %v5161 = vadd.f32 %v5150, 1.0
    %v5162 = vadd.f32 %v5152, 1.0
    %v5163 = vadd.f32 %v5154, 1.0
    %v5164 = vadd.f32 %v5156, 1.0
    %v5165 = vrcp.pop %v5157
    %v5166 = vrcp.pop %v5158
    %v5167 = vrcp.pop %v5159
    %v5168 = vrcp.pop %v5160
    %v5169 = vrcp.pop %v5161
    %v5170 = vrcp.pop %v5162
    %v5171 = vrcp.pop %v5163
    %v5172 = vrcp.pop %v5164
    %v5174 = vsel %vm1804, %v5165, 0
    %v5177 = vsel %vm1804, %v5166, 0
    %v5180 = vsel %vm1804, %v5167, 0
    %v5183 = vsel %vm1804, %v5168, 0
    %v5186 = vsel %vm1804, %v5169, 0
    %v5189 = vsel %vm1804, %v5170, 0
    %v5192 = vsel %vm1804, %v5171, 0
    %v5195 = vsel %vm1804, %v5172, 0
    %v5198 = vsel %vm1829, %v3500, 0
    %5200 = vmatpush.msra.mxu0 0.0
    %5201 = vmatpush.msra.mxu0 0.0
    %5202 = vmatpush.msra.mxu0 0.0
    %5203 = vmatpush.msra.mxu0 0.0
    %5204 = vmatpush.msra.mxu0 0.0
    %5205 = vmatpush.msra.mxu0 0.0
    %5206 = vmatpush.msra.mxu0 0.0
    %5207 = vmatpush.msra.mxu0 0.0
    %5208 = vmatpush.msra.mxu0 %v5198
    %5209 = vmatpush.msra.mxu0 %v3499
    %5210 = vmatpush.msra.mxu0 %v3498
    %5211 = vmatpush.msra.mxu0 %v3497
    %5212 = vmatpush.msra.mxu0 %v3496
    %5213 = vmatpush.msra.mxu0 %v3495
    %5214 = vmatpush.msra.mxu0 %v3494
    %5215 = vmatpush.msra.mxu0 %v3493
    %5216 = vmatmul.f32.gmra.mxu0 %v5174
    %v5217 = vpop.f32.mrf.mxu0
    %v5218 = vadd.f32 0.0, %v5217
    %5219 = vmatmul.f32.gmra.mxu0 %v5177
    %v5220 = vpop.f32.mrf.mxu0
    %v5221 = vadd.f32 0.0, %v5220
    %5222 = vmatmul.f32.gmra.mxu0 %v5180
    %v5223 = vpop.f32.mrf.mxu0
    %v5224 = vadd.f32 0.0, %v5223
    %5225 = vmatmul.f32.gmra.mxu0 %v5183
    %v5226 = vpop.f32.mrf.mxu0
    %v5227 = vadd.f32 0.0, %v5226
    %5228 = vmatmul.f32.gmra.mxu0 %v5186
    %v5229 = vpop.f32.mrf.mxu0
    %v5230 = vadd.f32 0.0, %v5229
    %5231 = vmatmul.f32.gmra.mxu0 %v5189
    %v5232 = vpop.f32.mrf.mxu0
    %v5233 = vadd.f32 0.0, %v5232
    %5234 = vmatmul.f32.gmra.mxu0 %v5192
    %v5235 = vpop.f32.mrf.mxu0
    %v5236 = vadd.f32 0.0, %v5235
    %5237 = vmatmul.f32.gmra.mxu0 %v5195
    %v5238 = vpop.f32.mrf.mxu0
    %v5239 = vadd.f32 0.0, %v5238
    %5240 = vdwg.mxu0
    %v5241 = vmul.f32 %v5218, 0.999995
    %v5242 = vmul.f32 %v5221, 0.999995
    %v5243 = vmul.f32 %v5224, 0.999995
    %v5244 = vmul.f32 %v5227, 0.999995
    %v5245 = vmul.f32 %v5230, 0.999995
    %v5246 = vmul.f32 %v5233, 0.999995
    %v5247 = vmul.f32 %v5236, 0.999995
    %v5248 = vmul.f32 %v5239, 0.999995
    %v5249 = vsel %vm1804, %v5241, -inf
    %5250 = vmax.xlane.f32.xlu0 %v5249
    %v5251 = vpop.xlane.xlu0 %5250
    %v5252 = vsel %vm1804, %v5242, -inf
    %5253 = vmax.xlane.f32.xlu0 %v5252
    %v5254 = vpop.xlane.xlu0 %5253
    %v5255 = vsel %vm1804, %v5243, -inf
    %5256 = vmax.xlane.f32.xlu0 %v5255
    %v5257 = vpop.xlane.xlu0 %5256
    %v5258 = vsel %vm1804, %v5244, -inf
    %5259 = vmax.xlane.f32.xlu0 %v5258
    %v5260 = vpop.xlane.xlu0 %5259
    %v5261 = vsel %vm1804, %v5245, -inf
    %5262 = vmax.xlane.f32.xlu0 %v5261
    %v5263 = vpop.xlane.xlu0 %5262
    %v5264 = vsel %vm1804, %v5246, -inf
    %5265 = vmax.xlane.f32.xlu0 %v5264
    %v5266 = vpop.xlane.xlu0 %5265
    %v5267 = vsel %vm1804, %v5247, -inf
    %5268 = vmax.xlane.f32.xlu0 %v5267
    %v5269 = vpop.xlane.xlu0 %5268
    %v5270 = vsel %vm1903, %v5248, -inf
    %5271 = vmax.xlane.f32.xlu0 %v5270
    %v5272 = vpop.xlane.xlu0 %5271
    %v5273 = vsub.f32 %v5241, %v5251
    %v5274 = vsub.f32 %v5242, %v5254
    %v5275 = vsub.f32 %v5243, %v5257
    %v5276 = vsub.f32 %v5244, %v5260
    %v5277 = vsub.f32 %v5245, %v5263
    %v5278 = vsub.f32 %v5246, %v5266
    %v5279 = vsub.f32 %v5247, %v5269
    %v5280 = vsub.f32 %v5248, %v5272
    %v5281 = vmul.f32 %v5273, 1.442695
    %v5282 = vpow.pop %v5281
    %v5283 = vmul.f32 %v5274, 1.442695
    %v5284 = vpow.pop %v5283
    %v5285 = vmul.f32 %v5275, 1.442695
    %v5286 = vpow.pop %v5285
    %v5287 = vmul.f32 %v5276, 1.442695
    %v5288 = vpow.pop %v5287
    %v5289 = vmul.f32 %v5277, 1.442695
    %v5290 = vpow.pop %v5289
    %v5291 = vmul.f32 %v5278, 1.442695
    %v5292 = vpow.pop %v5291
    %v5293 = vmul.f32 %v5279, 1.442695
    %v5294 = vpow.pop %v5293
    %v5295 = vmul.f32 %v5280, 1.442695
    %v5296 = vpow.pop %v5295
    %v5297 = vsel %vm1804, %v5282, 0.0
    %5298 = vadd.xlane.f32.xlu0 %v5297
    %v5299 = vpop.xlane.xlu0 %5298
    %v5300 = vsel %vm1804, %v5284, 0.0
    %5301 = vadd.xlane.f32.xlu0 %v5300
    %v5302 = vpop.xlane.xlu0 %5301
    %v5303 = vsel %vm1804, %v5286, 0.0
    %5304 = vadd.xlane.f32.xlu0 %v5303
    %v5305 = vpop.xlane.xlu0 %5304
    %v5306 = vsel %vm1804, %v5288, 0.0
    %5307 = vadd.xlane.f32.xlu0 %v5306
    %v5308 = vpop.xlane.xlu0 %5307
    %v5309 = vsel %vm1804, %v5290, 0.0
    %5310 = vadd.xlane.f32.xlu0 %v5309
    %v5311 = vpop.xlane.xlu0 %5310
    %v5312 = vsel %vm1804, %v5292, 0.0
    %5313 = vadd.xlane.f32.xlu0 %v5312
    %v5314 = vpop.xlane.xlu0 %5313
    %v5315 = vsel %vm1804, %v5294, 0.0
    %5316 = vadd.xlane.f32.xlu0 %v5315
    %v5317 = vpop.xlane.xlu0 %5316
    %v5318 = vsel %vm1903, %v5296, 0.0
    %5319 = vadd.xlane.f32.xlu0 %v5318
    %v5320 = vpop.xlane.xlu0 %5319
    %v5321 = vrcp.pop %v5299
    %v5322 = vrcp.pop %v5302
    %v5323 = vrcp.pop %v5305
    %v5324 = vrcp.pop %v5308
    %v5325 = vrcp.pop %v5311
    %v5326 = vrcp.pop %v5314
    %v5327 = vrcp.pop %v5317
    %v5328 = vrcp.pop %v5320
    %v5329 = vmul.f32 %v5282, %v5321
    %v5330 = vmul.f32 %v5284, %v5322
    %v5331 = vmul.f32 %v5286, %v5323
    %v5332 = vmul.f32 %v5288, %v5324
    %v5333 = vmul.f32 %v5290, %v5325
    %v5334 = vmul.f32 %v5292, %v5326
    %v5335 = vmul.f32 %v5294, %v5327
    %v5336 = vmul.f32 %v5296, %v5328
    %v5338 = vsel %vm1804, %v4948, 0
    %v5341 = vsel %vm1804, %v4949, 0
    %v5344 = vsel %vm1804, %v4950, 0
    %v5347 = vsel %vm1804, %v4951, 0
    %v5350 = vsel %vm1804, %v4952, 0
    %v5353 = vsel %vm1804, %v4953, 0
    %v5356 = vsel %vm1804, %v4954, 0
    %v5359 = vsel %vm1804, %v4955, 0
    %v5362 = vsel %vm1804, %v4956, 0
    %v5365 = vsel %vm1804, %v4957, 0
    %v5368 = vsel %vm1804, %v4958, 0
    %v5371 = vsel %vm1804, %v4959, 0
    %v5374 = vsel %vm1804, %v4960, 0
    %v5377 = vsel %vm1804, %v4961, 0
    %v5380 = vsel %vm1804, %v4962, 0
    %v5383 = vsel %vm1804, %v4963, 0
    %v5386 = vsel %vm1804, %v5329, 0
    %v5389 = vsel %vm1804, %v5330, 0
    %v5392 = vsel %vm1804, %v5331, 0
    %v5395 = vsel %vm1804, %v5332, 0
    %v5398 = vsel %vm1804, %v5333, 0
    %v5401 = vsel %vm1804, %v5334, 0
    %v5404 = vsel %vm1804, %v5335, 0
    %v5407 = vsel %vm1804, %v5336, 0
    %5409 = vmatpush.xpose.msra.mxu0 0.0
    %5410 = vmatpush.xpose.msra.mxu0 0.0
    %5411 = vmatpush.xpose.msra.mxu0 0.0
    %5412 = vmatpush.xpose.msra.mxu0 0.0
    %5413 = vmatpush.xpose.msra.mxu0 0.0
    %5414 = vmatpush.xpose.msra.mxu0 0.0
    %5415 = vmatpush.xpose.msra.mxu0 0.0
    %5416 = vmatpush.xpose.msra.mxu0 0.0
    %5417 = vmatpush.xpose.msra.mxu0 %v5407
    %5418 = vmatpush.xpose.msra.mxu0 %v5404
    %5419 = vmatpush.xpose.msra.mxu0 %v5401
    %5420 = vmatpush.xpose.msra.mxu0 %v5398
    %5421 = vmatpush.xpose.msra.mxu0 %v5395
    %5422 = vmatpush.xpose.msra.mxu0 %v5392
    %5423 = vmatpush.xpose.msra.mxu0 %v5389
    %5424 = vmatpush.xpose.msra.mxu0 %v5386
    %5425 = vmatmul.f32.gmra.mxu0 %v5338
    %v5426 = vpop.f32.mrf.mxu0
    %v5427 = vadd.f32 0.0, %v5426
    %5428 = vmatmul.f32.gmra.mxu0 %v5341
    %v5429 = vpop.f32.mrf.mxu0
    %v5430 = vadd.f32 0.0, %v5429
    %5431 = vmatmul.f32.gmra.mxu0 %v5344
    %v5432 = vpop.f32.mrf.mxu0
    %v5433 = vadd.f32 0.0, %v5432
    %5434 = vmatmul.f32.gmra.mxu0 %v5347
    %v5435 = vpop.f32.mrf.mxu0
    %v5436 = vadd.f32 0.0, %v5435
    %5437 = vmatmul.f32.gmra.mxu0 %v5350
    %v5438 = vpop.f32.mrf.mxu0
    %v5439 = vadd.f32 0.0, %v5438
    %5440 = vmatmul.f32.gmra.mxu0 %v5353
    %v5441 = vpop.f32.mrf.mxu0
    %v5442 = vadd.f32 0.0, %v5441
    %5443 = vmatmul.f32.gmra.mxu0 %v5356
    %v5444 = vpop.f32.mrf.mxu0
    %v5445 = vadd.f32 0.0, %v5444
    %5446 = vmatmul.f32.gmra.mxu0 %v5359
    %v5447 = vpop.f32.mrf.mxu0
    %v5448 = vadd.f32 0.0, %v5447
    %5449 = vmatmul.f32.gmra.mxu0 %v5362
    %v5450 = vpop.f32.mrf.mxu0
    %v5451 = vadd.f32 0.0, %v5450
    %5452 = vmatmul.f32.gmra.mxu0 %v5365
    %v5453 = vpop.f32.mrf.mxu0
    %v5454 = vadd.f32 0.0, %v5453
    %5455 = vmatmul.f32.gmra.mxu0 %v5368
    %v5456 = vpop.f32.mrf.mxu0
    %v5457 = vadd.f32 0.0, %v5456
    %5458 = vmatmul.f32.gmra.mxu0 %v5371
    %v5459 = vpop.f32.mrf.mxu0
    %v5460 = vadd.f32 0.0, %v5459
    %5461 = vmatmul.f32.gmra.mxu0 %v5374
    %v5462 = vpop.f32.mrf.mxu0
    %v5463 = vadd.f32 0.0, %v5462
    %5464 = vmatmul.f32.gmra.mxu0 %v5377
    %v5465 = vpop.f32.mrf.mxu0
    %v5466 = vadd.f32 0.0, %v5465
    %5467 = vmatmul.f32.gmra.mxu0 %v5380
    %v5468 = vpop.f32.mrf.mxu0
    %v5469 = vadd.f32 0.0, %v5468
    %5470 = vmatmul.f32.gmra.mxu0 %v5383
    %v5471 = vpop.f32.mrf.mxu0
    %v5472 = vadd.f32 0.0, %v5471
    %5473 = vdwg.mxu0
    %vm5474 = vcmp.ge.f32.partialorder %v5427, 0.0
    %vm5475 = vcmp.ge.f32.partialorder %v5430, 0.0
    %vm5476 = vcmp.ge.f32.partialorder %v5433, 0.0
    %vm5477 = vcmp.ge.f32.partialorder %v5436, 0.0
    %vm5478 = vcmp.ge.f32.partialorder %v5439, 0.0
    %vm5479 = vcmp.ge.f32.partialorder %v5442, 0.0
    %vm5480 = vcmp.ge.f32.partialorder %v5445, 0.0
    %vm5481 = vcmp.ge.f32.partialorder %v5448, 0.0
    %vm5482 = vcmp.ge.f32.partialorder %v5451, 0.0
    %vm5483 = vcmp.ge.f32.partialorder %v5454, 0.0
    %vm5484 = vcmp.ge.f32.partialorder %v5457, 0.0
    %vm5485 = vcmp.ge.f32.partialorder %v5460, 0.0
    %vm5486 = vcmp.ge.f32.partialorder %v5463, 0.0
    %vm5487 = vcmp.ge.f32.partialorder %v5466, 0.0
    %vm5488 = vcmp.ge.f32.partialorder %v5469, 0.0
    %vm5489 = vcmp.ge.f32.partialorder %v5472, 0.0
    %v5490 = vmul.f32 %v5427, 0.01
    %v5491 = vmul.f32 %v5430, 0.01
    %v5492 = vmul.f32 %v5433, 0.01
    %v5493 = vmul.f32 %v5436, 0.01
    %v5494 = vmul.f32 %v5439, 0.01
    %v5495 = vmul.f32 %v5442, 0.01
    %v5496 = vmul.f32 %v5445, 0.01
    %v5497 = vmul.f32 %v5448, 0.01
    %v5498 = vmul.f32 %v5451, 0.01
    %v5499 = vmul.f32 %v5454, 0.01
    %v5500 = vmul.f32 %v5457, 0.01
    %v5501 = vmul.f32 %v5460, 0.01
    %v5502 = vmul.f32 %v5463, 0.01
    %v5503 = vmul.f32 %v5466, 0.01
    %v5504 = vmul.f32 %v5469, 0.01
    %v5505 = vmul.f32 %v5472, 0.01
    %v5506 = vsel %vm5474, %v5427, %v5490
    %v5507 = vsel %vm5475, %v5430, %v5491
    %v5508 = vsel %vm5476, %v5433, %v5492
    %v5509 = vsel %vm5477, %v5436, %v5493
    %v5510 = vsel %vm5478, %v5439, %v5494
    %v5511 = vsel %vm5479, %v5442, %v5495
    %v5512 = vsel %vm5480, %v5445, %v5496
    %v5513 = vsel %vm5481, %v5448, %v5497
    %v5514 = vsel %vm5482, %v5451, %v5498
    %v5515 = vsel %vm5483, %v5454, %v5499
    %v5516 = vsel %vm5484, %v5457, %v5500
    %v5517 = vsel %vm5485, %v5460, %v5501
    %v5518 = vsel %vm5486, %v5463, %v5502
    %v5519 = vsel %vm5487, %v5466, %v5503
    %v5520 = vsel %vm5488, %v5469, %v5504
    %v5521 = vsel %vm5489, %v5472, %v5505
    %v5522 = vadd.f32 %v5506, %v3599
    %v5523 = vadd.f32 %v5507, %v3602
    %v5524 = vadd.f32 %v5508, %v3605
    %v5525 = vadd.f32 %v5509, %v3608
    %v5526 = vadd.f32 %v5510, %v3611
    %v5527 = vadd.f32 %v5511, %v3614
    %v5528 = vadd.f32 %v5512, %v3617
    %v5529 = vadd.f32 %v5513, %v3620
    %v5530 = vadd.f32 %v5514, %v3623
    %v5531 = vadd.f32 %v5515, %v3626
    %v5532 = vadd.f32 %v5516, %v3629
    %v5533 = vadd.f32 %v5517, %v3632
    %v5534 = vadd.f32 %v5518, %v3635
    %v5535 = vadd.f32 %v5519, %v3638
    %v5536 = vadd.f32 %v5520, %v3641
    %v5537 = vadd.f32 %v5521, %v3644
    %v5538 = vsel %vm1804, %v5522, 0.0
    %5539 = vadd.xlane.f32.xlu0 %v5538
    %v5540 = vpop.xlane.xlu0 %5539
    %v5541 = vsel %vm1804, %v5523, 0.0
    %5542 = vadd.xlane.f32.xlu0 %v5541
    %v5543 = vpop.xlane.xlu0 %5542
    %v5544 = vsel %vm1804, %v5524, 0.0
    %5545 = vadd.xlane.f32.xlu0 %v5544
    %v5546 = vpop.xlane.xlu0 %5545
    %v5547 = vsel %vm1804, %v5525, 0.0
    %5548 = vadd.xlane.f32.xlu0 %v5547
    %v5549 = vpop.xlane.xlu0 %5548
    %v5550 = vsel %vm1804, %v5526, 0.0
    %5551 = vadd.xlane.f32.xlu0 %v5550
    %v5552 = vpop.xlane.xlu0 %5551
    %v5553 = vsel %vm1804, %v5527, 0.0
    %5554 = vadd.xlane.f32.xlu0 %v5553
    %v5555 = vpop.xlane.xlu0 %5554
    %v5556 = vsel %vm1804, %v5528, 0.0
    %5557 = vadd.xlane.f32.xlu0 %v5556
    %v5558 = vpop.xlane.xlu0 %5557
    %v5559 = vsel %vm1804, %v5529, 0.0
    %5560 = vadd.xlane.f32.xlu0 %v5559
    %v5561 = vpop.xlane.xlu0 %5560
    %v5562 = vsel %vm1804, %v5530, 0.0
    %5563 = vadd.xlane.f32.xlu0 %v5562
    %v5564 = vpop.xlane.xlu0 %5563
    %v5565 = vsel %vm1804, %v5531, 0.0
    %5566 = vadd.xlane.f32.xlu0 %v5565
    %v5567 = vpop.xlane.xlu0 %5566
    %v5568 = vsel %vm1804, %v5532, 0.0
    %5569 = vadd.xlane.f32.xlu0 %v5568
    %v5570 = vpop.xlane.xlu0 %5569
    %v5571 = vsel %vm1804, %v5533, 0.0
    %5572 = vadd.xlane.f32.xlu0 %v5571
    %v5573 = vpop.xlane.xlu0 %5572
    %v5574 = vsel %vm1804, %v5534, 0.0
    %5575 = vadd.xlane.f32.xlu0 %v5574
    %v5576 = vpop.xlane.xlu0 %5575
    %v5577 = vsel %vm1804, %v5535, 0.0
    %5578 = vadd.xlane.f32.xlu0 %v5577
    %v5579 = vpop.xlane.xlu0 %5578
    %v5580 = vsel %vm1804, %v5536, 0.0
    %5581 = vadd.xlane.f32.xlu0 %v5580
    %v5582 = vpop.xlane.xlu0 %5581
    %v5583 = vsel %vm1804, %v5537, 0.0
    %5584 = vadd.xlane.f32.xlu0 %v5583
    %v5585 = vpop.xlane.xlu0 %5584
    %v5586 = vadd.f32 %v5540, %v5543
    %v5587 = vadd.f32 %v5586, %v5546
    %v5588 = vadd.f32 %v5587, %v5549
    %v5589 = vadd.f32 %v5588, %v5552
    %v5590 = vadd.f32 %v5589, %v5555
    %v5591 = vadd.f32 %v5590, %v5558
    %v5592 = vadd.f32 %v5591, %v5561
    %v5593 = vadd.f32 %v5592, %v5564
    %v5594 = vadd.f32 %v5593, %v5567
    %v5595 = vadd.f32 %v5594, %v5570
    %v5596 = vadd.f32 %v5595, %v5573
    %v5597 = vadd.f32 %v5596, %v5576
    %v5598 = vadd.f32 %v5597, %v5579
    %v5599 = vadd.f32 %v5598, %v5582
    %v5600 = vadd.f32 %v5599, %v5585
    %v5601 = vrot.slane %v5600, 4
    %v5602 = vadd.f32 %v5600, %v5601
    %v5603 = vrot.slane %v5602, 2
    %v5604 = vadd.f32 %v5602, %v5603
    %v5605 = vrot.slane %v5604, 1
    %v5606 = vadd.f32 %v5604, %v5605
    %v5607 = vmul.f32 %v5522, %v5522
    %v5608 = vmul.f32 %v5523, %v5523
    %v5609 = vmul.f32 %v5524, %v5524
    %v5610 = vmul.f32 %v5525, %v5525
    %v5611 = vmul.f32 %v5526, %v5526
    %v5612 = vmul.f32 %v5527, %v5527
    %v5613 = vmul.f32 %v5528, %v5528
    %v5614 = vmul.f32 %v5529, %v5529
    %v5615 = vmul.f32 %v5530, %v5530
    %v5616 = vmul.f32 %v5531, %v5531
    %v5617 = vmul.f32 %v5532, %v5532
    %v5618 = vmul.f32 %v5533, %v5533
    %v5619 = vmul.f32 %v5534, %v5534
    %v5620 = vmul.f32 %v5535, %v5535
    %v5621 = vmul.f32 %v5536, %v5536
    %v5622 = vmul.f32 %v5537, %v5537
    %v5623 = vsel %vm1804, %v5607, 0.0
    %5624 = vadd.xlane.f32.xlu0 %v5623
    %v5625 = vpop.xlane.xlu0 %5624
    %v5626 = vsel %vm1804, %v5608, 0.0
    %5627 = vadd.xlane.f32.xlu0 %v5626
    %v5628 = vpop.xlane.xlu0 %5627
    %v5629 = vsel %vm1804, %v5609, 0.0
    %5630 = vadd.xlane.f32.xlu0 %v5629
    %v5631 = vpop.xlane.xlu0 %5630
    %v5632 = vsel %vm1804, %v5610, 0.0
    %5633 = vadd.xlane.f32.xlu0 %v5632
    %v5634 = vpop.xlane.xlu0 %5633
    %v5635 = vsel %vm1804, %v5611, 0.0
    %5636 = vadd.xlane.f32.xlu0 %v5635
    %v5637 = vpop.xlane.xlu0 %5636
    %v5638 = vsel %vm1804, %v5612, 0.0
    %5639 = vadd.xlane.f32.xlu0 %v5638
    %v5640 = vpop.xlane.xlu0 %5639
    %v5641 = vsel %vm1804, %v5613, 0.0
    %5642 = vadd.xlane.f32.xlu0 %v5641
    %v5643 = vpop.xlane.xlu0 %5642
    %v5644 = vsel %vm1804, %v5614, 0.0
    %5645 = vadd.xlane.f32.xlu0 %v5644
    %v5646 = vpop.xlane.xlu0 %5645
    %v5647 = vsel %vm1804, %v5615, 0.0
    %5648 = vadd.xlane.f32.xlu0 %v5647
    %v5649 = vpop.xlane.xlu0 %5648
    %v5650 = vsel %vm1804, %v5616, 0.0
    %5651 = vadd.xlane.f32.xlu0 %v5650
    %v5652 = vpop.xlane.xlu0 %5651
    %v5653 = vsel %vm1804, %v5617, 0.0
    %5654 = vadd.xlane.f32.xlu0 %v5653
    %v5655 = vpop.xlane.xlu0 %5654
    %v5656 = vsel %vm1804, %v5618, 0.0
    %5657 = vadd.xlane.f32.xlu0 %v5656
    %v5658 = vpop.xlane.xlu0 %5657
    %v5659 = vsel %vm1804, %v5619, 0.0
    %5660 = vadd.xlane.f32.xlu0 %v5659
    %v5661 = vpop.xlane.xlu0 %5660
    %v5662 = vsel %vm1804, %v5620, 0.0
    %5663 = vadd.xlane.f32.xlu0 %v5662
    %v5664 = vpop.xlane.xlu0 %5663
    %v5665 = vsel %vm1804, %v5621, 0.0
    %5666 = vadd.xlane.f32.xlu0 %v5665
    %v5667 = vpop.xlane.xlu0 %5666
    %v5668 = vsel %vm1804, %v5622, 0.0
    %5669 = vadd.xlane.f32.xlu0 %v5668
    %v5670 = vpop.xlane.xlu0 %5669
    %v5671 = vadd.f32 %v5625, %v5628
    %v5672 = vadd.f32 %v5671, %v5631
    %v5673 = vadd.f32 %v5672, %v5634
    %v5674 = vadd.f32 %v5673, %v5637
    %v5675 = vadd.f32 %v5674, %v5640
    %v5676 = vadd.f32 %v5675, %v5643
    %v5677 = vadd.f32 %v5676, %v5646
    %v5678 = vadd.f32 %v5677, %v5649
    %v5679 = vadd.f32 %v5678, %v5652
    %v5680 = vadd.f32 %v5679, %v5655
    %v5681 = vadd.f32 %v5680, %v5658
    %v5682 = vadd.f32 %v5681, %v5661
    %v5683 = vadd.f32 %v5682, %v5664
    %v5684 = vadd.f32 %v5683, %v5667
    %v5685 = vadd.f32 %v5684, %v5670
    %v5686 = vrot.slane %v5685, 4
    %v5687 = vadd.f32 %v5685, %v5686
    %v5688 = vrot.slane %v5687, 2
    %v5689 = vadd.f32 %v5687, %v5688
    %v5690 = vrot.slane %v5689, 1
    %v5691 = vadd.f32 %v5689, %v5690
    %v5692 = vmul.f32 %v5606, %v2332
    %v5693 = vmul.f32 %v5691, %v2332
    %v5694 = vmul.f32 %v5692, %v5692
    %v5695 = vsub.f32 %v5693, %v5694
    %v5696 = vsub.f32 %v5522, %v5692
    %v5697 = vsub.f32 %v5523, %v5692
    %v5698 = vsub.f32 %v5524, %v5692
    %v5699 = vsub.f32 %v5525, %v5692
    %v5700 = vsub.f32 %v5526, %v5692
    %v5701 = vsub.f32 %v5527, %v5692
    %v5702 = vsub.f32 %v5528, %v5692
    %v5703 = vsub.f32 %v5529, %v5692
    %v5704 = vsub.f32 %v5530, %v5692
    %v5705 = vsub.f32 %v5531, %v5692
    %v5706 = vsub.f32 %v5532, %v5692
    %v5707 = vsub.f32 %v5533, %v5692
    %v5708 = vsub.f32 %v5534, %v5692
    %v5709 = vsub.f32 %v5535, %v5692
    %v5710 = vsub.f32 %v5536, %v5692
    %v5711 = vsub.f32 %v5537, %v5692
    %v5712 = vadd.f32 %v5695, 1e-05
    %v5713 = vrsqrt.pop %v5712
    %v5714 = vmul.f32 %v5713, %v5712
    %v5715 = vmul.f32 %v5714, %v5713
    %v5716 = vmul.f32 0.5, %v5715
    %v5717 = vsub.f32 1.5, %v5716
    %v5718 = vmul.f32 %v5713, %v5717
    %vm5719 = vweird.f32 %v5712
    %vm5720 = vweird.f32 %v5713
    %vm5721 = vmor %vm5719, %vm5720
    %v5722 = vsel %vm5721, %v5713, %v5718
    %v5723 = vmul.f32 %v5696, %v5722
    %v5724 = vmul.f32 %v5697, %v5722
    %v5725 = vmul.f32 %v5698, %v5722
    %v5726 = vmul.f32 %v5699, %v5722
    %v5727 = vmul.f32 %v5700, %v5722
    %v5728 = vmul.f32 %v5701, %v5722
    %v5729 = vmul.f32 %v5702, %v5722
    %v5730 = vmul.f32 %v5703, %v5722
    %v5731 = vmul.f32 %v5704, %v5722
    %v5732 = vmul.f32 %v5705, %v5722
    %v5733 = vmul.f32 %v5706, %v5722
    %v5734 = vmul.f32 %v5707, %v5722
    %v5735 = vmul.f32 %v5708, %v5722
    %v5736 = vmul.f32 %v5709, %v5722
    %v5737 = vmul.f32 %v5710, %v5722
    %v5738 = vmul.f32 %v5711, %v5722
    %5741 = vrot.lane.b32.xlu0 %v5002, 68
    %v5742 = vpop.permute.xlu0 %5741
    %5743 = vrot.lane.b32.xlu0 %v5005, 68
    %v5744 = vpop.permute.xlu0 %5743
    %5747 = vxpose.xlu0.b32.start [1/16] %v5742, 128
    %5748 = vxpose.xlu0.b32.cont [2/16] %v5744, 128
    %5749 = vxpose.xlu0.b32.cont [3/16] 0.0, 128
    %5750 = vxpose.xlu0.b32.cont [4/16] 0.0, 128
    %5751 = vxpose.xlu0.b32.cont [5/16] 0.0, 128
    %5752 = vxpose.xlu0.b32.cont [6/16] 0.0, 128
    %5753 = vxpose.xlu0.b32.cont [7/16] 0.0, 128
    %5754 = vxpose.xlu0.b32.cont [8/16] 0.0, 128
    %5755 = vxpose.xlu0.b32.cont [9/16] 0.0, 128
    %5756 = vxpose.xlu0.b32.cont [10/16] 0.0, 128
    %5757 = vxpose.xlu0.b32.cont [11/16] 0.0, 128
    %5758 = vxpose.xlu0.b32.cont [12/16] 0.0, 128
    %5759 = vxpose.xlu0.b32.cont [13/16] 0.0, 128
    %5760 = vxpose.xlu0.b32.cont [14/16] 0.0, 128
    %5761 = vxpose.xlu0.b32.cont [15/16] 0.0, 128
    %5762 = vxpose.xlu0.b32.end [16/16] 0.0, 128
    %v5763 = vpop.trf.xlu0
    %v5764 = vpop.trf.xlu0
    %v5765 = vpop.trf.xlu0
    %v5766 = vpop.trf.xlu0
    %v5767 = vpop.trf.xlu0
    %v5768 = vpop.trf.xlu0
    %v5769 = vpop.trf.xlu0
    %v5770 = vpop.trf.xlu0
    %v5771 = vpop.trf.xlu0
    %v5772 = vpop.trf.xlu0
    %v5773 = vpop.trf.xlu0
    %v5774 = vpop.trf.xlu0
    %v5775 = vpop.trf.xlu0
    %v5776 = vpop.trf.xlu0
    %v5777 = vpop.trf.xlu0
    %v5778 = vpop.trf.xlu0
    %5781 = vrot.lane.b32.xlu0 %v5031, 68
    %v5782 = vpop.permute.xlu0 %5781
    %5783 = vrot.lane.b32.xlu0 %v5034, 68
    %v5784 = vpop.permute.xlu0 %5783
    %v5788 = vsel %vm389, %v5763, 0
    %v5791 = vsel %vm389, %v5764, 0
    %v5794 = vsel %vm389, %v5765, 0
    %v5797 = vsel %vm389, %v5766, 0
    %v5800 = vsel %vm389, %v5767, 0
    %v5803 = vsel %vm389, %v5768, 0
    %v5806 = vsel %vm389, %v5769, 0
    %v5809 = vsel %vm389, %v5770, 0
    %5811 = vmatpush.msra.mxu0 0.0
    %5812 = vmatpush.msra.mxu0 0.0
    %5813 = vmatpush.msra.mxu0 0.0
    %5814 = vmatpush.msra.mxu0 0.0
    %5815 = vmatpush.msra.mxu0 0.0
    %5816 = vmatpush.msra.mxu0 0.0
    %5817 = vmatpush.msra.mxu0 0.0
    %5818 = vmatpush.msra.mxu0 0.0
    %5819 = vmatpush.msra.mxu0 0.0
    %5820 = vmatpush.msra.mxu0 0.0
    %5821 = vmatpush.msra.mxu0 0.0
    %5822 = vmatpush.msra.mxu0 0.0
    %5823 = vmatpush.msra.mxu0 0.0
    %5824 = vmatpush.msra.mxu0 0.0
    %5825 = vmatpush.msra.mxu0 %v5784
    %5826 = vmatpush.msra.mxu0 %v5782
    %5827 = vmatmul.f32.gmra.mxu0 %v5788
    %v5828 = vpop.f32.mrf.mxu0
    %v5829 = vadd.f32 %v3485, %v5828
    %5830 = vmatmul.f32.gmra.mxu0 %v5791
    %v5831 = vpop.f32.mrf.mxu0
    %v5832 = vadd.f32 %v3486, %v5831
    %5833 = vmatmul.f32.gmra.mxu0 %v5794
    %v5834 = vpop.f32.mrf.mxu0
    %v5835 = vadd.f32 %v3487, %v5834
    %5836 = vmatmul.f32.gmra.mxu0 %v5797
    %v5837 = vpop.f32.mrf.mxu0
    %v5838 = vadd.f32 %v3488, %v5837
    %5839 = vmatmul.f32.gmra.mxu0 %v5800
    %v5840 = vpop.f32.mrf.mxu0
    %v5841 = vadd.f32 %v3489, %v5840
    %5842 = vmatmul.f32.gmra.mxu0 %v5803
    %v5843 = vpop.f32.mrf.mxu0
    %v5844 = vadd.f32 %v3490, %v5843
    %5845 = vmatmul.f32.gmra.mxu0 %v5806
    %v5846 = vpop.f32.mrf.mxu0
    %v5847 = vadd.f32 %v3491, %v5846
    %5848 = vmatmul.f32.gmra.mxu0 %v5809
    %v5849 = vpop.f32.mrf.mxu0
    %v5850 = vadd.f32 %v3492, %v5849
    %5851 = vdwg.mxu0
    %v5852 = vsub.f32 0.0, %v5829
    %v5853 = vsub.f32 0.0, %v5832
    %v5854 = vsub.f32 0.0, %v5835
    %v5855 = vsub.f32 0.0, %v5838
    %v5856 = vsub.f32 0.0, %v5841
    %v5857 = vsub.f32 0.0, %v5844
    %v5858 = vsub.f32 0.0, %v5847
    %v5859 = vsub.f32 0.0, %v5850
    %v5860 = vmul.f32 %v5852, 1.442695
    %v5861 = vpow.pop %v5860
    %v5862 = vmul.f32 %v5853, 1.442695
    %v5863 = vpow.pop %v5862
    %v5864 = vmul.f32 %v5854, 1.442695
    %v5865 = vpow.pop %v5864
    %v5866 = vmul.f32 %v5855, 1.442695
    %v5867 = vpow.pop %v5866
    %v5868 = vmul.f32 %v5856, 1.442695
    %v5869 = vpow.pop %v5868
    %v5870 = vmul.f32 %v5857, 1.442695
    %v5871 = vpow.pop %v5870
    %v5872 = vmul.f32 %v5858, 1.442695
    %v5873 = vpow.pop %v5872
    %v5874 = vmul.f32 %v5859, 1.442695
    %v5875 = vpow.pop %v5874
    %v5876 = vadd.f32 %v5861, 1.0
    %v5877 = vadd.f32 %v5863, 1.0
    %v5878 = vadd.f32 %v5865, 1.0
    %v5879 = vadd.f32 %v5867, 1.0
    %v5880 = vadd.f32 %v5869, 1.0
    %v5881 = vadd.f32 %v5871, 1.0
    %v5882 = vadd.f32 %v5873, 1.0
    %v5883 = vadd.f32 %v5875, 1.0
    %v5884 = vrcp.pop %v5876
    %v5885 = vrcp.pop %v5877
    %v5886 = vrcp.pop %v5878
    %v5887 = vrcp.pop %v5879
    %v5888 = vrcp.pop %v5880
    %v5889 = vrcp.pop %v5881
    %v5890 = vrcp.pop %v5882
    %v5891 = vrcp.pop %v5883
    %v5893 = vsel %vm1804, %v5884, 0
    %v5896 = vsel %vm1804, %v5885, 0
    %v5899 = vsel %vm1804, %v5886, 0
    %v5902 = vsel %vm1804, %v5887, 0
    %v5905 = vsel %vm1804, %v5888, 0
    %v5908 = vsel %vm1804, %v5889, 0
    %v5911 = vsel %vm1804, %v5890, 0
    %v5914 = vsel %vm1804, %v5891, 0
    %5916 = vmatpush.msra.mxu0 0.0
    %5917 = vmatpush.msra.mxu0 0.0
    %5918 = vmatpush.msra.mxu0 0.0
    %5919 = vmatpush.msra.mxu0 0.0
    %5920 = vmatpush.msra.mxu0 0.0
    %5921 = vmatpush.msra.mxu0 0.0
    %5922 = vmatpush.msra.mxu0 0.0
    %5923 = vmatpush.msra.mxu0 0.0
    %5924 = vmatpush.msra.mxu0 %v5198
    %5925 = vmatpush.msra.mxu0 %v3499
    %5926 = vmatpush.msra.mxu0 %v3498
    %5927 = vmatpush.msra.mxu0 %v3497
    %5928 = vmatpush.msra.mxu0 %v3496
    %5929 = vmatpush.msra.mxu0 %v3495
    %5930 = vmatpush.msra.mxu0 %v3494
    %5931 = vmatpush.msra.mxu0 %v3493
    %5932 = vmatmul.f32.gmra.mxu0 %v5893
    %v5933 = vpop.f32.mrf.mxu0
    %v5934 = vadd.f32 0.0, %v5933
    %5935 = vmatmul.f32.gmra.mxu0 %v5896
    %v5936 = vpop.f32.mrf.mxu0
    %v5937 = vadd.f32 0.0, %v5936
    %5938 = vmatmul.f32.gmra.mxu0 %v5899
    %v5939 = vpop.f32.mrf.mxu0
    %v5940 = vadd.f32 0.0, %v5939
    %5941 = vmatmul.f32.gmra.mxu0 %v5902
    %v5942 = vpop.f32.mrf.mxu0
    %v5943 = vadd.f32 0.0, %v5942
    %5944 = vmatmul.f32.gmra.mxu0 %v5905
    %v5945 = vpop.f32.mrf.mxu0
    %v5946 = vadd.f32 0.0, %v5945
    %5947 = vmatmul.f32.gmra.mxu0 %v5908
    %v5948 = vpop.f32.mrf.mxu0
    %v5949 = vadd.f32 0.0, %v5948
    %5950 = vmatmul.f32.gmra.mxu0 %v5911
    %v5951 = vpop.f32.mrf.mxu0
    %v5952 = vadd.f32 0.0, %v5951
    %5953 = vmatmul.f32.gmra.mxu0 %v5914
    %v5954 = vpop.f32.mrf.mxu0
    %v5955 = vadd.f32 0.0, %v5954
    %5956 = vdwg.mxu0
    %v5957 = vmul.f32 %v5934, 0.999995
    %v5958 = vmul.f32 %v5937, 0.999995
    %v5959 = vmul.f32 %v5940, 0.999995
    %v5960 = vmul.f32 %v5943, 0.999995
    %v5961 = vmul.f32 %v5946, 0.999995
    %v5962 = vmul.f32 %v5949, 0.999995
    %v5963 = vmul.f32 %v5952, 0.999995
    %v5964 = vmul.f32 %v5955, 0.999995
    %v5965 = vsel %vm1804, %v5957, -inf
    %5966 = vmax.xlane.f32.xlu0 %v5965
    %v5967 = vpop.xlane.xlu0 %5966
    %v5968 = vsel %vm1804, %v5958, -inf
    %5969 = vmax.xlane.f32.xlu0 %v5968
    %v5970 = vpop.xlane.xlu0 %5969
    %v5971 = vsel %vm1804, %v5959, -inf
    %5972 = vmax.xlane.f32.xlu0 %v5971
    %v5973 = vpop.xlane.xlu0 %5972
    %v5974 = vsel %vm1804, %v5960, -inf
    %5975 = vmax.xlane.f32.xlu0 %v5974
    %v5976 = vpop.xlane.xlu0 %5975
    %v5977 = vsel %vm1804, %v5961, -inf
    %5978 = vmax.xlane.f32.xlu0 %v5977
    %v5979 = vpop.xlane.xlu0 %5978
    %v5980 = vsel %vm1804, %v5962, -inf
    %5981 = vmax.xlane.f32.xlu0 %v5980
    %v5982 = vpop.xlane.xlu0 %5981
    %v5983 = vsel %vm1804, %v5963, -inf
    %5984 = vmax.xlane.f32.xlu0 %v5983
    %v5985 = vpop.xlane.xlu0 %5984
    %v5986 = vsel %vm1903, %v5964, -inf
    %5987 = vmax.xlane.f32.xlu0 %v5986
    %v5988 = vpop.xlane.xlu0 %5987
    %v5989 = vsub.f32 %v5957, %v5967
    %v5990 = vsub.f32 %v5958, %v5970
    %v5991 = vsub.f32 %v5959, %v5973
    %v5992 = vsub.f32 %v5960, %v5976
    %v5993 = vsub.f32 %v5961, %v5979
    %v5994 = vsub.f32 %v5962, %v5982
    %v5995 = vsub.f32 %v5963, %v5985
    %v5996 = vsub.f32 %v5964, %v5988
    %v5997 = vmul.f32 %v5989, 1.442695
    %v5998 = vpow.pop %v5997
    %v5999 = vmul.f32 %v5990, 1.442695
    %v6000 = vpow.pop %v5999
    %v6001 = vmul.f32 %v5991, 1.442695
    %v6002 = vpow.pop %v6001
    %v6003 = vmul.f32 %v5992, 1.442695
    %v6004 = vpow.pop %v6003
    %v6005 = vmul.f32 %v5993, 1.442695
    %v6006 = vpow.pop %v6005
    %v6007 = vmul.f32 %v5994, 1.442695
    %v6008 = vpow.pop %v6007
    %v6009 = vmul.f32 %v5995, 1.442695
    %v6010 = vpow.pop %v6009
    %v6011 = vmul.f32 %v5996, 1.442695
    %v6012 = vpow.pop %v6011
    %v6013 = vsel %vm1804, %v5998, 0.0
    %6014 = vadd.xlane.f32.xlu0 %v6013
    %v6015 = vpop.xlane.xlu0 %6014
    %v6016 = vsel %vm1804, %v6000, 0.0
    %6017 = vadd.xlane.f32.xlu0 %v6016
    %v6018 = vpop.xlane.xlu0 %6017
    %v6019 = vsel %vm1804, %v6002, 0.0
    %6020 = vadd.xlane.f32.xlu0 %v6019
    %v6021 = vpop.xlane.xlu0 %6020
    %v6022 = vsel %vm1804, %v6004, 0.0
    %6023 = vadd.xlane.f32.xlu0 %v6022
    %v6024 = vpop.xlane.xlu0 %6023
    %v6025 = vsel %vm1804, %v6006, 0.0
    %6026 = vadd.xlane.f32.xlu0 %v6025
    %v6027 = vpop.xlane.xlu0 %6026
    %v6028 = vsel %vm1804, %v6008, 0.0
    %6029 = vadd.xlane.f32.xlu0 %v6028
    %v6030 = vpop.xlane.xlu0 %6029
    %v6031 = vsel %vm1804, %v6010, 0.0
    %6032 = vadd.xlane.f32.xlu0 %v6031
    %v6033 = vpop.xlane.xlu0 %6032
    %v6034 = vsel %vm1903, %v6012, 0.0
    %6035 = vadd.xlane.f32.xlu0 %v6034
    %v6036 = vpop.xlane.xlu0 %6035
    %v6037 = vrcp.pop %v6015
    %v6038 = vrcp.pop %v6018
    %v6039 = vrcp.pop %v6021
    %v6040 = vrcp.pop %v6024
    %v6041 = vrcp.pop %v6027
    %v6042 = vrcp.pop %v6030
    %v6043 = vrcp.pop %v6033
    %v6044 = vrcp.pop %v6036
    %v6045 = vmul.f32 %v5998, %v6037
    %v6046 = vmul.f32 %v6000, %v6038
    %v6047 = vmul.f32 %v6002, %v6039
    %v6048 = vmul.f32 %v6004, %v6040
    %v6049 = vmul.f32 %v6006, %v6041
    %v6050 = vmul.f32 %v6008, %v6042
    %v6051 = vmul.f32 %v6010, %v6043
    %v6052 = vmul.f32 %v6012, %v6044
    %6053 = vrot.lane.b32.xlu0 %v4948, 68
    %v6054 = vpop.permute.xlu0 %6053
    %6055 = vrot.lane.b32.xlu0 %v4949, 68
    %v6056 = vpop.permute.xlu0 %6055
    %6057 = vrot.lane.b32.xlu0 %v4950, 68
    %v6058 = vpop.permute.xlu0 %6057
    %6059 = vrot.lane.b32.xlu0 %v4951, 68
    %v6060 = vpop.permute.xlu0 %6059
    %6061 = vrot.lane.b32.xlu0 %v4952, 68
    %v6062 = vpop.permute.xlu0 %6061
    %6063 = vrot.lane.b32.xlu0 %v4953, 68
    %v6064 = vpop.permute.xlu0 %6063
    %6065 = vrot.lane.b32.xlu0 %v4954, 68
    %v6066 = vpop.permute.xlu0 %6065
    %6067 = vrot.lane.b32.xlu0 %v4955, 68
    %v6068 = vpop.permute.xlu0 %6067
    %6069 = vrot.lane.b32.xlu0 %v4956, 68
    %v6070 = vpop.permute.xlu0 %6069
    %6071 = vrot.lane.b32.xlu0 %v4957, 68
    %v6072 = vpop.permute.xlu0 %6071
    %6073 = vrot.lane.b32.xlu0 %v4958, 68
    %v6074 = vpop.permute.xlu0 %6073
    %6075 = vrot.lane.b32.xlu0 %v4959, 68
    %v6076 = vpop.permute.xlu0 %6075
    %6077 = vrot.lane.b32.xlu0 %v4960, 68
    %v6078 = vpop.permute.xlu0 %6077
    %6079 = vrot.lane.b32.xlu0 %v4961, 68
    %v6080 = vpop.permute.xlu0 %6079
    %6081 = vrot.lane.b32.xlu0 %v4962, 68
    %v6082 = vpop.permute.xlu0 %6081
    %6083 = vrot.lane.b32.xlu0 %v4963, 68
    %v6084 = vpop.permute.xlu0 %6083
    %v6085 = vsel %vm1804, %v6054, 0
    %v6087 = vsel %vm1804, %v6056, 0
    %v6089 = vsel %vm1804, %v6058, 0
    %v6091 = vsel %vm1804, %v6060, 0
    %v6093 = vsel %vm1804, %v6062, 0
    %v6095 = vsel %vm1804, %v6064, 0
    %v6097 = vsel %vm1804, %v6066, 0
    %v6099 = vsel %vm1804, %v6068, 0
    %v6101 = vsel %vm1804, %v6070, 0
    %v6103 = vsel %vm1804, %v6072, 0
    %v6105 = vsel %vm1804, %v6074, 0
    %v6107 = vsel %vm1804, %v6076, 0
    %v6109 = vsel %vm1804, %v6078, 0
    %v6111 = vsel %vm1804, %v6080, 0
    %v6113 = vsel %vm1804, %v6082, 0
    %v6115 = vsel %vm1804, %v6084, 0
    %v6118 = vsel %vm1804, %v6045, 0
    %v6121 = vsel %vm1804, %v6046, 0
    %v6124 = vsel %vm1804, %v6047, 0
    %v6127 = vsel %vm1804, %v6048, 0
    %v6130 = vsel %vm1804, %v6049, 0
    %v6133 = vsel %vm1804, %v6050, 0
    %v6136 = vsel %vm1804, %v6051, 0
    %v6139 = vsel %vm1804, %v6052, 0
    %6141 = vmatpush.xpose.msra.mxu0 0.0
    %6142 = vmatpush.xpose.msra.mxu0 0.0
    %6143 = vmatpush.xpose.msra.mxu0 0.0
    %6144 = vmatpush.xpose.msra.mxu0 0.0
    %6145 = vmatpush.xpose.msra.mxu0 0.0
    %6146 = vmatpush.xpose.msra.mxu0 0.0
    %6147 = vmatpush.xpose.msra.mxu0 0.0
    %6148 = vmatpush.xpose.msra.mxu0 0.0
    %6149 = vmatpush.xpose.msra.mxu0 %v6139
    %6150 = vmatpush.xpose.msra.mxu0 %v6136
    %6151 = vmatpush.xpose.msra.mxu0 %v6133
    %6152 = vmatpush.xpose.msra.mxu0 %v6130
    %6153 = vmatpush.xpose.msra.mxu0 %v6127
    %6154 = vmatpush.xpose.msra.mxu0 %v6124
    %6155 = vmatpush.xpose.msra.mxu0 %v6121
    %6156 = vmatpush.xpose.msra.mxu0 %v6118
    %6157 = vmatmul.f32.gmra.mxu0 %v6085
    %v6158 = vpop.f32.mrf.mxu0
    %v6159 = vadd.f32 0.0, %v6158
    %6160 = vmatmul.f32.gmra.mxu0 %v6087
    %v6161 = vpop.f32.mrf.mxu0
    %v6162 = vadd.f32 0.0, %v6161
    %6163 = vmatmul.f32.gmra.mxu0 %v6089
    %v6164 = vpop.f32.mrf.mxu0
    %v6165 = vadd.f32 0.0, %v6164
    %6166 = vmatmul.f32.gmra.mxu0 %v6091
    %v6167 = vpop.f32.mrf.mxu0
    %v6168 = vadd.f32 0.0, %v6167
    %6169 = vmatmul.f32.gmra.mxu0 %v6093
    %v6170 = vpop.f32.mrf.mxu0
    %v6171 = vadd.f32 0.0, %v6170
    %6172 = vmatmul.f32.gmra.mxu0 %v6095
    %v6173 = vpop.f32.mrf.mxu0
    %v6174 = vadd.f32 0.0, %v6173
    %6175 = vmatmul.f32.gmra.mxu0 %v6097
    %v6176 = vpop.f32.mrf.mxu0
    %v6177 = vadd.f32 0.0, %v6176
    %6178 = vmatmul.f32.gmra.mxu0 %v6099
    %v6179 = vpop.f32.mrf.mxu0
    %v6180 = vadd.f32 0.0, %v6179
    %6181 = vmatmul.f32.gmra.mxu0 %v6101
    %v6182 = vpop.f32.mrf.mxu0
    %v6183 = vadd.f32 0.0, %v6182
    %6184 = vmatmul.f32.gmra.mxu0 %v6103
    %v6185 = vpop.f32.mrf.mxu0
    %v6186 = vadd.f32 0.0, %v6185
    %6187 = vmatmul.f32.gmra.mxu0 %v6105
    %v6188 = vpop.f32.mrf.mxu0
    %v6189 = vadd.f32 0.0, %v6188
    %6190 = vmatmul.f32.gmra.mxu0 %v6107
    %v6191 = vpop.f32.mrf.mxu0
    %v6192 = vadd.f32 0.0, %v6191
    %6193 = vmatmul.f32.gmra.mxu0 %v6109
    %v6194 = vpop.f32.mrf.mxu0
    %v6195 = vadd.f32 0.0, %v6194
    %6196 = vmatmul.f32.gmra.mxu0 %v6111
    %v6197 = vpop.f32.mrf.mxu0
    %v6198 = vadd.f32 0.0, %v6197
    %6199 = vmatmul.f32.gmra.mxu0 %v6113
    %v6200 = vpop.f32.mrf.mxu0
    %v6201 = vadd.f32 0.0, %v6200
    %6202 = vmatmul.f32.gmra.mxu0 %v6115
    %v6203 = vpop.f32.mrf.mxu0
    %v6204 = vadd.f32 0.0, %v6203
    %6205 = vdwg.mxu0
    %vm6206 = vcmp.ge.f32.partialorder %v6159, 0.0
    %vm6207 = vcmp.ge.f32.partialorder %v6162, 0.0
    %vm6208 = vcmp.ge.f32.partialorder %v6165, 0.0
    %vm6209 = vcmp.ge.f32.partialorder %v6168, 0.0
    %vm6210 = vcmp.ge.f32.partialorder %v6171, 0.0
    %vm6211 = vcmp.ge.f32.partialorder %v6174, 0.0
    %vm6212 = vcmp.ge.f32.partialorder %v6177, 0.0
    %vm6213 = vcmp.ge.f32.partialorder %v6180, 0.0
    %vm6214 = vcmp.ge.f32.partialorder %v6183, 0.0
    %vm6215 = vcmp.ge.f32.partialorder %v6186, 0.0
    %vm6216 = vcmp.ge.f32.partialorder %v6189, 0.0
    %vm6217 = vcmp.ge.f32.partialorder %v6192, 0.0
    %vm6218 = vcmp.ge.f32.partialorder %v6195, 0.0
    %vm6219 = vcmp.ge.f32.partialorder %v6198, 0.0
    %vm6220 = vcmp.ge.f32.partialorder %v6201, 0.0
    %vm6221 = vcmp.ge.f32.partialorder %v6204, 0.0
    %v6222 = vmul.f32 %v6159, 0.01
    %v6223 = vmul.f32 %v6162, 0.01
    %v6224 = vmul.f32 %v6165, 0.01
    %v6225 = vmul.f32 %v6168, 0.01
    %v6226 = vmul.f32 %v6171, 0.01
    %v6227 = vmul.f32 %v6174, 0.01
    %v6228 = vmul.f32 %v6177, 0.01
    %v6229 = vmul.f32 %v6180, 0.01
    %v6230 = vmul.f32 %v6183, 0.01
    %v6231 = vmul.f32 %v6186, 0.01
    %v6232 = vmul.f32 %v6189, 0.01
    %v6233 = vmul.f32 %v6192, 0.01
    %v6234 = vmul.f32 %v6195, 0.01
    %v6235 = vmul.f32 %v6198, 0.01
    %v6236 = vmul.f32 %v6201, 0.01
    %v6237 = vmul.f32 %v6204, 0.01
    %v6238 = vsel %vm6206, %v6159, %v6222
    %v6239 = vsel %vm6207, %v6162, %v6223
    %v6240 = vsel %vm6208, %v6165, %v6224
    %v6241 = vsel %vm6209, %v6168, %v6225
    %v6242 = vsel %vm6210, %v6171, %v6226
    %v6243 = vsel %vm6211, %v6174, %v6227
    %v6244 = vsel %vm6212, %v6177, %v6228
    %v6245 = vsel %vm6213, %v6180, %v6229
    %v6246 = vsel %vm6214, %v6183, %v6230
    %v6247 = vsel %vm6215, %v6186, %v6231
    %v6248 = vsel %vm6216, %v6189, %v6232
    %v6249 = vsel %vm6217, %v6192, %v6233
    %v6250 = vsel %vm6218, %v6195, %v6234
    %v6251 = vsel %vm6219, %v6198, %v6235
    %v6252 = vsel %vm6220, %v6201, %v6236
    %v6253 = vsel %vm6221, %v6204, %v6237
    %6270 = vrot.lane.b32.xlu0 %v3599, 68
    %v6271 = vpop.permute.xlu0 %6270
    %6272 = vrot.lane.b32.xlu0 %v3602, 68
    %v6273 = vpop.permute.xlu0 %6272
    %6274 = vrot.lane.b32.xlu0 %v3605, 68
    %v6275 = vpop.permute.xlu0 %6274
    %6276 = vrot.lane.b32.xlu0 %v3608, 68
    %v6277 = vpop.permute.xlu0 %6276
    %6278 = vrot.lane.b32.xlu0 %v3611, 68
    %v6279 = vpop.permute.xlu0 %6278
    %6280 = vrot.lane.b32.xlu0 %v3614, 68
    %v6281 = vpop.permute.xlu0 %6280
    %6282 = vrot.lane.b32.xlu0 %v3617, 68
    %v6283 = vpop.permute.xlu0 %6282
    %6284 = vrot.lane.b32.xlu0 %v3620, 68
    %v6285 = vpop.permute.xlu0 %6284
    %6286 = vrot.lane.b32.xlu0 %v3623, 68
    %v6287 = vpop.permute.xlu0 %6286
    %6288 = vrot.lane.b32.xlu0 %v3626, 68
    %v6289 = vpop.permute.xlu0 %6288
    %6290 = vrot.lane.b32.xlu0 %v3629, 68
    %v6291 = vpop.permute.xlu0 %6290
    %6292 = vrot.lane.b32.xlu0 %v3632, 68
    %v6293 = vpop.permute.xlu0 %6292
    %6294 = vrot.lane.b32.xlu0 %v3635, 68
    %v6295 = vpop.permute.xlu0 %6294
    %6296 = vrot.lane.b32.xlu0 %v3638, 68
    %v6297 = vpop.permute.xlu0 %6296
    %6298 = vrot.lane.b32.xlu0 %v3641, 68
    %v6299 = vpop.permute.xlu0 %6298
    %6300 = vrot.lane.b32.xlu0 %v3644, 68
    %v6301 = vpop.permute.xlu0 %6300
    %v6318 = vadd.f32 %v6238, %v6271
    %v6319 = vadd.f32 %v6239, %v6273
    %v6320 = vadd.f32 %v6240, %v6275
    %v6321 = vadd.f32 %v6241, %v6277
    %v6322 = vadd.f32 %v6242, %v6279
    %v6323 = vadd.f32 %v6243, %v6281
    %v6324 = vadd.f32 %v6244, %v6283
    %v6325 = vadd.f32 %v6245, %v6285
    %v6326 = vadd.f32 %v6246, %v6287
    %v6327 = vadd.f32 %v6247, %v6289
    %v6328 = vadd.f32 %v6248, %v6291
    %v6329 = vadd.f32 %v6249, %v6293
    %v6330 = vadd.f32 %v6250, %v6295
    %v6331 = vadd.f32 %v6251, %v6297
    %v6332 = vadd.f32 %v6252, %v6299
    %v6333 = vadd.f32 %v6253, %v6301
    %v6334 = vsel %vm1804, %v6318, 0.0
    %6335 = vadd.xlane.f32.xlu0 %v6334
    %v6336 = vpop.xlane.xlu0 %6335
    %v6337 = vsel %vm1804, %v6319, 0.0
    %6338 = vadd.xlane.f32.xlu0 %v6337
    %v6339 = vpop.xlane.xlu0 %6338
    %v6340 = vsel %vm1804, %v6320, 0.0
    %6341 = vadd.xlane.f32.xlu0 %v6340
    %v6342 = vpop.xlane.xlu0 %6341
    %v6343 = vsel %vm1804, %v6321, 0.0
    %6344 = vadd.xlane.f32.xlu0 %v6343
    %v6345 = vpop.xlane.xlu0 %6344
    %v6346 = vsel %vm1804, %v6322, 0.0
    %6347 = vadd.xlane.f32.xlu0 %v6346
    %v6348 = vpop.xlane.xlu0 %6347
    %v6349 = vsel %vm1804, %v6323, 0.0
    %6350 = vadd.xlane.f32.xlu0 %v6349
    %v6351 = vpop.xlane.xlu0 %6350
    %v6352 = vsel %vm1804, %v6324, 0.0
    %6353 = vadd.xlane.f32.xlu0 %v6352
    %v6354 = vpop.xlane.xlu0 %6353
    %v6355 = vsel %vm1804, %v6325, 0.0
    %6356 = vadd.xlane.f32.xlu0 %v6355
    %v6357 = vpop.xlane.xlu0 %6356
    %v6358 = vsel %vm1804, %v6326, 0.0
    %6359 = vadd.xlane.f32.xlu0 %v6358
    %v6360 = vpop.xlane.xlu0 %6359
    %v6361 = vsel %vm1804, %v6327, 0.0
    %6362 = vadd.xlane.f32.xlu0 %v6361
    %v6363 = vpop.xlane.xlu0 %6362
    %v6364 = vsel %vm1804, %v6328, 0.0
    %6365 = vadd.xlane.f32.xlu0 %v6364
    %v6366 = vpop.xlane.xlu0 %6365
    %v6367 = vsel %vm1804, %v6329, 0.0
    %6368 = vadd.xlane.f32.xlu0 %v6367
    %v6369 = vpop.xlane.xlu0 %6368
    %v6370 = vsel %vm1804, %v6330, 0.0
    %6371 = vadd.xlane.f32.xlu0 %v6370
    %v6372 = vpop.xlane.xlu0 %6371
    %v6373 = vsel %vm1804, %v6331, 0.0
    %6374 = vadd.xlane.f32.xlu0 %v6373
    %v6375 = vpop.xlane.xlu0 %6374
    %v6376 = vsel %vm1804, %v6332, 0.0
    %6377 = vadd.xlane.f32.xlu0 %v6376
    %v6378 = vpop.xlane.xlu0 %6377
    %v6379 = vsel %vm1804, %v6333, 0.0
    %6380 = vadd.xlane.f32.xlu0 %v6379
    %v6381 = vpop.xlane.xlu0 %6380
    %v6382 = vadd.f32 %v6336, %v6339
    %v6383 = vadd.f32 %v6382, %v6342
    %v6384 = vadd.f32 %v6383, %v6345
    %v6385 = vadd.f32 %v6384, %v6348
    %v6386 = vadd.f32 %v6385, %v6351
    %v6387 = vadd.f32 %v6386, %v6354
    %v6388 = vadd.f32 %v6387, %v6357
    %v6389 = vadd.f32 %v6388, %v6360
    %v6390 = vadd.f32 %v6389, %v6363
    %v6391 = vadd.f32 %v6390, %v6366
    %v6392 = vadd.f32 %v6391, %v6369
    %v6393 = vadd.f32 %v6392, %v6372
    %v6394 = vadd.f32 %v6393, %v6375
    %v6395 = vadd.f32 %v6394, %v6378
    %v6396 = vadd.f32 %v6395, %v6381
    %v6397 = vrot.slane %v6396, 4
    %v6398 = vadd.f32 %v6396, %v6397
    %v6399 = vrot.slane %v6398, 2
    %v6400 = vadd.f32 %v6398, %v6399
    %v6401 = vrot.slane %v6400, 1
    %v6402 = vadd.f32 %v6400, %v6401
    %v6403 = vmul.f32 %v6318, %v6318
    %v6404 = vmul.f32 %v6319, %v6319
    %v6405 = vmul.f32 %v6320, %v6320
    %v6406 = vmul.f32 %v6321, %v6321
    %v6407 = vmul.f32 %v6322, %v6322
    %v6408 = vmul.f32 %v6323, %v6323
    %v6409 = vmul.f32 %v6324, %v6324
    %v6410 = vmul.f32 %v6325, %v6325
    %v6411 = vmul.f32 %v6326, %v6326
    %v6412 = vmul.f32 %v6327, %v6327
    %v6413 = vmul.f32 %v6328, %v6328
    %v6414 = vmul.f32 %v6329, %v6329
    %v6415 = vmul.f32 %v6330, %v6330
    %v6416 = vmul.f32 %v6331, %v6331
    %v6417 = vmul.f32 %v6332, %v6332
    %v6418 = vmul.f32 %v6333, %v6333
    %v6419 = vsel %vm1804, %v6403, 0.0
    %6420 = vadd.xlane.f32.xlu0 %v6419
    %v6421 = vpop.xlane.xlu0 %6420
    %v6422 = vsel %vm1804, %v6404, 0.0
    %6423 = vadd.xlane.f32.xlu0 %v6422
    %v6424 = vpop.xlane.xlu0 %6423
    %v6425 = vsel %vm1804, %v6405, 0.0
    %6426 = vadd.xlane.f32.xlu0 %v6425
    %v6427 = vpop.xlane.xlu0 %6426
    %v6428 = vsel %vm1804, %v6406, 0.0
    %6429 = vadd.xlane.f32.xlu0 %v6428
    %v6430 = vpop.xlane.xlu0 %6429
    %v6431 = vsel %vm1804, %v6407, 0.0
    %6432 = vadd.xlane.f32.xlu0 %v6431
    %v6433 = vpop.xlane.xlu0 %6432
    %v6434 = vsel %vm1804, %v6408, 0.0
    %6435 = vadd.xlane.f32.xlu0 %v6434
    %v6436 = vpop.xlane.xlu0 %6435
    %v6437 = vsel %vm1804, %v6409, 0.0
    %6438 = vadd.xlane.f32.xlu0 %v6437
    %v6439 = vpop.xlane.xlu0 %6438
    %v6440 = vsel %vm1804, %v6410, 0.0
    %6441 = vadd.xlane.f32.xlu0 %v6440
    %v6442 = vpop.xlane.xlu0 %6441
    %v6443 = vsel %vm1804, %v6411, 0.0
    %6444 = vadd.xlane.f32.xlu0 %v6443
    %v6445 = vpop.xlane.xlu0 %6444
    %v6446 = vsel %vm1804, %v6412, 0.0
    %6447 = vadd.xlane.f32.xlu0 %v6446
    %v6448 = vpop.xlane.xlu0 %6447
    %v6449 = vsel %vm1804, %v6413, 0.0
    %6450 = vadd.xlane.f32.xlu0 %v6449
    %v6451 = vpop.xlane.xlu0 %6450
    %v6452 = vsel %vm1804, %v6414, 0.0
    %6453 = vadd.xlane.f32.xlu0 %v6452
    %v6454 = vpop.xlane.xlu0 %6453
    %v6455 = vsel %vm1804, %v6415, 0.0
    %6456 = vadd.xlane.f32.xlu0 %v6455
    %v6457 = vpop.xlane.xlu0 %6456
    %v6458 = vsel %vm1804, %v6416, 0.0
    %6459 = vadd.xlane.f32.xlu0 %v6458
    %v6460 = vpop.xlane.xlu0 %6459
    %v6461 = vsel %vm1804, %v6417, 0.0
    %6462 = vadd.xlane.f32.xlu0 %v6461
    %v6463 = vpop.xlane.xlu0 %6462
    %v6464 = vsel %vm1804, %v6418, 0.0
    %6465 = vadd.xlane.f32.xlu0 %v6464
    %v6466 = vpop.xlane.xlu0 %6465
    %v6467 = vadd.f32 %v6421, %v6424
    %v6468 = vadd.f32 %v6467, %v6427
    %v6469 = vadd.f32 %v6468, %v6430
    %v6470 = vadd.f32 %v6469, %v6433
    %v6471 = vadd.f32 %v6470, %v6436
    %v6472 = vadd.f32 %v6471, %v6439
    %v6473 = vadd.f32 %v6472, %v6442
    %v6474 = vadd.f32 %v6473, %v6445
    %v6475 = vadd.f32 %v6474, %v6448
    %v6476 = vadd.f32 %v6475, %v6451
    %v6477 = vadd.f32 %v6476, %v6454
    %v6478 = vadd.f32 %v6477, %v6457
    %v6479 = vadd.f32 %v6478, %v6460
    %v6480 = vadd.f32 %v6479, %v6463
    %v6481 = vadd.f32 %v6480, %v6466
    %v6482 = vrot.slane %v6481, 4
    %v6483 = vadd.f32 %v6481, %v6482
    %v6484 = vrot.slane %v6483, 2
    %v6485 = vadd.f32 %v6483, %v6484
    %v6486 = vrot.slane %v6485, 1
    %v6487 = vadd.f32 %v6485, %v6486
    %v6488 = vmul.f32 %v6402, %v2332
    %v6489 = vmul.f32 %v6487, %v2332
    %v6490 = vmul.f32 %v6488, %v6488
    %v6491 = vsub.f32 %v6489, %v6490
    %v6492 = vsub.f32 %v6318, %v6488
    %v6493 = vsub.f32 %v6319, %v6488
    %v6494 = vsub.f32 %v6320, %v6488
    %v6495 = vsub.f32 %v6321, %v6488
    %v6496 = vsub.f32 %v6322, %v6488
    %v6497 = vsub.f32 %v6323, %v6488
    %v6498 = vsub.f32 %v6324, %v6488
    %v6499 = vsub.f32 %v6325, %v6488
    %v6500 = vsub.f32 %v6326, %v6488
    %v6501 = vsub.f32 %v6327, %v6488
    %v6502 = vsub.f32 %v6328, %v6488
    %v6503 = vsub.f32 %v6329, %v6488
    %v6504 = vsub.f32 %v6330, %v6488
    %v6505 = vsub.f32 %v6331, %v6488
    %v6506 = vsub.f32 %v6332, %v6488
    %v6507 = vsub.f32 %v6333, %v6488
    %v6508 = vadd.f32 %v6491, 1e-05
    %v6509 = vrsqrt.pop %v6508
    %v6510 = vmul.f32 %v6509, %v6508
    %v6511 = vmul.f32 %v6510, %v6509
    %v6512 = vmul.f32 0.5, %v6511
    %v6513 = vsub.f32 1.5, %v6512
    %v6514 = vmul.f32 %v6509, %v6513
    %vm6515 = vweird.f32 %v6508
    %vm6516 = vweird.f32 %v6509
    %vm6517 = vmor %vm6515, %vm6516
    %v6518 = vsel %vm6517, %v6509, %v6514
    %v6519 = vmul.f32 %v6492, %v6518
    %v6520 = vmul.f32 %v6493, %v6518
    %v6521 = vmul.f32 %v6494, %v6518
    %v6522 = vmul.f32 %v6495, %v6518
    %v6523 = vmul.f32 %v6496, %v6518
    %v6524 = vmul.f32 %v6497, %v6518
    %v6525 = vmul.f32 %v6498, %v6518
    %v6526 = vmul.f32 %v6499, %v6518
    %v6527 = vmul.f32 %v6500, %v6518
    %v6528 = vmul.f32 %v6501, %v6518
    %v6529 = vmul.f32 %v6502, %v6518
    %v6530 = vmul.f32 %v6503, %v6518
    %v6531 = vmul.f32 %v6504, %v6518
    %v6532 = vmul.f32 %v6505, %v6518
    %v6533 = vmul.f32 %v6506, %v6518
    %v6534 = vmul.f32 %v6507, %v6518
    %6551 = vrot.lane.b32.xlu0 %v6519, 60
    %v6552 = vpop.permute.xlu0 %6551
    %6553 = vrot.lane.b32.xlu0 %v6520, 60
    %v6554 = vpop.permute.xlu0 %6553
    %6555 = vrot.lane.b32.xlu0 %v6521, 60
    %v6556 = vpop.permute.xlu0 %6555
    %6557 = vrot.lane.b32.xlu0 %v6522, 60
    %v6558 = vpop.permute.xlu0 %6557
    %6559 = vrot.lane.b32.xlu0 %v6523, 60
    %v6560 = vpop.permute.xlu0 %6559
    %6561 = vrot.lane.b32.xlu0 %v6524, 60
    %v6562 = vpop.permute.xlu0 %6561
    %6563 = vrot.lane.b32.xlu0 %v6525, 60
    %v6564 = vpop.permute.xlu0 %6563
    %6565 = vrot.lane.b32.xlu0 %v6526, 60
    %v6566 = vpop.permute.xlu0 %6565
    %6567 = vrot.lane.b32.xlu0 %v6527, 60
    %v6568 = vpop.permute.xlu0 %6567
    %6569 = vrot.lane.b32.xlu0 %v6528, 60
    %v6570 = vpop.permute.xlu0 %6569
    %6571 = vrot.lane.b32.xlu0 %v6529, 60
    %v6572 = vpop.permute.xlu0 %6571
    %6573 = vrot.lane.b32.xlu0 %v6530, 60
    %v6574 = vpop.permute.xlu0 %6573
    %6575 = vrot.lane.b32.xlu0 %v6531, 60
    %v6576 = vpop.permute.xlu0 %6575
    %6577 = vrot.lane.b32.xlu0 %v6532, 60
    %v6578 = vpop.permute.xlu0 %6577
    %6579 = vrot.lane.b32.xlu0 %v6533, 60
    %v6580 = vpop.permute.xlu0 %6579
    %6581 = vrot.lane.b32.xlu0 %v6534, 60
    %v6582 = vpop.permute.xlu0 %6581
    %v6599 = vsel %vm1804, %v5723, %v6552
    %v6600 = vsel %vm1804, %v5724, %v6554
    %v6601 = vsel %vm1804, %v5725, %v6556
    %v6602 = vsel %vm1804, %v5726, %v6558
    %v6603 = vsel %vm1804, %v5727, %v6560
    %v6604 = vsel %vm1804, %v5728, %v6562
    %v6605 = vsel %vm1804, %v5729, %v6564
    %v6606 = vsel %vm1804, %v5730, %v6566
    %v6607 = vsel %vm1804, %v5731, %v6568
    %v6608 = vsel %vm1804, %v5732, %v6570
    %v6609 = vsel %vm1804, %v5733, %v6572
    %v6610 = vsel %vm1804, %v5734, %v6574
    %v6611 = vsel %vm1804, %v5735, %v6576
    %v6612 = vsel %vm1804, %v5736, %v6578
    %v6613 = vsel %vm1804, %v5737, %v6580
    %v6614 = vsel %vm1804, %v5738, %v6582
    %v6615 = vld [vmem:[%s25] sm:$0xff]
    %v6616 = vld [vmem:[%s25 + $0x8] sm:$0xff]
    %v6617 = vld [vmem:[%s25 + $0x10] sm:$0xff]
    %v6618 = vld [vmem:[%s25 + $0x18] sm:$0xff]
    %v6619 = vld [vmem:[%s25 + $0x20] sm:$0xff]
    %6620 = vmatpush.msra.mxu0 %v6614
    %6621 = vmatpush.msra.mxu0 %v6613
    %6622 = vmatpush.msra.mxu0 %v6612
    %6623 = vmatpush.msra.mxu0 %v6611
    %6624 = vmatpush.msra.mxu0 %v6610
    %6625 = vmatpush.msra.mxu0 %v6609
    %6626 = vmatpush.msra.mxu0 %v6608
    %6627 = vmatpush.msra.mxu0 %v6607
    %6628 = vmatpush.msra.mxu0 %v6606
    %6629 = vmatpush.msra.mxu0 %v6605
    %6630 = vmatpush.msra.mxu0 %v6604
    %6631 = vmatpush.msra.mxu0 %v6603
    %6632 = vmatpush.msra.mxu0 %v6602
    %6633 = vmatpush.msra.mxu0 %v6601
    %6634 = vmatpush.msra.mxu0 %v6600
    %6635 = vmatpush.msra.mxu0 %v6599
    %6636 = vmatmul.f32.gmra.mxu0 %v6615
    %v6637 = vpop.f32.mrf.mxu0
    %v6638 = vadd.f32 0.0, %v6637
    %6639 = vmatmul.f32.gmra.mxu0 %v6616
    %v6640 = vpop.f32.mrf.mxu0
    %v6641 = vadd.f32 0.0, %v6640
    %6642 = vmatmul.f32.gmra.mxu0 %v6617
    %v6643 = vpop.f32.mrf.mxu0
    %v6644 = vadd.f32 0.0, %v6643
    %6645 = vmatmul.f32.gmra.mxu0 %v6618
    %v6646 = vpop.f32.mrf.mxu0
    %v6647 = vadd.f32 0.0, %v6646
    %6648 = vmatmul.f32.gmra.mxu0 %v6619
    %v6649 = vpop.f32.mrf.mxu0
    %v6650 = vadd.f32 0.0, %v6649
    %6651 = vdwg.mxu0
    %v6652 = vld [vmem:[%s26] sm:$0xff]
    %v6653 = vld [vmem:[%s26 + $0x8] sm:$0xff]
    %v6654 = vld [vmem:[%s26 + $0x10] sm:$0xff]
    %v6655 = vld [vmem:[%s26 + $0x18] sm:$0xff]
    %v6656 = vld [vmem:[%s26 + $0x20] sm:$0xff]
    %v6657 = vld [vmem:[%s26 + $0x28] sm:$0xff]
    %v6658 = vld [vmem:[%s26 + $0x30] sm:$0xff]
    %v6659 = vld [vmem:[%s26 + $0x38] sm:$0xf]
    %v6660 = vld [vmem:[%s26 + $0x40] sm:$0xff]
    %v6661 = vld [vmem:[%s26 + $0x48] sm:$0xff]
    %v6662 = vld [vmem:[%s26 + $0x50] sm:$0xff]
    %v6663 = vld [vmem:[%s26 + $0x58] sm:$0xff]
    %v6664 = vld [vmem:[%s26 + $0x60] sm:$0xff]
    %v6665 = vld [vmem:[%s26 + $0x68] sm:$0xff]
    %v6666 = vld [vmem:[%s26 + $0x70] sm:$0xff]
    %v6667 = vld [vmem:[%s26 + $0x78] sm:$0xf]
    %v6668 = vld [vmem:[%s26 + $0x80] sm:$0xff]
    %v6669 = vld [vmem:[%s26 + $0x88] sm:$0xff]
    %v6670 = vld [vmem:[%s26 + $0x90] sm:$0xff]
    %v6671 = vld [vmem:[%s26 + $0x98] sm:$0xff]
    %v6672 = vld [vmem:[%s26 + $0xa0] sm:$0xff]
    %v6673 = vld [vmem:[%s26 + $0xa8] sm:$0xff]
    %v6674 = vld [vmem:[%s26 + $0xb0] sm:$0xff]
    %v6675 = vld [vmem:[%s26 + $0xb8] sm:$0xf]
    %v6676 = vld [vmem:[%s26 + $0xc0] sm:$0xff]
    %v6677 = vld [vmem:[%s26 + $0xc8] sm:$0xff]
    %v6678 = vld [vmem:[%s26 + $0xd0] sm:$0xff]
    %v6679 = vld [vmem:[%s26 + $0xd8] sm:$0xff]
    %v6680 = vld [vmem:[%s26 + $0xe0] sm:$0xff]
    %v6681 = vld [vmem:[%s26 + $0xe8] sm:$0xff]
    %v6682 = vld [vmem:[%s26 + $0xf0] sm:$0xff]
    %v6683 = vld [vmem:[%s26 + $0xf8] sm:$0xf]
    %v6684 = vld [vmem:[%s26 + $0x100] sm:$0xff]
    %v6685 = vld [vmem:[%s26 + $0x108] sm:$0xff]
    %v6686 = vld [vmem:[%s26 + $0x110] sm:$0xff]
    %v6687 = vld [vmem:[%s26 + $0x118] sm:$0xff]
    %v6688 = vld [vmem:[%s26 + $0x120] sm:$0xff]
    %v6689 = vld [vmem:[%s26 + $0x128] sm:$0xff]
    %v6690 = vld [vmem:[%s26 + $0x130] sm:$0xff]
    %v6691 = vld [vmem:[%s26 + $0x138] sm:$0xf]
    %v6692 = vld [vmem:[#allocation2] sm:$0x1]
    %v6694 = vsel %vm1804, %v6641, 0
    %v6697 = vsel %vm1829, %v6667, 0
    %6699 = vmatpush.msra.mxu0 0.0
    %6700 = vmatpush.msra.mxu0 0.0
    %6701 = vmatpush.msra.mxu0 0.0
    %6702 = vmatpush.msra.mxu0 0.0
    %6703 = vmatpush.msra.mxu0 0.0
    %6704 = vmatpush.msra.mxu0 0.0
    %6705 = vmatpush.msra.mxu0 0.0
    %6706 = vmatpush.msra.mxu0 0.0
    %6707 = vmatpush.msra.mxu0 %v6697
    %6708 = vmatpush.msra.mxu0 %v6666
    %6709 = vmatpush.msra.mxu0 %v6665
    %6710 = vmatpush.msra.mxu0 %v6664
    %6711 = vmatpush.msra.mxu0 %v6663
    %6712 = vmatpush.msra.mxu0 %v6662
    %6713 = vmatpush.msra.mxu0 %v6661
    %6714 = vmatpush.msra.mxu0 %v6660
    %6715 = vmatmul.f32.gmra.mxu0 %v6694
    %v6716 = vpop.f32.mrf.mxu0
    %v6717 = vadd.f32 0.0, %v6716
    %6718 = vdwg.mxu0
    %v6720 = vsel %vm1804, %v6638, 0
    %v6723 = vsel %vm1829, %v6659, 0
    %6725 = vmatpush.msra.mxu0 0.0
    %6726 = vmatpush.msra.mxu0 0.0
    %6727 = vmatpush.msra.mxu0 0.0
    %6728 = vmatpush.msra.mxu0 0.0
    %6729 = vmatpush.msra.mxu0 0.0
    %6730 = vmatpush.msra.mxu0 0.0
    %6731 = vmatpush.msra.mxu0 0.0
    %6732 = vmatpush.msra.mxu0 0.0
    %6733 = vmatpush.msra.mxu0 %v6723
    %6734 = vmatpush.msra.mxu0 %v6658
    %6735 = vmatpush.msra.mxu0 %v6657
    %6736 = vmatpush.msra.mxu0 %v6656
    %6737 = vmatpush.msra.mxu0 %v6655
    %6738 = vmatpush.msra.mxu0 %v6654
    %6739 = vmatpush.msra.mxu0 %v6653
    %6740 = vmatpush.msra.mxu0 %v6652
    %6741 = vmatmul.f32.gmra.mxu0 %v6720
    %v6742 = vpop.f32.mrf.mxu0
    %v6743 = vadd.f32 %v6717, %v6742
    %6744 = vdwg.mxu0
    %v6746 = vsel %vm1804, %v6644, 0
    %v6749 = vsel %vm1829, %v6675, 0
    %6751 = vmatpush.msra.mxu0 0.0
    %6752 = vmatpush.msra.mxu0 0.0
    %6753 = vmatpush.msra.mxu0 0.0
    %6754 = vmatpush.msra.mxu0 0.0
    %6755 = vmatpush.msra.mxu0 0.0
    %6756 = vmatpush.msra.mxu0 0.0
    %6757 = vmatpush.msra.mxu0 0.0
    %6758 = vmatpush.msra.mxu0 0.0
    %6759 = vmatpush.msra.mxu0 %v6749
    %6760 = vmatpush.msra.mxu0 %v6674
    %6761 = vmatpush.msra.mxu0 %v6673
    %6762 = vmatpush.msra.mxu0 %v6672
    %6763 = vmatpush.msra.mxu0 %v6671
    %6764 = vmatpush.msra.mxu0 %v6670
    %6765 = vmatpush.msra.mxu0 %v6669
    %6766 = vmatpush.msra.mxu0 %v6668
    %6767 = vmatmul.f32.gmra.mxu0 %v6746
    %v6768 = vpop.f32.mrf.mxu0
    %v6769 = vadd.f32 0.0, %v6768
    %6770 = vdwg.mxu0
    %v6771 = vadd.f32 %v6743, %v6769
    %v6773 = vsel %vm1804, %v6647, 0
    %v6776 = vsel %vm1829, %v6683, 0
    %6778 = vmatpush.msra.mxu0 0.0
    %6779 = vmatpush.msra.mxu0 0.0
    %6780 = vmatpush.msra.mxu0 0.0
    %6781 = vmatpush.msra.mxu0 0.0
    %6782 = vmatpush.msra.mxu0 0.0
    %6783 = vmatpush.msra.mxu0 0.0
    %6784 = vmatpush.msra.mxu0 0.0
    %6785 = vmatpush.msra.mxu0 0.0
    %6786 = vmatpush.msra.mxu0 %v6776
    %6787 = vmatpush.msra.mxu0 %v6682
    %6788 = vmatpush.msra.mxu0 %v6681
    %6789 = vmatpush.msra.mxu0 %v6680
    %6790 = vmatpush.msra.mxu0 %v6679
    %6791 = vmatpush.msra.mxu0 %v6678
    %6792 = vmatpush.msra.mxu0 %v6677
    %6793 = vmatpush.msra.mxu0 %v6676
    %6794 = vmatmul.f32.gmra.mxu0 %v6773
    %v6795 = vpop.f32.mrf.mxu0
    %v6796 = vadd.f32 0.0, %v6795
    %6797 = vdwg.mxu0
    %v6798 = vadd.f32 %v6771, %v6796
    %v6800 = vsel %vm1804, %v6650, 0
    %v6803 = vsel %vm1829, %v6691, 0
    %6805 = vmatpush.msra.mxu0 0.0
    %6806 = vmatpush.msra.mxu0 0.0
    %6807 = vmatpush.msra.mxu0 0.0
    %6808 = vmatpush.msra.mxu0 0.0
    %6809 = vmatpush.msra.mxu0 0.0
    %6810 = vmatpush.msra.mxu0 0.0
    %6811 = vmatpush.msra.mxu0 0.0
    %6812 = vmatpush.msra.mxu0 0.0
    %6813 = vmatpush.msra.mxu0 %v6803
    %6814 = vmatpush.msra.mxu0 %v6690
    %6815 = vmatpush.msra.mxu0 %v6689
    %6816 = vmatpush.msra.mxu0 %v6688
    %6817 = vmatpush.msra.mxu0 %v6687
    %6818 = vmatpush.msra.mxu0 %v6686
    %6819 = vmatpush.msra.mxu0 %v6685
    %6820 = vmatpush.msra.mxu0 %v6684
    %6821 = vmatmul.f32.gmra.mxu0 %v6800
    %v6822 = vpop.f32.mrf.mxu0
    %v6823 = vadd.f32 0.0, %v6822
    %6824 = vdwg.mxu0
    %v6825 = vadd.f32 %v6798, %v6823
    %v6827 = vperm.slane %v6692, 0
    %6828 = vset.pattern.permute.xlu0 0
    %6829 = vperm.xlu0 %6828, %v6827
    %v6830 = vpop.permute.xlu0 %6829
    %v6832 = vadd.f32 %v6825, %v6830
    %vm6833 = vcmask 97280
    %6834 = vst.msk [vmem:[#allocation3] sm:$0xff] %vm6833, %v6832
    %6835 = vrot.lane.b32.xlu0 %v6641, 68
    %v6836 = vpop.permute.xlu0 %6835
    %v6837 = vsel %vm1804, %v6836, 0
    %6839 = vmatpush.msra.mxu0 0.0
    %6840 = vmatpush.msra.mxu0 0.0
    %6841 = vmatpush.msra.mxu0 0.0
    %6842 = vmatpush.msra.mxu0 0.0
    %6843 = vmatpush.msra.mxu0 0.0
    %6844 = vmatpush.msra.mxu0 0.0
    %6845 = vmatpush.msra.mxu0 0.0
    %6846 = vmatpush.msra.mxu0 0.0
    %6847 = vmatpush.msra.mxu0 %v6697
    %6848 = vmatpush.msra.mxu0 %v6666
    %6849 = vmatpush.msra.mxu0 %v6665
    %6850 = vmatpush.msra.mxu0 %v6664
    %6851 = vmatpush.msra.mxu0 %v6663
    %6852 = vmatpush.msra.mxu0 %v6662
    %6853 = vmatpush.msra.mxu0 %v6661
    %6854 = vmatpush.msra.mxu0 %v6660
    %6855 = vmatmul.f32.gmra.mxu0 %v6837
    %v6856 = vpop.f32.mrf.mxu0
    %v6857 = vadd.f32 0.0, %v6856
    %6858 = vdwg.mxu0
    %6859 = vrot.lane.b32.xlu0 %v6638, 68
    %v6860 = vpop.permute.xlu0 %6859
    %v6861 = vsel %vm1804, %v6860, 0
    %6863 = vmatpush.msra.mxu0 0.0
    %6864 = vmatpush.msra.mxu0 0.0
    %6865 = vmatpush.msra.mxu0 0.0
    %6866 = vmatpush.msra.mxu0 0.0
    %6867 = vmatpush.msra.mxu0 0.0
    %6868 = vmatpush.msra.mxu0 0.0
    %6869 = vmatpush.msra.mxu0 0.0
    %6870 = vmatpush.msra.mxu0 0.0
    %6871 = vmatpush.msra.mxu0 %v6723
    %6872 = vmatpush.msra.mxu0 %v6658
    %6873 = vmatpush.msra.mxu0 %v6657
    %6874 = vmatpush.msra.mxu0 %v6656
    %6875 = vmatpush.msra.mxu0 %v6655
    %6876 = vmatpush.msra.mxu0 %v6654
    %6877 = vmatpush.msra.mxu0 %v6653
    %6878 = vmatpush.msra.mxu0 %v6652
    %6879 = vmatmul.f32.gmra.mxu0 %v6861
    %v6880 = vpop.f32.mrf.mxu0
    %v6881 = vadd.f32 %v6857, %v6880
    %6882 = vdwg.mxu0
    %6883 = vrot.lane.b32.xlu0 %v6644, 68
    %v6884 = vpop.permute.xlu0 %6883
    %v6885 = vsel %vm1804, %v6884, 0
    %6887 = vmatpush.msra.mxu0 0.0
    %6888 = vmatpush.msra.mxu0 0.0
    %6889 = vmatpush.msra.mxu0 0.0
    %6890 = vmatpush.msra.mxu0 0.0
    %6891 = vmatpush.msra.mxu0 0.0
    %6892 = vmatpush.msra.mxu0 0.0
    %6893 = vmatpush.msra.mxu0 0.0
    %6894 = vmatpush.msra.mxu0 0.0
    %6895 = vmatpush.msra.mxu0 %v6749
    %6896 = vmatpush.msra.mxu0 %v6674
    %6897 = vmatpush.msra.mxu0 %v6673
    %6898 = vmatpush.msra.mxu0 %v6672
    %6899 = vmatpush.msra.mxu0 %v6671
    %6900 = vmatpush.msra.mxu0 %v6670
    %6901 = vmatpush.msra.mxu0 %v6669
    %6902 = vmatpush.msra.mxu0 %v6668
    %6903 = vmatmul.f32.gmra.mxu0 %v6885
    %v6904 = vpop.f32.mrf.mxu0
    %v6905 = vadd.f32 0.0, %v6904
    %6906 = vdwg.mxu0
    %v6907 = vadd.f32 %v6881, %v6905
    %6908 = vrot.lane.b32.xlu0 %v6647, 68
    %v6909 = vpop.permute.xlu0 %6908
    %v6910 = vsel %vm1804, %v6909, 0
    %6912 = vmatpush.msra.mxu0 0.0
    %6913 = vmatpush.msra.mxu0 0.0
    %6914 = vmatpush.msra.mxu0 0.0
    %6915 = vmatpush.msra.mxu0 0.0
    %6916 = vmatpush.msra.mxu0 0.0
    %6917 = vmatpush.msra.mxu0 0.0
    %6918 = vmatpush.msra.mxu0 0.0
    %6919 = vmatpush.msra.mxu0 0.0
    %6920 = vmatpush.msra.mxu0 %v6776
    %6921 = vmatpush.msra.mxu0 %v6682
    %6922 = vmatpush.msra.mxu0 %v6681
    %6923 = vmatpush.msra.mxu0 %v6680
    %6924 = vmatpush.msra.mxu0 %v6679
    %6925 = vmatpush.msra.mxu0 %v6678
    %6926 = vmatpush.msra.mxu0 %v6677
    %6927 = vmatpush.msra.mxu0 %v6676
    %6928 = vmatmul.f32.gmra.mxu0 %v6910
    %v6929 = vpop.f32.mrf.mxu0
    %v6930 = vadd.f32 0.0, %v6929
    %6931 = vdwg.mxu0
    %v6932 = vadd.f32 %v6907, %v6930
    %6933 = vrot.lane.b32.xlu0 %v6650, 68
    %v6934 = vpop.permute.xlu0 %6933
    %v6935 = vsel %vm1804, %v6934, 0
    %6937 = vmatpush.msra.mxu0 0.0
    %6938 = vmatpush.msra.mxu0 0.0
    %6939 = vmatpush.msra.mxu0 0.0
    %6940 = vmatpush.msra.mxu0 0.0
    %6941 = vmatpush.msra.mxu0 0.0
    %6942 = vmatpush.msra.mxu0 0.0
    %6943 = vmatpush.msra.mxu0 0.0
    %6944 = vmatpush.msra.mxu0 0.0
    %6945 = vmatpush.msra.mxu0 %v6803
    %6946 = vmatpush.msra.mxu0 %v6690
    %6947 = vmatpush.msra.mxu0 %v6689
    %6948 = vmatpush.msra.mxu0 %v6688
    %6949 = vmatpush.msra.mxu0 %v6687
    %6950 = vmatpush.msra.mxu0 %v6686
    %6951 = vmatpush.msra.mxu0 %v6685
    %6952 = vmatpush.msra.mxu0 %v6684
    %6953 = vmatmul.f32.gmra.mxu0 %v6935
    %v6954 = vpop.f32.mrf.mxu0
    %v6955 = vadd.f32 0.0, %v6954
    %6956 = vdwg.mxu0
    %v6957 = vadd.f32 %v6932, %v6955
    %v6958 = vadd.f32 %v6957, %v6830
    %s6959 = scalar_lea.vmem [#allocation3], 8
    %6960 = vst.msk [vmem:[%s6959] sm:$0xff] %vm6833, %v6958
    // Predicated region
    $region114: #{dgcn_mask_forward.1} parent=1 // pred_check
      _
    $region115: #{dgcn_mask_forward.1} parent=1 // pred_check_branch
      %6962 = sbr.rel (0) target = $region117
    $region116: #{dgcn_mask_forward.1} parent=1 // pred_region
      %6964 = vsyncadd [#allocation4], 0
      %s6965 = sshll.u32 [#allocation3], 4
      %s6966 = int_to_ptr.vmem [resolvable:$true] %s6965
      %s6967 = sshll.u32 %s28, 4
      %s6968 = int_to_ptr.hbm [resolvable:$true] %s6967
      %6973 = dma.vmem_to_hbm [thread:$0]  %s6966, 256, %s6968, [#allocation4], 128, 128, 8
    $region117: #{dgcn_mask_forward.1} parent=1 // pred_fallthru
      _
    // Predicated region
    $region118: #{dgcn_mask_forward.1} parent=1 // pred_check
      _
    $region119: #{dgcn_mask_forward.1} parent=1 // pred_check_branch
      %6975 = sbr.rel (0) target = $region121
    $region120: #{dgcn_mask_forward.1} parent=1 // pred_region
      %6977 = dma.done [#allocation4], 256
    $region121: #{dgcn_mask_forward.1} parent=1 // pred_fallthru
      _
    %6978 = vsyncpa [#allocation4], 1

</llo_original>
